<compile_context>
chip_gen: v7x
topology: tpu7x:2x2x1
jax: 0.10.0
libtpu: 0.0.40
codegen_flags: <defaults>
</compile_context>

<pallas_src>
import functools

import jax
import jax.numpy as jnp
from jax.experimental import pallas as pl
from jax.experimental.pallas import tpu as pltpu


# ----------------------------------------------------------------------------
# Fused C2 kernel (one grid step per batch element)
# ----------------------------------------------------------------------------
def _c2_fused_kernel(x_ref, w_cv1_ref, b_cv1_ref, w_m_ref, b_m_ref,
                     w_cv2_ref, b_cv2_ref, o_ref, pad_ref,
                     *, H, W, c, c2, n, shortcut):
    """Fused C2 forward for one batch element.

    x_ref:     (1, H*W, c1)        input pixels, channels on lanes
    w_cv1_ref: (c1, 2c)            folded 1x1 conv+BN weight
    b_cv1_ref: (1, 2c)             folded bias
    w_m_ref:   (n*2*9, c, c)       folded 3x3 weights, tap-major (i*3+j)
    b_m_ref:   (n*2, 1, c)         folded biases of the bottleneck convs
    w_cv2_ref: (2c, c2)            folded 1x1 conv+BN weight
    b_cv2_ref: (1, c2)             folded bias
    o_ref:     (1, H, W, c2)       output (NHWC)
    pad_ref:   (H+2, W+2, c) f32   VMEM halo buffer for the 3x3 convs
    """
    N = H * W
    x = x_ref[0]                                            # (N, c1)

    # ---- cv1: 1x1 conv + BN(folded) + SiLU : one MXU matmul, M = N --------
    y = jnp.dot(x, w_cv1_ref[...], preferred_element_type=jnp.float32)
    y = y + b_cv1_ref[...]
    y = y * jax.nn.sigmoid(y)                               # SiLU

    a = y[:, :c]                                            # chunk(2, dim=C)
    b_half = y[:, c:]

    # Zero the halo buffer once per invocation: the border must be zero
    # (pad=1) and the interior is fully overwritten before each conv.
    pad_ref[...] = jnp.zeros_like(pad_ref)

    def conv3x3_bn_silu(v, conv_idx):
        # v: (N, c) f32.  3x3 conv, stride 1, pad 1 == 9 accumulated matmuls.
        pad_ref[1:H + 1, 1:W + 1, :] = v.reshape(H, W, c).astype(pad_ref.dtype)
        acc = jnp.zeros((N, c), jnp.float32)
        for i in range(3):                                  # static unroll
            for j in range(3):
                patch = pad_ref[i:i + H, j:j + W, :].reshape(N, c)
                acc = acc + jnp.dot(patch, w_m_ref[conv_idx * 9 + i * 3 + j],
                                    preferred_element_type=jnp.float32)
        acc = acc + b_m_ref[conv_idx]                       # (1, c) broadcast
        return acc * jax.nn.sigmoid(acc)                    # SiLU

    # ---- m = Sequential(Bottleneck x n), e=1.0, k=(3,3),(3,3) -------------
    for k in range(n):                                      # static unroll
        m = conv3x3_bn_silu(a, 2 * k)                       # Bottleneck.cv1
        m = conv3x3_bn_silu(m, 2 * k + 1)                   # Bottleneck.cv2
        a = a + m if shortcut else m                        # residual add

    # ---- cv2 on cat([m(a), b], C) == split matmul (no concat needed) ------
    w2 = w_cv2_ref[...]                                     # (2c, c2)
    out = (jnp.dot(a, w2[:c], preferred_element_type=jnp.float32)
           + jnp.dot(b_half, w2[c:], preferred_element_type=jnp.float32)
           + b_cv2_ref[...])
    out = out * jax.nn.sigmoid(out)                         # SiLU
    o_ref[0] = out.reshape(H, W, c2).astype(o_ref.dtype)


# ----------------------------------------------------------------------------
# Wrapper
# ----------------------------------------------------------------------------
def c2_forward(x_nchw, params, *, n, shortcut=True):
    """x_nchw: (B, c1, H, W) like PyTorch. Returns (B, c2, H, W)."""
    B, c1, H, W = x_nchw.shape
    w_cv1, b_cv1 = params["cv1"]          # (c1, 2c), (1, 2c)
    w_cv2, b_cv2 = params["cv2"]          # (2c, c2), (1, c2)
    w_m, b_m = params["m_w"], params["m_b"]  # (n*2*9, c, c), (n*2, 1, c)
    two_c = w_cv1.shape[1]
    c = two_c // 2
    c2 = w_cv2.shape[1]

    # NCHW -> NHWC, then flatten pixels so the kernel sees (H*W, Cin) directly.
    x = jnp.transpose(x_nchw, (0, 2, 3, 1)).reshape(B, H * W, c1)

    kern = functools.partial(_c2_fused_kernel, H=H, W=W, c=c, c2=c2, n=n,
                             shortcut=shortcut)
    out = pl.pallas_call(
        kern,
        out_shape=jax.ShapeDtypeStruct((B, H, W, c2), x_nchw.dtype),
        grid=(B,),
        in_specs=[
            pl.BlockSpec((1, H * W, c1), lambda bi: (bi, 0, 0)),
            pl.BlockSpec(w_cv1.shape, lambda bi: (0, 0)),
            pl.BlockSpec(b_cv1.shape, lambda bi: (0, 0)),
            pl.BlockSpec(w_m.shape, lambda bi: (0, 0, 0)),
            pl.BlockSpec(b_m.shape, lambda bi: (0, 0, 0)),
            pl.BlockSpec(w_cv2.shape, lambda bi: (0, 0)),
            pl.BlockSpec(b_cv2.shape, lambda bi: (0, 0)),
        ],
        out_specs=pl.BlockSpec((1, H, W, c2), lambda bi: (bi, 0, 0, 0)),
        scratch_shapes=[pltpu.VMEM((H + 2, W + 2, c), jnp.float32)],
        compiler_params=pltpu.CompilerParams(dimension_semantics=("parallel",)),
    )(x, w_cv1, b_cv1, w_m, b_m, w_cv2, b_cv2)

    return jnp.transpose(out, (0, 3, 1, 2))                 # NHWC -> NCHW


# ----------------------------------------------------------------------------
# Parameter construction (deterministic, synthetic) + BN folding (eval mode)
# ----------------------------------------------------------------------------
def make_conv_bn_params(key, cin, cout, k):
    """Conv2d(bias=False, HWIO weight) + BatchNorm2d(eps=1e-3) folded."""
    k1, k2, k3, k4, k5 = jax.random.split(key, 5)
    w = 0.1 * jax.random.normal(k1, (k, k, cin, cout), jnp.float32)
    gamma = 1.0 + 0.1 * jax.random.normal(k2, (cout,), jnp.float32)
    beta = 0.1 * jax.random.normal(k3, (cout,), jnp.float32)
    mean = 0.1 * jax.random.normal(k4, (cout,), jnp.float32)
    var = jnp.abs(jax.random.normal(k5, (cout,), jnp.float32)) + 0.5
    scale = gamma / jnp.sqrt(var + 1e-3)      # ultralytics BN eps = 0.001
    return w * scale[None, None, None, :], beta - mean * scale


def make_c2_params(key, c1, c2_out, n, e=0.5):
    c = int(c2_out * e)
    keys = jax.random.split(key, 2 + 2 * n)
    w_cv1, b_cv1 = make_conv_bn_params(keys[0], c1, 2 * c, 1)
    w_cv2, b_cv2 = make_conv_bn_params(keys[1], 2 * c, c2_out, 1)
    m_w, m_b = [], []
    for i in range(n):
        w1, b1 = make_conv_bn_params(keys[2 + 2 * i], c, c, 3)
        w2, b2 = make_conv_bn_params(keys[3 + 2 * i], c, c, 3)
        m_w += [w1, w2]
        m_b += [b1, b2]
    params = {
        # kernel-friendly (flattened) forms
        "cv1": (w_cv1.reshape(c1, 2 * c), b_cv1.reshape(1, 2 * c)),
        "cv2": (w_cv2.reshape(2 * c, c2_out), b_cv2.reshape(1, c2_out)),
        "m_w": jnp.concatenate([w.reshape(9, c, c) for w in m_w], axis=0),
        "m_b": jnp.stack([b.reshape(1, c) for b in m_b], axis=0),
        # original HWIO forms for the XLA reference
        "ref": {"cv1": (w_cv1, b_cv1), "cv2": (w_cv2, b_cv2),
                "m": list(zip(m_w, m_b))},
    }
    return params, c


# ----------------------------------------------------------------------------
# Pure-JAX reference (XLA convs) for validation
# ----------------------------------------------------------------------------
def c2_reference(x_nchw, params, *, n, shortcut=True):
    def conv_silu(x, w, b, pad):
        y = jax.lax.conv_general_dilated(
            x, w, window_strides=(1, 1), padding=[(pad, pad), (pad, pad)],
            dimension_numbers=("NHWC", "HWIO", "NHWC"))
        y = y + b.reshape(1, 1, 1, -1)
        return y * jax.nn.sigmoid(y)

    ref = params["ref"]
    x = jnp.transpose(x_nchw, (0, 2, 3, 1))
    y = conv_silu(x, *ref["cv1"], 0)
    c = y.shape[-1] // 2
    a, b = y[..., :c], y[..., c:]
    for k in range(n):
        w1, b1 = ref["m"][2 * k]
        w2, b2 = ref["m"][2 * k + 1]
        m = conv_silu(a, w1, b1, 1)
        m = conv_silu(m, w2, b2, 1)
        a = a + m if shortcut else m
    y = jnp.concatenate([a, b], axis=-1)
    y = conv_silu(y, *ref["cv2"], 0)
    return jnp.transpose(y, (0, 3, 1, 2))


# ----------------------------------------------------------------------------
if __name__ == "__main__":
    B, c1, c2_out, H, W, n = 2, 16, 16, 16, 16, 1   # module defaults: n=1, e=0.5

    key = jax.random.PRNGKey(0)
    kx, kp = jax.random.split(key)
    x = jax.random.normal(kx, (B, c1, H, W), jnp.float32)   # NCHW like PyTorch
    params, c_hidden = make_c2_params(kp, c1, c2_out, n)

    out = jax.block_until_ready(c2_forward(x, params, n=n))
    assert out.shape == (B, c2_out, H, W), out.shape

    ref = jax.block_until_ready(c2_reference(x, params, n=n))
    max_err = float(jnp.max(jnp.abs(out - ref)))
    assert jnp.allclose(out, ref, atol=2e-4, rtol=2e-4), max_err

    print("KERNEL_OK")
</pallas_src>

<mosaic_0001>
module attributes {stable_mosaic.version = 11 : i64} {
  func.func @_c2_fused_kernel(%arg0: i32, %arg1: memref<1x256x16xf32, #tpu.memory_space<vmem>>, %arg2: memref<16x16xf32, #tpu.memory_space<vmem>>, %arg3: memref<1x16xf32, #tpu.memory_space<vmem>>, %arg4: memref<18x8x8xf32, #tpu.memory_space<vmem>>, %arg5: memref<2x1x8xf32, #tpu.memory_space<vmem>>, %arg6: memref<16x16xf32, #tpu.memory_space<vmem>>, %arg7: memref<1x16xf32, #tpu.memory_space<vmem>>, %arg8: memref<1x16x16x16xf32, #tpu.memory_space<vmem>>, %arg9: memref<18x18x8xf32, #tpu.memory_space<vmem>>) attributes {dimension_semantics = [#tpu.dimension_semantics<parallel>], iteration_bounds = array<i64: 2>, scalar_prefetch = 0 : i64, scratch_operands = 1 : i64, tpu.core_type = #tpu.core_type<tc>, window_params = [{transform_indices = @transform_0, window_bounds = array<i64: 1, 256, 16>}, {pipeline_mode = #tpu.pipeline_mode<synchronous>, transform_indices = @transform_1, window_bounds = array<i64: 16, 16>}, {pipeline_mode = #tpu.pipeline_mode<synchronous>, transform_indices = @transform_2, window_bounds = array<i64: 1, 16>}, {pipeline_mode = #tpu.pipeline_mode<synchronous>, transform_indices = @transform_3, window_bounds = array<i64: 18, 8, 8>}, {pipeline_mode = #tpu.pipeline_mode<synchronous>, transform_indices = @transform_4, window_bounds = array<i64: 2, 1, 8>}, {pipeline_mode = #tpu.pipeline_mode<synchronous>, transform_indices = @transform_5, window_bounds = array<i64: 16, 16>}, {pipeline_mode = #tpu.pipeline_mode<synchronous>, transform_indices = @transform_6, window_bounds = array<i64: 1, 16>}, {transform_indices = @transform_7, window_bounds = array<i64: 1, 16, 16, 16>}]} {
    %c0 = arith.constant 0 : index
    %c0_0 = arith.constant 0 : index
    %c0_1 = arith.constant 0 : index
    %0 = vector.load %arg1[%c0, %c0_0, %c0_1] : memref<1x256x16xf32, #tpu.memory_space<vmem>>, vector<1x256x16xf32>
    %1 = vector.shape_cast %0 : vector<1x256x16xf32> to vector<256x16xf32>
    %c0_2 = arith.constant 0 : index
    %c0_3 = arith.constant 0 : index
    %2 = vector.load %arg2[%c0_2, %c0_3] : memref<16x16xf32, #tpu.memory_space<vmem>>, vector<16x16xf32>
    %cst = arith.constant dense<0.000000e+00> : vector<256x16xf32>
    %3 = tpu.matmul %1, %2, %cst {dimension_numbers = #tpu.dot_dimension_numbers<[1], [0], [0], [1], [0, 0, 1, 1], [], []>} : vector<256x16xf32>, vector<16x16xf32>, vector<256x16xf32> -> vector<256x16xf32>
    %c0_4 = arith.constant 0 : index
    %c0_5 = arith.constant 0 : index
    %4 = vector.load %arg3[%c0_4, %c0_5] : memref<1x16xf32, #tpu.memory_space<vmem>>, vector<1x16xf32>
    %5 = vector.broadcast %4 : vector<1x16xf32> to vector<256x16xf32>
    %6 = arith.addf %3, %5 : vector<256x16xf32>
    %7 = arith.negf %6 : vector<256x16xf32>
    %8 = math.exp %7 : vector<256x16xf32>
    %cst_6 = arith.constant 1.000000e+00 : f32
    %9 = vector.broadcast %cst_6 : f32 to vector<256x16xf32>
    %10 = arith.addf %9, %8 : vector<256x16xf32>
    %11 = arith.divf %9, %10 : vector<256x16xf32>
    %12 = arith.mulf %6, %11 : vector<256x16xf32>
    %13 = vector.extract_strided_slice %12 {offsets = [0, 0], sizes = [256, 8], strides = [1, 1]} : vector<256x16xf32> to vector<256x8xf32>
    %14 = vector.extract_strided_slice %12 {offsets = [0, 8], sizes = [256, 8], strides = [1, 1]} : vector<256x16xf32> to vector<256x8xf32>
    %cst_7 = arith.constant 0.000000e+00 : f32
    %15 = vector.broadcast %cst_7 : f32 to vector<18x18x8xf32>
    %c0_8 = arith.constant 0 : index
    %c0_9 = arith.constant 0 : index
    %c0_10 = arith.constant 0 : index
    %16 = vector.load %arg9[%c0_8, %c0_9, %c0_10] : memref<18x18x8xf32, #tpu.memory_space<vmem>>, vector<18x18x8xf32>
    tpu.vector_store %arg9[%c0_8, %c0_9, %c0_10], %15 {strides = array<i32>} : memref<18x18x8xf32, #tpu.memory_space<vmem>>, vector<18x18x8xf32>,
    %17 = vector.shape_cast %13 : vector<256x8xf32> to vector<16x16x8xf32>
    %c1 = arith.constant 1 : index
    %c1_11 = arith.constant 1 : index
    %c0_12 = arith.constant 0 : index
    %18 = vector.load %arg9[%c1, %c1_11, %c0_12] : memref<18x18x8xf32, #tpu.memory_space<vmem>>, vector<16x16x8xf32>
    tpu.vector_store %arg9[%c1, %c1_11, %c0_12], %17 {strides = array<i32>} : memref<18x18x8xf32, #tpu.memory_space<vmem>>, vector<16x16x8xf32>,
    %cst_13 = arith.constant 0.000000e+00 : f32
    %19 = vector.broadcast %cst_13 : f32 to vector<256x8xf32>
    %c0_14 = arith.constant 0 : index
    %c0_15 = arith.constant 0 : index
    %c0_16 = arith.constant 0 : index
    %20 = vector.load %arg9[%c0_14, %c0_15, %c0_16] : memref<18x18x8xf32, #tpu.memory_space<vmem>>, vector<16x16x8xf32>
    %21 = vector.shape_cast %20 : vector<16x16x8xf32> to vector<256x8xf32>
    %c0_17 = arith.constant 0 : index
    %c0_18 = arith.constant 0 : index
    %c0_19 = arith.constant 0 : index
    %22 = vector.load %arg4[%c0_17, %c0_18, %c0_19] : memref<18x8x8xf32, #tpu.memory_space<vmem>>, vector<1x8x8xf32>
    %23 = vector.shape_cast %22 : vector<1x8x8xf32> to vector<8x8xf32>
    %cst_20 = arith.constant dense<0.000000e+00> : vector<256x8xf32>
    %24 = tpu.matmul %21, %23, %cst_20 {dimension_numbers = #tpu.dot_dimension_numbers<[1], [0], [0], [1], [0, 0, 1, 1], [], []>} : vector<256x8xf32>, vector<8x8xf32>, vector<256x8xf32> -> vector<256x8xf32>
    %25 = arith.addf %19, %24 : vector<256x8xf32>
    %c0_21 = arith.constant 0 : index
    %c1_22 = arith.constant 1 : index
    %c0_23 = arith.constant 0 : index
    %26 = vector.load %arg9[%c0_21, %c1_22, %c0_23] : memref<18x18x8xf32, #tpu.memory_space<vmem>>, vector<16x16x8xf32>
    %27 = vector.shape_cast %26 : vector<16x16x8xf32> to vector<256x8xf32>
    %c1_24 = arith.constant 1 : index
    %c0_25 = arith.constant 0 : index
    %c0_26 = arith.constant 0 : index
    %28 = vector.load %arg4[%c1_24, %c0_25, %c0_26] : memref<18x8x8xf32, #tpu.memory_space<vmem>>, vector<1x8x8xf32>
    %29 = vector.shape_cast %28 : vector<1x8x8xf32> to vector<8x8xf32>
    %cst_27 = arith.constant dense<0.000000e+00> : vector<256x8xf32>
    %30 = tpu.matmul %27, %29, %cst_27 {dimension_numbers = #tpu.dot_dimension_numbers<[1], [0], [0], [1], [0, 0, 1, 1], [], []>} : vector<256x8xf32>, vector<8x8xf32>, vector<256x8xf32> -> vector<256x8xf32>
    %31 = arith.addf %25, %30 : vector<256x8xf32>
    %c0_28 = arith.constant 0 : index
    %c2 = arith.constant 2 : index
    %c0_29 = arith.constant 0 : index
    %32 = vector.load %arg9[%c0_28, %c2, %c0_29] : memref<18x18x8xf32, #tpu.memory_space<vmem>>, vector<16x16x8xf32>
    %33 = vector.shape_cast %32 : vector<16x16x8xf32> to vector<256x8xf32>
    %c2_30 = arith.constant 2 : index
    %c0_31 = arith.constant 0 : index
    %c0_32 = arith.constant 0 : index
    %34 = vector.load %arg4[%c2_30, %c0_31, %c0_32] : memref<18x8x8xf32, #tpu.memory_space<vmem>>, vector<1x8x8xf32>
    %35 = vector.shape_cast %34 : vector<1x8x8xf32> to vector<8x8xf32>
    %cst_33 = arith.constant dense<0.000000e+00> : vector<256x8xf32>
    %36 = tpu.matmul %33, %35, %cst_33 {dimension_numbers = #tpu.dot_dimension_numbers<[1], [0], [0], [1], [0, 0, 1, 1], [], []>} : vector<256x8xf32>, vector<8x8xf32>, vector<256x8xf32> -> vector<256x8xf32>
    %37 = arith.addf %31, %36 : vector<256x8xf32>
    %c1_34 = arith.constant 1 : index
    %c0_35 = arith.constant 0 : index
    %c0_36 = arith.constant 0 : index
    %38 = vector.load %arg9[%c1_34, %c0_35, %c0_36] : memref<18x18x8xf32, #tpu.memory_space<vmem>>, vector<16x16x8xf32>
    %39 = vector.shape_cast %38 : vector<16x16x8xf32> to vector<256x8xf32>
    %c3 = arith.constant 3 : index
    %c0_37 = arith.constant 0 : index
    %c0_38 = arith.constant 0 : index
    %40 = vector.load %arg4[%c3, %c0_37, %c0_38] : memref<18x8x8xf32, #tpu.memory_space<vmem>>, vector<1x8x8xf32>
    %41 = vector.shape_cast %40 : vector<1x8x8xf32> to vector<8x8xf32>
    %cst_39 = arith.constant dense<0.000000e+00> : vector<256x8xf32>
    %42 = tpu.matmul %39, %41, %cst_39 {dimension_numbers = #tpu.dot_dimension_numbers<[1], [0], [0], [1], [0, 0, 1, 1], [], []>} : vector<256x8xf32>, vector<8x8xf32>, vector<256x8xf32> -> vector<256x8xf32>
    %43 = arith.addf %37, %42 : vector<256x8xf32>
    %c1_40 = arith.constant 1 : index
    %c1_41 = arith.constant 1 : index
    %c0_42 = arith.constant 0 : index
    %44 = vector.load %arg9[%c1_40, %c1_41, %c0_42] : memref<18x18x8xf32, #tpu.memory_space<vmem>>, vector<16x16x8xf32>
    %45 = vector.shape_cast %44 : vector<16x16x8xf32> to vector<256x8xf32>
    %c4 = arith.constant 4 : index
    %c0_43 = arith.constant 0 : index
    %c0_44 = arith.constant 0 : index
    %46 = vector.load %arg4[%c4, %c0_43, %c0_44] : memref<18x8x8xf32, #tpu.memory_space<vmem>>, vector<1x8x8xf32>
    %47 = vector.shape_cast %46 : vector<1x8x8xf32> to vector<8x8xf32>
    %cst_45 = arith.constant dense<0.000000e+00> : vector<256x8xf32>
    %48 = tpu.matmul %45, %47, %cst_45 {dimension_numbers = #tpu.dot_dimension_numbers<[1], [0], [0], [1], [0, 0, 1, 1], [], []>} : vector<256x8xf32>, vector<8x8xf32>, vector<256x8xf32> -> vector<256x8xf32>
    %49 = arith.addf %43, %48 : vector<256x8xf32>
    %c1_46 = arith.constant 1 : index
    %c2_47 = arith.constant 2 : index
    %c0_48 = arith.constant 0 : index
    %50 = vector.load %arg9[%c1_46, %c2_47, %c0_48] : memref<18x18x8xf32, #tpu.memory_space<vmem>>, vector<16x16x8xf32>
    %51 = vector.shape_cast %50 : vector<16x16x8xf32> to vector<256x8xf32>
    %c5 = arith.constant 5 : index
    %c0_49 = arith.constant 0 : index
    %c0_50 = arith.constant 0 : index
    %52 = vector.load %arg4[%c5, %c0_49, %c0_50] : memref<18x8x8xf32, #tpu.memory_space<vmem>>, vector<1x8x8xf32>
    %53 = vector.shape_cast %52 : vector<1x8x8xf32> to vector<8x8xf32>
    %cst_51 = arith.constant dense<0.000000e+00> : vector<256x8xf32>
    %54 = tpu.matmul %51, %53, %cst_51 {dimension_numbers = #tpu.dot_dimension_numbers<[1], [0], [0], [1], [0, 0, 1, 1], [], []>} : vector<256x8xf32>, vector<8x8xf32>, vector<256x8xf32> -> vector<256x8xf32>
    %55 = arith.addf %49, %54 : vector<256x8xf32>
    %c2_52 = arith.constant 2 : index
    %c0_53 = arith.constant 0 : index
    %c0_54 = arith.constant 0 : index
    %56 = vector.load %arg9[%c2_52, %c0_53, %c0_54] : memref<18x18x8xf32, #tpu.memory_space<vmem>>, vector<16x16x8xf32>
    %57 = vector.shape_cast %56 : vector<16x16x8xf32> to vector<256x8xf32>
    %c6 = arith.constant 6 : index
    %c0_55 = arith.constant 0 : index
    %c0_56 = arith.constant 0 : index
    %58 = vector.load %arg4[%c6, %c0_55, %c0_56] : memref<18x8x8xf32, #tpu.memory_space<vmem>>, vector<1x8x8xf32>
    %59 = vector.shape_cast %58 : vector<1x8x8xf32> to vector<8x8xf32>
    %cst_57 = arith.constant dense<0.000000e+00> : vector<256x8xf32>
    %60 = tpu.matmul %57, %59, %cst_57 {dimension_numbers = #tpu.dot_dimension_numbers<[1], [0], [0], [1], [0, 0, 1, 1], [], []>} : vector<256x8xf32>, vector<8x8xf32>, vector<256x8xf32> -> vector<256x8xf32>
    %61 = arith.addf %55, %60 : vector<256x8xf32>
    %c2_58 = arith.constant 2 : index
    %c1_59 = arith.constant 1 : index
    %c0_60 = arith.constant 0 : index
    %62 = vector.load %arg9[%c2_58, %c1_59, %c0_60] : memref<18x18x8xf32, #tpu.memory_space<vmem>>, vector<16x16x8xf32>
    %63 = vector.shape_cast %62 : vector<16x16x8xf32> to vector<256x8xf32>
    %c7 = arith.constant 7 : index
    %c0_61 = arith.constant 0 : index
    %c0_62 = arith.constant 0 : index
    %64 = vector.load %arg4[%c7, %c0_61, %c0_62] : memref<18x8x8xf32, #tpu.memory_space<vmem>>, vector<1x8x8xf32>
    %65 = vector.shape_cast %64 : vector<1x8x8xf32> to vector<8x8xf32>
    %cst_63 = arith.constant dense<0.000000e+00> : vector<256x8xf32>
    %66 = tpu.matmul %63, %65, %cst_63 {dimension_numbers = #tpu.dot_dimension_numbers<[1], [0], [0], [1], [0, 0, 1, 1], [], []>} : vector<256x8xf32>, vector<8x8xf32>, vector<256x8xf32> -> vector<256x8xf32>
    %67 = arith.addf %61, %66 : vector<256x8xf32>
    %c2_64 = arith.constant 2 : index
    %c2_65 = arith.constant 2 : index
    %c0_66 = arith.constant 0 : index
    %68 = vector.load %arg9[%c2_64, %c2_65, %c0_66] : memref<18x18x8xf32, #tpu.memory_space<vmem>>, vector<16x16x8xf32>
    %69 = vector.shape_cast %68 : vector<16x16x8xf32> to vector<256x8xf32>
    %c8 = arith.constant 8 : index
    %c0_67 = arith.constant 0 : index
    %c0_68 = arith.constant 0 : index
    %70 = vector.load %arg4[%c8, %c0_67, %c0_68] : memref<18x8x8xf32, #tpu.memory_space<vmem>>, vector<1x8x8xf32>
    %71 = vector.shape_cast %70 : vector<1x8x8xf32> to vector<8x8xf32>
    %cst_69 = arith.constant dense<0.000000e+00> : vector<256x8xf32>
    %72 = tpu.matmul %69, %71, %cst_69 {dimension_numbers = #tpu.dot_dimension_numbers<[1], [0], [0], [1], [0, 0, 1, 1], [], []>} : vector<256x8xf32>, vector<8x8xf32>, vector<256x8xf32> -> vector<256x8xf32>
    %73 = arith.addf %67, %72 : vector<256x8xf32>
    %c0_70 = arith.constant 0 : index
    %c0_71 = arith.constant 0 : index
    %c0_72 = arith.constant 0 : index
    %74 = vector.load %arg5[%c0_70, %c0_71, %c0_72] : memref<2x1x8xf32, #tpu.memory_space<vmem>>, vector<1x1x8xf32>
    %75 = vector.shape_cast %74 : vector<1x1x8xf32> to vector<1x8xf32>
    %76 = vector.broadcast %75 : vector<1x8xf32> to vector<256x8xf32>
    %77 = arith.addf %73, %76 : vector<256x8xf32>
    %78 = arith.negf %77 : vector<256x8xf32>
    %79 = math.exp %78 : vector<256x8xf32>
    %cst_73 = arith.constant 1.000000e+00 : f32
    %80 = vector.broadcast %cst_73 : f32 to vector<256x8xf32>
    %81 = arith.addf %80, %79 : vector<256x8xf32>
    %82 = arith.divf %80, %81 : vector<256x8xf32>
    %83 = arith.mulf %77, %82 : vector<256x8xf32>
    %84 = vector.shape_cast %83 : vector<256x8xf32> to vector<16x16x8xf32>
    %c1_74 = arith.constant 1 : index
    %c1_75 = arith.constant 1 : index
    %c0_76 = arith.constant 0 : index
    %85 = vector.load %arg9[%c1_74, %c1_75, %c0_76] : memref<18x18x8xf32, #tpu.memory_space<vmem>>, vector<16x16x8xf32>
    tpu.vector_store %arg9[%c1_74, %c1_75, %c0_76], %84 {strides = array<i32>} : memref<18x18x8xf32, #tpu.memory_space<vmem>>, vector<16x16x8xf32>,
    %cst_77 = arith.constant 0.000000e+00 : f32
    %86 = vector.broadcast %cst_77 : f32 to vector<256x8xf32>
    %c0_78 = arith.constant 0 : index
    %c0_79 = arith.constant 0 : index
    %c0_80 = arith.constant 0 : index
    %87 = vector.load %arg9[%c0_78, %c0_79, %c0_80] : memref<18x18x8xf32, #tpu.memory_space<vmem>>, vector<16x16x8xf32>
    %88 = vector.shape_cast %87 : vector<16x16x8xf32> to vector<256x8xf32>
    %c9 = arith.constant 9 : index
    %c0_81 = arith.constant 0 : index
    %c0_82 = arith.constant 0 : index
    %89 = vector.load %arg4[%c9, %c0_81, %c0_82] : memref<18x8x8xf32, #tpu.memory_space<vmem>>, vector<1x8x8xf32>
    %90 = vector.shape_cast %89 : vector<1x8x8xf32> to vector<8x8xf32>
    %cst_83 = arith.constant dense<0.000000e+00> : vector<256x8xf32>
    %91 = tpu.matmul %88, %90, %cst_83 {dimension_numbers = #tpu.dot_dimension_numbers<[1], [0], [0], [1], [0, 0, 1, 1], [], []>} : vector<256x8xf32>, vector<8x8xf32>, vector<256x8xf32> -> vector<256x8xf32>
    %92 = arith.addf %86, %91 : vector<256x8xf32>
    %c0_84 = arith.constant 0 : index
    %c1_85 = arith.constant 1 : index
    %c0_86 = arith.constant 0 : index
    %93 = vector.load %arg9[%c0_84, %c1_85, %c0_86] : memref<18x18x8xf32, #tpu.memory_space<vmem>>, vector<16x16x8xf32>
    %94 = vector.shape_cast %93 : vector<16x16x8xf32> to vector<256x8xf32>
    %c10 = arith.constant 10 : index
    %c0_87 = arith.constant 0 : index
    %c0_88 = arith.constant 0 : index
    %95 = vector.load %arg4[%c10, %c0_87, %c0_88] : memref<18x8x8xf32, #tpu.memory_space<vmem>>, vector<1x8x8xf32>
    %96 = vector.shape_cast %95 : vector<1x8x8xf32> to vector<8x8xf32>
    %cst_89 = arith.constant dense<0.000000e+00> : vector<256x8xf32>
    %97 = tpu.matmul %94, %96, %cst_89 {dimension_numbers = #tpu.dot_dimension_numbers<[1], [0], [0], [1], [0, 0, 1, 1], [], []>} : vector<256x8xf32>, vector<8x8xf32>, vector<256x8xf32> -> vector<256x8xf32>
    %98 = arith.addf %92, %97 : vector<256x8xf32>
    %c0_90 = arith.constant 0 : index
    %c2_91 = arith.constant 2 : index
    %c0_92 = arith.constant 0 : index
    %99 = vector.load %arg9[%c0_90, %c2_91, %c0_92] : memref<18x18x8xf32, #tpu.memory_space<vmem>>, vector<16x16x8xf32>
    %100 = vector.shape_cast %99 : vector<16x16x8xf32> to vector<256x8xf32>
    %c11 = arith.constant 11 : index
    %c0_93 = arith.constant 0 : index
    %c0_94 = arith.constant 0 : index
    %101 = vector.load %arg4[%c11, %c0_93, %c0_94] : memref<18x8x8xf32, #tpu.memory_space<vmem>>, vector<1x8x8xf32>
    %102 = vector.shape_cast %101 : vector<1x8x8xf32> to vector<8x8xf32>
    %cst_95 = arith.constant dense<0.000000e+00> : vector<256x8xf32>
    %103 = tpu.matmul %100, %102, %cst_95 {dimension_numbers = #tpu.dot_dimension_numbers<[1], [0], [0], [1], [0, 0, 1, 1], [], []>} : vector<256x8xf32>, vector<8x8xf32>, vector<256x8xf32> -> vector<256x8xf32>
    %104 = arith.addf %98, %103 : vector<256x8xf32>
    %c1_96 = arith.constant 1 : index
    %c0_97 = arith.constant 0 : index
    %c0_98 = arith.constant 0 : index
    %105 = vector.load %arg9[%c1_96, %c0_97, %c0_98] : memref<18x18x8xf32, #tpu.memory_space<vmem>>, vector<16x16x8xf32>
    %106 = vector.shape_cast %105 : vector<16x16x8xf32> to vector<256x8xf32>
    %c12 = arith.constant 12 : index
    %c0_99 = arith.constant 0 : index
    %c0_100 = arith.constant 0 : index
    %107 = vector.load %arg4[%c12, %c0_99, %c0_100] : memref<18x8x8xf32, #tpu.memory_space<vmem>>, vector<1x8x8xf32>
    %108 = vector.shape_cast %107 : vector<1x8x8xf32> to vector<8x8xf32>
    %cst_101 = arith.constant dense<0.000000e+00> : vector<256x8xf32>
    %109 = tpu.matmul %106, %108, %cst_101 {dimension_numbers = #tpu.dot_dimension_numbers<[1], [0], [0], [1], [0, 0, 1, 1], [], []>} : vector<256x8xf32>, vector<8x8xf32>, vector<256x8xf32> -> vector<256x8xf32>
    %110 = arith.addf %104, %109 : vector<256x8xf32>
    %c1_102 = arith.constant 1 : index
    %c1_103 = arith.constant 1 : index
    %c0_104 = arith.constant 0 : index
    %111 = vector.load %arg9[%c1_102, %c1_103, %c0_104] : memref<18x18x8xf32, #tpu.memory_space<vmem>>, vector<16x16x8xf32>
    %112 = vector.shape_cast %111 : vector<16x16x8xf32> to vector<256x8xf32>
    %c13 = arith.constant 13 : index
    %c0_105 = arith.constant 0 : index
    %c0_106 = arith.constant 0 : index
    %113 = vector.load %arg4[%c13, %c0_105, %c0_106] : memref<18x8x8xf32, #tpu.memory_space<vmem>>, vector<1x8x8xf32>
    %114 = vector.shape_cast %113 : vector<1x8x8xf32> to vector<8x8xf32>
    %cst_107 = arith.constant dense<0.000000e+00> : vector<256x8xf32>
    %115 = tpu.matmul %112, %114, %cst_107 {dimension_numbers = #tpu.dot_dimension_numbers<[1], [0], [0], [1], [0, 0, 1, 1], [], []>} : vector<256x8xf32>, vector<8x8xf32>, vector<256x8xf32> -> vector<256x8xf32>
    %116 = arith.addf %110, %115 : vector<256x8xf32>
    %c1_108 = arith.constant 1 : index
    %c2_109 = arith.constant 2 : index
    %c0_110 = arith.constant 0 : index
    %117 = vector.load %arg9[%c1_108, %c2_109, %c0_110] : memref<18x18x8xf32, #tpu.memory_space<vmem>>, vector<16x16x8xf32>
    %118 = vector.shape_cast %117 : vector<16x16x8xf32> to vector<256x8xf32>
    %c14 = arith.constant 14 : index
    %c0_111 = arith.constant 0 : index
    %c0_112 = arith.constant 0 : index
    %119 = vector.load %arg4[%c14, %c0_111, %c0_112] : memref<18x8x8xf32, #tpu.memory_space<vmem>>, vector<1x8x8xf32>
    %120 = vector.shape_cast %119 : vector<1x8x8xf32> to vector<8x8xf32>
    %cst_113 = arith.constant dense<0.000000e+00> : vector<256x8xf32>
    %121 = tpu.matmul %118, %120, %cst_113 {dimension_numbers = #tpu.dot_dimension_numbers<[1], [0], [0], [1], [0, 0, 1, 1], [], []>} : vector<256x8xf32>, vector<8x8xf32>, vector<256x8xf32> -> vector<256x8xf32>
    %122 = arith.addf %116, %121 : vector<256x8xf32>
    %c2_114 = arith.constant 2 : index
    %c0_115 = arith.constant 0 : index
    %c0_116 = arith.constant 0 : index
    %123 = vector.load %arg9[%c2_114, %c0_115, %c0_116] : memref<18x18x8xf32, #tpu.memory_space<vmem>>, vector<16x16x8xf32>
    %124 = vector.shape_cast %123 : vector<16x16x8xf32> to vector<256x8xf32>
    %c15 = arith.constant 15 : index
    %c0_117 = arith.constant 0 : index
    %c0_118 = arith.constant 0 : index
    %125 = vector.load %arg4[%c15, %c0_117, %c0_118] : memref<18x8x8xf32, #tpu.memory_space<vmem>>, vector<1x8x8xf32>
    %126 = vector.shape_cast %125 : vector<1x8x8xf32> to vector<8x8xf32>
    %cst_119 = arith.constant dense<0.000000e+00> : vector<256x8xf32>
    %127 = tpu.matmul %124, %126, %cst_119 {dimension_numbers = #tpu.dot_dimension_numbers<[1], [0], [0], [1], [0, 0, 1, 1], [], []>} : vector<256x8xf32>, vector<8x8xf32>, vector<256x8xf32> -> vector<256x8xf32>
    %128 = arith.addf %122, %127 : vector<256x8xf32>
    %c2_120 = arith.constant 2 : index
    %c1_121 = arith.constant 1 : index
    %c0_122 = arith.constant 0 : index
    %129 = vector.load %arg9[%c2_120, %c1_121, %c0_122] : memref<18x18x8xf32, #tpu.memory_space<vmem>>, vector<16x16x8xf32>
    %130 = vector.shape_cast %129 : vector<16x16x8xf32> to vector<256x8xf32>
    %c16 = arith.constant 16 : index
    %c0_123 = arith.constant 0 : index
    %c0_124 = arith.constant 0 : index
    %131 = vector.load %arg4[%c16, %c0_123, %c0_124] : memref<18x8x8xf32, #tpu.memory_space<vmem>>, vector<1x8x8xf32>
    %132 = vector.shape_cast %131 : vector<1x8x8xf32> to vector<8x8xf32>
    %cst_125 = arith.constant dense<0.000000e+00> : vector<256x8xf32>
    %133 = tpu.matmul %130, %132, %cst_125 {dimension_numbers = #tpu.dot_dimension_numbers<[1], [0], [0], [1], [0, 0, 1, 1], [], []>} : vector<256x8xf32>, vector<8x8xf32>, vector<256x8xf32> -> vector<256x8xf32>
    %134 = arith.addf %128, %133 : vector<256x8xf32>
    %c2_126 = arith.constant 2 : index
    %c2_127 = arith.constant 2 : index
    %c0_128 = arith.constant 0 : index
    %135 = vector.load %arg9[%c2_126, %c2_127, %c0_128] : memref<18x18x8xf32, #tpu.memory_space<vmem>>, vector<16x16x8xf32>
    %136 = vector.shape_cast %135 : vector<16x16x8xf32> to vector<256x8xf32>
    %c17 = arith.constant 17 : index
    %c0_129 = arith.constant 0 : index
    %c0_130 = arith.constant 0 : index
    %137 = vector.load %arg4[%c17, %c0_129, %c0_130] : memref<18x8x8xf32, #tpu.memory_space<vmem>>, vector<1x8x8xf32>
    %138 = vector.shape_cast %137 : vector<1x8x8xf32> to vector<8x8xf32>
    %cst_131 = arith.constant dense<0.000000e+00> : vector<256x8xf32>
    %139 = tpu.matmul %136, %138, %cst_131 {dimension_numbers = #tpu.dot_dimension_numbers<[1], [0], [0], [1], [0, 0, 1, 1], [], []>} : vector<256x8xf32>, vector<8x8xf32>, vector<256x8xf32> -> vector<256x8xf32>
    %140 = arith.addf %134, %139 : vector<256x8xf32>
    %c1_132 = arith.constant 1 : index
    %c0_133 = arith.constant 0 : index
    %c0_134 = arith.constant 0 : index
    %141 = vector.load %arg5[%c1_132, %c0_133, %c0_134] : memref<2x1x8xf32, #tpu.memory_space<vmem>>, vector<1x1x8xf32>
    %142 = vector.shape_cast %141 : vector<1x1x8xf32> to vector<1x8xf32>
    %143 = vector.broadcast %142 : vector<1x8xf32> to vector<256x8xf32>
    %144 = arith.addf %140, %143 : vector<256x8xf32>
    %145 = arith.negf %144 : vector<256x8xf32>
    %146 = math.exp %145 : vector<256x8xf32>
    %cst_135 = arith.constant 1.000000e+00 : f32
    %147 = vector.broadcast %cst_135 : f32 to vector<256x8xf32>
    %148 = arith.addf %147, %146 : vector<256x8xf32>
    %149 = arith.divf %147, %148 : vector<256x8xf32>
    %150 = arith.mulf %144, %149 : vector<256x8xf32>
    %151 = arith.addf %13, %150 : vector<256x8xf32>
    %c0_136 = arith.constant 0 : index
    %c0_137 = arith.constant 0 : index
    %152 = vector.load %arg6[%c0_136, %c0_137] : memref<16x16xf32, #tpu.memory_space<vmem>>, vector<16x16xf32>
    %153 = vector.extract_strided_slice %152 {offsets = [0, 0], sizes = [8, 16], strides = [1, 1]} : vector<16x16xf32> to vector<8x16xf32>
    %cst_138 = arith.constant dense<0.000000e+00> : vector<256x16xf32>
    %154 = tpu.matmul %151, %153, %cst_138 {dimension_numbers = #tpu.dot_dimension_numbers<[1], [0], [0], [1], [0, 0, 1, 1], [], []>} : vector<256x8xf32>, vector<8x16xf32>, vector<256x16xf32> -> vector<256x16xf32>
    %155 = vector.extract_strided_slice %152 {offsets = [8, 0], sizes = [8, 16], strides = [1, 1]} : vector<16x16xf32> to vector<8x16xf32>
    %cst_139 = arith.constant dense<0.000000e+00> : vector<256x16xf32>
    %156 = tpu.matmul %14, %155, %cst_139 {dimension_numbers = #tpu.dot_dimension_numbers<[1], [0], [0], [1], [0, 0, 1, 1], [], []>} : vector<256x8xf32>, vector<8x16xf32>, vector<256x16xf32> -> vector<256x16xf32>
    %157 = arith.addf %154, %156 : vector<256x16xf32>
    %c0_140 = arith.constant 0 : index
    %c0_141 = arith.constant 0 : index
    %158 = vector.load %arg7[%c0_140, %c0_141] : memref<1x16xf32, #tpu.memory_space<vmem>>, vector<1x16xf32>
    %159 = vector.broadcast %158 : vector<1x16xf32> to vector<256x16xf32>
    %160 = arith.addf %157, %159 : vector<256x16xf32>
    %161 = arith.negf %160 : vector<256x16xf32>
    %162 = math.exp %161 : vector<256x16xf32>
    %cst_142 = arith.constant 1.000000e+00 : f32
    %163 = vector.broadcast %cst_142 : f32 to vector<256x16xf32>
    %164 = arith.addf %163, %162 : vector<256x16xf32>
    %165 = arith.divf %163, %164 : vector<256x16xf32>
    %166 = arith.mulf %160, %165 : vector<256x16xf32>
    %167 = vector.shape_cast %166 : vector<256x16xf32> to vector<16x16x16xf32>
    %c0_143 = arith.constant 0 : index
    %c0_144 = arith.constant 0 : index
    %c0_145 = arith.constant 0 : index
    %c0_146 = arith.constant 0 : index
    %168 = vector.load %arg8[%c0_143, %c0_144, %c0_145, %c0_146] : memref<1x16x16x16xf32, #tpu.memory_space<vmem>>, vector<1x16x16x16xf32>
    %169 = vector.shape_cast %168 : vector<1x16x16x16xf32> to vector<16x16x16xf32>
    %170 = vector.shape_cast %167 : vector<16x16x16xf32> to vector<1x16x16x16xf32>
    tpu.vector_store %arg8[%c0_143, %c0_144, %c0_145, %c0_146], %170 {strides = array<i32>} : memref<1x16x16x16xf32, #tpu.memory_space<vmem>>, vector<1x16x16x16xf32>,
    return
  }
  func.func @transform_0(%arg0: i32) -> (i32, i32, i32) {
    %c0_i32 = arith.constant 0 : i32
    %c0_i32_0 = arith.constant 0 : i32
    %c0_i32_1 = arith.constant 0 : i32
    return %arg0, %c0_i32, %c0_i32_0 : i32, i32, i32
  }
  func.func @transform_1(%arg0: i32) -> (i32, i32) {
    %c0_i32 = arith.constant 0 : i32
    %c0_i32_0 = arith.constant 0 : i32
    %c0_i32_1 = arith.constant 0 : i32
    return %c0_i32, %c0_i32_0 : i32, i32
  }
  func.func @transform_2(%arg0: i32) -> (i32, i32) {
    %c0_i32 = arith.constant 0 : i32
    %c0_i32_0 = arith.constant 0 : i32
    %c0_i32_1 = arith.constant 0 : i32
    return %c0_i32, %c0_i32_0 : i32, i32
  }
  func.func @transform_3(%arg0: i32) -> (i32, i32, i32) {
    %c0_i32 = arith.constant 0 : i32
    %c0_i32_0 = arith.constant 0 : i32
    %c0_i32_1 = arith.constant 0 : i32
    %c0_i32_2 = arith.constant 0 : i32
    return %c0_i32, %c0_i32_0, %c0_i32_1 : i32, i32, i32
  }
  func.func @transform_4(%arg0: i32) -> (i32, i32, i32) {
    %c0_i32 = arith.constant 0 : i32
    %c0_i32_0 = arith.constant 0 : i32
    %c0_i32_1 = arith.constant 0 : i32
    %c0_i32_2 = arith.constant 0 : i32
    return %c0_i32, %c0_i32_0, %c0_i32_1 : i32, i32, i32
  }
  func.func @transform_5(%arg0: i32) -> (i32, i32) {
    %c0_i32 = arith.constant 0 : i32
    %c0_i32_0 = arith.constant 0 : i32
    %c0_i32_1 = arith.constant 0 : i32
    return %c0_i32, %c0_i32_0 : i32, i32
  }
  func.func @transform_6(%arg0: i32) -> (i32, i32) {
    %c0_i32 = arith.constant 0 : i32
    %c0_i32_0 = arith.constant 0 : i32
    %c0_i32_1 = arith.constant 0 : i32
    return %c0_i32, %c0_i32_0 : i32, i32
  }
  func.func @transform_7(%arg0: i32) -> (i32, i32, i32, i32) {
    %c0_i32 = arith.constant 0 : i32
    %c0_i32_0 = arith.constant 0 : i32
    %c0_i32_1 = arith.constant 0 : i32
    %c0_i32_2 = arith.constant 0 : i32
    return %arg0, %c0_i32, %c0_i32_0, %c0_i32_1 : i32, i32, i32, i32
  }
}

</mosaic_0001>

<llo_original>
// kernel: tpu_custom_call.1
$region0: #{tpu_custom_call.1}
  #allocation0 [shape = 'u32[]', space=smem, size = 0x4, offset = 0x4, fixed_abs, tag = 'smem constant byte address 0x4 - core index']
  #allocation1 [shape = 'u32[144,128]{1,0:T(1,128)}', space=vmem, size = 0x12000, scoped, tag = 'internal scratch']
  #allocation2 [shape = 'f32[18,18,8]{2,1,0:T(8,128)}', space=vmem, size = 0x36000, scoped, tag = 'scratch operand']
  %s0 = inlined_call_operand.vmem [shape: f32[2,256,16], index: 0, kind: input, shape index: {}]
  %s1 = inlined_call_operand.vmem [shape: f32[16,16], index: 1, kind: input, shape index: {}]
  %s2 = inlined_call_operand.vmem [shape: f32[1,16], index: 2, kind: input, shape index: {}]
  %s3 = inlined_call_operand.vmem [shape: f32[18,8,8], index: 3, kind: input, shape index: {}]
  %s4 = inlined_call_operand.vmem [shape: f32[2,1,8], index: 4, kind: input, shape index: {}]
  %s5 = inlined_call_operand.vmem [shape: f32[16,16], index: 5, kind: input, shape index: {}]
  %s6 = inlined_call_operand.vmem [shape: f32[1,16], index: 6, kind: input, shape index: {}]
  %s7 = inlined_call_operand.hbm [shape: f32[2,16,16,16], index: 7, kind: output, shape index: {}]
  %s8 = sld [smem:[#allocation0]]
  $region61: #{tpu_custom_call.1} parent=0
    _
  %s10 = ssub.s32 1, %s8
  %s11 = scalar_select 0, %s10, %s8
  $region1: #{tpu_custom_call.1} parent=0
    #allocation3 [shape = 'u8[262144]{0}', space=vmem, size = 0x40000, scoped, tag = 'output window, operand 0']
    #allocation4 [shape = 's32[2]{0}', space=sflag, size = 0x8, scoped, tag = 'scoped memory for tpu_custom_call.1']
    %12 = vsyncpa [#allocation4], 0
    %s13 = scalar_lea.sflag [#allocation4], 1
    %14 = vsyncpa %s13, 0
    loop: start=0, step=1, limit=4
    $region2: #{tpu_custom_call.1} parent=1 // loop_pre_header
      _
    $region3: #{tpu_custom_call.1} parent=1 // loop_header
      %s16 = sphi 0, %s20
      %p17 = scmp.ge.s32.totalorder %s16, 4
      %s26 = sphi 0, %s28
      %s29 = sphi 0, %s26
      %s30 = sphi 0, %s29
      %s46 = sphi 0, %s30
      %s50 = sphi 0, %s50
      %s52 = sphi 0, %s50
      %s53 = sphi 0, %s52
      %s67 = sphi 0, %s53
      %s71 = sphi 0, %s71
      %s73 = sphi 0, %s71
      %s74 = sphi 0, %s73
      %s88 = sphi 0, %s74
      %s92 = sphi 0, %s92
      %s94 = sphi 0, %s92
      %s95 = sphi 0, %s94
      %s109 = sphi 0, %s95
      %s113 = sphi 0, %s113
      %s115 = sphi 0, %s113
      %s116 = sphi 0, %s115
      %s130 = sphi 0, %s116
      %s134 = sphi 0, %s134
      %s136 = sphi 0, %s134
      %s137 = sphi 0, %s136
      %s151 = sphi 0, %s137
      %s155 = sphi 0, %s155
      %s157 = sphi 0, %s155
      %s158 = sphi 0, %s157
      %s172 = sphi 0, %s158
      %s178 = sphi 0, %s180
      %s181 = sphi 0, %s178
      %s182 = sphi 0, %s181
      %s198 = sphi 0, %s182
    $region4: #{tpu_custom_call.1} parent=1 // loop_header_branch
      %19 = sbr.rel (%p17) target = $region8
    $region5: #{tpu_custom_call.1} parent=1 // loop_body
      %s21 = ssub.s32 %s16, 1
      %s22 = ssub.s32 %s16, 2
      %s23 = sadd.s32 %s16, 1
      %s24 = ssub.s32 %s16, %s23
      %p25 = scmp.eq.s32.totalorder %s24, 0
      %s27 = sadd.s32 %s26, 1
      %s28 = scalar_select %p25, %s26, %s27
      %p31 = pneg %p25
      %p32 = scmp.eq.s32.totalorder %s16, 1
      %p33 = por %p31, %p32
      %p34 = scmp.ne.s32.totalorder %s26, %s29
      %p35 = scmp.eq.s32.totalorder %s16, 0
      %p36 = por %p34, %p35
      %p37 = scmp.ne.s32.totalorder %s26, %s29
      %p38 = scmp.eq.s32.totalorder %s21, 1
      %p39 = por %p37, %p38
      %p40 = scmp.ne.s32.totalorder %s29, %s30
      %p41 = scmp.eq.s32.totalorder %s21, 0
      %p42 = por %p40, %p41
      %p43 = scmp.ne.s32.totalorder %s29, %s30
      %p44 = scmp.eq.s32.totalorder %s22, 1
      %p45 = por %p43, %p44
      %p47 = scmp.ne.s32.totalorder %s30, %s46
      %p48 = scmp.eq.s32.totalorder %s22, 0
      %p49 = por %p47, %p48
      %s51 = sadd.s32 %s50, 1
      %p54 = scmp.eq.s32.totalorder %s16, 1
      %p55 = scmp.ne.s32.totalorder %s50, %s52
      %p56 = scmp.eq.s32.totalorder %s16, 0
      %p57 = por %p55, %p56
      %p58 = scmp.ne.s32.totalorder %s50, %s52
      %p59 = scmp.eq.s32.totalorder %s21, 1
      %p60 = por %p58, %p59
      %p61 = scmp.ne.s32.totalorder %s52, %s53
      %p62 = scmp.eq.s32.totalorder %s21, 0
      %p63 = por %p61, %p62
      %p64 = scmp.ne.s32.totalorder %s52, %s53
      %p65 = scmp.eq.s32.totalorder %s22, 1
      %p66 = por %p64, %p65
      %p68 = scmp.ne.s32.totalorder %s53, %s67
      %p69 = scmp.eq.s32.totalorder %s22, 0
      %p70 = por %p68, %p69
      %s72 = sadd.s32 %s71, 1
      %p75 = scmp.eq.s32.totalorder %s16, 1
      %p76 = scmp.ne.s32.totalorder %s71, %s73
      %p77 = scmp.eq.s32.totalorder %s16, 0
      %p78 = por %p76, %p77
      %p79 = scmp.ne.s32.totalorder %s71, %s73
      %p80 = scmp.eq.s32.totalorder %s21, 1
      %p81 = por %p79, %p80
      %p82 = scmp.ne.s32.totalorder %s73, %s74
      %p83 = scmp.eq.s32.totalorder %s21, 0
      %p84 = por %p82, %p83
      %p85 = scmp.ne.s32.totalorder %s73, %s74
      %p86 = scmp.eq.s32.totalorder %s22, 1
      %p87 = por %p85, %p86
      %p89 = scmp.ne.s32.totalorder %s74, %s88
      %p90 = scmp.eq.s32.totalorder %s22, 0
      %p91 = por %p89, %p90
      %s93 = sadd.s32 %s92, 1
      %p96 = scmp.eq.s32.totalorder %s16, 1
      %p97 = scmp.ne.s32.totalorder %s92, %s94
      %p98 = scmp.eq.s32.totalorder %s16, 0
      %p99 = por %p97, %p98
      %p100 = scmp.ne.s32.totalorder %s92, %s94
      %p101 = scmp.eq.s32.totalorder %s21, 1
      %p102 = por %p100, %p101
      %p103 = scmp.ne.s32.totalorder %s94, %s95
      %p104 = scmp.eq.s32.totalorder %s21, 0
      %p105 = por %p103, %p104
      %p106 = scmp.ne.s32.totalorder %s94, %s95
      %p107 = scmp.eq.s32.totalorder %s22, 1
      %p108 = por %p106, %p107
      %p110 = scmp.ne.s32.totalorder %s95, %s109
      %p111 = scmp.eq.s32.totalorder %s22, 0
      %p112 = por %p110, %p111
      %s114 = sadd.s32 %s113, 1
      %p117 = scmp.eq.s32.totalorder %s16, 1
      %p118 = scmp.ne.s32.totalorder %s113, %s115
      %p119 = scmp.eq.s32.totalorder %s16, 0
      %p120 = por %p118, %p119
      %p121 = scmp.ne.s32.totalorder %s113, %s115
      %p122 = scmp.eq.s32.totalorder %s21, 1
      %p123 = por %p121, %p122
      %p124 = scmp.ne.s32.totalorder %s115, %s116
      %p125 = scmp.eq.s32.totalorder %s21, 0
      %p126 = por %p124, %p125
      %p127 = scmp.ne.s32.totalorder %s115, %s116
      %p128 = scmp.eq.s32.totalorder %s22, 1
      %p129 = por %p127, %p128
      %p131 = scmp.ne.s32.totalorder %s116, %s130
      %p132 = scmp.eq.s32.totalorder %s22, 0
      %p133 = por %p131, %p132
      %s135 = sadd.s32 %s134, 1
      %p138 = scmp.eq.s32.totalorder %s16, 1
      %p139 = scmp.ne.s32.totalorder %s134, %s136
      %p140 = scmp.eq.s32.totalorder %s16, 0
      %p141 = por %p139, %p140
      %p142 = scmp.ne.s32.totalorder %s134, %s136
      %p143 = scmp.eq.s32.totalorder %s21, 1
      %p144 = por %p142, %p143
      %p145 = scmp.ne.s32.totalorder %s136, %s137
      %p146 = scmp.eq.s32.totalorder %s21, 0
      %p147 = por %p145, %p146
      %p148 = scmp.ne.s32.totalorder %s136, %s137
      %p149 = scmp.eq.s32.totalorder %s22, 1
      %p150 = por %p148, %p149
      %p152 = scmp.ne.s32.totalorder %s137, %s151
      %p153 = scmp.eq.s32.totalorder %s22, 0
      %p154 = por %p152, %p153
      %s156 = sadd.s32 %s155, 1
      %p159 = scmp.eq.s32.totalorder %s16, 1
      %p160 = scmp.ne.s32.totalorder %s155, %s157
      %p161 = scmp.eq.s32.totalorder %s16, 0
      %p162 = por %p160, %p161
      %p163 = scmp.ne.s32.totalorder %s155, %s157
      %p164 = scmp.eq.s32.totalorder %s21, 1
      %p165 = por %p163, %p164
      %p166 = scmp.ne.s32.totalorder %s157, %s158
      %p167 = scmp.eq.s32.totalorder %s21, 0
      %p168 = por %p166, %p167
      %p169 = scmp.ne.s32.totalorder %s157, %s158
      %p170 = scmp.eq.s32.totalorder %s22, 1
      %p171 = por %p169, %p170
      %p173 = scmp.ne.s32.totalorder %s158, %s172
      %p174 = scmp.eq.s32.totalorder %s22, 0
      %p175 = por %p173, %p174
      %s176 = ssub.s32 %s16, %s23
      %p177 = scmp.eq.s32.totalorder %s176, 0
      %s179 = sadd.s32 %s178, 1
      %s180 = scalar_select %p177, %s178, %s179
      %p183 = pneg %p177
      %p184 = scmp.eq.s32.totalorder %s16, 1
      %p185 = por %p183, %p184
      %p186 = scmp.ne.s32.totalorder %s178, %s181
      %p187 = scmp.eq.s32.totalorder %s16, 0
      %p188 = por %p186, %p187
      %p189 = scmp.ne.s32.totalorder %s178, %s181
      %p190 = scmp.eq.s32.totalorder %s21, 1
      %p191 = por %p189, %p190
      %p192 = scmp.ne.s32.totalorder %s181, %s182
      %p193 = scmp.eq.s32.totalorder %s21, 0
      %p194 = por %p192, %p193
      %p195 = scmp.ne.s32.totalorder %s181, %s182
      %p196 = scmp.eq.s32.totalorder %s22, 1
      %p197 = por %p195, %p196
      %p199 = scmp.ne.s32.totalorder %s182, %s198
      %p200 = scmp.eq.s32.totalorder %s22, 0
      %p201 = por %p199, %p200
      %p202 = scmp.le.s32.totalorder 1, %s16
      %p203 = scmp.lt.s32.totalorder %s16, 3
      %p204 = pnand %p202, %p203
      %p205 = pneg %p204
      // Predicated region
      $region9: #{tpu_custom_call.1} parent=5 // pred_check
        _
      $region10: #{tpu_custom_call.1} parent=5 // pred_check_branch
        %207 = sbr.rel (%p204) target = $region12
      $region11: #{tpu_custom_call.1} parent=5 // pred_region
        %s208 = ssub.s32 %s16, 1
        // Predicated region
        $region13: #{tpu_custom_call.1} parent=11 // pred_check
          %p209 = pneg %p63
        $region14: #{tpu_custom_call.1} parent=11 // pred_check_branch
          %211 = sbr.rel (%p209) target = $region16
        $region15: #{tpu_custom_call.1} parent=11 // pred_region
          _
        $region16: #{tpu_custom_call.1} parent=11 // pred_fallthru
          _
        // Predicated region
        $region17: #{tpu_custom_call.1} parent=11 // pred_check
          %p212 = pneg %p84
        $region18: #{tpu_custom_call.1} parent=11 // pred_check_branch
          %214 = sbr.rel (%p212) target = $region20
        $region19: #{tpu_custom_call.1} parent=11 // pred_region
          _
        $region20: #{tpu_custom_call.1} parent=11 // pred_fallthru
          _
        // Predicated region
        $region21: #{tpu_custom_call.1} parent=11 // pred_check
          %p215 = pneg %p105
        $region22: #{tpu_custom_call.1} parent=11 // pred_check_branch
          %217 = sbr.rel (%p215) target = $region24
        $region23: #{tpu_custom_call.1} parent=11 // pred_region
          _
        $region24: #{tpu_custom_call.1} parent=11 // pred_fallthru
          _
        // Predicated region
        $region25: #{tpu_custom_call.1} parent=11 // pred_check
          %p218 = pneg %p126
        $region26: #{tpu_custom_call.1} parent=11 // pred_check_branch
          %220 = sbr.rel (%p218) target = $region28
        $region27: #{tpu_custom_call.1} parent=11 // pred_region
          _
        $region28: #{tpu_custom_call.1} parent=11 // pred_fallthru
          _
        // Predicated region
        $region29: #{tpu_custom_call.1} parent=11 // pred_check
          %p221 = pneg %p147
        $region30: #{tpu_custom_call.1} parent=11 // pred_check_branch
          %223 = sbr.rel (%p221) target = $region32
        $region31: #{tpu_custom_call.1} parent=11 // pred_region
          _
        $region32: #{tpu_custom_call.1} parent=11 // pred_fallthru
          _
        // Predicated region
        $region33: #{tpu_custom_call.1} parent=11 // pred_check
          %p224 = pneg %p168
        $region34: #{tpu_custom_call.1} parent=11 // pred_check_branch
          %226 = sbr.rel (%p224) target = $region36
        $region35: #{tpu_custom_call.1} parent=11 // pred_region
          _
        $region36: #{tpu_custom_call.1} parent=11 // pred_fallthru
          _
      $region12: #{tpu_custom_call.1} parent=5 // pred_fallthru
        _
      %p227 = scmp.lt.s32.totalorder %s16, 2
      // Predicated region
      $region37: #{tpu_custom_call.1} parent=5 // pred_check
        %p228 = pneg %p227
      $region38: #{tpu_custom_call.1} parent=5 // pred_check_branch
        %230 = sbr.rel (%p228) target = $region40
      $region39: #{tpu_custom_call.1} parent=5 // pred_region
        // Predicated region
        $region41: #{tpu_custom_call.1} parent=39 // pred_check
          %p231 = pneg %p36
        $region42: #{tpu_custom_call.1} parent=39 // pred_check_branch
          %233 = sbr.rel (%p231) target = $region44
        $region43: #{tpu_custom_call.1} parent=39 // pred_region
          %p234 = scmp.lt.s32.totalorder %s16, 1
          %s235 = scalar_select %p234, %s16, 1
          %s236 = smul.addr %s235, 32
          %s237 = smul.addr %s236, 8
          %s238 = scalar_lea.vmem %s0, %s237
        $region44: #{tpu_custom_call.1} parent=39 // pred_fallthru
          _
      $region40: #{tpu_custom_call.1} parent=5 // pred_fallthru
        _
      %p239 = scmp.le.s32.totalorder 1, %s16
      %p240 = scmp.lt.s32.totalorder %s16, 3
      %p241 = pnand %p239, %p240
      %p242 = pneg %p241
      // Predicated region
      $region45: #{tpu_custom_call.1} parent=5 // pred_check
        _
      $region46: #{tpu_custom_call.1} parent=5 // pred_check_branch
        %244 = sbr.rel (%p241) target = $region48
      $region47: #{tpu_custom_call.1} parent=5 // pred_region
        %s245 = ssub.s32 %s16, 1
        %p246 = scmp.lt.s32.totalorder %s21, 1
        %s247 = scalar_select %p246, %s21, 1
        %s248 = smul.addr %s247, 32
        %s249 = smul.addr %s248, 8
        %s250 = scalar_lea.vmem %s0, %s249
        %p251 = pneg %p42
        %p252 = pneg %p39
        %p253 = pneg %p63
        %p254 = pneg %p60
        %p255 = pneg %p84
        %p256 = pneg %p81
        %p257 = pneg %p105
        %p258 = pneg %p102
        %p259 = pneg %p126
        %p260 = pneg %p123
        %p261 = pneg %p147
        %p262 = pneg %p144
        %p263 = pneg %p168
        %p264 = pneg %p165
        %p265 = pneg %p194
        %p266 = pneg %p191
        %s267 = sand.u32 %s181, 1
        %s268 = scalar_lea.sflag [#allocation4], %s267
        %s269 = sand.u32 %s181, 1
        %s270 = smul.addr %s269, 256
        %s271 = scalar_lea.vmem [#allocation3], %s270
        %p272 = scmp.lt.s32.totalorder %s21, 1
        %s273 = scalar_select %p272, %s21, 1
        %s274 = smul.addr %s273, 32
        %s275 = smul.addr %s274, 8
        %s276 = scalar_lea.vmem %s0, %s275
        %v277 = vld [vmem:[%s276] sm:$0xff]
        %v278 = vld [vmem:[%s276 + $0x8] sm:$0xff]
        %v279 = vld [vmem:[%s276 + $0x10] sm:$0xff]
        %v280 = vld [vmem:[%s276 + $0x18] sm:$0xff]
        %v281 = vld [vmem:[%s276 + $0x20] sm:$0xff]
        %v282 = vld [vmem:[%s276 + $0x28] sm:$0xff]
        %v283 = vld [vmem:[%s276 + $0x30] sm:$0xff]
        %v284 = vld [vmem:[%s276 + $0x38] sm:$0xff]
        %v285 = vld [vmem:[%s276 + $0x40] sm:$0xff]
        %v286 = vld [vmem:[%s276 + $0x48] sm:$0xff]
        %v287 = vld [vmem:[%s276 + $0x50] sm:$0xff]
        %v288 = vld [vmem:[%s276 + $0x58] sm:$0xff]
        %v289 = vld [vmem:[%s276 + $0x60] sm:$0xff]
        %v290 = vld [vmem:[%s276 + $0x68] sm:$0xff]
        %v291 = vld [vmem:[%s276 + $0x70] sm:$0xff]
        %v292 = vld [vmem:[%s276 + $0x78] sm:$0xff]
        %v293 = vld [vmem:[%s276 + $0x80] sm:$0xff]
        %v294 = vld [vmem:[%s276 + $0x88] sm:$0xff]
        %v295 = vld [vmem:[%s276 + $0x90] sm:$0xff]
        %v296 = vld [vmem:[%s276 + $0x98] sm:$0xff]
        %v297 = vld [vmem:[%s276 + $0xa0] sm:$0xff]
        %v298 = vld [vmem:[%s276 + $0xa8] sm:$0xff]
        %v299 = vld [vmem:[%s276 + $0xb0] sm:$0xff]
        %v300 = vld [vmem:[%s276 + $0xb8] sm:$0xff]
        %v301 = vld [vmem:[%s276 + $0xc0] sm:$0xff]
        %v302 = vld [vmem:[%s276 + $0xc8] sm:$0xff]
        %v303 = vld [vmem:[%s276 + $0xd0] sm:$0xff]
        %v304 = vld [vmem:[%s276 + $0xd8] sm:$0xff]
        %v305 = vld [vmem:[%s276 + $0xe0] sm:$0xff]
        %v306 = vld [vmem:[%s276 + $0xe8] sm:$0xff]
        %v307 = vld [vmem:[%s276 + $0xf0] sm:$0xff]
        %v308 = vld [vmem:[%s276 + $0xf8] sm:$0xff]
        %v309 = vld [vmem:[%s1] sm:$0xff]
        %v310 = vld [vmem:[%s1 + $0x8] sm:$0xff]
        %v311 = vld [vmem:[%s2] sm:$0x1]
        %v313 = vlaneseq
        %v314 = vshrl.u32 %v313, 7
        %v315 = vsub.s32 0, %v314
        %v316 = vrot.slane %v311, %v315
        %vm318 = vcmask 130048
        %v320 = vsel %vm318, %v277, 0
        %v323 = vsel %vm318, %v278, 0
        %v326 = vsel %vm318, %v279, 0
        %v329 = vsel %vm318, %v280, 0
        %v332 = vsel %vm318, %v281, 0
        %v335 = vsel %vm318, %v282, 0
        %v338 = vsel %vm318, %v283, 0
        %v341 = vsel %vm318, %v284, 0
        %v344 = vsel %vm318, %v285, 0
        %v347 = vsel %vm318, %v286, 0
        %v350 = vsel %vm318, %v287, 0
        %v353 = vsel %vm318, %v288, 0
        %v356 = vsel %vm318, %v289, 0
        %v359 = vsel %vm318, %v290, 0
        %v362 = vsel %vm318, %v291, 0
        %v365 = vsel %vm318, %v292, 0
        %v368 = vsel %vm318, %v293, 0
        %v371 = vsel %vm318, %v294, 0
        %v374 = vsel %vm318, %v295, 0
        %v377 = vsel %vm318, %v296, 0
        %v380 = vsel %vm318, %v297, 0
        %v383 = vsel %vm318, %v298, 0
        %v386 = vsel %vm318, %v299, 0
        %v389 = vsel %vm318, %v300, 0
        %v392 = vsel %vm318, %v301, 0
        %v395 = vsel %vm318, %v302, 0
        %v398 = vsel %vm318, %v303, 0
        %v401 = vsel %vm318, %v304, 0
        %v404 = vsel %vm318, %v305, 0
        %v407 = vsel %vm318, %v306, 0
        %v410 = vsel %vm318, %v307, 0
        %v413 = vsel %vm318, %v308, 0
        %415 = vmatprep.subr.mxu0 0.0
        %416 = vmatpush1.msra.mxu0 %v309
        %417 = vmatprep.subr.mxu0 0.0
        %418 = vmatpush1.msra.mxu0 %v310
        %419 = vmatprep.subr.mxu0 0.0
        %420 = vmatpush1.msra.mxu0 0.0
        %421 = vmatprep.subr.mxu0 0.0
        %422 = vmatpush1.msra.mxu0 0.0
        %423 = vmatprep.subr.mxu0 0.0
        %424 = vmatpush1.msra.mxu0 0.0
        %425 = vmatprep.subr.mxu0 0.0
        %426 = vmatpush1.msra.mxu0 0.0
        %427 = vmatprep.subr.mxu0 0.0
        %428 = vmatpush1.msra.mxu0 0.0
        %429 = vmatprep.subr.mxu0 0.0
        %430 = vmatpush1.msra.mxu0 0.0
        %431 = vmatprep.subr.mxu0 0.0
        %432 = vmatpush1.msra.mxu0 0.0
        %433 = vmatprep.subr.mxu0 0.0
        %434 = vmatpush1.msra.mxu0 0.0
        %435 = vmatprep.subr.mxu0 0.0
        %436 = vmatpush1.msra.mxu0 0.0
        %437 = vmatprep.subr.mxu0 0.0
        %438 = vmatpush1.msra.mxu0 0.0
        %439 = vmatprep.subr.mxu0 0.0
        %440 = vmatpush1.msra.mxu0 0.0
        %441 = vmatprep.subr.mxu0 0.0
        %442 = vmatpush1.msra.mxu0 0.0
        %443 = vmatprep.subr.mxu0 0.0
        %444 = vmatpush1.msra.mxu0 0.0
        %445 = vmatprep.subr.mxu0 0.0
        %446 = vmatpush1.msra.mxu0 0.0
        %447 = vmatprep.subr.mxu0 0.0
        %448 = vmatpush1.msra.mxu0 0.0
        %449 = vmatprep.subr.mxu0 0.0
        %450 = vmatpush1.msra.mxu0 0.0
        %451 = vmatprep.subr.mxu0 0.0
        %452 = vmatpush1.msra.mxu0 0.0
        %453 = vmatprep.subr.mxu0 0.0
        %454 = vmatpush1.msra.mxu0 0.0
        %455 = vmatprep.subr.mxu0 0.0
        %456 = vmatpush1.msra.mxu0 0.0
        %457 = vmatprep.subr.mxu0 0.0
        %458 = vmatpush1.msra.mxu0 0.0
        %459 = vmatprep.subr.mxu0 0.0
        %460 = vmatpush1.msra.mxu0 0.0
        %461 = vmatprep.subr.mxu0 0.0
        %462 = vmatpush1.msra.mxu0 0.0
        %463 = vmatprep.subr.mxu0 0.0
        %464 = vmatpush1.msra.mxu0 0.0
        %465 = vmatprep.subr.mxu0 0.0
        %466 = vmatpush1.msra.mxu0 0.0
        %467 = vmatprep.subr.mxu0 0.0
        %468 = vmatpush1.msra.mxu0 0.0
        %469 = vmatprep.subr.mxu0 0.0
        %470 = vmatpush1.msra.mxu0 0.0
        %471 = vmatprep.subr.mxu0 0.0
        %472 = vmatpush1.msra.mxu0 0.0
        %473 = vmatprep.subr.mxu0 0.0
        %474 = vmatpush1.msra.mxu0 0.0
        %475 = vmatprep.subr.mxu0 0.0
        %476 = vmatpush1.msra.mxu0 0.0
        %477 = vmatprep.subr.mxu0 0.0
        %478 = vmatpush1.msra.mxu0 0.0
        %479 = vmatprep.mubr.f32.mxu0 0.0
        %480 = vmatmul.mubr.f32.gmra.mrb[0].mxu0 %v320
        %v481 = vpop.f32.mrb[0].mxu0
        %v482 = vadd.f32 %v316, %v481
        %v483 = vpop.f32.mrb[0].mxu0
        %484 = vmatprep.mubr.f32.mxu0 0.0
        %485 = vmatmul.mubr.f32.gmra.mrb[0].mxu0 %v323
        %v486 = vpop.f32.mrb[0].mxu0
        %v487 = vadd.f32 %v316, %v486
        %v488 = vpop.f32.mrb[0].mxu0
        %489 = vmatprep.mubr.f32.mxu0 0.0
        %490 = vmatmul.mubr.f32.gmra.mrb[0].mxu0 %v326
        %v491 = vpop.f32.mrb[0].mxu0
        %v492 = vadd.f32 %v316, %v491
        %v493 = vpop.f32.mrb[0].mxu0
        %494 = vmatprep.mubr.f32.mxu0 0.0
        %495 = vmatmul.mubr.f32.gmra.mrb[0].mxu0 %v329
        %v496 = vpop.f32.mrb[0].mxu0
        %v497 = vadd.f32 %v316, %v496
        %v498 = vpop.f32.mrb[0].mxu0
        %499 = vmatprep.mubr.f32.mxu0 0.0
        %500 = vmatmul.mubr.f32.gmra.mrb[0].mxu0 %v332
        %v501 = vpop.f32.mrb[0].mxu0
        %v502 = vadd.f32 %v316, %v501
        %v503 = vpop.f32.mrb[0].mxu0
        %504 = vmatprep.mubr.f32.mxu0 0.0
        %505 = vmatmul.mubr.f32.gmra.mrb[0].mxu0 %v335
        %v506 = vpop.f32.mrb[0].mxu0
        %v507 = vadd.f32 %v316, %v506
        %v508 = vpop.f32.mrb[0].mxu0
        %509 = vmatprep.mubr.f32.mxu0 0.0
        %510 = vmatmul.mubr.f32.gmra.mrb[0].mxu0 %v338
        %v511 = vpop.f32.mrb[0].mxu0
        %v512 = vadd.f32 %v316, %v511
        %v513 = vpop.f32.mrb[0].mxu0
        %514 = vmatprep.mubr.f32.mxu0 0.0
        %515 = vmatmul.mubr.f32.gmra.mrb[0].mxu0 %v341
        %v516 = vpop.f32.mrb[0].mxu0
        %v517 = vadd.f32 %v316, %v516
        %v518 = vpop.f32.mrb[0].mxu0
        %519 = vmatprep.mubr.f32.mxu0 0.0
        %520 = vmatmul.mubr.f32.gmra.mrb[0].mxu0 %v344
        %v521 = vpop.f32.mrb[0].mxu0
        %v522 = vadd.f32 %v316, %v521
        %v523 = vpop.f32.mrb[0].mxu0
        %524 = vmatprep.mubr.f32.mxu0 0.0
        %525 = vmatmul.mubr.f32.gmra.mrb[0].mxu0 %v347
        %v526 = vpop.f32.mrb[0].mxu0
        %v527 = vadd.f32 %v316, %v526
        %v528 = vpop.f32.mrb[0].mxu0
        %529 = vmatprep.mubr.f32.mxu0 0.0
        %530 = vmatmul.mubr.f32.gmra.mrb[0].mxu0 %v350
        %v531 = vpop.f32.mrb[0].mxu0
        %v532 = vadd.f32 %v316, %v531
        %v533 = vpop.f32.mrb[0].mxu0
        %534 = vmatprep.mubr.f32.mxu0 0.0
        %535 = vmatmul.mubr.f32.gmra.mrb[0].mxu0 %v353
        %v536 = vpop.f32.mrb[0].mxu0
        %v537 = vadd.f32 %v316, %v536
        %v538 = vpop.f32.mrb[0].mxu0
        %539 = vmatprep.mubr.f32.mxu0 0.0
        %540 = vmatmul.mubr.f32.gmra.mrb[0].mxu0 %v356
        %v541 = vpop.f32.mrb[0].mxu0
        %v542 = vadd.f32 %v316, %v541
        %v543 = vpop.f32.mrb[0].mxu0
        %544 = vmatprep.mubr.f32.mxu0 0.0
        %545 = vmatmul.mubr.f32.gmra.mrb[0].mxu0 %v359
        %v546 = vpop.f32.mrb[0].mxu0
        %v547 = vadd.f32 %v316, %v546
        %v548 = vpop.f32.mrb[0].mxu0
        %549 = vmatprep.mubr.f32.mxu0 0.0
        %550 = vmatmul.mubr.f32.gmra.mrb[0].mxu0 %v362
        %v551 = vpop.f32.mrb[0].mxu0
        %v552 = vadd.f32 %v316, %v551
        %v553 = vpop.f32.mrb[0].mxu0
        %554 = vmatprep.mubr.f32.mxu0 0.0
        %555 = vmatmul.mubr.f32.gmra.mrb[0].mxu0 %v365
        %v556 = vpop.f32.mrb[0].mxu0
        %v557 = vadd.f32 %v316, %v556
        %v558 = vpop.f32.mrb[0].mxu0
        %559 = vmatprep.mubr.f32.mxu0 0.0
        %560 = vmatmul.mubr.f32.gmra.mrb[0].mxu0 %v368
        %v561 = vpop.f32.mrb[0].mxu0
        %v562 = vadd.f32 %v316, %v561
        %v563 = vpop.f32.mrb[0].mxu0
        %564 = vmatprep.mubr.f32.mxu0 0.0
        %565 = vmatmul.mubr.f32.gmra.mrb[0].mxu0 %v371
        %v566 = vpop.f32.mrb[0].mxu0
        %v567 = vadd.f32 %v316, %v566
        %v568 = vpop.f32.mrb[0].mxu0
        %569 = vmatprep.mubr.f32.mxu0 0.0
        %570 = vmatmul.mubr.f32.gmra.mrb[0].mxu0 %v374
        %v571 = vpop.f32.mrb[0].mxu0
        %v572 = vadd.f32 %v316, %v571
        %v573 = vpop.f32.mrb[0].mxu0
        %574 = vmatprep.mubr.f32.mxu0 0.0
        %575 = vmatmul.mubr.f32.gmra.mrb[0].mxu0 %v377
        %v576 = vpop.f32.mrb[0].mxu0
        %v577 = vadd.f32 %v316, %v576
        %v578 = vpop.f32.mrb[0].mxu0
        %579 = vmatprep.mubr.f32.mxu0 0.0
        %580 = vmatmul.mubr.f32.gmra.mrb[0].mxu0 %v380
        %v581 = vpop.f32.mrb[0].mxu0
        %v582 = vadd.f32 %v316, %v581
        %v583 = vpop.f32.mrb[0].mxu0
        %584 = vmatprep.mubr.f32.mxu0 0.0
        %585 = vmatmul.mubr.f32.gmra.mrb[0].mxu0 %v383
        %v586 = vpop.f32.mrb[0].mxu0
        %v587 = vadd.f32 %v316, %v586
        %v588 = vpop.f32.mrb[0].mxu0
        %589 = vmatprep.mubr.f32.mxu0 0.0
        %590 = vmatmul.mubr.f32.gmra.mrb[0].mxu0 %v386
        %v591 = vpop.f32.mrb[0].mxu0
        %v592 = vadd.f32 %v316, %v591
        %v593 = vpop.f32.mrb[0].mxu0
        %594 = vmatprep.mubr.f32.mxu0 0.0
        %595 = vmatmul.mubr.f32.gmra.mrb[0].mxu0 %v389
        %v596 = vpop.f32.mrb[0].mxu0
        %v597 = vadd.f32 %v316, %v596
        %v598 = vpop.f32.mrb[0].mxu0
        %599 = vmatprep.mubr.f32.mxu0 0.0
        %600 = vmatmul.mubr.f32.gmra.mrb[0].mxu0 %v392
        %v601 = vpop.f32.mrb[0].mxu0
        %v602 = vadd.f32 %v316, %v601
        %v603 = vpop.f32.mrb[0].mxu0
        %604 = vmatprep.mubr.f32.mxu0 0.0
        %605 = vmatmul.mubr.f32.gmra.mrb[0].mxu0 %v395
        %v606 = vpop.f32.mrb[0].mxu0
        %v607 = vadd.f32 %v316, %v606
        %v608 = vpop.f32.mrb[0].mxu0
        %609 = vmatprep.mubr.f32.mxu0 0.0
        %610 = vmatmul.mubr.f32.gmra.mrb[0].mxu0 %v398
        %v611 = vpop.f32.mrb[0].mxu0
        %v612 = vadd.f32 %v316, %v611
        %v613 = vpop.f32.mrb[0].mxu0
        %614 = vmatprep.mubr.f32.mxu0 0.0
        %615 = vmatmul.mubr.f32.gmra.mrb[0].mxu0 %v401
        %v616 = vpop.f32.mrb[0].mxu0
        %v617 = vadd.f32 %v316, %v616
        %v618 = vpop.f32.mrb[0].mxu0
        %619 = vmatprep.mubr.f32.mxu0 0.0
        %620 = vmatmul.mubr.f32.gmra.mrb[0].mxu0 %v404
        %v621 = vpop.f32.mrb[0].mxu0
        %v622 = vadd.f32 %v316, %v621
        %v623 = vpop.f32.mrb[0].mxu0
        %624 = vmatprep.mubr.f32.mxu0 0.0
        %625 = vmatmul.mubr.f32.gmra.mrb[0].mxu0 %v407
        %v626 = vpop.f32.mrb[0].mxu0
        %v627 = vadd.f32 %v316, %v626
        %v628 = vpop.f32.mrb[0].mxu0
        %629 = vmatprep.mubr.f32.mxu0 0.0
        %630 = vmatmul.mubr.f32.gmra.mrb[0].mxu0 %v410
        %v631 = vpop.f32.mrb[0].mxu0
        %v632 = vadd.f32 %v316, %v631
        %v633 = vpop.f32.mrb[0].mxu0
        %634 = vmatprep.mubr.f32.mxu0 0.0
        %635 = vmatmul.mubr.f32.gmra.mrb[0].mxu0 %v413
        %v636 = vpop.f32.mrb[0].mxu0
        %v637 = vadd.f32 %v316, %v636
        %v638 = vpop.f32.mrb[0].mxu0
        %639 = vdwg.mxu0
        %v640 = vxor.u32 %v482, 2147483648
        %v641 = vxor.u32 %v487, 2147483648
        %v642 = vxor.u32 %v492, 2147483648
        %v643 = vxor.u32 %v497, 2147483648
        %v644 = vxor.u32 %v502, 2147483648
        %v645 = vxor.u32 %v507, 2147483648
        %v646 = vxor.u32 %v512, 2147483648
        %v647 = vxor.u32 %v517, 2147483648
        %v648 = vxor.u32 %v522, 2147483648
        %v649 = vxor.u32 %v527, 2147483648
        %v650 = vxor.u32 %v532, 2147483648
        %v651 = vxor.u32 %v537, 2147483648
        %v652 = vxor.u32 %v542, 2147483648
        %v653 = vxor.u32 %v547, 2147483648
        %v654 = vxor.u32 %v552, 2147483648
        %v655 = vxor.u32 %v557, 2147483648
        %v656 = vxor.u32 %v562, 2147483648
        %v657 = vxor.u32 %v567, 2147483648
        %v658 = vxor.u32 %v572, 2147483648
        %v659 = vxor.u32 %v577, 2147483648
        %v660 = vxor.u32 %v582, 2147483648
        %v661 = vxor.u32 %v587, 2147483648
        %v662 = vxor.u32 %v592, 2147483648
        %v663 = vxor.u32 %v597, 2147483648
        %v664 = vxor.u32 %v602, 2147483648
        %v665 = vxor.u32 %v607, 2147483648
        %v666 = vxor.u32 %v612, 2147483648
        %v667 = vxor.u32 %v617, 2147483648
        %v668 = vxor.u32 %v622, 2147483648
        %v669 = vxor.u32 %v627, 2147483648
        %v670 = vxor.u32 %v632, 2147483648
        %v671 = vxor.u32 %v637, 2147483648
        %v672 = vmul.f32 %v640, 1.442695
        %v673 = vpow.pop %v672
        %v674 = vmul.f32 %v641, 1.442695
        %v675 = vpow.pop %v674
        %v676 = vmul.f32 %v642, 1.442695
        %v677 = vpow.pop %v676
        %v678 = vmul.f32 %v643, 1.442695
        %v679 = vpow.pop %v678
        %v680 = vmul.f32 %v644, 1.442695
        %v681 = vpow.pop %v680
        %v682 = vmul.f32 %v645, 1.442695
        %v683 = vpow.pop %v682
        %v684 = vmul.f32 %v646, 1.442695
        %v685 = vpow.pop %v684
        %v686 = vmul.f32 %v647, 1.442695
        %v687 = vpow.pop %v686
        %v688 = vmul.f32 %v648, 1.442695
        %v689 = vpow.pop %v688
        %v690 = vmul.f32 %v649, 1.442695
        %v691 = vpow.pop %v690
        %v692 = vmul.f32 %v650, 1.442695
        %v693 = vpow.pop %v692
        %v694 = vmul.f32 %v651, 1.442695
        %v695 = vpow.pop %v694
        %v696 = vmul.f32 %v652, 1.442695
        %v697 = vpow.pop %v696
        %v698 = vmul.f32 %v653, 1.442695
        %v699 = vpow.pop %v698
        %v700 = vmul.f32 %v654, 1.442695
        %v701 = vpow.pop %v700
        %v702 = vmul.f32 %v655, 1.442695
        %v703 = vpow.pop %v702
        %v704 = vmul.f32 %v656, 1.442695
        %v705 = vpow.pop %v704
        %v706 = vmul.f32 %v657, 1.442695
        %v707 = vpow.pop %v706
        %v708 = vmul.f32 %v658, 1.442695
        %v709 = vpow.pop %v708
        %v710 = vmul.f32 %v659, 1.442695
        %v711 = vpow.pop %v710
        %v712 = vmul.f32 %v660, 1.442695
        %v713 = vpow.pop %v712
        %v714 = vmul.f32 %v661, 1.442695
        %v715 = vpow.pop %v714
        %v716 = vmul.f32 %v662, 1.442695
        %v717 = vpow.pop %v716
        %v718 = vmul.f32 %v663, 1.442695
        %v719 = vpow.pop %v718
        %v720 = vmul.f32 %v664, 1.442695
        %v721 = vpow.pop %v720
        %v722 = vmul.f32 %v665, 1.442695
        %v723 = vpow.pop %v722
        %v724 = vmul.f32 %v666, 1.442695
        %v725 = vpow.pop %v724
        %v726 = vmul.f32 %v667, 1.442695
        %v727 = vpow.pop %v726
        %v728 = vmul.f32 %v668, 1.442695
        %v729 = vpow.pop %v728
        %v730 = vmul.f32 %v669, 1.442695
        %v731 = vpow.pop %v730
        %v732 = vmul.f32 %v670, 1.442695
        %v733 = vpow.pop %v732
        %v734 = vmul.f32 %v671, 1.442695
        %v735 = vpow.pop %v734
        %v736 = vadd.f32 %v673, 1.0
        %v737 = vadd.f32 %v675, 1.0
        %v738 = vadd.f32 %v677, 1.0
        %v739 = vadd.f32 %v679, 1.0
        %v740 = vadd.f32 %v681, 1.0
        %v741 = vadd.f32 %v683, 1.0
        %v742 = vadd.f32 %v685, 1.0
        %v743 = vadd.f32 %v687, 1.0
        %v744 = vadd.f32 %v689, 1.0
        %v745 = vadd.f32 %v691, 1.0
        %v746 = vadd.f32 %v693, 1.0
        %v747 = vadd.f32 %v695, 1.0
        %v748 = vadd.f32 %v697, 1.0
        %v749 = vadd.f32 %v699, 1.0
        %v750 = vadd.f32 %v701, 1.0
        %v751 = vadd.f32 %v703, 1.0
        %v752 = vadd.f32 %v705, 1.0
        %v753 = vadd.f32 %v707, 1.0
        %v754 = vadd.f32 %v709, 1.0
        %v755 = vadd.f32 %v711, 1.0
        %v756 = vadd.f32 %v713, 1.0
        %v757 = vadd.f32 %v715, 1.0
        %v758 = vadd.f32 %v717, 1.0
        %v759 = vadd.f32 %v719, 1.0
        %v760 = vadd.f32 %v721, 1.0
        %v761 = vadd.f32 %v723, 1.0
        %v762 = vadd.f32 %v725, 1.0
        %v763 = vadd.f32 %v727, 1.0
        %v764 = vadd.f32 %v729, 1.0
        %v765 = vadd.f32 %v731, 1.0
        %v766 = vadd.f32 %v733, 1.0
        %v767 = vadd.f32 %v735, 1.0
        %v768 = vrcp.pop %v736
        %v769 = vmul.f32 1.0, %v768
        %v770 = vrcp.pop %v737
        %v771 = vmul.f32 1.0, %v770
        %v772 = vrcp.pop %v738
        %v773 = vmul.f32 1.0, %v772
        %v774 = vrcp.pop %v739
        %v775 = vmul.f32 1.0, %v774
        %v776 = vrcp.pop %v740
        %v777 = vmul.f32 1.0, %v776
        %v778 = vrcp.pop %v741
        %v779 = vmul.f32 1.0, %v778
        %v780 = vrcp.pop %v742
        %v781 = vmul.f32 1.0, %v780
        %v782 = vrcp.pop %v743
        %v783 = vmul.f32 1.0, %v782
        %v784 = vrcp.pop %v744
        %v785 = vmul.f32 1.0, %v784
        %v786 = vrcp.pop %v745
        %v787 = vmul.f32 1.0, %v786
        %v788 = vrcp.pop %v746
        %v789 = vmul.f32 1.0, %v788
        %v790 = vrcp.pop %v747
        %v791 = vmul.f32 1.0, %v790
        %v792 = vrcp.pop %v748
        %v793 = vmul.f32 1.0, %v792
        %v794 = vrcp.pop %v749
        %v795 = vmul.f32 1.0, %v794
        %v796 = vrcp.pop %v750
        %v797 = vmul.f32 1.0, %v796
        %v798 = vrcp.pop %v751
        %v799 = vmul.f32 1.0, %v798
        %v800 = vrcp.pop %v752
        %v801 = vmul.f32 1.0, %v800
        %v802 = vrcp.pop %v753
        %v803 = vmul.f32 1.0, %v802
        %v804 = vrcp.pop %v754
        %v805 = vmul.f32 1.0, %v804
        %v806 = vrcp.pop %v755
        %v807 = vmul.f32 1.0, %v806
        %v808 = vrcp.pop %v756
        %v809 = vmul.f32 1.0, %v808
        %v810 = vrcp.pop %v757
        %v811 = vmul.f32 1.0, %v810
        %v812 = vrcp.pop %v758
        %v813 = vmul.f32 1.0, %v812
        %v814 = vrcp.pop %v759
        %v815 = vmul.f32 1.0, %v814
        %v816 = vrcp.pop %v760
        %v817 = vmul.f32 1.0, %v816
        %v818 = vrcp.pop %v761
        %v819 = vmul.f32 1.0, %v818
        %v820 = vrcp.pop %v762
        %v821 = vmul.f32 1.0, %v820
        %v822 = vrcp.pop %v763
        %v823 = vmul.f32 1.0, %v822
        %v824 = vrcp.pop %v764
        %v825 = vmul.f32 1.0, %v824
        %v826 = vrcp.pop %v765
        %v827 = vmul.f32 1.0, %v826
        %v828 = vrcp.pop %v766
        %v829 = vmul.f32 1.0, %v828
        %v830 = vrcp.pop %v767
        %v831 = vmul.f32 1.0, %v830
        %v832 = vmul.f32 %v482, %v769
        %v833 = vmul.f32 %v487, %v771
        %v834 = vmul.f32 %v492, %v773
        %v835 = vmul.f32 %v497, %v775
        %v836 = vmul.f32 %v502, %v777
        %v837 = vmul.f32 %v507, %v779
        %v838 = vmul.f32 %v512, %v781
        %v839 = vmul.f32 %v517, %v783
        %v840 = vmul.f32 %v522, %v785
        %v841 = vmul.f32 %v527, %v787
        %v842 = vmul.f32 %v532, %v789
        %v843 = vmul.f32 %v537, %v791
        %v844 = vmul.f32 %v542, %v793
        %v845 = vmul.f32 %v547, %v795
        %v846 = vmul.f32 %v552, %v797
        %v847 = vmul.f32 %v557, %v799
        %v848 = vmul.f32 %v562, %v801
        %v849 = vmul.f32 %v567, %v803
        %v850 = vmul.f32 %v572, %v805
        %v851 = vmul.f32 %v577, %v807
        %v852 = vmul.f32 %v582, %v809
        %v853 = vmul.f32 %v587, %v811
        %v854 = vmul.f32 %v592, %v813
        %v855 = vmul.f32 %v597, %v815
        %v856 = vmul.f32 %v602, %v817
        %v857 = vmul.f32 %v607, %v819
        %v858 = vmul.f32 %v612, %v821
        %v859 = vmul.f32 %v617, %v823
        %v860 = vmul.f32 %v622, %v825
        %v861 = vmul.f32 %v627, %v827
        %v862 = vmul.f32 %v632, %v829
        %v863 = vmul.f32 %v637, %v831
        %vm864 = vcmask 64512
        %865 = vst.msk [vmem:[#allocation2] sm:$0xff] %vm864, 0.0
        %866 = vst.msk [vmem:[#allocation2 + $0x8] sm:$0xff] %vm864, 0.0
        %vm867 = vcmask 58368
        %868 = vst.msk [vmem:[#allocation2 + $0x10] sm:$0x3] %vm867, 0.0
        %869 = vst.msk [vmem:[#allocation2 + $0x18] sm:$0xff] %vm864, 0.0
        %870 = vst.msk [vmem:[#allocation2 + $0x20] sm:$0xff] %vm864, 0.0
        %871 = vst.msk [vmem:[#allocation2 + $0x28] sm:$0x3] %vm867, 0.0
        %872 = vst.msk [vmem:[#allocation2 + $0x30] sm:$0xff] %vm864, 0.0
        %873 = vst.msk [vmem:[#allocation2 + $0x38] sm:$0xff] %vm864, 0.0
        %874 = vst.msk [vmem:[#allocation2 + $0x40] sm:$0x3] %vm867, 0.0
        %875 = vst.msk [vmem:[#allocation2 + $0x48] sm:$0xff] %vm864, 0.0
        %876 = vst.msk [vmem:[#allocation2 + $0x50] sm:$0xff] %vm864, 0.0
        %877 = vst.msk [vmem:[#allocation2 + $0x58] sm:$0x3] %vm867, 0.0
        %878 = vst.msk [vmem:[#allocation2 + $0x60] sm:$0xff] %vm864, 0.0
        %879 = vst.msk [vmem:[#allocation2 + $0x68] sm:$0xff] %vm864, 0.0
        %880 = vst.msk [vmem:[#allocation2 + $0x70] sm:$0x3] %vm867, 0.0
        %881 = vst.msk [vmem:[#allocation2 + $0x78] sm:$0xff] %vm864, 0.0
        %882 = vst.msk [vmem:[#allocation2 + $0x80] sm:$0xff] %vm864, 0.0
        %883 = vst.msk [vmem:[#allocation2 + $0x88] sm:$0x3] %vm867, 0.0
        %884 = vst.msk [vmem:[#allocation2 + $0x90] sm:$0xff] %vm864, 0.0
        %885 = vst.msk [vmem:[#allocation2 + $0x98] sm:$0xff] %vm864, 0.0
        %886 = vst.msk [vmem:[#allocation2 + $0xa0] sm:$0x3] %vm867, 0.0
        %887 = vst.msk [vmem:[#allocation2 + $0xa8] sm:$0xff] %vm864, 0.0
        %888 = vst.msk [vmem:[#allocation2 + $0xb0] sm:$0xff] %vm864, 0.0
        %889 = vst.msk [vmem:[#allocation2 + $0xb8] sm:$0x3] %vm867, 0.0
        %890 = vst.msk [vmem:[#allocation2 + $0xc0] sm:$0xff] %vm864, 0.0
        %891 = vst.msk [vmem:[#allocation2 + $0xc8] sm:$0xff] %vm864, 0.0
        %892 = vst.msk [vmem:[#allocation2 + $0xd0] sm:$0x3] %vm867, 0.0
        %893 = vst.msk [vmem:[#allocation2 + $0xd8] sm:$0xff] %vm864, 0.0
        %894 = vst.msk [vmem:[#allocation2 + $0xe0] sm:$0xff] %vm864, 0.0
        %895 = vst.msk [vmem:[#allocation2 + $0xe8] sm:$0x3] %vm867, 0.0
        %896 = vst.msk [vmem:[#allocation2 + $0xf0] sm:$0xff] %vm864, 0.0
        %897 = vst.msk [vmem:[#allocation2 + $0xf8] sm:$0xff] %vm864, 0.0
        %898 = vst.msk [vmem:[#allocation2 + $0x100] sm:$0x3] %vm867, 0.0
        %899 = vst.msk [vmem:[#allocation2 + $0x108] sm:$0xff] %vm864, 0.0
        %900 = vst.msk [vmem:[#allocation2 + $0x110] sm:$0xff] %vm864, 0.0
        %901 = vst.msk [vmem:[#allocation2 + $0x118] sm:$0x3] %vm867, 0.0
        %902 = vst.msk [vmem:[#allocation2 + $0x120] sm:$0xff] %vm864, 0.0
        %903 = vst.msk [vmem:[#allocation2 + $0x128] sm:$0xff] %vm864, 0.0
        %904 = vst.msk [vmem:[#allocation2 + $0x130] sm:$0x3] %vm867, 0.0
        %905 = vst.msk [vmem:[#allocation2 + $0x138] sm:$0xff] %vm864, 0.0
        %906 = vst.msk [vmem:[#allocation2 + $0x140] sm:$0xff] %vm864, 0.0
        %907 = vst.msk [vmem:[#allocation2 + $0x148] sm:$0x3] %vm867, 0.0
        %908 = vst.msk [vmem:[#allocation2 + $0x150] sm:$0xff] %vm864, 0.0
        %909 = vst.msk [vmem:[#allocation2 + $0x158] sm:$0xff] %vm864, 0.0
        %910 = vst.msk [vmem:[#allocation2 + $0x160] sm:$0x3] %vm867, 0.0
        %911 = vst.msk [vmem:[#allocation2 + $0x168] sm:$0xff] %vm864, 0.0
        %912 = vst.msk [vmem:[#allocation2 + $0x170] sm:$0xff] %vm864, 0.0
        %913 = vst.msk [vmem:[#allocation2 + $0x178] sm:$0x3] %vm867, 0.0
        %914 = vst.msk [vmem:[#allocation2 + $0x180] sm:$0xff] %vm864, 0.0
        %915 = vst.msk [vmem:[#allocation2 + $0x188] sm:$0xff] %vm864, 0.0
        %916 = vst.msk [vmem:[#allocation2 + $0x190] sm:$0x3] %vm867, 0.0
        %917 = vst.msk [vmem:[#allocation2 + $0x198] sm:$0xff] %vm864, 0.0
        %918 = vst.msk [vmem:[#allocation2 + $0x1a0] sm:$0xff] %vm864, 0.0
        %919 = vst.msk [vmem:[#allocation2 + $0x1a8] sm:$0x3] %vm867, 0.0
        %s920 = scalar_lea.vmem [#allocation2], 24
        %921 = vst.msk [vmem:[%s920 + $0x1] sm:$0xff] %vm864, %v832
        %922 = vst.msk [vmem:[%s920 + $0x9] sm:$0xff] %vm864, %v833
        %923 = vst.msk [vmem:[%s920 + $0x19] sm:$0xff] %vm864, %v834
        %924 = vst.msk [vmem:[%s920 + $0x21] sm:$0xff] %vm864, %v835
        %925 = vst.msk [vmem:[%s920 + $0x31] sm:$0xff] %vm864, %v836
        %926 = vst.msk [vmem:[%s920 + $0x39] sm:$0xff] %vm864, %v837
        %927 = vst.msk [vmem:[%s920 + $0x49] sm:$0xff] %vm864, %v838
        %928 = vst.msk [vmem:[%s920 + $0x51] sm:$0xff] %vm864, %v839
        %929 = vst.msk [vmem:[%s920 + $0x61] sm:$0xff] %vm864, %v840
        %930 = vst.msk [vmem:[%s920 + $0x69] sm:$0xff] %vm864, %v841
        %931 = vst.msk [vmem:[%s920 + $0x79] sm:$0xff] %vm864, %v842
        %932 = vst.msk [vmem:[%s920 + $0x81] sm:$0xff] %vm864, %v843
        %933 = vst.msk [vmem:[%s920 + $0x91] sm:$0xff] %vm864, %v844
        %934 = vst.msk [vmem:[%s920 + $0x99] sm:$0xff] %vm864, %v845
        %935 = vst.msk [vmem:[%s920 + $0xa9] sm:$0xff] %vm864, %v846
        %936 = vst.msk [vmem:[%s920 + $0xb1] sm:$0xff] %vm864, %v847
        %937 = vst.msk [vmem:[%s920 + $0xc1] sm:$0xff] %vm864, %v848
        %938 = vst.msk [vmem:[%s920 + $0xc9] sm:$0xff] %vm864, %v849
        %939 = vst.msk [vmem:[%s920 + $0xd9] sm:$0xff] %vm864, %v850
        %940 = vst.msk [vmem:[%s920 + $0xe1] sm:$0xff] %vm864, %v851
        %941 = vst.msk [vmem:[%s920 + $0xf1] sm:$0xff] %vm864, %v852
        %942 = vst.msk [vmem:[%s920 + $0xf9] sm:$0xff] %vm864, %v853
        %943 = vst.msk [vmem:[%s920 + $0x109] sm:$0xff] %vm864, %v854
        %944 = vst.msk [vmem:[%s920 + $0x111] sm:$0xff] %vm864, %v855
        %945 = vst.msk [vmem:[%s920 + $0x121] sm:$0xff] %vm864, %v856
        %946 = vst.msk [vmem:[%s920 + $0x129] sm:$0xff] %vm864, %v857
        %947 = vst.msk [vmem:[%s920 + $0x139] sm:$0xff] %vm864, %v858
        %948 = vst.msk [vmem:[%s920 + $0x141] sm:$0xff] %vm864, %v859
        %949 = vst.msk [vmem:[%s920 + $0x151] sm:$0xff] %vm864, %v860
        %950 = vst.msk [vmem:[%s920 + $0x159] sm:$0xff] %vm864, %v861
        %951 = vst.msk [vmem:[%s920 + $0x169] sm:$0xff] %vm864, %v862
        %952 = vst.msk [vmem:[%s920 + $0x171] sm:$0xff] %vm864, %v863
        %v953 = vld [vmem:[#allocation2] sm:$0xff]
        %v954 = vld [vmem:[#allocation2 + $0x8] sm:$0xff]
        %v955 = vld [vmem:[#allocation2 + $0x18] sm:$0xff]
        %v956 = vld [vmem:[#allocation2 + $0x20] sm:$0xff]
        %v957 = vld [vmem:[#allocation2 + $0x30] sm:$0xff]
        %v958 = vld [vmem:[#allocation2 + $0x38] sm:$0xff]
        %v959 = vld [vmem:[#allocation2 + $0x48] sm:$0xff]
        %v960 = vld [vmem:[#allocation2 + $0x50] sm:$0xff]
        %v961 = vld [vmem:[#allocation2 + $0x60] sm:$0xff]
        %v962 = vld [vmem:[#allocation2 + $0x68] sm:$0xff]
        %v963 = vld [vmem:[#allocation2 + $0x78] sm:$0xff]
        %v964 = vld [vmem:[#allocation2 + $0x80] sm:$0xff]
        %v965 = vld [vmem:[#allocation2 + $0x90] sm:$0xff]
        %v966 = vld [vmem:[#allocation2 + $0x98] sm:$0xff]
        %v967 = vld [vmem:[#allocation2 + $0xa8] sm:$0xff]
        %v968 = vld [vmem:[#allocation2 + $0xb0] sm:$0xff]
        %v969 = vld [vmem:[#allocation2 + $0xc0] sm:$0xff]
        %v970 = vld [vmem:[#allocation2 + $0xc8] sm:$0xff]
        %v971 = vld [vmem:[#allocation2 + $0xd8] sm:$0xff]
        %v972 = vld [vmem:[#allocation2 + $0xe0] sm:$0xff]
        %v973 = vld [vmem:[#allocation2 + $0xf0] sm:$0xff]
        %v974 = vld [vmem:[#allocation2 + $0xf8] sm:$0xff]
        %v975 = vld [vmem:[#allocation2 + $0x108] sm:$0xff]
        %v976 = vld [vmem:[#allocation2 + $0x110] sm:$0xff]
        %v977 = vld [vmem:[#allocation2 + $0x120] sm:$0xff]
        %v978 = vld [vmem:[#allocation2 + $0x128] sm:$0xff]
        %v979 = vld [vmem:[#allocation2 + $0x138] sm:$0xff]
        %v980 = vld [vmem:[#allocation2 + $0x140] sm:$0xff]
        %v981 = vld [vmem:[#allocation2 + $0x150] sm:$0xff]
        %v982 = vld [vmem:[#allocation2 + $0x158] sm:$0xff]
        %v983 = vld [vmem:[#allocation2 + $0x168] sm:$0xff]
        %v984 = vld [vmem:[#allocation2 + $0x170] sm:$0xff]
        %v985 = vld [vmem:[%s3] sm:$0xff]
        %v986 = vld [vmem:[#allocation2 + $0x1] sm:$0xff]
        %v987 = vld [vmem:[#allocation2 + $0x9] sm:$0xff]
        %v988 = vld [vmem:[#allocation2 + $0x19] sm:$0xff]
        %v989 = vld [vmem:[#allocation2 + $0x21] sm:$0xff]
        %v990 = vld [vmem:[#allocation2 + $0x31] sm:$0xff]
        %v991 = vld [vmem:[#allocation2 + $0x39] sm:$0xff]
        %v992 = vld [vmem:[#allocation2 + $0x49] sm:$0xff]
        %v993 = vld [vmem:[#allocation2 + $0x51] sm:$0xff]
        %v994 = vld [vmem:[#allocation2 + $0x61] sm:$0xff]
        %v995 = vld [vmem:[#allocation2 + $0x69] sm:$0xff]
        %v996 = vld [vmem:[#allocation2 + $0x79] sm:$0xff]
        %v997 = vld [vmem:[#allocation2 + $0x81] sm:$0xff]
        %v998 = vld [vmem:[#allocation2 + $0x91] sm:$0xff]
        %v999 = vld [vmem:[#allocation2 + $0x99] sm:$0xff]
        %v1000 = vld [vmem:[#allocation2 + $0xa9] sm:$0xff]
        %v1001 = vld [vmem:[#allocation2 + $0xb1] sm:$0xff]
        %v1002 = vld [vmem:[#allocation2 + $0xc1] sm:$0xff]
        %v1003 = vld [vmem:[#allocation2 + $0xc9] sm:$0xff]
        %v1004 = vld [vmem:[#allocation2 + $0xd9] sm:$0xff]
        %v1005 = vld [vmem:[#allocation2 + $0xe1] sm:$0xff]
        %v1006 = vld [vmem:[#allocation2 + $0xf1] sm:$0xff]
        %v1007 = vld [vmem:[#allocation2 + $0xf9] sm:$0xff]
        %v1008 = vld [vmem:[#allocation2 + $0x109] sm:$0xff]
        %v1009 = vld [vmem:[#allocation2 + $0x111] sm:$0xff]
        %v1010 = vld [vmem:[#allocation2 + $0x121] sm:$0xff]
        %v1011 = vld [vmem:[#allocation2 + $0x129] sm:$0xff]
        %v1012 = vld [vmem:[#allocation2 + $0x139] sm:$0xff]
        %v1013 = vld [vmem:[#allocation2 + $0x141] sm:$0xff]
        %v1014 = vld [vmem:[#allocation2 + $0x151] sm:$0xff]
        %v1015 = vld [vmem:[#allocation2 + $0x159] sm:$0xff]
        %v1016 = vld [vmem:[#allocation2 + $0x169] sm:$0xff]
        %v1017 = vld [vmem:[#allocation2 + $0x171] sm:$0xff]
        %s1018 = scalar_lea.vmem %s3, 8
        %v1019 = vld [vmem:[%s1018] sm:$0xff]
        %v1021 = vsel %vm864, %v986, 0
        %v1024 = vsel %vm864, %v987, 0
        %v1027 = vsel %vm864, %v988, 0
        %v1030 = vsel %vm864, %v989, 0
        %v1033 = vsel %vm864, %v990, 0
        %v1036 = vsel %vm864, %v991, 0
        %v1039 = vsel %vm864, %v992, 0
        %v1042 = vsel %vm864, %v993, 0
        %v1045 = vsel %vm864, %v994, 0
        %v1048 = vsel %vm864, %v995, 0
        %v1051 = vsel %vm864, %v996, 0
        %v1054 = vsel %vm864, %v997, 0
        %v1057 = vsel %vm864, %v998, 0
        %v1060 = vsel %vm864, %v999, 0
        %v1063 = vsel %vm864, %v1000, 0
        %v1066 = vsel %vm864, %v1001, 0
        %v1069 = vsel %vm864, %v1002, 0
        %v1072 = vsel %vm864, %v1003, 0
        %v1075 = vsel %vm864, %v1004, 0
        %v1078 = vsel %vm864, %v1005, 0
        %v1081 = vsel %vm864, %v1006, 0
        %v1084 = vsel %vm864, %v1007, 0
        %v1087 = vsel %vm864, %v1008, 0
        %v1090 = vsel %vm864, %v1009, 0
        %v1093 = vsel %vm864, %v1010, 0
        %v1096 = vsel %vm864, %v1011, 0
        %v1099 = vsel %vm864, %v1012, 0
        %v1102 = vsel %vm864, %v1013, 0
        %v1105 = vsel %vm864, %v1014, 0
        %v1108 = vsel %vm864, %v1015, 0
        %v1111 = vsel %vm864, %v1016, 0
        %v1114 = vsel %vm864, %v1017, 0
        %1116 = vmatprep.subr.mxu0 0.0
        %1117 = vmatpush1.msra.mxu0 %v1019
        %1118 = vmatprep.subr.mxu0 0.0
        %1119 = vmatpush1.msra.mxu0 0.0
        %1120 = vmatprep.subr.mxu0 0.0
        %1121 = vmatpush1.msra.mxu0 0.0
        %1122 = vmatprep.subr.mxu0 0.0
        %1123 = vmatpush1.msra.mxu0 0.0
        %1124 = vmatprep.subr.mxu0 0.0
        %1125 = vmatpush1.msra.mxu0 0.0
        %1126 = vmatprep.subr.mxu0 0.0
        %1127 = vmatpush1.msra.mxu0 0.0
        %1128 = vmatprep.subr.mxu0 0.0
        %1129 = vmatpush1.msra.mxu0 0.0
        %1130 = vmatprep.subr.mxu0 0.0
        %1131 = vmatpush1.msra.mxu0 0.0
        %1132 = vmatprep.subr.mxu0 0.0
        %1133 = vmatpush1.msra.mxu0 0.0
        %1134 = vmatprep.subr.mxu0 0.0
        %1135 = vmatpush1.msra.mxu0 0.0
        %1136 = vmatprep.subr.mxu0 0.0
        %1137 = vmatpush1.msra.mxu0 0.0
        %1138 = vmatprep.subr.mxu0 0.0
        %1139 = vmatpush1.msra.mxu0 0.0
        %1140 = vmatprep.subr.mxu0 0.0
        %1141 = vmatpush1.msra.mxu0 0.0
        %1142 = vmatprep.subr.mxu0 0.0
        %1143 = vmatpush1.msra.mxu0 0.0
        %1144 = vmatprep.subr.mxu0 0.0
        %1145 = vmatpush1.msra.mxu0 0.0
        %1146 = vmatprep.subr.mxu0 0.0
        %1147 = vmatpush1.msra.mxu0 0.0
        %1148 = vmatprep.subr.mxu0 0.0
        %1149 = vmatpush1.msra.mxu0 0.0
        %1150 = vmatprep.subr.mxu0 0.0
        %1151 = vmatpush1.msra.mxu0 0.0
        %1152 = vmatprep.subr.mxu0 0.0
        %1153 = vmatpush1.msra.mxu0 0.0
        %1154 = vmatprep.subr.mxu0 0.0
        %1155 = vmatpush1.msra.mxu0 0.0
        %1156 = vmatprep.subr.mxu0 0.0
        %1157 = vmatpush1.msra.mxu0 0.0
        %1158 = vmatprep.subr.mxu0 0.0
        %1159 = vmatpush1.msra.mxu0 0.0
        %1160 = vmatprep.subr.mxu0 0.0
        %1161 = vmatpush1.msra.mxu0 0.0
        %1162 = vmatprep.subr.mxu0 0.0
        %1163 = vmatpush1.msra.mxu0 0.0
        %1164 = vmatprep.subr.mxu0 0.0
        %1165 = vmatpush1.msra.mxu0 0.0
        %1166 = vmatprep.subr.mxu0 0.0
        %1167 = vmatpush1.msra.mxu0 0.0
        %1168 = vmatprep.subr.mxu0 0.0
        %1169 = vmatpush1.msra.mxu0 0.0
        %1170 = vmatprep.subr.mxu0 0.0
        %1171 = vmatpush1.msra.mxu0 0.0
        %1172 = vmatprep.subr.mxu0 0.0
        %1173 = vmatpush1.msra.mxu0 0.0
        %1174 = vmatprep.subr.mxu0 0.0
        %1175 = vmatpush1.msra.mxu0 0.0
        %1176 = vmatprep.subr.mxu0 0.0
        %1177 = vmatpush1.msra.mxu0 0.0
        %1178 = vmatprep.subr.mxu0 0.0
        %1179 = vmatpush1.msra.mxu0 0.0
        %1180 = vmatprep.mubr.f32.mxu0 0.0
        %1181 = vmatmul.mubr.f32.gmra.mrb[0].mxu0 %v1021
        %v1182 = vpop.f32.mrb[0].mxu0
        %v1183 = vadd.f32 0.0, %v1182
        %v1184 = vpop.f32.mrb[0].mxu0
        %1185 = vmatprep.mubr.f32.mxu0 0.0
        %1186 = vmatmul.mubr.f32.gmra.mrb[0].mxu0 %v1024
        %v1187 = vpop.f32.mrb[0].mxu0
        %v1188 = vadd.f32 0.0, %v1187
        %v1189 = vpop.f32.mrb[0].mxu0
        %1190 = vmatprep.mubr.f32.mxu0 0.0
        %1191 = vmatmul.mubr.f32.gmra.mrb[0].mxu0 %v1027
        %v1192 = vpop.f32.mrb[0].mxu0
        %v1193 = vadd.f32 0.0, %v1192
        %v1194 = vpop.f32.mrb[0].mxu0
        %1195 = vmatprep.mubr.f32.mxu0 0.0
        %1196 = vmatmul.mubr.f32.gmra.mrb[0].mxu0 %v1030
        %v1197 = vpop.f32.mrb[0].mxu0
        %v1198 = vadd.f32 0.0, %v1197
        %v1199 = vpop.f32.mrb[0].mxu0
        %1200 = vmatprep.mubr.f32.mxu0 0.0
        %1201 = vmatmul.mubr.f32.gmra.mrb[0].mxu0 %v1033
        %v1202 = vpop.f32.mrb[0].mxu0
        %v1203 = vadd.f32 0.0, %v1202
        %v1204 = vpop.f32.mrb[0].mxu0
        %1205 = vmatprep.mubr.f32.mxu0 0.0
        %1206 = vmatmul.mubr.f32.gmra.mrb[0].mxu0 %v1036
        %v1207 = vpop.f32.mrb[0].mxu0
        %v1208 = vadd.f32 0.0, %v1207
        %v1209 = vpop.f32.mrb[0].mxu0
        %1210 = vmatprep.mubr.f32.mxu0 0.0
        %1211 = vmatmul.mubr.f32.gmra.mrb[0].mxu0 %v1039
        %v1212 = vpop.f32.mrb[0].mxu0
        %v1213 = vadd.f32 0.0, %v1212
        %v1214 = vpop.f32.mrb[0].mxu0
        %1215 = vmatprep.mubr.f32.mxu0 0.0
        %1216 = vmatmul.mubr.f32.gmra.mrb[0].mxu0 %v1042
        %v1217 = vpop.f32.mrb[0].mxu0
        %v1218 = vadd.f32 0.0, %v1217
        %v1219 = vpop.f32.mrb[0].mxu0
        %1220 = vmatprep.mubr.f32.mxu0 0.0
        %1221 = vmatmul.mubr.f32.gmra.mrb[0].mxu0 %v1045
        %v1222 = vpop.f32.mrb[0].mxu0
        %v1223 = vadd.f32 0.0, %v1222
        %v1224 = vpop.f32.mrb[0].mxu0
        %1225 = vmatprep.mubr.f32.mxu0 0.0
        %1226 = vmatmul.mubr.f32.gmra.mrb[0].mxu0 %v1048
        %v1227 = vpop.f32.mrb[0].mxu0
        %v1228 = vadd.f32 0.0, %v1227
        %v1229 = vpop.f32.mrb[0].mxu0
        %1230 = vmatprep.mubr.f32.mxu0 0.0
        %1231 = vmatmul.mubr.f32.gmra.mrb[0].mxu0 %v1051
        %v1232 = vpop.f32.mrb[0].mxu0
        %v1233 = vadd.f32 0.0, %v1232
        %v1234 = vpop.f32.mrb[0].mxu0
        %1235 = vmatprep.mubr.f32.mxu0 0.0
        %1236 = vmatmul.mubr.f32.gmra.mrb[0].mxu0 %v1054
        %v1237 = vpop.f32.mrb[0].mxu0
        %v1238 = vadd.f32 0.0, %v1237
        %v1239 = vpop.f32.mrb[0].mxu0
        %1240 = vmatprep.mubr.f32.mxu0 0.0
        %1241 = vmatmul.mubr.f32.gmra.mrb[0].mxu0 %v1057
        %v1242 = vpop.f32.mrb[0].mxu0
        %v1243 = vadd.f32 0.0, %v1242
        %v1244 = vpop.f32.mrb[0].mxu0
        %1245 = vmatprep.mubr.f32.mxu0 0.0
        %1246 = vmatmul.mubr.f32.gmra.mrb[0].mxu0 %v1060
        %v1247 = vpop.f32.mrb[0].mxu0
        %v1248 = vadd.f32 0.0, %v1247
        %v1249 = vpop.f32.mrb[0].mxu0
        %1250 = vmatprep.mubr.f32.mxu0 0.0
        %1251 = vmatmul.mubr.f32.gmra.mrb[0].mxu0 %v1063
        %v1252 = vpop.f32.mrb[0].mxu0
        %v1253 = vadd.f32 0.0, %v1252
        %v1254 = vpop.f32.mrb[0].mxu0
        %1255 = vmatprep.mubr.f32.mxu0 0.0
        %1256 = vmatmul.mubr.f32.gmra.mrb[0].mxu0 %v1066
        %v1257 = vpop.f32.mrb[0].mxu0
        %v1258 = vadd.f32 0.0, %v1257
        %v1259 = vpop.f32.mrb[0].mxu0
        %1260 = vmatprep.mubr.f32.mxu0 0.0
        %1261 = vmatmul.mubr.f32.gmra.mrb[0].mxu0 %v1069
        %v1262 = vpop.f32.mrb[0].mxu0
        %v1263 = vadd.f32 0.0, %v1262
        %v1264 = vpop.f32.mrb[0].mxu0
        %1265 = vmatprep.mubr.f32.mxu0 0.0
        %1266 = vmatmul.mubr.f32.gmra.mrb[0].mxu0 %v1072
        %v1267 = vpop.f32.mrb[0].mxu0
        %v1268 = vadd.f32 0.0, %v1267
        %v1269 = vpop.f32.mrb[0].mxu0
        %1270 = vmatprep.mubr.f32.mxu0 0.0
        %1271 = vmatmul.mubr.f32.gmra.mrb[0].mxu0 %v1075
        %v1272 = vpop.f32.mrb[0].mxu0
        %v1273 = vadd.f32 0.0, %v1272
        %v1274 = vpop.f32.mrb[0].mxu0
        %1275 = vmatprep.mubr.f32.mxu0 0.0
        %1276 = vmatmul.mubr.f32.gmra.mrb[0].mxu0 %v1078
        %v1277 = vpop.f32.mrb[0].mxu0
        %v1278 = vadd.f32 0.0, %v1277
        %v1279 = vpop.f32.mrb[0].mxu0
        %1280 = vmatprep.mubr.f32.mxu0 0.0
        %1281 = vmatmul.mubr.f32.gmra.mrb[0].mxu0 %v1081
        %v1282 = vpop.f32.mrb[0].mxu0
        %v1283 = vadd.f32 0.0, %v1282
        %v1284 = vpop.f32.mrb[0].mxu0
        %1285 = vmatprep.mubr.f32.mxu0 0.0
        %1286 = vmatmul.mubr.f32.gmra.mrb[0].mxu0 %v1084
        %v1287 = vpop.f32.mrb[0].mxu0
        %v1288 = vadd.f32 0.0, %v1287
        %v1289 = vpop.f32.mrb[0].mxu0
        %1290 = vmatprep.mubr.f32.mxu0 0.0
        %1291 = vmatmul.mubr.f32.gmra.mrb[0].mxu0 %v1087
        %v1292 = vpop.f32.mrb[0].mxu0
        %v1293 = vadd.f32 0.0, %v1292
        %v1294 = vpop.f32.mrb[0].mxu0
        %1295 = vmatprep.mubr.f32.mxu0 0.0
        %1296 = vmatmul.mubr.f32.gmra.mrb[0].mxu0 %v1090
        %v1297 = vpop.f32.mrb[0].mxu0
        %v1298 = vadd.f32 0.0, %v1297
        %v1299 = vpop.f32.mrb[0].mxu0
        %1300 = vmatprep.mubr.f32.mxu0 0.0
        %1301 = vmatmul.mubr.f32.gmra.mrb[0].mxu0 %v1093
        %v1302 = vpop.f32.mrb[0].mxu0
        %v1303 = vadd.f32 0.0, %v1302
        %v1304 = vpop.f32.mrb[0].mxu0
        %1305 = vmatprep.mubr.f32.mxu0 0.0
        %1306 = vmatmul.mubr.f32.gmra.mrb[0].mxu0 %v1096
        %v1307 = vpop.f32.mrb[0].mxu0
        %v1308 = vadd.f32 0.0, %v1307
        %v1309 = vpop.f32.mrb[0].mxu0
        %1310 = vmatprep.mubr.f32.mxu0 0.0
        %1311 = vmatmul.mubr.f32.gmra.mrb[0].mxu0 %v1099
        %v1312 = vpop.f32.mrb[0].mxu0
        %v1313 = vadd.f32 0.0, %v1312
        %v1314 = vpop.f32.mrb[0].mxu0
        %1315 = vmatprep.mubr.f32.mxu0 0.0
        %1316 = vmatmul.mubr.f32.gmra.mrb[0].mxu0 %v1102
        %v1317 = vpop.f32.mrb[0].mxu0
        %v1318 = vadd.f32 0.0, %v1317
        %v1319 = vpop.f32.mrb[0].mxu0
        %1320 = vmatprep.mubr.f32.mxu0 0.0
        %1321 = vmatmul.mubr.f32.gmra.mrb[0].mxu0 %v1105
        %v1322 = vpop.f32.mrb[0].mxu0
        %v1323 = vadd.f32 0.0, %v1322
        %v1324 = vpop.f32.mrb[0].mxu0
        %1325 = vmatprep.mubr.f32.mxu0 0.0
        %1326 = vmatmul.mubr.f32.gmra.mrb[0].mxu0 %v1108
        %v1327 = vpop.f32.mrb[0].mxu0
        %v1328 = vadd.f32 0.0, %v1327
        %v1329 = vpop.f32.mrb[0].mxu0
        %1330 = vmatprep.mubr.f32.mxu0 0.0
        %1331 = vmatmul.mubr.f32.gmra.mrb[0].mxu0 %v1111
        %v1332 = vpop.f32.mrb[0].mxu0
        %v1333 = vadd.f32 0.0, %v1332
        %v1334 = vpop.f32.mrb[0].mxu0
        %1335 = vmatprep.mubr.f32.mxu0 0.0
        %1336 = vmatmul.mubr.f32.gmra.mrb[0].mxu0 %v1114
        %v1337 = vpop.f32.mrb[0].mxu0
        %v1338 = vadd.f32 0.0, %v1337
        %v1339 = vpop.f32.mrb[0].mxu0
        %1340 = vdwg.mxu0
        %v1342 = vsel %vm864, %v953, 0
        %v1345 = vsel %vm864, %v954, 0
        %v1348 = vsel %vm864, %v955, 0
        %v1351 = vsel %vm864, %v956, 0
        %v1354 = vsel %vm864, %v957, 0
        %v1357 = vsel %vm864, %v958, 0
        %v1360 = vsel %vm864, %v959, 0
        %v1363 = vsel %vm864, %v960, 0
        %v1366 = vsel %vm864, %v961, 0
        %v1369 = vsel %vm864, %v962, 0
        %v1372 = vsel %vm864, %v963, 0
        %v1375 = vsel %vm864, %v964, 0
        %v1378 = vsel %vm864, %v965, 0
        %v1381 = vsel %vm864, %v966, 0
        %v1384 = vsel %vm864, %v967, 0
        %v1387 = vsel %vm864, %v968, 0
        %v1390 = vsel %vm864, %v969, 0
        %v1393 = vsel %vm864, %v970, 0
        %v1396 = vsel %vm864, %v971, 0
        %v1399 = vsel %vm864, %v972, 0
        %v1402 = vsel %vm864, %v973, 0
        %v1405 = vsel %vm864, %v974, 0
        %v1408 = vsel %vm864, %v975, 0
        %v1411 = vsel %vm864, %v976, 0
        %v1414 = vsel %vm864, %v977, 0
        %v1417 = vsel %vm864, %v978, 0
        %v1420 = vsel %vm864, %v979, 0
        %v1423 = vsel %vm864, %v980, 0
        %v1426 = vsel %vm864, %v981, 0
        %v1429 = vsel %vm864, %v982, 0
        %v1432 = vsel %vm864, %v983, 0
        %v1435 = vsel %vm864, %v984, 0
        %1437 = vmatprep.subr.mxu0 0.0
        %1438 = vmatpush1.msra.mxu0 %v985
        %1439 = vmatprep.subr.mxu0 0.0
        %1440 = vmatpush1.msra.mxu0 0.0
        %1441 = vmatprep.subr.mxu0 0.0
        %1442 = vmatpush1.msra.mxu0 0.0
        %1443 = vmatprep.subr.mxu0 0.0
        %1444 = vmatpush1.msra.mxu0 0.0
        %1445 = vmatprep.subr.mxu0 0.0
        %1446 = vmatpush1.msra.mxu0 0.0
        %1447 = vmatprep.subr.mxu0 0.0
        %1448 = vmatpush1.msra.mxu0 0.0
        %1449 = vmatprep.subr.mxu0 0.0
        %1450 = vmatpush1.msra.mxu0 0.0
        %1451 = vmatprep.subr.mxu0 0.0
        %1452 = vmatpush1.msra.mxu0 0.0
        %1453 = vmatprep.subr.mxu0 0.0
        %1454 = vmatpush1.msra.mxu0 0.0
        %1455 = vmatprep.subr.mxu0 0.0
        %1456 = vmatpush1.msra.mxu0 0.0
        %1457 = vmatprep.subr.mxu0 0.0
        %1458 = vmatpush1.msra.mxu0 0.0
        %1459 = vmatprep.subr.mxu0 0.0
        %1460 = vmatpush1.msra.mxu0 0.0
        %1461 = vmatprep.subr.mxu0 0.0
        %1462 = vmatpush1.msra.mxu0 0.0
        %1463 = vmatprep.subr.mxu0 0.0
        %1464 = vmatpush1.msra.mxu0 0.0
        %1465 = vmatprep.subr.mxu0 0.0
        %1466 = vmatpush1.msra.mxu0 0.0
        %1467 = vmatprep.subr.mxu0 0.0
        %1468 = vmatpush1.msra.mxu0 0.0
        %1469 = vmatprep.subr.mxu0 0.0
        %1470 = vmatpush1.msra.mxu0 0.0
        %1471 = vmatprep.subr.mxu0 0.0
        %1472 = vmatpush1.msra.mxu0 0.0
        %1473 = vmatprep.subr.mxu0 0.0
        %1474 = vmatpush1.msra.mxu0 0.0
        %1475 = vmatprep.subr.mxu0 0.0
        %1476 = vmatpush1.msra.mxu0 0.0
        %1477 = vmatprep.subr.mxu0 0.0
        %1478 = vmatpush1.msra.mxu0 0.0
        %1479 = vmatprep.subr.mxu0 0.0
        %1480 = vmatpush1.msra.mxu0 0.0
        %1481 = vmatprep.subr.mxu0 0.0
        %1482 = vmatpush1.msra.mxu0 0.0
        %1483 = vmatprep.subr.mxu0 0.0
        %1484 = vmatpush1.msra.mxu0 0.0
        %1485 = vmatprep.subr.mxu0 0.0
        %1486 = vmatpush1.msra.mxu0 0.0
        %1487 = vmatprep.subr.mxu0 0.0
        %1488 = vmatpush1.msra.mxu0 0.0
        %1489 = vmatprep.subr.mxu0 0.0
        %1490 = vmatpush1.msra.mxu0 0.0
        %1491 = vmatprep.subr.mxu0 0.0
        %1492 = vmatpush1.msra.mxu0 0.0
        %1493 = vmatprep.subr.mxu0 0.0
        %1494 = vmatpush1.msra.mxu0 0.0
        %1495 = vmatprep.subr.mxu0 0.0
        %1496 = vmatpush1.msra.mxu0 0.0
        %1497 = vmatprep.subr.mxu0 0.0
        %1498 = vmatpush1.msra.mxu0 0.0
        %1499 = vmatprep.subr.mxu0 0.0
        %1500 = vmatpush1.msra.mxu0 0.0
        %1501 = vmatprep.mubr.f32.mxu0 0.0
        %1502 = vmatmul.mubr.f32.gmra.mrb[0].mxu0 %v1342
        %v1503 = vpop.f32.mrb[0].mxu0
        %v1504 = vadd.f32 %v1183, %v1503
        %v1505 = vpop.f32.mrb[0].mxu0
        %1506 = vmatprep.mubr.f32.mxu0 0.0
        %1507 = vmatmul.mubr.f32.gmra.mrb[0].mxu0 %v1345
        %v1508 = vpop.f32.mrb[0].mxu0
        %v1509 = vadd.f32 %v1188, %v1508
        %v1510 = vpop.f32.mrb[0].mxu0
        %1511 = vmatprep.mubr.f32.mxu0 0.0
        %1512 = vmatmul.mubr.f32.gmra.mrb[0].mxu0 %v1348
        %v1513 = vpop.f32.mrb[0].mxu0
        %v1514 = vadd.f32 %v1193, %v1513
        %v1515 = vpop.f32.mrb[0].mxu0
        %1516 = vmatprep.mubr.f32.mxu0 0.0
        %1517 = vmatmul.mubr.f32.gmra.mrb[0].mxu0 %v1351
        %v1518 = vpop.f32.mrb[0].mxu0
        %v1519 = vadd.f32 %v1198, %v1518
        %v1520 = vpop.f32.mrb[0].mxu0
        %1521 = vmatprep.mubr.f32.mxu0 0.0
        %1522 = vmatmul.mubr.f32.gmra.mrb[0].mxu0 %v1354
        %v1523 = vpop.f32.mrb[0].mxu0
        %v1524 = vadd.f32 %v1203, %v1523
        %v1525 = vpop.f32.mrb[0].mxu0
        %1526 = vmatprep.mubr.f32.mxu0 0.0
        %1527 = vmatmul.mubr.f32.gmra.mrb[0].mxu0 %v1357
        %v1528 = vpop.f32.mrb[0].mxu0
        %v1529 = vadd.f32 %v1208, %v1528
        %v1530 = vpop.f32.mrb[0].mxu0
        %1531 = vmatprep.mubr.f32.mxu0 0.0
        %1532 = vmatmul.mubr.f32.gmra.mrb[0].mxu0 %v1360
        %v1533 = vpop.f32.mrb[0].mxu0
        %v1534 = vadd.f32 %v1213, %v1533
        %v1535 = vpop.f32.mrb[0].mxu0
        %1536 = vmatprep.mubr.f32.mxu0 0.0
        %1537 = vmatmul.mubr.f32.gmra.mrb[0].mxu0 %v1363
        %v1538 = vpop.f32.mrb[0].mxu0
        %v1539 = vadd.f32 %v1218, %v1538
        %v1540 = vpop.f32.mrb[0].mxu0
        %1541 = vmatprep.mubr.f32.mxu0 0.0
        %1542 = vmatmul.mubr.f32.gmra.mrb[0].mxu0 %v1366
        %v1543 = vpop.f32.mrb[0].mxu0
        %v1544 = vadd.f32 %v1223, %v1543
        %v1545 = vpop.f32.mrb[0].mxu0
        %1546 = vmatprep.mubr.f32.mxu0 0.0
        %1547 = vmatmul.mubr.f32.gmra.mrb[0].mxu0 %v1369
        %v1548 = vpop.f32.mrb[0].mxu0
        %v1549 = vadd.f32 %v1228, %v1548
        %v1550 = vpop.f32.mrb[0].mxu0
        %1551 = vmatprep.mubr.f32.mxu0 0.0
        %1552 = vmatmul.mubr.f32.gmra.mrb[0].mxu0 %v1372
        %v1553 = vpop.f32.mrb[0].mxu0
        %v1554 = vadd.f32 %v1233, %v1553
        %v1555 = vpop.f32.mrb[0].mxu0
        %1556 = vmatprep.mubr.f32.mxu0 0.0
        %1557 = vmatmul.mubr.f32.gmra.mrb[0].mxu0 %v1375
        %v1558 = vpop.f32.mrb[0].mxu0
        %v1559 = vadd.f32 %v1238, %v1558
        %v1560 = vpop.f32.mrb[0].mxu0
        %1561 = vmatprep.mubr.f32.mxu0 0.0
        %1562 = vmatmul.mubr.f32.gmra.mrb[0].mxu0 %v1378
        %v1563 = vpop.f32.mrb[0].mxu0
        %v1564 = vadd.f32 %v1243, %v1563
        %v1565 = vpop.f32.mrb[0].mxu0
        %1566 = vmatprep.mubr.f32.mxu0 0.0
        %1567 = vmatmul.mubr.f32.gmra.mrb[0].mxu0 %v1381
        %v1568 = vpop.f32.mrb[0].mxu0
        %v1569 = vadd.f32 %v1248, %v1568
        %v1570 = vpop.f32.mrb[0].mxu0
        %1571 = vmatprep.mubr.f32.mxu0 0.0
        %1572 = vmatmul.mubr.f32.gmra.mrb[0].mxu0 %v1384
        %v1573 = vpop.f32.mrb[0].mxu0
        %v1574 = vadd.f32 %v1253, %v1573
        %v1575 = vpop.f32.mrb[0].mxu0
        %1576 = vmatprep.mubr.f32.mxu0 0.0
        %1577 = vmatmul.mubr.f32.gmra.mrb[0].mxu0 %v1387
        %v1578 = vpop.f32.mrb[0].mxu0
        %v1579 = vadd.f32 %v1258, %v1578
        %v1580 = vpop.f32.mrb[0].mxu0
        %1581 = vmatprep.mubr.f32.mxu0 0.0
        %1582 = vmatmul.mubr.f32.gmra.mrb[0].mxu0 %v1390
        %v1583 = vpop.f32.mrb[0].mxu0
        %v1584 = vadd.f32 %v1263, %v1583
        %v1585 = vpop.f32.mrb[0].mxu0
        %1586 = vmatprep.mubr.f32.mxu0 0.0
        %1587 = vmatmul.mubr.f32.gmra.mrb[0].mxu0 %v1393
        %v1588 = vpop.f32.mrb[0].mxu0
        %v1589 = vadd.f32 %v1268, %v1588
        %v1590 = vpop.f32.mrb[0].mxu0
        %1591 = vmatprep.mubr.f32.mxu0 0.0
        %1592 = vmatmul.mubr.f32.gmra.mrb[0].mxu0 %v1396
        %v1593 = vpop.f32.mrb[0].mxu0
        %v1594 = vadd.f32 %v1273, %v1593
        %v1595 = vpop.f32.mrb[0].mxu0
        %1596 = vmatprep.mubr.f32.mxu0 0.0
        %1597 = vmatmul.mubr.f32.gmra.mrb[0].mxu0 %v1399
        %v1598 = vpop.f32.mrb[0].mxu0
        %v1599 = vadd.f32 %v1278, %v1598
        %v1600 = vpop.f32.mrb[0].mxu0
        %1601 = vmatprep.mubr.f32.mxu0 0.0
        %1602 = vmatmul.mubr.f32.gmra.mrb[0].mxu0 %v1402
        %v1603 = vpop.f32.mrb[0].mxu0
        %v1604 = vadd.f32 %v1283, %v1603
        %v1605 = vpop.f32.mrb[0].mxu0
        %1606 = vmatprep.mubr.f32.mxu0 0.0
        %1607 = vmatmul.mubr.f32.gmra.mrb[0].mxu0 %v1405
        %v1608 = vpop.f32.mrb[0].mxu0
        %v1609 = vadd.f32 %v1288, %v1608
        %v1610 = vpop.f32.mrb[0].mxu0
        %1611 = vmatprep.mubr.f32.mxu0 0.0
        %1612 = vmatmul.mubr.f32.gmra.mrb[0].mxu0 %v1408
        %v1613 = vpop.f32.mrb[0].mxu0
        %v1614 = vadd.f32 %v1293, %v1613
        %v1615 = vpop.f32.mrb[0].mxu0
        %1616 = vmatprep.mubr.f32.mxu0 0.0
        %1617 = vmatmul.mubr.f32.gmra.mrb[0].mxu0 %v1411
        %v1618 = vpop.f32.mrb[0].mxu0
        %v1619 = vadd.f32 %v1298, %v1618
        %v1620 = vpop.f32.mrb[0].mxu0
        %1621 = vmatprep.mubr.f32.mxu0 0.0
        %1622 = vmatmul.mubr.f32.gmra.mrb[0].mxu0 %v1414
        %v1623 = vpop.f32.mrb[0].mxu0
        %v1624 = vadd.f32 %v1303, %v1623
        %v1625 = vpop.f32.mrb[0].mxu0
        %1626 = vmatprep.mubr.f32.mxu0 0.0
        %1627 = vmatmul.mubr.f32.gmra.mrb[0].mxu0 %v1417
        %v1628 = vpop.f32.mrb[0].mxu0
        %v1629 = vadd.f32 %v1308, %v1628
        %v1630 = vpop.f32.mrb[0].mxu0
        %1631 = vmatprep.mubr.f32.mxu0 0.0
        %1632 = vmatmul.mubr.f32.gmra.mrb[0].mxu0 %v1420
        %v1633 = vpop.f32.mrb[0].mxu0
        %v1634 = vadd.f32 %v1313, %v1633
        %v1635 = vpop.f32.mrb[0].mxu0
        %1636 = vmatprep.mubr.f32.mxu0 0.0
        %1637 = vmatmul.mubr.f32.gmra.mrb[0].mxu0 %v1423
        %v1638 = vpop.f32.mrb[0].mxu0
        %v1639 = vadd.f32 %v1318, %v1638
        %v1640 = vpop.f32.mrb[0].mxu0
        %1641 = vmatprep.mubr.f32.mxu0 0.0
        %1642 = vmatmul.mubr.f32.gmra.mrb[0].mxu0 %v1426
        %v1643 = vpop.f32.mrb[0].mxu0
        %v1644 = vadd.f32 %v1323, %v1643
        %v1645 = vpop.f32.mrb[0].mxu0
        %1646 = vmatprep.mubr.f32.mxu0 0.0
        %1647 = vmatmul.mubr.f32.gmra.mrb[0].mxu0 %v1429
        %v1648 = vpop.f32.mrb[0].mxu0
        %v1649 = vadd.f32 %v1328, %v1648
        %v1650 = vpop.f32.mrb[0].mxu0
        %1651 = vmatprep.mubr.f32.mxu0 0.0
        %1652 = vmatmul.mubr.f32.gmra.mrb[0].mxu0 %v1432
        %v1653 = vpop.f32.mrb[0].mxu0
        %v1654 = vadd.f32 %v1333, %v1653
        %v1655 = vpop.f32.mrb[0].mxu0
        %1656 = vmatprep.mubr.f32.mxu0 0.0
        %1657 = vmatmul.mubr.f32.gmra.mrb[0].mxu0 %v1435
        %v1658 = vpop.f32.mrb[0].mxu0
        %v1659 = vadd.f32 %v1338, %v1658
        %v1660 = vpop.f32.mrb[0].mxu0
        %1661 = vdwg.mxu0
        %v1662 = vld [vmem:[#allocation2 + $0x2] sm:$0xff]
        %v1663 = vld [vmem:[#allocation2 + $0xa] sm:$0xff]
        %v1664 = vld [vmem:[#allocation2 + $0x1a] sm:$0xff]
        %v1665 = vld [vmem:[#allocation2 + $0x22] sm:$0xff]
        %v1666 = vld [vmem:[#allocation2 + $0x32] sm:$0xff]
        %v1667 = vld [vmem:[#allocation2 + $0x3a] sm:$0xff]
        %v1668 = vld [vmem:[#allocation2 + $0x4a] sm:$0xff]
        %v1669 = vld [vmem:[#allocation2 + $0x52] sm:$0xff]
        %v1670 = vld [vmem:[#allocation2 + $0x62] sm:$0xff]
        %v1671 = vld [vmem:[#allocation2 + $0x6a] sm:$0xff]
        %v1672 = vld [vmem:[#allocation2 + $0x7a] sm:$0xff]
        %v1673 = vld [vmem:[#allocation2 + $0x82] sm:$0xff]
        %v1674 = vld [vmem:[#allocation2 + $0x92] sm:$0xff]
        %v1675 = vld [vmem:[#allocation2 + $0x9a] sm:$0xff]
        %v1676 = vld [vmem:[#allocation2 + $0xaa] sm:$0xff]
        %v1677 = vld [vmem:[#allocation2 + $0xb2] sm:$0xff]
        %v1678 = vld [vmem:[#allocation2 + $0xc2] sm:$0xff]
        %v1679 = vld [vmem:[#allocation2 + $0xca] sm:$0xff]
        %v1680 = vld [vmem:[#allocation2 + $0xda] sm:$0xff]
        %v1681 = vld [vmem:[#allocation2 + $0xe2] sm:$0xff]
        %v1682 = vld [vmem:[#allocation2 + $0xf2] sm:$0xff]
        %v1683 = vld [vmem:[#allocation2 + $0xfa] sm:$0xff]
        %v1684 = vld [vmem:[#allocation2 + $0x10a] sm:$0xff]
        %v1685 = vld [vmem:[#allocation2 + $0x112] sm:$0xff]
        %v1686 = vld [vmem:[#allocation2 + $0x122] sm:$0xff]
        %v1687 = vld [vmem:[#allocation2 + $0x12a] sm:$0xff]
        %v1688 = vld [vmem:[#allocation2 + $0x13a] sm:$0xff]
        %v1689 = vld [vmem:[#allocation2 + $0x142] sm:$0xff]
        %v1690 = vld [vmem:[#allocation2 + $0x152] sm:$0xff]
        %v1691 = vld [vmem:[#allocation2 + $0x15a] sm:$0xff]
        %v1692 = vld [vmem:[#allocation2 + $0x16a] sm:$0xff]
        %v1693 = vld [vmem:[#allocation2 + $0x172] sm:$0xff]
        %s1694 = scalar_lea.vmem %s3, 16
        %v1695 = vld [vmem:[%s1694] sm:$0xff]
        %v1697 = vsel %vm864, %v1662, 0
        %v1700 = vsel %vm864, %v1663, 0
        %v1703 = vsel %vm864, %v1664, 0
        %v1706 = vsel %vm864, %v1665, 0
        %v1709 = vsel %vm864, %v1666, 0
        %v1712 = vsel %vm864, %v1667, 0
        %v1715 = vsel %vm864, %v1668, 0
        %v1718 = vsel %vm864, %v1669, 0
        %v1721 = vsel %vm864, %v1670, 0
        %v1724 = vsel %vm864, %v1671, 0
        %v1727 = vsel %vm864, %v1672, 0
        %v1730 = vsel %vm864, %v1673, 0
        %v1733 = vsel %vm864, %v1674, 0
        %v1736 = vsel %vm864, %v1675, 0
        %v1739 = vsel %vm864, %v1676, 0
        %v1742 = vsel %vm864, %v1677, 0
        %v1745 = vsel %vm864, %v1678, 0
        %v1748 = vsel %vm864, %v1679, 0
        %v1751 = vsel %vm864, %v1680, 0
        %v1754 = vsel %vm864, %v1681, 0
        %v1757 = vsel %vm864, %v1682, 0
        %v1760 = vsel %vm864, %v1683, 0
        %v1763 = vsel %vm864, %v1684, 0
        %v1766 = vsel %vm864, %v1685, 0
        %v1769 = vsel %vm864, %v1686, 0
        %v1772 = vsel %vm864, %v1687, 0
        %v1775 = vsel %vm864, %v1688, 0
        %v1778 = vsel %vm864, %v1689, 0
        %v1781 = vsel %vm864, %v1690, 0
        %v1784 = vsel %vm864, %v1691, 0
        %v1787 = vsel %vm864, %v1692, 0
        %v1790 = vsel %vm864, %v1693, 0
        %1792 = vmatprep.subr.mxu0 0.0
        %1793 = vmatpush1.msra.mxu0 %v1695
        %1794 = vmatprep.subr.mxu0 0.0
        %1795 = vmatpush1.msra.mxu0 0.0
        %1796 = vmatprep.subr.mxu0 0.0
        %1797 = vmatpush1.msra.mxu0 0.0
        %1798 = vmatprep.subr.mxu0 0.0
        %1799 = vmatpush1.msra.mxu0 0.0
        %1800 = vmatprep.subr.mxu0 0.0
        %1801 = vmatpush1.msra.mxu0 0.0
        %1802 = vmatprep.subr.mxu0 0.0
        %1803 = vmatpush1.msra.mxu0 0.0
        %1804 = vmatprep.subr.mxu0 0.0
        %1805 = vmatpush1.msra.mxu0 0.0
        %1806 = vmatprep.subr.mxu0 0.0
        %1807 = vmatpush1.msra.mxu0 0.0
        %1808 = vmatprep.subr.mxu0 0.0
        %1809 = vmatpush1.msra.mxu0 0.0
        %1810 = vmatprep.subr.mxu0 0.0
        %1811 = vmatpush1.msra.mxu0 0.0
        %1812 = vmatprep.subr.mxu0 0.0
        %1813 = vmatpush1.msra.mxu0 0.0
        %1814 = vmatprep.subr.mxu0 0.0
        %1815 = vmatpush1.msra.mxu0 0.0
        %1816 = vmatprep.subr.mxu0 0.0
        %1817 = vmatpush1.msra.mxu0 0.0
        %1818 = vmatprep.subr.mxu0 0.0
        %1819 = vmatpush1.msra.mxu0 0.0
        %1820 = vmatprep.subr.mxu0 0.0
        %1821 = vmatpush1.msra.mxu0 0.0
        %1822 = vmatprep.subr.mxu0 0.0
        %1823 = vmatpush1.msra.mxu0 0.0
        %1824 = vmatprep.subr.mxu0 0.0
        %1825 = vmatpush1.msra.mxu0 0.0
        %1826 = vmatprep.subr.mxu0 0.0
        %1827 = vmatpush1.msra.mxu0 0.0
        %1828 = vmatprep.subr.mxu0 0.0
        %1829 = vmatpush1.msra.mxu0 0.0
        %1830 = vmatprep.subr.mxu0 0.0
        %1831 = vmatpush1.msra.mxu0 0.0
        %1832 = vmatprep.subr.mxu0 0.0
        %1833 = vmatpush1.msra.mxu0 0.0
        %1834 = vmatprep.subr.mxu0 0.0
        %1835 = vmatpush1.msra.mxu0 0.0
        %1836 = vmatprep.subr.mxu0 0.0
        %1837 = vmatpush1.msra.mxu0 0.0
        %1838 = vmatprep.subr.mxu0 0.0
        %1839 = vmatpush1.msra.mxu0 0.0
        %1840 = vmatprep.subr.mxu0 0.0
        %1841 = vmatpush1.msra.mxu0 0.0
        %1842 = vmatprep.subr.mxu0 0.0
        %1843 = vmatpush1.msra.mxu0 0.0
        %1844 = vmatprep.subr.mxu0 0.0
        %1845 = vmatpush1.msra.mxu0 0.0
        %1846 = vmatprep.subr.mxu0 0.0
        %1847 = vmatpush1.msra.mxu0 0.0
        %1848 = vmatprep.subr.mxu0 0.0
        %1849 = vmatpush1.msra.mxu0 0.0
        %1850 = vmatprep.subr.mxu0 0.0
        %1851 = vmatpush1.msra.mxu0 0.0
        %1852 = vmatprep.subr.mxu0 0.0
        %1853 = vmatpush1.msra.mxu0 0.0
        %1854 = vmatprep.subr.mxu0 0.0
        %1855 = vmatpush1.msra.mxu0 0.0
        %1856 = vmatprep.mubr.f32.mxu0 0.0
        %1857 = vmatmul.mubr.f32.gmra.mrb[0].mxu0 %v1697
        %v1858 = vpop.f32.mrb[0].mxu0
        %v1859 = vadd.f32 0.0, %v1858
        %v1860 = vpop.f32.mrb[0].mxu0
        %1861 = vmatprep.mubr.f32.mxu0 0.0
        %1862 = vmatmul.mubr.f32.gmra.mrb[0].mxu0 %v1700
        %v1863 = vpop.f32.mrb[0].mxu0
        %v1864 = vadd.f32 0.0, %v1863
        %v1865 = vpop.f32.mrb[0].mxu0
        %1866 = vmatprep.mubr.f32.mxu0 0.0
        %1867 = vmatmul.mubr.f32.gmra.mrb[0].mxu0 %v1703
        %v1868 = vpop.f32.mrb[0].mxu0
        %v1869 = vadd.f32 0.0, %v1868
        %v1870 = vpop.f32.mrb[0].mxu0
        %1871 = vmatprep.mubr.f32.mxu0 0.0
        %1872 = vmatmul.mubr.f32.gmra.mrb[0].mxu0 %v1706
        %v1873 = vpop.f32.mrb[0].mxu0
        %v1874 = vadd.f32 0.0, %v1873
        %v1875 = vpop.f32.mrb[0].mxu0
        %1876 = vmatprep.mubr.f32.mxu0 0.0
        %1877 = vmatmul.mubr.f32.gmra.mrb[0].mxu0 %v1709
        %v1878 = vpop.f32.mrb[0].mxu0
        %v1879 = vadd.f32 0.0, %v1878
        %v1880 = vpop.f32.mrb[0].mxu0
        %1881 = vmatprep.mubr.f32.mxu0 0.0
        %1882 = vmatmul.mubr.f32.gmra.mrb[0].mxu0 %v1712
        %v1883 = vpop.f32.mrb[0].mxu0
        %v1884 = vadd.f32 0.0, %v1883
        %v1885 = vpop.f32.mrb[0].mxu0
        %1886 = vmatprep.mubr.f32.mxu0 0.0
        %1887 = vmatmul.mubr.f32.gmra.mrb[0].mxu0 %v1715
        %v1888 = vpop.f32.mrb[0].mxu0
        %v1889 = vadd.f32 0.0, %v1888
        %v1890 = vpop.f32.mrb[0].mxu0
        %1891 = vmatprep.mubr.f32.mxu0 0.0
        %1892 = vmatmul.mubr.f32.gmra.mrb[0].mxu0 %v1718
        %v1893 = vpop.f32.mrb[0].mxu0
        %v1894 = vadd.f32 0.0, %v1893
        %v1895 = vpop.f32.mrb[0].mxu0
        %1896 = vmatprep.mubr.f32.mxu0 0.0
        %1897 = vmatmul.mubr.f32.gmra.mrb[0].mxu0 %v1721
        %v1898 = vpop.f32.mrb[0].mxu0
        %v1899 = vadd.f32 0.0, %v1898
        %v1900 = vpop.f32.mrb[0].mxu0
        %1901 = vmatprep.mubr.f32.mxu0 0.0
        %1902 = vmatmul.mubr.f32.gmra.mrb[0].mxu0 %v1724
        %v1903 = vpop.f32.mrb[0].mxu0
        %v1904 = vadd.f32 0.0, %v1903
        %v1905 = vpop.f32.mrb[0].mxu0
        %1906 = vmatprep.mubr.f32.mxu0 0.0
        %1907 = vmatmul.mubr.f32.gmra.mrb[0].mxu0 %v1727
        %v1908 = vpop.f32.mrb[0].mxu0
        %v1909 = vadd.f32 0.0, %v1908
        %v1910 = vpop.f32.mrb[0].mxu0
        %1911 = vmatprep.mubr.f32.mxu0 0.0
        %1912 = vmatmul.mubr.f32.gmra.mrb[0].mxu0 %v1730
        %v1913 = vpop.f32.mrb[0].mxu0
        %v1914 = vadd.f32 0.0, %v1913
        %v1915 = vpop.f32.mrb[0].mxu0
        %1916 = vmatprep.mubr.f32.mxu0 0.0
        %1917 = vmatmul.mubr.f32.gmra.mrb[0].mxu0 %v1733
        %v1918 = vpop.f32.mrb[0].mxu0
        %v1919 = vadd.f32 0.0, %v1918
        %v1920 = vpop.f32.mrb[0].mxu0
        %1921 = vmatprep.mubr.f32.mxu0 0.0
        %1922 = vmatmul.mubr.f32.gmra.mrb[0].mxu0 %v1736
        %v1923 = vpop.f32.mrb[0].mxu0
        %v1924 = vadd.f32 0.0, %v1923
        %v1925 = vpop.f32.mrb[0].mxu0
        %1926 = vmatprep.mubr.f32.mxu0 0.0
        %1927 = vmatmul.mubr.f32.gmra.mrb[0].mxu0 %v1739
        %v1928 = vpop.f32.mrb[0].mxu0
        %v1929 = vadd.f32 0.0, %v1928
        %v1930 = vpop.f32.mrb[0].mxu0
        %1931 = vmatprep.mubr.f32.mxu0 0.0
        %1932 = vmatmul.mubr.f32.gmra.mrb[0].mxu0 %v1742
        %v1933 = vpop.f32.mrb[0].mxu0
        %v1934 = vadd.f32 0.0, %v1933
        %v1935 = vpop.f32.mrb[0].mxu0
        %1936 = vmatprep.mubr.f32.mxu0 0.0
        %1937 = vmatmul.mubr.f32.gmra.mrb[0].mxu0 %v1745
        %v1938 = vpop.f32.mrb[0].mxu0
        %v1939 = vadd.f32 0.0, %v1938
        %v1940 = vpop.f32.mrb[0].mxu0
        %1941 = vmatprep.mubr.f32.mxu0 0.0
        %1942 = vmatmul.mubr.f32.gmra.mrb[0].mxu0 %v1748
        %v1943 = vpop.f32.mrb[0].mxu0
        %v1944 = vadd.f32 0.0, %v1943
        %v1945 = vpop.f32.mrb[0].mxu0
        %1946 = vmatprep.mubr.f32.mxu0 0.0
        %1947 = vmatmul.mubr.f32.gmra.mrb[0].mxu0 %v1751
        %v1948 = vpop.f32.mrb[0].mxu0
        %v1949 = vadd.f32 0.0, %v1948
        %v1950 = vpop.f32.mrb[0].mxu0
        %1951 = vmatprep.mubr.f32.mxu0 0.0
        %1952 = vmatmul.mubr.f32.gmra.mrb[0].mxu0 %v1754
        %v1953 = vpop.f32.mrb[0].mxu0
        %v1954 = vadd.f32 0.0, %v1953
        %v1955 = vpop.f32.mrb[0].mxu0
        %1956 = vmatprep.mubr.f32.mxu0 0.0
        %1957 = vmatmul.mubr.f32.gmra.mrb[0].mxu0 %v1757
        %v1958 = vpop.f32.mrb[0].mxu0
        %v1959 = vadd.f32 0.0, %v1958
        %v1960 = vpop.f32.mrb[0].mxu0
        %1961 = vmatprep.mubr.f32.mxu0 0.0
        %1962 = vmatmul.mubr.f32.gmra.mrb[0].mxu0 %v1760
        %v1963 = vpop.f32.mrb[0].mxu0
        %v1964 = vadd.f32 0.0, %v1963
        %v1965 = vpop.f32.mrb[0].mxu0
        %1966 = vmatprep.mubr.f32.mxu0 0.0
        %1967 = vmatmul.mubr.f32.gmra.mrb[0].mxu0 %v1763
        %v1968 = vpop.f32.mrb[0].mxu0
        %v1969 = vadd.f32 0.0, %v1968
        %v1970 = vpop.f32.mrb[0].mxu0
        %1971 = vmatprep.mubr.f32.mxu0 0.0
        %1972 = vmatmul.mubr.f32.gmra.mrb[0].mxu0 %v1766
        %v1973 = vpop.f32.mrb[0].mxu0
        %v1974 = vadd.f32 0.0, %v1973
        %v1975 = vpop.f32.mrb[0].mxu0
        %1976 = vmatprep.mubr.f32.mxu0 0.0
        %1977 = vmatmul.mubr.f32.gmra.mrb[0].mxu0 %v1769
        %v1978 = vpop.f32.mrb[0].mxu0
        %v1979 = vadd.f32 0.0, %v1978
        %v1980 = vpop.f32.mrb[0].mxu0
        %1981 = vmatprep.mubr.f32.mxu0 0.0
        %1982 = vmatmul.mubr.f32.gmra.mrb[0].mxu0 %v1772
        %v1983 = vpop.f32.mrb[0].mxu0
        %v1984 = vadd.f32 0.0, %v1983
        %v1985 = vpop.f32.mrb[0].mxu0
        %1986 = vmatprep.mubr.f32.mxu0 0.0
        %1987 = vmatmul.mubr.f32.gmra.mrb[0].mxu0 %v1775
        %v1988 = vpop.f32.mrb[0].mxu0
        %v1989 = vadd.f32 0.0, %v1988
        %v1990 = vpop.f32.mrb[0].mxu0
        %1991 = vmatprep.mubr.f32.mxu0 0.0
        %1992 = vmatmul.mubr.f32.gmra.mrb[0].mxu0 %v1778
        %v1993 = vpop.f32.mrb[0].mxu0
        %v1994 = vadd.f32 0.0, %v1993
        %v1995 = vpop.f32.mrb[0].mxu0
        %1996 = vmatprep.mubr.f32.mxu0 0.0
        %1997 = vmatmul.mubr.f32.gmra.mrb[0].mxu0 %v1781
        %v1998 = vpop.f32.mrb[0].mxu0
        %v1999 = vadd.f32 0.0, %v1998
        %v2000 = vpop.f32.mrb[0].mxu0
        %2001 = vmatprep.mubr.f32.mxu0 0.0
        %2002 = vmatmul.mubr.f32.gmra.mrb[0].mxu0 %v1784
        %v2003 = vpop.f32.mrb[0].mxu0
        %v2004 = vadd.f32 0.0, %v2003
        %v2005 = vpop.f32.mrb[0].mxu0
        %2006 = vmatprep.mubr.f32.mxu0 0.0
        %2007 = vmatmul.mubr.f32.gmra.mrb[0].mxu0 %v1787
        %v2008 = vpop.f32.mrb[0].mxu0
        %v2009 = vadd.f32 0.0, %v2008
        %v2010 = vpop.f32.mrb[0].mxu0
        %2011 = vmatprep.mubr.f32.mxu0 0.0
        %2012 = vmatmul.mubr.f32.gmra.mrb[0].mxu0 %v1790
        %v2013 = vpop.f32.mrb[0].mxu0
        %v2014 = vadd.f32 0.0, %v2013
        %v2015 = vpop.f32.mrb[0].mxu0
        %2016 = vdwg.mxu0
        %v2017 = vadd.f32 %v1504, %v1859
        %v2018 = vadd.f32 %v1509, %v1864
        %v2019 = vadd.f32 %v1514, %v1869
        %v2020 = vadd.f32 %v1519, %v1874
        %v2021 = vadd.f32 %v1524, %v1879
        %v2022 = vadd.f32 %v1529, %v1884
        %v2023 = vadd.f32 %v1534, %v1889
        %v2024 = vadd.f32 %v1539, %v1894
        %v2025 = vadd.f32 %v1544, %v1899
        %v2026 = vadd.f32 %v1549, %v1904
        %v2027 = vadd.f32 %v1554, %v1909
        %v2028 = vadd.f32 %v1559, %v1914
        %v2029 = vadd.f32 %v1564, %v1919
        %v2030 = vadd.f32 %v1569, %v1924
        %v2031 = vadd.f32 %v1574, %v1929
        %v2032 = vadd.f32 %v1579, %v1934
        %v2033 = vadd.f32 %v1584, %v1939
        %v2034 = vadd.f32 %v1589, %v1944
        %v2035 = vadd.f32 %v1594, %v1949
        %v2036 = vadd.f32 %v1599, %v1954
        %v2037 = vadd.f32 %v1604, %v1959
        %v2038 = vadd.f32 %v1609, %v1964
        %v2039 = vadd.f32 %v1614, %v1969
        %v2040 = vadd.f32 %v1619, %v1974
        %v2041 = vadd.f32 %v1624, %v1979
        %v2042 = vadd.f32 %v1629, %v1984
        %v2043 = vadd.f32 %v1634, %v1989
        %v2044 = vadd.f32 %v1639, %v1994
        %v2045 = vadd.f32 %v1644, %v1999
        %v2046 = vadd.f32 %v1649, %v2004
        %v2047 = vadd.f32 %v1654, %v2009
        %v2048 = vadd.f32 %v1659, %v2014
        %v2049 = vld [vmem:[%s920] sm:$0xff]
        %v2050 = vld [vmem:[%s920 + $0x8] sm:$0xff]
        %v2051 = vld [vmem:[%s920 + $0x18] sm:$0xff]
        %v2052 = vld [vmem:[%s920 + $0x20] sm:$0xff]
        %v2053 = vld [vmem:[%s920 + $0x30] sm:$0xff]
        %v2054 = vld [vmem:[%s920 + $0x38] sm:$0xff]
        %v2055 = vld [vmem:[%s920 + $0x48] sm:$0xff]
        %v2056 = vld [vmem:[%s920 + $0x50] sm:$0xff]
        %v2057 = vld [vmem:[%s920 + $0x60] sm:$0xff]
        %v2058 = vld [vmem:[%s920 + $0x68] sm:$0xff]
        %v2059 = vld [vmem:[%s920 + $0x78] sm:$0xff]
        %v2060 = vld [vmem:[%s920 + $0x80] sm:$0xff]
        %v2061 = vld [vmem:[%s920 + $0x90] sm:$0xff]
        %v2062 = vld [vmem:[%s920 + $0x98] sm:$0xff]
        %v2063 = vld [vmem:[%s920 + $0xa8] sm:$0xff]
        %v2064 = vld [vmem:[%s920 + $0xb0] sm:$0xff]
        %v2065 = vld [vmem:[%s920 + $0xc0] sm:$0xff]
        %v2066 = vld [vmem:[%s920 + $0xc8] sm:$0xff]
        %v2067 = vld [vmem:[%s920 + $0xd8] sm:$0xff]
        %v2068 = vld [vmem:[%s920 + $0xe0] sm:$0xff]
        %v2069 = vld [vmem:[%s920 + $0xf0] sm:$0xff]
        %v2070 = vld [vmem:[%s920 + $0xf8] sm:$0xff]
        %v2071 = vld [vmem:[%s920 + $0x108] sm:$0xff]
        %v2072 = vld [vmem:[%s920 + $0x110] sm:$0xff]
        %v2073 = vld [vmem:[%s920 + $0x120] sm:$0xff]
        %v2074 = vld [vmem:[%s920 + $0x128] sm:$0xff]
        %v2075 = vld [vmem:[%s920 + $0x138] sm:$0xff]
        %v2076 = vld [vmem:[%s920 + $0x140] sm:$0xff]
        %v2077 = vld [vmem:[%s920 + $0x150] sm:$0xff]
        %v2078 = vld [vmem:[%s920 + $0x158] sm:$0xff]
        %v2079 = vld [vmem:[%s920 + $0x168] sm:$0xff]
        %v2080 = vld [vmem:[%s920 + $0x170] sm:$0xff]
        %s2081 = scalar_lea.vmem %s3, 24
        %v2082 = vld [vmem:[%s2081] sm:$0xff]
        %v2084 = vsel %vm864, %v2049, 0
        %v2087 = vsel %vm864, %v2050, 0
        %v2090 = vsel %vm864, %v2051, 0
        %v2093 = vsel %vm864, %v2052, 0
        %v2096 = vsel %vm864, %v2053, 0
        %v2099 = vsel %vm864, %v2054, 0
        %v2102 = vsel %vm864, %v2055, 0
        %v2105 = vsel %vm864, %v2056, 0
        %v2108 = vsel %vm864, %v2057, 0
        %v2111 = vsel %vm864, %v2058, 0
        %v2114 = vsel %vm864, %v2059, 0
        %v2117 = vsel %vm864, %v2060, 0
        %v2120 = vsel %vm864, %v2061, 0
        %v2123 = vsel %vm864, %v2062, 0
        %v2126 = vsel %vm864, %v2063, 0
        %v2129 = vsel %vm864, %v2064, 0
        %v2132 = vsel %vm864, %v2065, 0
        %v2135 = vsel %vm864, %v2066, 0
        %v2138 = vsel %vm864, %v2067, 0
        %v2141 = vsel %vm864, %v2068, 0
        %v2144 = vsel %vm864, %v2069, 0
        %v2147 = vsel %vm864, %v2070, 0
        %v2150 = vsel %vm864, %v2071, 0
        %v2153 = vsel %vm864, %v2072, 0
        %v2156 = vsel %vm864, %v2073, 0
        %v2159 = vsel %vm864, %v2074, 0
        %v2162 = vsel %vm864, %v2075, 0
        %v2165 = vsel %vm864, %v2076, 0
        %v2168 = vsel %vm864, %v2077, 0
        %v2171 = vsel %vm864, %v2078, 0
        %v2174 = vsel %vm864, %v2079, 0
        %v2177 = vsel %vm864, %v2080, 0
        %2179 = vmatprep.subr.mxu0 0.0
        %2180 = vmatpush1.msra.mxu0 %v2082
        %2181 = vmatprep.subr.mxu0 0.0
        %2182 = vmatpush1.msra.mxu0 0.0
        %2183 = vmatprep.subr.mxu0 0.0
        %2184 = vmatpush1.msra.mxu0 0.0
        %2185 = vmatprep.subr.mxu0 0.0
        %2186 = vmatpush1.msra.mxu0 0.0
        %2187 = vmatprep.subr.mxu0 0.0
        %2188 = vmatpush1.msra.mxu0 0.0
        %2189 = vmatprep.subr.mxu0 0.0
        %2190 = vmatpush1.msra.mxu0 0.0
        %2191 = vmatprep.subr.mxu0 0.0
        %2192 = vmatpush1.msra.mxu0 0.0
        %2193 = vmatprep.subr.mxu0 0.0
        %2194 = vmatpush1.msra.mxu0 0.0
        %2195 = vmatprep.subr.mxu0 0.0
        %2196 = vmatpush1.msra.mxu0 0.0
        %2197 = vmatprep.subr.mxu0 0.0
        %2198 = vmatpush1.msra.mxu0 0.0
        %2199 = vmatprep.subr.mxu0 0.0
        %2200 = vmatpush1.msra.mxu0 0.0
        %2201 = vmatprep.subr.mxu0 0.0
        %2202 = vmatpush1.msra.mxu0 0.0
        %2203 = vmatprep.subr.mxu0 0.0
        %2204 = vmatpush1.msra.mxu0 0.0
        %2205 = vmatprep.subr.mxu0 0.0
        %2206 = vmatpush1.msra.mxu0 0.0
        %2207 = vmatprep.subr.mxu0 0.0
        %2208 = vmatpush1.msra.mxu0 0.0
        %2209 = vmatprep.subr.mxu0 0.0
        %2210 = vmatpush1.msra.mxu0 0.0
        %2211 = vmatprep.subr.mxu0 0.0
        %2212 = vmatpush1.msra.mxu0 0.0
        %2213 = vmatprep.subr.mxu0 0.0
        %2214 = vmatpush1.msra.mxu0 0.0
        %2215 = vmatprep.subr.mxu0 0.0
        %2216 = vmatpush1.msra.mxu0 0.0
        %2217 = vmatprep.subr.mxu0 0.0
        %2218 = vmatpush1.msra.mxu0 0.0
        %2219 = vmatprep.subr.mxu0 0.0
        %2220 = vmatpush1.msra.mxu0 0.0
        %2221 = vmatprep.subr.mxu0 0.0
        %2222 = vmatpush1.msra.mxu0 0.0
        %2223 = vmatprep.subr.mxu0 0.0
        %2224 = vmatpush1.msra.mxu0 0.0
        %2225 = vmatprep.subr.mxu0 0.0
        %2226 = vmatpush1.msra.mxu0 0.0
        %2227 = vmatprep.subr.mxu0 0.0
        %2228 = vmatpush1.msra.mxu0 0.0
        %2229 = vmatprep.subr.mxu0 0.0
        %2230 = vmatpush1.msra.mxu0 0.0
        %2231 = vmatprep.subr.mxu0 0.0
        %2232 = vmatpush1.msra.mxu0 0.0
        %2233 = vmatprep.subr.mxu0 0.0
        %2234 = vmatpush1.msra.mxu0 0.0
        %2235 = vmatprep.subr.mxu0 0.0
        %2236 = vmatpush1.msra.mxu0 0.0
        %2237 = vmatprep.subr.mxu0 0.0
        %2238 = vmatpush1.msra.mxu0 0.0
        %2239 = vmatprep.subr.mxu0 0.0
        %2240 = vmatpush1.msra.mxu0 0.0
        %2241 = vmatprep.subr.mxu0 0.0
        %2242 = vmatpush1.msra.mxu0 0.0
        %2243 = vmatprep.mubr.f32.mxu0 0.0
        %2244 = vmatmul.mubr.f32.gmra.mrb[0].mxu0 %v2084
        %v2245 = vpop.f32.mrb[0].mxu0
        %v2246 = vadd.f32 0.0, %v2245
        %v2247 = vpop.f32.mrb[0].mxu0
        %2248 = vmatprep.mubr.f32.mxu0 0.0
        %2249 = vmatmul.mubr.f32.gmra.mrb[0].mxu0 %v2087
        %v2250 = vpop.f32.mrb[0].mxu0
        %v2251 = vadd.f32 0.0, %v2250
        %v2252 = vpop.f32.mrb[0].mxu0
        %2253 = vmatprep.mubr.f32.mxu0 0.0
        %2254 = vmatmul.mubr.f32.gmra.mrb[0].mxu0 %v2090
        %v2255 = vpop.f32.mrb[0].mxu0
        %v2256 = vadd.f32 0.0, %v2255
        %v2257 = vpop.f32.mrb[0].mxu0
        %2258 = vmatprep.mubr.f32.mxu0 0.0
        %2259 = vmatmul.mubr.f32.gmra.mrb[0].mxu0 %v2093
        %v2260 = vpop.f32.mrb[0].mxu0
        %v2261 = vadd.f32 0.0, %v2260
        %v2262 = vpop.f32.mrb[0].mxu0
        %2263 = vmatprep.mubr.f32.mxu0 0.0
        %2264 = vmatmul.mubr.f32.gmra.mrb[0].mxu0 %v2096
        %v2265 = vpop.f32.mrb[0].mxu0
        %v2266 = vadd.f32 0.0, %v2265
        %v2267 = vpop.f32.mrb[0].mxu0
        %2268 = vmatprep.mubr.f32.mxu0 0.0
        %2269 = vmatmul.mubr.f32.gmra.mrb[0].mxu0 %v2099
        %v2270 = vpop.f32.mrb[0].mxu0
        %v2271 = vadd.f32 0.0, %v2270
        %v2272 = vpop.f32.mrb[0].mxu0
        %2273 = vmatprep.mubr.f32.mxu0 0.0
        %2274 = vmatmul.mubr.f32.gmra.mrb[0].mxu0 %v2102
        %v2275 = vpop.f32.mrb[0].mxu0
        %v2276 = vadd.f32 0.0, %v2275
        %v2277 = vpop.f32.mrb[0].mxu0
        %2278 = vmatprep.mubr.f32.mxu0 0.0
        %2279 = vmatmul.mubr.f32.gmra.mrb[0].mxu0 %v2105
        %v2280 = vpop.f32.mrb[0].mxu0
        %v2281 = vadd.f32 0.0, %v2280
        %v2282 = vpop.f32.mrb[0].mxu0
        %2283 = vmatprep.mubr.f32.mxu0 0.0
        %2284 = vmatmul.mubr.f32.gmra.mrb[0].mxu0 %v2108
        %v2285 = vpop.f32.mrb[0].mxu0
        %v2286 = vadd.f32 0.0, %v2285
        %v2287 = vpop.f32.mrb[0].mxu0
        %2288 = vmatprep.mubr.f32.mxu0 0.0
        %2289 = vmatmul.mubr.f32.gmra.mrb[0].mxu0 %v2111
        %v2290 = vpop.f32.mrb[0].mxu0
        %v2291 = vadd.f32 0.0, %v2290
        %v2292 = vpop.f32.mrb[0].mxu0
        %2293 = vmatprep.mubr.f32.mxu0 0.0
        %2294 = vmatmul.mubr.f32.gmra.mrb[0].mxu0 %v2114
        %v2295 = vpop.f32.mrb[0].mxu0
        %v2296 = vadd.f32 0.0, %v2295
        %v2297 = vpop.f32.mrb[0].mxu0
        %2298 = vmatprep.mubr.f32.mxu0 0.0
        %2299 = vmatmul.mubr.f32.gmra.mrb[0].mxu0 %v2117
        %v2300 = vpop.f32.mrb[0].mxu0
        %v2301 = vadd.f32 0.0, %v2300
        %v2302 = vpop.f32.mrb[0].mxu0
        %2303 = vmatprep.mubr.f32.mxu0 0.0
        %2304 = vmatmul.mubr.f32.gmra.mrb[0].mxu0 %v2120
        %v2305 = vpop.f32.mrb[0].mxu0
        %v2306 = vadd.f32 0.0, %v2305
        %v2307 = vpop.f32.mrb[0].mxu0
        %2308 = vmatprep.mubr.f32.mxu0 0.0
        %2309 = vmatmul.mubr.f32.gmra.mrb[0].mxu0 %v2123
        %v2310 = vpop.f32.mrb[0].mxu0
        %v2311 = vadd.f32 0.0, %v2310
        %v2312 = vpop.f32.mrb[0].mxu0
        %2313 = vmatprep.mubr.f32.mxu0 0.0
        %2314 = vmatmul.mubr.f32.gmra.mrb[0].mxu0 %v2126
        %v2315 = vpop.f32.mrb[0].mxu0
        %v2316 = vadd.f32 0.0, %v2315
        %v2317 = vpop.f32.mrb[0].mxu0
        %2318 = vmatprep.mubr.f32.mxu0 0.0
        %2319 = vmatmul.mubr.f32.gmra.mrb[0].mxu0 %v2129
        %v2320 = vpop.f32.mrb[0].mxu0
        %v2321 = vadd.f32 0.0, %v2320
        %v2322 = vpop.f32.mrb[0].mxu0
        %2323 = vmatprep.mubr.f32.mxu0 0.0
        %2324 = vmatmul.mubr.f32.gmra.mrb[0].mxu0 %v2132
        %v2325 = vpop.f32.mrb[0].mxu0
        %v2326 = vadd.f32 0.0, %v2325
        %v2327 = vpop.f32.mrb[0].mxu0
        %2328 = vmatprep.mubr.f32.mxu0 0.0
        %2329 = vmatmul.mubr.f32.gmra.mrb[0].mxu0 %v2135
        %v2330 = vpop.f32.mrb[0].mxu0
        %v2331 = vadd.f32 0.0, %v2330
        %v2332 = vpop.f32.mrb[0].mxu0
        %2333 = vmatprep.mubr.f32.mxu0 0.0
        %2334 = vmatmul.mubr.f32.gmra.mrb[0].mxu0 %v2138
        %v2335 = vpop.f32.mrb[0].mxu0
        %v2336 = vadd.f32 0.0, %v2335
        %v2337 = vpop.f32.mrb[0].mxu0
        %2338 = vmatprep.mubr.f32.mxu0 0.0
        %2339 = vmatmul.mubr.f32.gmra.mrb[0].mxu0 %v2141
        %v2340 = vpop.f32.mrb[0].mxu0
        %v2341 = vadd.f32 0.0, %v2340
        %v2342 = vpop.f32.mrb[0].mxu0
        %2343 = vmatprep.mubr.f32.mxu0 0.0
        %2344 = vmatmul.mubr.f32.gmra.mrb[0].mxu0 %v2144
        %v2345 = vpop.f32.mrb[0].mxu0
        %v2346 = vadd.f32 0.0, %v2345
        %v2347 = vpop.f32.mrb[0].mxu0
        %2348 = vmatprep.mubr.f32.mxu0 0.0
        %2349 = vmatmul.mubr.f32.gmra.mrb[0].mxu0 %v2147
        %v2350 = vpop.f32.mrb[0].mxu0
        %v2351 = vadd.f32 0.0, %v2350
        %v2352 = vpop.f32.mrb[0].mxu0
        %2353 = vmatprep.mubr.f32.mxu0 0.0
        %2354 = vmatmul.mubr.f32.gmra.mrb[0].mxu0 %v2150
        %v2355 = vpop.f32.mrb[0].mxu0
        %v2356 = vadd.f32 0.0, %v2355
        %v2357 = vpop.f32.mrb[0].mxu0
        %2358 = vmatprep.mubr.f32.mxu0 0.0
        %2359 = vmatmul.mubr.f32.gmra.mrb[0].mxu0 %v2153
        %v2360 = vpop.f32.mrb[0].mxu0
        %v2361 = vadd.f32 0.0, %v2360
        %v2362 = vpop.f32.mrb[0].mxu0
        %2363 = vmatprep.mubr.f32.mxu0 0.0
        %2364 = vmatmul.mubr.f32.gmra.mrb[0].mxu0 %v2156
        %v2365 = vpop.f32.mrb[0].mxu0
        %v2366 = vadd.f32 0.0, %v2365
        %v2367 = vpop.f32.mrb[0].mxu0
        %2368 = vmatprep.mubr.f32.mxu0 0.0
        %2369 = vmatmul.mubr.f32.gmra.mrb[0].mxu0 %v2159
        %v2370 = vpop.f32.mrb[0].mxu0
        %v2371 = vadd.f32 0.0, %v2370
        %v2372 = vpop.f32.mrb[0].mxu0
        %2373 = vmatprep.mubr.f32.mxu0 0.0
        %2374 = vmatmul.mubr.f32.gmra.mrb[0].mxu0 %v2162
        %v2375 = vpop.f32.mrb[0].mxu0
        %v2376 = vadd.f32 0.0, %v2375
        %v2377 = vpop.f32.mrb[0].mxu0
        %2378 = vmatprep.mubr.f32.mxu0 0.0
        %2379 = vmatmul.mubr.f32.gmra.mrb[0].mxu0 %v2165
        %v2380 = vpop.f32.mrb[0].mxu0
        %v2381 = vadd.f32 0.0, %v2380
        %v2382 = vpop.f32.mrb[0].mxu0
        %2383 = vmatprep.mubr.f32.mxu0 0.0
        %2384 = vmatmul.mubr.f32.gmra.mrb[0].mxu0 %v2168
        %v2385 = vpop.f32.mrb[0].mxu0
        %v2386 = vadd.f32 0.0, %v2385
        %v2387 = vpop.f32.mrb[0].mxu0
        %2388 = vmatprep.mubr.f32.mxu0 0.0
        %2389 = vmatmul.mubr.f32.gmra.mrb[0].mxu0 %v2171
        %v2390 = vpop.f32.mrb[0].mxu0
        %v2391 = vadd.f32 0.0, %v2390
        %v2392 = vpop.f32.mrb[0].mxu0
        %2393 = vmatprep.mubr.f32.mxu0 0.0
        %2394 = vmatmul.mubr.f32.gmra.mrb[0].mxu0 %v2174
        %v2395 = vpop.f32.mrb[0].mxu0
        %v2396 = vadd.f32 0.0, %v2395
        %v2397 = vpop.f32.mrb[0].mxu0
        %2398 = vmatprep.mubr.f32.mxu0 0.0
        %2399 = vmatmul.mubr.f32.gmra.mrb[0].mxu0 %v2177
        %v2400 = vpop.f32.mrb[0].mxu0
        %v2401 = vadd.f32 0.0, %v2400
        %v2402 = vpop.f32.mrb[0].mxu0
        %2403 = vdwg.mxu0
        %v2404 = vadd.f32 %v2017, %v2246
        %v2405 = vadd.f32 %v2018, %v2251
        %v2406 = vadd.f32 %v2019, %v2256
        %v2407 = vadd.f32 %v2020, %v2261
        %v2408 = vadd.f32 %v2021, %v2266
        %v2409 = vadd.f32 %v2022, %v2271
        %v2410 = vadd.f32 %v2023, %v2276
        %v2411 = vadd.f32 %v2024, %v2281
        %v2412 = vadd.f32 %v2025, %v2286
        %v2413 = vadd.f32 %v2026, %v2291
        %v2414 = vadd.f32 %v2027, %v2296
        %v2415 = vadd.f32 %v2028, %v2301
        %v2416 = vadd.f32 %v2029, %v2306
        %v2417 = vadd.f32 %v2030, %v2311
        %v2418 = vadd.f32 %v2031, %v2316
        %v2419 = vadd.f32 %v2032, %v2321
        %v2420 = vadd.f32 %v2033, %v2326
        %v2421 = vadd.f32 %v2034, %v2331
        %v2422 = vadd.f32 %v2035, %v2336
        %v2423 = vadd.f32 %v2036, %v2341
        %v2424 = vadd.f32 %v2037, %v2346
        %v2425 = vadd.f32 %v2038, %v2351
        %v2426 = vadd.f32 %v2039, %v2356
        %v2427 = vadd.f32 %v2040, %v2361
        %v2428 = vadd.f32 %v2041, %v2366
        %v2429 = vadd.f32 %v2042, %v2371
        %v2430 = vadd.f32 %v2043, %v2376
        %v2431 = vadd.f32 %v2044, %v2381
        %v2432 = vadd.f32 %v2045, %v2386
        %v2433 = vadd.f32 %v2046, %v2391
        %v2434 = vadd.f32 %v2047, %v2396
        %v2435 = vadd.f32 %v2048, %v2401
        %v2436 = vld [vmem:[%s920 + $0x1] sm:$0xff]
        %v2437 = vld [vmem:[%s920 + $0x9] sm:$0xff]
        %v2438 = vld [vmem:[%s920 + $0x19] sm:$0xff]
        %v2439 = vld [vmem:[%s920 + $0x21] sm:$0xff]
        %v2440 = vld [vmem:[%s920 + $0x31] sm:$0xff]
        %v2441 = vld [vmem:[%s920 + $0x39] sm:$0xff]
        %v2442 = vld [vmem:[%s920 + $0x49] sm:$0xff]
        %v2443 = vld [vmem:[%s920 + $0x51] sm:$0xff]
        %v2444 = vld [vmem:[%s920 + $0x61] sm:$0xff]
        %v2445 = vld [vmem:[%s920 + $0x69] sm:$0xff]
        %v2446 = vld [vmem:[%s920 + $0x79] sm:$0xff]
        %v2447 = vld [vmem:[%s920 + $0x81] sm:$0xff]
        %v2448 = vld [vmem:[%s920 + $0x91] sm:$0xff]
        %v2449 = vld [vmem:[%s920 + $0x99] sm:$0xff]
        %v2450 = vld [vmem:[%s920 + $0xa9] sm:$0xff]
        %v2451 = vld [vmem:[%s920 + $0xb1] sm:$0xff]
        %v2452 = vld [vmem:[%s920 + $0xc1] sm:$0xff]
        %v2453 = vld [vmem:[%s920 + $0xc9] sm:$0xff]
        %v2454 = vld [vmem:[%s920 + $0xd9] sm:$0xff]
        %v2455 = vld [vmem:[%s920 + $0xe1] sm:$0xff]
        %v2456 = vld [vmem:[%s920 + $0xf1] sm:$0xff]
        %v2457 = vld [vmem:[%s920 + $0xf9] sm:$0xff]
        %v2458 = vld [vmem:[%s920 + $0x109] sm:$0xff]
        %v2459 = vld [vmem:[%s920 + $0x111] sm:$0xff]
        %v2460 = vld [vmem:[%s920 + $0x121] sm:$0xff]
        %v2461 = vld [vmem:[%s920 + $0x129] sm:$0xff]
        %v2462 = vld [vmem:[%s920 + $0x139] sm:$0xff]
        %v2463 = vld [vmem:[%s920 + $0x141] sm:$0xff]
        %v2464 = vld [vmem:[%s920 + $0x151] sm:$0xff]
        %v2465 = vld [vmem:[%s920 + $0x159] sm:$0xff]
        %v2466 = vld [vmem:[%s920 + $0x169] sm:$0xff]
        %v2467 = vld [vmem:[%s920 + $0x171] sm:$0xff]
        %s2468 = scalar_lea.vmem %s3, 32
        %v2469 = vld [vmem:[%s2468] sm:$0xff]
        %v2471 = vsel %vm864, %v2436, 0
        %v2474 = vsel %vm864, %v2437, 0
        %v2477 = vsel %vm864, %v2438, 0
        %v2480 = vsel %vm864, %v2439, 0
        %v2483 = vsel %vm864, %v2440, 0
        %v2486 = vsel %vm864, %v2441, 0
        %v2489 = vsel %vm864, %v2442, 0
        %v2492 = vsel %vm864, %v2443, 0
        %v2495 = vsel %vm864, %v2444, 0
        %v2498 = vsel %vm864, %v2445, 0
        %v2501 = vsel %vm864, %v2446, 0
        %v2504 = vsel %vm864, %v2447, 0
        %v2507 = vsel %vm864, %v2448, 0
        %v2510 = vsel %vm864, %v2449, 0
        %v2513 = vsel %vm864, %v2450, 0
        %v2516 = vsel %vm864, %v2451, 0
        %v2519 = vsel %vm864, %v2452, 0
        %v2522 = vsel %vm864, %v2453, 0
        %v2525 = vsel %vm864, %v2454, 0
        %v2528 = vsel %vm864, %v2455, 0
        %v2531 = vsel %vm864, %v2456, 0
        %v2534 = vsel %vm864, %v2457, 0
        %v2537 = vsel %vm864, %v2458, 0
        %v2540 = vsel %vm864, %v2459, 0
        %v2543 = vsel %vm864, %v2460, 0
        %v2546 = vsel %vm864, %v2461, 0
        %v2549 = vsel %vm864, %v2462, 0
        %v2552 = vsel %vm864, %v2463, 0
        %v2555 = vsel %vm864, %v2464, 0
        %v2558 = vsel %vm864, %v2465, 0
        %v2561 = vsel %vm864, %v2466, 0
        %v2564 = vsel %vm864, %v2467, 0
        %2566 = vmatprep.subr.mxu0 0.0
        %2567 = vmatpush1.msra.mxu0 %v2469
        %2568 = vmatprep.subr.mxu0 0.0
        %2569 = vmatpush1.msra.mxu0 0.0
        %2570 = vmatprep.subr.mxu0 0.0
        %2571 = vmatpush1.msra.mxu0 0.0
        %2572 = vmatprep.subr.mxu0 0.0
        %2573 = vmatpush1.msra.mxu0 0.0
        %2574 = vmatprep.subr.mxu0 0.0
        %2575 = vmatpush1.msra.mxu0 0.0
        %2576 = vmatprep.subr.mxu0 0.0
        %2577 = vmatpush1.msra.mxu0 0.0
        %2578 = vmatprep.subr.mxu0 0.0
        %2579 = vmatpush1.msra.mxu0 0.0
        %2580 = vmatprep.subr.mxu0 0.0
        %2581 = vmatpush1.msra.mxu0 0.0
        %2582 = vmatprep.subr.mxu0 0.0
        %2583 = vmatpush1.msra.mxu0 0.0
        %2584 = vmatprep.subr.mxu0 0.0
        %2585 = vmatpush1.msra.mxu0 0.0
        %2586 = vmatprep.subr.mxu0 0.0
        %2587 = vmatpush1.msra.mxu0 0.0
        %2588 = vmatprep.subr.mxu0 0.0
        %2589 = vmatpush1.msra.mxu0 0.0
        %2590 = vmatprep.subr.mxu0 0.0
        %2591 = vmatpush1.msra.mxu0 0.0
        %2592 = vmatprep.subr.mxu0 0.0
        %2593 = vmatpush1.msra.mxu0 0.0
        %2594 = vmatprep.subr.mxu0 0.0
        %2595 = vmatpush1.msra.mxu0 0.0
        %2596 = vmatprep.subr.mxu0 0.0
        %2597 = vmatpush1.msra.mxu0 0.0
        %2598 = vmatprep.subr.mxu0 0.0
        %2599 = vmatpush1.msra.mxu0 0.0
        %2600 = vmatprep.subr.mxu0 0.0
        %2601 = vmatpush1.msra.mxu0 0.0
        %2602 = vmatprep.subr.mxu0 0.0
        %2603 = vmatpush1.msra.mxu0 0.0
        %2604 = vmatprep.subr.mxu0 0.0
        %2605 = vmatpush1.msra.mxu0 0.0
        %2606 = vmatprep.subr.mxu0 0.0
        %2607 = vmatpush1.msra.mxu0 0.0
        %2608 = vmatprep.subr.mxu0 0.0
        %2609 = vmatpush1.msra.mxu0 0.0
        %2610 = vmatprep.subr.mxu0 0.0
        %2611 = vmatpush1.msra.mxu0 0.0
        %2612 = vmatprep.subr.mxu0 0.0
        %2613 = vmatpush1.msra.mxu0 0.0
        %2614 = vmatprep.subr.mxu0 0.0
        %2615 = vmatpush1.msra.mxu0 0.0
        %2616 = vmatprep.subr.mxu0 0.0
        %2617 = vmatpush1.msra.mxu0 0.0
        %2618 = vmatprep.subr.mxu0 0.0
        %2619 = vmatpush1.msra.mxu0 0.0
        %2620 = vmatprep.subr.mxu0 0.0
        %2621 = vmatpush1.msra.mxu0 0.0
        %2622 = vmatprep.subr.mxu0 0.0
        %2623 = vmatpush1.msra.mxu0 0.0
        %2624 = vmatprep.subr.mxu0 0.0
        %2625 = vmatpush1.msra.mxu0 0.0
        %2626 = vmatprep.subr.mxu0 0.0
        %2627 = vmatpush1.msra.mxu0 0.0
        %2628 = vmatprep.subr.mxu0 0.0
        %2629 = vmatpush1.msra.mxu0 0.0
        %2630 = vmatprep.mubr.f32.mxu0 0.0
        %2631 = vmatmul.mubr.f32.gmra.mrb[0].mxu0 %v2471
        %v2632 = vpop.f32.mrb[0].mxu0
        %v2633 = vadd.f32 0.0, %v2632
        %v2634 = vpop.f32.mrb[0].mxu0
        %2635 = vmatprep.mubr.f32.mxu0 0.0
        %2636 = vmatmul.mubr.f32.gmra.mrb[0].mxu0 %v2474
        %v2637 = vpop.f32.mrb[0].mxu0
        %v2638 = vadd.f32 0.0, %v2637
        %v2639 = vpop.f32.mrb[0].mxu0
        %2640 = vmatprep.mubr.f32.mxu0 0.0
        %2641 = vmatmul.mubr.f32.gmra.mrb[0].mxu0 %v2477
        %v2642 = vpop.f32.mrb[0].mxu0
        %v2643 = vadd.f32 0.0, %v2642
        %v2644 = vpop.f32.mrb[0].mxu0
        %2645 = vmatprep.mubr.f32.mxu0 0.0
        %2646 = vmatmul.mubr.f32.gmra.mrb[0].mxu0 %v2480
        %v2647 = vpop.f32.mrb[0].mxu0
        %v2648 = vadd.f32 0.0, %v2647
        %v2649 = vpop.f32.mrb[0].mxu0
        %2650 = vmatprep.mubr.f32.mxu0 0.0
        %2651 = vmatmul.mubr.f32.gmra.mrb[0].mxu0 %v2483
        %v2652 = vpop.f32.mrb[0].mxu0
        %v2653 = vadd.f32 0.0, %v2652
        %v2654 = vpop.f32.mrb[0].mxu0
        %2655 = vmatprep.mubr.f32.mxu0 0.0
        %2656 = vmatmul.mubr.f32.gmra.mrb[0].mxu0 %v2486
        %v2657 = vpop.f32.mrb[0].mxu0
        %v2658 = vadd.f32 0.0, %v2657
        %v2659 = vpop.f32.mrb[0].mxu0
        %2660 = vmatprep.mubr.f32.mxu0 0.0
        %2661 = vmatmul.mubr.f32.gmra.mrb[0].mxu0 %v2489
        %v2662 = vpop.f32.mrb[0].mxu0
        %v2663 = vadd.f32 0.0, %v2662
        %v2664 = vpop.f32.mrb[0].mxu0
        %2665 = vmatprep.mubr.f32.mxu0 0.0
        %2666 = vmatmul.mubr.f32.gmra.mrb[0].mxu0 %v2492
        %v2667 = vpop.f32.mrb[0].mxu0
        %v2668 = vadd.f32 0.0, %v2667
        %v2669 = vpop.f32.mrb[0].mxu0
        %2670 = vmatprep.mubr.f32.mxu0 0.0
        %2671 = vmatmul.mubr.f32.gmra.mrb[0].mxu0 %v2495
        %v2672 = vpop.f32.mrb[0].mxu0
        %v2673 = vadd.f32 0.0, %v2672
        %v2674 = vpop.f32.mrb[0].mxu0
        %2675 = vmatprep.mubr.f32.mxu0 0.0
        %2676 = vmatmul.mubr.f32.gmra.mrb[0].mxu0 %v2498
        %v2677 = vpop.f32.mrb[0].mxu0
        %v2678 = vadd.f32 0.0, %v2677
        %v2679 = vpop.f32.mrb[0].mxu0
        %2680 = vmatprep.mubr.f32.mxu0 0.0
        %2681 = vmatmul.mubr.f32.gmra.mrb[0].mxu0 %v2501
        %v2682 = vpop.f32.mrb[0].mxu0
        %v2683 = vadd.f32 0.0, %v2682
        %v2684 = vpop.f32.mrb[0].mxu0
        %2685 = vmatprep.mubr.f32.mxu0 0.0
        %2686 = vmatmul.mubr.f32.gmra.mrb[0].mxu0 %v2504
        %v2687 = vpop.f32.mrb[0].mxu0
        %v2688 = vadd.f32 0.0, %v2687
        %v2689 = vpop.f32.mrb[0].mxu0
        %2690 = vmatprep.mubr.f32.mxu0 0.0
        %2691 = vmatmul.mubr.f32.gmra.mrb[0].mxu0 %v2507
        %v2692 = vpop.f32.mrb[0].mxu0
        %v2693 = vadd.f32 0.0, %v2692
        %v2694 = vpop.f32.mrb[0].mxu0
        %2695 = vmatprep.mubr.f32.mxu0 0.0
        %2696 = vmatmul.mubr.f32.gmra.mrb[0].mxu0 %v2510
        %v2697 = vpop.f32.mrb[0].mxu0
        %v2698 = vadd.f32 0.0, %v2697
        %v2699 = vpop.f32.mrb[0].mxu0
        %2700 = vmatprep.mubr.f32.mxu0 0.0
        %2701 = vmatmul.mubr.f32.gmra.mrb[0].mxu0 %v2513
        %v2702 = vpop.f32.mrb[0].mxu0
        %v2703 = vadd.f32 0.0, %v2702
        %v2704 = vpop.f32.mrb[0].mxu0
        %2705 = vmatprep.mubr.f32.mxu0 0.0
        %2706 = vmatmul.mubr.f32.gmra.mrb[0].mxu0 %v2516
        %v2707 = vpop.f32.mrb[0].mxu0
        %v2708 = vadd.f32 0.0, %v2707
        %v2709 = vpop.f32.mrb[0].mxu0
        %2710 = vmatprep.mubr.f32.mxu0 0.0
        %2711 = vmatmul.mubr.f32.gmra.mrb[0].mxu0 %v2519
        %v2712 = vpop.f32.mrb[0].mxu0
        %v2713 = vadd.f32 0.0, %v2712
        %v2714 = vpop.f32.mrb[0].mxu0
        %2715 = vmatprep.mubr.f32.mxu0 0.0
        %2716 = vmatmul.mubr.f32.gmra.mrb[0].mxu0 %v2522
        %v2717 = vpop.f32.mrb[0].mxu0
        %v2718 = vadd.f32 0.0, %v2717
        %v2719 = vpop.f32.mrb[0].mxu0
        %2720 = vmatprep.mubr.f32.mxu0 0.0
        %2721 = vmatmul.mubr.f32.gmra.mrb[0].mxu0 %v2525
        %v2722 = vpop.f32.mrb[0].mxu0
        %v2723 = vadd.f32 0.0, %v2722
        %v2724 = vpop.f32.mrb[0].mxu0
        %2725 = vmatprep.mubr.f32.mxu0 0.0
        %2726 = vmatmul.mubr.f32.gmra.mrb[0].mxu0 %v2528
        %v2727 = vpop.f32.mrb[0].mxu0
        %v2728 = vadd.f32 0.0, %v2727
        %v2729 = vpop.f32.mrb[0].mxu0
        %2730 = vmatprep.mubr.f32.mxu0 0.0
        %2731 = vmatmul.mubr.f32.gmra.mrb[0].mxu0 %v2531
        %v2732 = vpop.f32.mrb[0].mxu0
        %v2733 = vadd.f32 0.0, %v2732
        %v2734 = vpop.f32.mrb[0].mxu0
        %2735 = vmatprep.mubr.f32.mxu0 0.0
        %2736 = vmatmul.mubr.f32.gmra.mrb[0].mxu0 %v2534
        %v2737 = vpop.f32.mrb[0].mxu0
        %v2738 = vadd.f32 0.0, %v2737
        %v2739 = vpop.f32.mrb[0].mxu0
        %2740 = vmatprep.mubr.f32.mxu0 0.0
        %2741 = vmatmul.mubr.f32.gmra.mrb[0].mxu0 %v2537
        %v2742 = vpop.f32.mrb[0].mxu0
        %v2743 = vadd.f32 0.0, %v2742
        %v2744 = vpop.f32.mrb[0].mxu0
        %2745 = vmatprep.mubr.f32.mxu0 0.0
        %2746 = vmatmul.mubr.f32.gmra.mrb[0].mxu0 %v2540
        %v2747 = vpop.f32.mrb[0].mxu0
        %v2748 = vadd.f32 0.0, %v2747
        %v2749 = vpop.f32.mrb[0].mxu0
        %2750 = vmatprep.mubr.f32.mxu0 0.0
        %2751 = vmatmul.mubr.f32.gmra.mrb[0].mxu0 %v2543
        %v2752 = vpop.f32.mrb[0].mxu0
        %v2753 = vadd.f32 0.0, %v2752
        %v2754 = vpop.f32.mrb[0].mxu0
        %2755 = vmatprep.mubr.f32.mxu0 0.0
        %2756 = vmatmul.mubr.f32.gmra.mrb[0].mxu0 %v2546
        %v2757 = vpop.f32.mrb[0].mxu0
        %v2758 = vadd.f32 0.0, %v2757
        %v2759 = vpop.f32.mrb[0].mxu0
        %2760 = vmatprep.mubr.f32.mxu0 0.0
        %2761 = vmatmul.mubr.f32.gmra.mrb[0].mxu0 %v2549
        %v2762 = vpop.f32.mrb[0].mxu0
        %v2763 = vadd.f32 0.0, %v2762
        %v2764 = vpop.f32.mrb[0].mxu0
        %2765 = vmatprep.mubr.f32.mxu0 0.0
        %2766 = vmatmul.mubr.f32.gmra.mrb[0].mxu0 %v2552
        %v2767 = vpop.f32.mrb[0].mxu0
        %v2768 = vadd.f32 0.0, %v2767
        %v2769 = vpop.f32.mrb[0].mxu0
        %2770 = vmatprep.mubr.f32.mxu0 0.0
        %2771 = vmatmul.mubr.f32.gmra.mrb[0].mxu0 %v2555
        %v2772 = vpop.f32.mrb[0].mxu0
        %v2773 = vadd.f32 0.0, %v2772
        %v2774 = vpop.f32.mrb[0].mxu0
        %2775 = vmatprep.mubr.f32.mxu0 0.0
        %2776 = vmatmul.mubr.f32.gmra.mrb[0].mxu0 %v2558
        %v2777 = vpop.f32.mrb[0].mxu0
        %v2778 = vadd.f32 0.0, %v2777
        %v2779 = vpop.f32.mrb[0].mxu0
        %2780 = vmatprep.mubr.f32.mxu0 0.0
        %2781 = vmatmul.mubr.f32.gmra.mrb[0].mxu0 %v2561
        %v2782 = vpop.f32.mrb[0].mxu0
        %v2783 = vadd.f32 0.0, %v2782
        %v2784 = vpop.f32.mrb[0].mxu0
        %2785 = vmatprep.mubr.f32.mxu0 0.0
        %2786 = vmatmul.mubr.f32.gmra.mrb[0].mxu0 %v2564
        %v2787 = vpop.f32.mrb[0].mxu0
        %v2788 = vadd.f32 0.0, %v2787
        %v2789 = vpop.f32.mrb[0].mxu0
        %2790 = vdwg.mxu0
        %v2791 = vadd.f32 %v2404, %v2633
        %v2792 = vadd.f32 %v2405, %v2638
        %v2793 = vadd.f32 %v2406, %v2643
        %v2794 = vadd.f32 %v2407, %v2648
        %v2795 = vadd.f32 %v2408, %v2653
        %v2796 = vadd.f32 %v2409, %v2658
        %v2797 = vadd.f32 %v2410, %v2663
        %v2798 = vadd.f32 %v2411, %v2668
        %v2799 = vadd.f32 %v2412, %v2673
        %v2800 = vadd.f32 %v2413, %v2678
        %v2801 = vadd.f32 %v2414, %v2683
        %v2802 = vadd.f32 %v2415, %v2688
        %v2803 = vadd.f32 %v2416, %v2693
        %v2804 = vadd.f32 %v2417, %v2698
        %v2805 = vadd.f32 %v2418, %v2703
        %v2806 = vadd.f32 %v2419, %v2708
        %v2807 = vadd.f32 %v2420, %v2713
        %v2808 = vadd.f32 %v2421, %v2718
        %v2809 = vadd.f32 %v2422, %v2723
        %v2810 = vadd.f32 %v2423, %v2728
        %v2811 = vadd.f32 %v2424, %v2733
        %v2812 = vadd.f32 %v2425, %v2738
        %v2813 = vadd.f32 %v2426, %v2743
        %v2814 = vadd.f32 %v2427, %v2748
        %v2815 = vadd.f32 %v2428, %v2753
        %v2816 = vadd.f32 %v2429, %v2758
        %v2817 = vadd.f32 %v2430, %v2763
        %v2818 = vadd.f32 %v2431, %v2768
        %v2819 = vadd.f32 %v2432, %v2773
        %v2820 = vadd.f32 %v2433, %v2778
        %v2821 = vadd.f32 %v2434, %v2783
        %v2822 = vadd.f32 %v2435, %v2788
        %v2823 = vld [vmem:[%s920 + $0x2] sm:$0xff]
        %v2824 = vld [vmem:[%s920 + $0xa] sm:$0xff]
        %v2825 = vld [vmem:[%s920 + $0x1a] sm:$0xff]
        %v2826 = vld [vmem:[%s920 + $0x22] sm:$0xff]
        %v2827 = vld [vmem:[%s920 + $0x32] sm:$0xff]
        %v2828 = vld [vmem:[%s920 + $0x3a] sm:$0xff]
        %v2829 = vld [vmem:[%s920 + $0x4a] sm:$0xff]
        %v2830 = vld [vmem:[%s920 + $0x52] sm:$0xff]
        %v2831 = vld [vmem:[%s920 + $0x62] sm:$0xff]
        %v2832 = vld [vmem:[%s920 + $0x6a] sm:$0xff]
        %v2833 = vld [vmem:[%s920 + $0x7a] sm:$0xff]
        %v2834 = vld [vmem:[%s920 + $0x82] sm:$0xff]
        %v2835 = vld [vmem:[%s920 + $0x92] sm:$0xff]
        %v2836 = vld [vmem:[%s920 + $0x9a] sm:$0xff]
        %v2837 = vld [vmem:[%s920 + $0xaa] sm:$0xff]
        %v2838 = vld [vmem:[%s920 + $0xb2] sm:$0xff]
        %v2839 = vld [vmem:[%s920 + $0xc2] sm:$0xff]
        %v2840 = vld [vmem:[%s920 + $0xca] sm:$0xff]
        %v2841 = vld [vmem:[%s920 + $0xda] sm:$0xff]
        %v2842 = vld [vmem:[%s920 + $0xe2] sm:$0xff]
        %v2843 = vld [vmem:[%s920 + $0xf2] sm:$0xff]
        %v2844 = vld [vmem:[%s920 + $0xfa] sm:$0xff]
        %v2845 = vld [vmem:[%s920 + $0x10a] sm:$0xff]
        %v2846 = vld [vmem:[%s920 + $0x112] sm:$0xff]
        %v2847 = vld [vmem:[%s920 + $0x122] sm:$0xff]
        %v2848 = vld [vmem:[%s920 + $0x12a] sm:$0xff]
        %v2849 = vld [vmem:[%s920 + $0x13a] sm:$0xff]
        %v2850 = vld [vmem:[%s920 + $0x142] sm:$0xff]
        %v2851 = vld [vmem:[%s920 + $0x152] sm:$0xff]
        %v2852 = vld [vmem:[%s920 + $0x15a] sm:$0xff]
        %v2853 = vld [vmem:[%s920 + $0x16a] sm:$0xff]
        %v2854 = vld [vmem:[%s920 + $0x172] sm:$0xff]
        %s2855 = scalar_lea.vmem %s3, 40
        %v2856 = vld [vmem:[%s2855] sm:$0xff]
        %v2858 = vsel %vm864, %v2823, 0
        %v2861 = vsel %vm864, %v2824, 0
        %v2864 = vsel %vm864, %v2825, 0
        %v2867 = vsel %vm864, %v2826, 0
        %v2870 = vsel %vm864, %v2827, 0
        %v2873 = vsel %vm864, %v2828, 0
        %v2876 = vsel %vm864, %v2829, 0
        %v2879 = vsel %vm864, %v2830, 0
        %v2882 = vsel %vm864, %v2831, 0
        %v2885 = vsel %vm864, %v2832, 0
        %v2888 = vsel %vm864, %v2833, 0
        %v2891 = vsel %vm864, %v2834, 0
        %v2894 = vsel %vm864, %v2835, 0
        %v2897 = vsel %vm864, %v2836, 0
        %v2900 = vsel %vm864, %v2837, 0
        %v2903 = vsel %vm864, %v2838, 0
        %v2906 = vsel %vm864, %v2839, 0
        %v2909 = vsel %vm864, %v2840, 0
        %v2912 = vsel %vm864, %v2841, 0
        %v2915 = vsel %vm864, %v2842, 0
        %v2918 = vsel %vm864, %v2843, 0
        %v2921 = vsel %vm864, %v2844, 0
        %v2924 = vsel %vm864, %v2845, 0
        %v2927 = vsel %vm864, %v2846, 0
        %v2930 = vsel %vm864, %v2847, 0
        %v2933 = vsel %vm864, %v2848, 0
        %v2936 = vsel %vm864, %v2849, 0
        %v2939 = vsel %vm864, %v2850, 0
        %v2942 = vsel %vm864, %v2851, 0
        %v2945 = vsel %vm864, %v2852, 0
        %v2948 = vsel %vm864, %v2853, 0
        %v2951 = vsel %vm864, %v2854, 0
        %2953 = vmatprep.subr.mxu0 0.0
        %2954 = vmatpush1.msra.mxu0 %v2856
        %2955 = vmatprep.subr.mxu0 0.0
        %2956 = vmatpush1.msra.mxu0 0.0
        %2957 = vmatprep.subr.mxu0 0.0
        %2958 = vmatpush1.msra.mxu0 0.0
        %2959 = vmatprep.subr.mxu0 0.0
        %2960 = vmatpush1.msra.mxu0 0.0
        %2961 = vmatprep.subr.mxu0 0.0
        %2962 = vmatpush1.msra.mxu0 0.0
        %2963 = vmatprep.subr.mxu0 0.0
        %2964 = vmatpush1.msra.mxu0 0.0
        %2965 = vmatprep.subr.mxu0 0.0
        %2966 = vmatpush1.msra.mxu0 0.0
        %2967 = vmatprep.subr.mxu0 0.0
        %2968 = vmatpush1.msra.mxu0 0.0
        %2969 = vmatprep.subr.mxu0 0.0
        %2970 = vmatpush1.msra.mxu0 0.0
        %2971 = vmatprep.subr.mxu0 0.0
        %2972 = vmatpush1.msra.mxu0 0.0
        %2973 = vmatprep.subr.mxu0 0.0
        %2974 = vmatpush1.msra.mxu0 0.0
        %2975 = vmatprep.subr.mxu0 0.0
        %2976 = vmatpush1.msra.mxu0 0.0
        %2977 = vmatprep.subr.mxu0 0.0
        %2978 = vmatpush1.msra.mxu0 0.0
        %2979 = vmatprep.subr.mxu0 0.0
        %2980 = vmatpush1.msra.mxu0 0.0
        %2981 = vmatprep.subr.mxu0 0.0
        %2982 = vmatpush1.msra.mxu0 0.0
        %2983 = vmatprep.subr.mxu0 0.0
        %2984 = vmatpush1.msra.mxu0 0.0
        %2985 = vmatprep.subr.mxu0 0.0
        %2986 = vmatpush1.msra.mxu0 0.0
        %2987 = vmatprep.subr.mxu0 0.0
        %2988 = vmatpush1.msra.mxu0 0.0
        %2989 = vmatprep.subr.mxu0 0.0
        %2990 = vmatpush1.msra.mxu0 0.0
        %2991 = vmatprep.subr.mxu0 0.0
        %2992 = vmatpush1.msra.mxu0 0.0
        %2993 = vmatprep.subr.mxu0 0.0
        %2994 = vmatpush1.msra.mxu0 0.0
        %2995 = vmatprep.subr.mxu0 0.0
        %2996 = vmatpush1.msra.mxu0 0.0
        %2997 = vmatprep.subr.mxu0 0.0
        %2998 = vmatpush1.msra.mxu0 0.0
        %2999 = vmatprep.subr.mxu0 0.0
        %3000 = vmatpush1.msra.mxu0 0.0
        %3001 = vmatprep.subr.mxu0 0.0
        %3002 = vmatpush1.msra.mxu0 0.0
        %3003 = vmatprep.subr.mxu0 0.0
        %3004 = vmatpush1.msra.mxu0 0.0
        %3005 = vmatprep.subr.mxu0 0.0
        %3006 = vmatpush1.msra.mxu0 0.0
        %3007 = vmatprep.subr.mxu0 0.0
        %3008 = vmatpush1.msra.mxu0 0.0
        %3009 = vmatprep.subr.mxu0 0.0
        %3010 = vmatpush1.msra.mxu0 0.0
        %3011 = vmatprep.subr.mxu0 0.0
        %3012 = vmatpush1.msra.mxu0 0.0
        %3013 = vmatprep.subr.mxu0 0.0
        %3014 = vmatpush1.msra.mxu0 0.0
        %3015 = vmatprep.subr.mxu0 0.0
        %3016 = vmatpush1.msra.mxu0 0.0
        %3017 = vmatprep.mubr.f32.mxu0 0.0
        %3018 = vmatmul.mubr.f32.gmra.mrb[0].mxu0 %v2858
        %v3019 = vpop.f32.mrb[0].mxu0
        %v3020 = vadd.f32 0.0, %v3019
        %v3021 = vpop.f32.mrb[0].mxu0
        %3022 = vmatprep.mubr.f32.mxu0 0.0
        %3023 = vmatmul.mubr.f32.gmra.mrb[0].mxu0 %v2861
        %v3024 = vpop.f32.mrb[0].mxu0
        %v3025 = vadd.f32 0.0, %v3024
        %v3026 = vpop.f32.mrb[0].mxu0
        %3027 = vmatprep.mubr.f32.mxu0 0.0
        %3028 = vmatmul.mubr.f32.gmra.mrb[0].mxu0 %v2864
        %v3029 = vpop.f32.mrb[0].mxu0
        %v3030 = vadd.f32 0.0, %v3029
        %v3031 = vpop.f32.mrb[0].mxu0
        %3032 = vmatprep.mubr.f32.mxu0 0.0
        %3033 = vmatmul.mubr.f32.gmra.mrb[0].mxu0 %v2867
        %v3034 = vpop.f32.mrb[0].mxu0
        %v3035 = vadd.f32 0.0, %v3034
        %v3036 = vpop.f32.mrb[0].mxu0
        %3037 = vmatprep.mubr.f32.mxu0 0.0
        %3038 = vmatmul.mubr.f32.gmra.mrb[0].mxu0 %v2870
        %v3039 = vpop.f32.mrb[0].mxu0
        %v3040 = vadd.f32 0.0, %v3039
        %v3041 = vpop.f32.mrb[0].mxu0
        %3042 = vmatprep.mubr.f32.mxu0 0.0
        %3043 = vmatmul.mubr.f32.gmra.mrb[0].mxu0 %v2873
        %v3044 = vpop.f32.mrb[0].mxu0
        %v3045 = vadd.f32 0.0, %v3044
        %v3046 = vpop.f32.mrb[0].mxu0
        %3047 = vmatprep.mubr.f32.mxu0 0.0
        %3048 = vmatmul.mubr.f32.gmra.mrb[0].mxu0 %v2876
        %v3049 = vpop.f32.mrb[0].mxu0
        %v3050 = vadd.f32 0.0, %v3049
        %v3051 = vpop.f32.mrb[0].mxu0
        %3052 = vmatprep.mubr.f32.mxu0 0.0
        %3053 = vmatmul.mubr.f32.gmra.mrb[0].mxu0 %v2879
        %v3054 = vpop.f32.mrb[0].mxu0
        %v3055 = vadd.f32 0.0, %v3054
        %v3056 = vpop.f32.mrb[0].mxu0
        %3057 = vmatprep.mubr.f32.mxu0 0.0
        %3058 = vmatmul.mubr.f32.gmra.mrb[0].mxu0 %v2882
        %v3059 = vpop.f32.mrb[0].mxu0
        %v3060 = vadd.f32 0.0, %v3059
        %v3061 = vpop.f32.mrb[0].mxu0
        %3062 = vmatprep.mubr.f32.mxu0 0.0
        %3063 = vmatmul.mubr.f32.gmra.mrb[0].mxu0 %v2885
        %v3064 = vpop.f32.mrb[0].mxu0
        %v3065 = vadd.f32 0.0, %v3064
        %v3066 = vpop.f32.mrb[0].mxu0
        %3067 = vmatprep.mubr.f32.mxu0 0.0
        %3068 = vmatmul.mubr.f32.gmra.mrb[0].mxu0 %v2888
        %v3069 = vpop.f32.mrb[0].mxu0
        %v3070 = vadd.f32 0.0, %v3069
        %v3071 = vpop.f32.mrb[0].mxu0
        %3072 = vmatprep.mubr.f32.mxu0 0.0
        %3073 = vmatmul.mubr.f32.gmra.mrb[0].mxu0 %v2891
        %v3074 = vpop.f32.mrb[0].mxu0
        %v3075 = vadd.f32 0.0, %v3074
        %v3076 = vpop.f32.mrb[0].mxu0
        %3077 = vmatprep.mubr.f32.mxu0 0.0
        %3078 = vmatmul.mubr.f32.gmra.mrb[0].mxu0 %v2894
        %v3079 = vpop.f32.mrb[0].mxu0
        %v3080 = vadd.f32 0.0, %v3079
        %v3081 = vpop.f32.mrb[0].mxu0
        %3082 = vmatprep.mubr.f32.mxu0 0.0
        %3083 = vmatmul.mubr.f32.gmra.mrb[0].mxu0 %v2897
        %v3084 = vpop.f32.mrb[0].mxu0
        %v3085 = vadd.f32 0.0, %v3084
        %v3086 = vpop.f32.mrb[0].mxu0
        %3087 = vmatprep.mubr.f32.mxu0 0.0
        %3088 = vmatmul.mubr.f32.gmra.mrb[0].mxu0 %v2900
        %v3089 = vpop.f32.mrb[0].mxu0
        %v3090 = vadd.f32 0.0, %v3089
        %v3091 = vpop.f32.mrb[0].mxu0
        %3092 = vmatprep.mubr.f32.mxu0 0.0
        %3093 = vmatmul.mubr.f32.gmra.mrb[0].mxu0 %v2903
        %v3094 = vpop.f32.mrb[0].mxu0
        %v3095 = vadd.f32 0.0, %v3094
        %v3096 = vpop.f32.mrb[0].mxu0
        %3097 = vmatprep.mubr.f32.mxu0 0.0
        %3098 = vmatmul.mubr.f32.gmra.mrb[0].mxu0 %v2906
        %v3099 = vpop.f32.mrb[0].mxu0
        %v3100 = vadd.f32 0.0, %v3099
        %v3101 = vpop.f32.mrb[0].mxu0
        %3102 = vmatprep.mubr.f32.mxu0 0.0
        %3103 = vmatmul.mubr.f32.gmra.mrb[0].mxu0 %v2909
        %v3104 = vpop.f32.mrb[0].mxu0
        %v3105 = vadd.f32 0.0, %v3104
        %v3106 = vpop.f32.mrb[0].mxu0
        %3107 = vmatprep.mubr.f32.mxu0 0.0
        %3108 = vmatmul.mubr.f32.gmra.mrb[0].mxu0 %v2912
        %v3109 = vpop.f32.mrb[0].mxu0
        %v3110 = vadd.f32 0.0, %v3109
        %v3111 = vpop.f32.mrb[0].mxu0
        %3112 = vmatprep.mubr.f32.mxu0 0.0
        %3113 = vmatmul.mubr.f32.gmra.mrb[0].mxu0 %v2915
        %v3114 = vpop.f32.mrb[0].mxu0
        %v3115 = vadd.f32 0.0, %v3114
        %v3116 = vpop.f32.mrb[0].mxu0
        %3117 = vmatprep.mubr.f32.mxu0 0.0
        %3118 = vmatmul.mubr.f32.gmra.mrb[0].mxu0 %v2918
        %v3119 = vpop.f32.mrb[0].mxu0
        %v3120 = vadd.f32 0.0, %v3119
        %v3121 = vpop.f32.mrb[0].mxu0
        %3122 = vmatprep.mubr.f32.mxu0 0.0
        %3123 = vmatmul.mubr.f32.gmra.mrb[0].mxu0 %v2921
        %v3124 = vpop.f32.mrb[0].mxu0
        %v3125 = vadd.f32 0.0, %v3124
        %v3126 = vpop.f32.mrb[0].mxu0
        %3127 = vmatprep.mubr.f32.mxu0 0.0
        %3128 = vmatmul.mubr.f32.gmra.mrb[0].mxu0 %v2924
        %v3129 = vpop.f32.mrb[0].mxu0
        %v3130 = vadd.f32 0.0, %v3129
        %v3131 = vpop.f32.mrb[0].mxu0
        %3132 = vmatprep.mubr.f32.mxu0 0.0
        %3133 = vmatmul.mubr.f32.gmra.mrb[0].mxu0 %v2927
        %v3134 = vpop.f32.mrb[0].mxu0
        %v3135 = vadd.f32 0.0, %v3134
        %v3136 = vpop.f32.mrb[0].mxu0
        %3137 = vmatprep.mubr.f32.mxu0 0.0
        %3138 = vmatmul.mubr.f32.gmra.mrb[0].mxu0 %v2930
        %v3139 = vpop.f32.mrb[0].mxu0
        %v3140 = vadd.f32 0.0, %v3139
        %v3141 = vpop.f32.mrb[0].mxu0
        %3142 = vmatprep.mubr.f32.mxu0 0.0
        %3143 = vmatmul.mubr.f32.gmra.mrb[0].mxu0 %v2933
        %v3144 = vpop.f32.mrb[0].mxu0
        %v3145 = vadd.f32 0.0, %v3144
        %v3146 = vpop.f32.mrb[0].mxu0
        %3147 = vmatprep.mubr.f32.mxu0 0.0
        %3148 = vmatmul.mubr.f32.gmra.mrb[0].mxu0 %v2936
        %v3149 = vpop.f32.mrb[0].mxu0
        %v3150 = vadd.f32 0.0, %v3149
        %v3151 = vpop.f32.mrb[0].mxu0
        %3152 = vmatprep.mubr.f32.mxu0 0.0
        %3153 = vmatmul.mubr.f32.gmra.mrb[0].mxu0 %v2939
        %v3154 = vpop.f32.mrb[0].mxu0
        %v3155 = vadd.f32 0.0, %v3154
        %v3156 = vpop.f32.mrb[0].mxu0
        %3157 = vmatprep.mubr.f32.mxu0 0.0
        %3158 = vmatmul.mubr.f32.gmra.mrb[0].mxu0 %v2942
        %v3159 = vpop.f32.mrb[0].mxu0
        %v3160 = vadd.f32 0.0, %v3159
        %v3161 = vpop.f32.mrb[0].mxu0
        %3162 = vmatprep.mubr.f32.mxu0 0.0
        %3163 = vmatmul.mubr.f32.gmra.mrb[0].mxu0 %v2945
        %v3164 = vpop.f32.mrb[0].mxu0
        %v3165 = vadd.f32 0.0, %v3164
        %v3166 = vpop.f32.mrb[0].mxu0
        %3167 = vmatprep.mubr.f32.mxu0 0.0
        %3168 = vmatmul.mubr.f32.gmra.mrb[0].mxu0 %v2948
        %v3169 = vpop.f32.mrb[0].mxu0
        %v3170 = vadd.f32 0.0, %v3169
        %v3171 = vpop.f32.mrb[0].mxu0
        %3172 = vmatprep.mubr.f32.mxu0 0.0
        %3173 = vmatmul.mubr.f32.gmra.mrb[0].mxu0 %v2951
        %v3174 = vpop.f32.mrb[0].mxu0
        %v3175 = vadd.f32 0.0, %v3174
        %v3176 = vpop.f32.mrb[0].mxu0
        %3177 = vdwg.mxu0
        %v3178 = vadd.f32 %v2791, %v3020
        %v3179 = vadd.f32 %v2792, %v3025
        %v3180 = vadd.f32 %v2793, %v3030
        %v3181 = vadd.f32 %v2794, %v3035
        %v3182 = vadd.f32 %v2795, %v3040
        %v3183 = vadd.f32 %v2796, %v3045
        %v3184 = vadd.f32 %v2797, %v3050
        %v3185 = vadd.f32 %v2798, %v3055
        %v3186 = vadd.f32 %v2799, %v3060
        %v3187 = vadd.f32 %v2800, %v3065
        %v3188 = vadd.f32 %v2801, %v3070
        %v3189 = vadd.f32 %v2802, %v3075
        %v3190 = vadd.f32 %v2803, %v3080
        %v3191 = vadd.f32 %v2804, %v3085
        %v3192 = vadd.f32 %v2805, %v3090
        %v3193 = vadd.f32 %v2806, %v3095
        %v3194 = vadd.f32 %v2807, %v3100
        %v3195 = vadd.f32 %v2808, %v3105
        %v3196 = vadd.f32 %v2809, %v3110
        %v3197 = vadd.f32 %v2810, %v3115
        %v3198 = vadd.f32 %v2811, %v3120
        %v3199 = vadd.f32 %v2812, %v3125
        %v3200 = vadd.f32 %v2813, %v3130
        %v3201 = vadd.f32 %v2814, %v3135
        %v3202 = vadd.f32 %v2815, %v3140
        %v3203 = vadd.f32 %v2816, %v3145
        %v3204 = vadd.f32 %v2817, %v3150
        %v3205 = vadd.f32 %v2818, %v3155
        %v3206 = vadd.f32 %v2819, %v3160
        %v3207 = vadd.f32 %v2820, %v3165
        %v3208 = vadd.f32 %v2821, %v3170
        %v3209 = vadd.f32 %v2822, %v3175
        %s3210 = scalar_lea.vmem [#allocation2], 48
        %v3211 = vld [vmem:[%s3210] sm:$0xff]
        %v3212 = vld [vmem:[%s3210 + $0x8] sm:$0xff]
        %v3213 = vld [vmem:[%s3210 + $0x18] sm:$0xff]
        %v3214 = vld [vmem:[%s3210 + $0x20] sm:$0xff]
        %v3215 = vld [vmem:[%s3210 + $0x30] sm:$0xff]
        %v3216 = vld [vmem:[%s3210 + $0x38] sm:$0xff]
        %v3217 = vld [vmem:[%s3210 + $0x48] sm:$0xff]
        %v3218 = vld [vmem:[%s3210 + $0x50] sm:$0xff]
        %v3219 = vld [vmem:[%s3210 + $0x60] sm:$0xff]
        %v3220 = vld [vmem:[%s3210 + $0x68] sm:$0xff]
        %v3221 = vld [vmem:[%s3210 + $0x78] sm:$0xff]
        %v3222 = vld [vmem:[%s3210 + $0x80] sm:$0xff]
        %v3223 = vld [vmem:[%s3210 + $0x90] sm:$0xff]
        %v3224 = vld [vmem:[%s3210 + $0x98] sm:$0xff]
        %v3225 = vld [vmem:[%s3210 + $0xa8] sm:$0xff]
        %v3226 = vld [vmem:[%s3210 + $0xb0] sm:$0xff]
        %v3227 = vld [vmem:[%s3210 + $0xc0] sm:$0xff]
        %v3228 = vld [vmem:[%s3210 + $0xc8] sm:$0xff]
        %v3229 = vld [vmem:[%s3210 + $0xd8] sm:$0xff]
        %v3230 = vld [vmem:[%s3210 + $0xe0] sm:$0xff]
        %v3231 = vld [vmem:[%s3210 + $0xf0] sm:$0xff]
        %v3232 = vld [vmem:[%s3210 + $0xf8] sm:$0xff]
        %v3233 = vld [vmem:[%s3210 + $0x108] sm:$0xff]
        %v3234 = vld [vmem:[%s3210 + $0x110] sm:$0xff]
        %v3235 = vld [vmem:[%s3210 + $0x120] sm:$0xff]
        %v3236 = vld [vmem:[%s3210 + $0x128] sm:$0xff]
        %v3237 = vld [vmem:[%s3210 + $0x138] sm:$0xff]
        %v3238 = vld [vmem:[%s3210 + $0x140] sm:$0xff]
        %v3239 = vld [vmem:[%s3210 + $0x150] sm:$0xff]
        %v3240 = vld [vmem:[%s3210 + $0x158] sm:$0xff]
        %v3241 = vld [vmem:[%s3210 + $0x168] sm:$0xff]
        %v3242 = vld [vmem:[%s3210 + $0x170] sm:$0xff]
        %s3243 = scalar_lea.vmem %s3, 48
        %v3244 = vld [vmem:[%s3243] sm:$0xff]
        %v3246 = vsel %vm864, %v3211, 0
        %v3249 = vsel %vm864, %v3212, 0
        %v3252 = vsel %vm864, %v3213, 0
        %v3255 = vsel %vm864, %v3214, 0
        %v3258 = vsel %vm864, %v3215, 0
        %v3261 = vsel %vm864, %v3216, 0
        %v3264 = vsel %vm864, %v3217, 0
        %v3267 = vsel %vm864, %v3218, 0
        %v3270 = vsel %vm864, %v3219, 0
        %v3273 = vsel %vm864, %v3220, 0
        %v3276 = vsel %vm864, %v3221, 0
        %v3279 = vsel %vm864, %v3222, 0
        %v3282 = vsel %vm864, %v3223, 0
        %v3285 = vsel %vm864, %v3224, 0
        %v3288 = vsel %vm864, %v3225, 0
        %v3291 = vsel %vm864, %v3226, 0
        %v3294 = vsel %vm864, %v3227, 0
        %v3297 = vsel %vm864, %v3228, 0
        %v3300 = vsel %vm864, %v3229, 0
        %v3303 = vsel %vm864, %v3230, 0
        %v3306 = vsel %vm864, %v3231, 0
        %v3309 = vsel %vm864, %v3232, 0
        %v3312 = vsel %vm864, %v3233, 0
        %v3315 = vsel %vm864, %v3234, 0
        %v3318 = vsel %vm864, %v3235, 0
        %v3321 = vsel %vm864, %v3236, 0
        %v3324 = vsel %vm864, %v3237, 0
        %v3327 = vsel %vm864, %v3238, 0
        %v3330 = vsel %vm864, %v3239, 0
        %v3333 = vsel %vm864, %v3240, 0
        %v3336 = vsel %vm864, %v3241, 0
        %v3339 = vsel %vm864, %v3242, 0
        %3341 = vmatprep.subr.mxu0 0.0
        %3342 = vmatpush1.msra.mxu0 %v3244
        %3343 = vmatprep.subr.mxu0 0.0
        %3344 = vmatpush1.msra.mxu0 0.0
        %3345 = vmatprep.subr.mxu0 0.0
        %3346 = vmatpush1.msra.mxu0 0.0
        %3347 = vmatprep.subr.mxu0 0.0
        %3348 = vmatpush1.msra.mxu0 0.0
        %3349 = vmatprep.subr.mxu0 0.0
        %3350 = vmatpush1.msra.mxu0 0.0
        %3351 = vmatprep.subr.mxu0 0.0
        %3352 = vmatpush1.msra.mxu0 0.0
        %3353 = vmatprep.subr.mxu0 0.0
        %3354 = vmatpush1.msra.mxu0 0.0
        %3355 = vmatprep.subr.mxu0 0.0
        %3356 = vmatpush1.msra.mxu0 0.0
        %3357 = vmatprep.subr.mxu0 0.0
        %3358 = vmatpush1.msra.mxu0 0.0
        %3359 = vmatprep.subr.mxu0 0.0
        %3360 = vmatpush1.msra.mxu0 0.0
        %3361 = vmatprep.subr.mxu0 0.0
        %3362 = vmatpush1.msra.mxu0 0.0
        %3363 = vmatprep.subr.mxu0 0.0
        %3364 = vmatpush1.msra.mxu0 0.0
        %3365 = vmatprep.subr.mxu0 0.0
        %3366 = vmatpush1.msra.mxu0 0.0
        %3367 = vmatprep.subr.mxu0 0.0
        %3368 = vmatpush1.msra.mxu0 0.0
        %3369 = vmatprep.subr.mxu0 0.0
        %3370 = vmatpush1.msra.mxu0 0.0
        %3371 = vmatprep.subr.mxu0 0.0
        %3372 = vmatpush1.msra.mxu0 0.0
        %3373 = vmatprep.subr.mxu0 0.0
        %3374 = vmatpush1.msra.mxu0 0.0
        %3375 = vmatprep.subr.mxu0 0.0
        %3376 = vmatpush1.msra.mxu0 0.0
        %3377 = vmatprep.subr.mxu0 0.0
        %3378 = vmatpush1.msra.mxu0 0.0
        %3379 = vmatprep.subr.mxu0 0.0
        %3380 = vmatpush1.msra.mxu0 0.0
        %3381 = vmatprep.subr.mxu0 0.0
        %3382 = vmatpush1.msra.mxu0 0.0
        %3383 = vmatprep.subr.mxu0 0.0
        %3384 = vmatpush1.msra.mxu0 0.0
        %3385 = vmatprep.subr.mxu0 0.0
        %3386 = vmatpush1.msra.mxu0 0.0
        %3387 = vmatprep.subr.mxu0 0.0
        %3388 = vmatpush1.msra.mxu0 0.0
        %3389 = vmatprep.subr.mxu0 0.0
        %3390 = vmatpush1.msra.mxu0 0.0
        %3391 = vmatprep.subr.mxu0 0.0
        %3392 = vmatpush1.msra.mxu0 0.0
        %3393 = vmatprep.subr.mxu0 0.0
        %3394 = vmatpush1.msra.mxu0 0.0
        %3395 = vmatprep.subr.mxu0 0.0
        %3396 = vmatpush1.msra.mxu0 0.0
        %3397 = vmatprep.subr.mxu0 0.0
        %3398 = vmatpush1.msra.mxu0 0.0
        %3399 = vmatprep.subr.mxu0 0.0
        %3400 = vmatpush1.msra.mxu0 0.0
        %3401 = vmatprep.subr.mxu0 0.0
        %3402 = vmatpush1.msra.mxu0 0.0
        %3403 = vmatprep.subr.mxu0 0.0
        %3404 = vmatpush1.msra.mxu0 0.0
        %3405 = vmatprep.mubr.f32.mxu0 0.0
        %3406 = vmatmul.mubr.f32.gmra.mrb[0].mxu0 %v3246
        %v3407 = vpop.f32.mrb[0].mxu0
        %v3408 = vadd.f32 0.0, %v3407
        %v3409 = vpop.f32.mrb[0].mxu0
        %3410 = vmatprep.mubr.f32.mxu0 0.0
        %3411 = vmatmul.mubr.f32.gmra.mrb[0].mxu0 %v3249
        %v3412 = vpop.f32.mrb[0].mxu0
        %v3413 = vadd.f32 0.0, %v3412
        %v3414 = vpop.f32.mrb[0].mxu0
        %3415 = vmatprep.mubr.f32.mxu0 0.0
        %3416 = vmatmul.mubr.f32.gmra.mrb[0].mxu0 %v3252
        %v3417 = vpop.f32.mrb[0].mxu0
        %v3418 = vadd.f32 0.0, %v3417
        %v3419 = vpop.f32.mrb[0].mxu0
        %3420 = vmatprep.mubr.f32.mxu0 0.0
        %3421 = vmatmul.mubr.f32.gmra.mrb[0].mxu0 %v3255
        %v3422 = vpop.f32.mrb[0].mxu0
        %v3423 = vadd.f32 0.0, %v3422
        %v3424 = vpop.f32.mrb[0].mxu0
        %3425 = vmatprep.mubr.f32.mxu0 0.0
        %3426 = vmatmul.mubr.f32.gmra.mrb[0].mxu0 %v3258
        %v3427 = vpop.f32.mrb[0].mxu0
        %v3428 = vadd.f32 0.0, %v3427
        %v3429 = vpop.f32.mrb[0].mxu0
        %3430 = vmatprep.mubr.f32.mxu0 0.0
        %3431 = vmatmul.mubr.f32.gmra.mrb[0].mxu0 %v3261
        %v3432 = vpop.f32.mrb[0].mxu0
        %v3433 = vadd.f32 0.0, %v3432
        %v3434 = vpop.f32.mrb[0].mxu0
        %3435 = vmatprep.mubr.f32.mxu0 0.0
        %3436 = vmatmul.mubr.f32.gmra.mrb[0].mxu0 %v3264
        %v3437 = vpop.f32.mrb[0].mxu0
        %v3438 = vadd.f32 0.0, %v3437
        %v3439 = vpop.f32.mrb[0].mxu0
        %3440 = vmatprep.mubr.f32.mxu0 0.0
        %3441 = vmatmul.mubr.f32.gmra.mrb[0].mxu0 %v3267
        %v3442 = vpop.f32.mrb[0].mxu0
        %v3443 = vadd.f32 0.0, %v3442
        %v3444 = vpop.f32.mrb[0].mxu0
        %3445 = vmatprep.mubr.f32.mxu0 0.0
        %3446 = vmatmul.mubr.f32.gmra.mrb[0].mxu0 %v3270
        %v3447 = vpop.f32.mrb[0].mxu0
        %v3448 = vadd.f32 0.0, %v3447
        %v3449 = vpop.f32.mrb[0].mxu0
        %3450 = vmatprep.mubr.f32.mxu0 0.0
        %3451 = vmatmul.mubr.f32.gmra.mrb[0].mxu0 %v3273
        %v3452 = vpop.f32.mrb[0].mxu0
        %v3453 = vadd.f32 0.0, %v3452
        %v3454 = vpop.f32.mrb[0].mxu0
        %3455 = vmatprep.mubr.f32.mxu0 0.0
        %3456 = vmatmul.mubr.f32.gmra.mrb[0].mxu0 %v3276
        %v3457 = vpop.f32.mrb[0].mxu0
        %v3458 = vadd.f32 0.0, %v3457
        %v3459 = vpop.f32.mrb[0].mxu0
        %3460 = vmatprep.mubr.f32.mxu0 0.0
        %3461 = vmatmul.mubr.f32.gmra.mrb[0].mxu0 %v3279
        %v3462 = vpop.f32.mrb[0].mxu0
        %v3463 = vadd.f32 0.0, %v3462
        %v3464 = vpop.f32.mrb[0].mxu0
        %3465 = vmatprep.mubr.f32.mxu0 0.0
        %3466 = vmatmul.mubr.f32.gmra.mrb[0].mxu0 %v3282
        %v3467 = vpop.f32.mrb[0].mxu0
        %v3468 = vadd.f32 0.0, %v3467
        %v3469 = vpop.f32.mrb[0].mxu0
        %3470 = vmatprep.mubr.f32.mxu0 0.0
        %3471 = vmatmul.mubr.f32.gmra.mrb[0].mxu0 %v3285
        %v3472 = vpop.f32.mrb[0].mxu0
        %v3473 = vadd.f32 0.0, %v3472
        %v3474 = vpop.f32.mrb[0].mxu0
        %3475 = vmatprep.mubr.f32.mxu0 0.0
        %3476 = vmatmul.mubr.f32.gmra.mrb[0].mxu0 %v3288
        %v3477 = vpop.f32.mrb[0].mxu0
        %v3478 = vadd.f32 0.0, %v3477
        %v3479 = vpop.f32.mrb[0].mxu0
        %3480 = vmatprep.mubr.f32.mxu0 0.0
        %3481 = vmatmul.mubr.f32.gmra.mrb[0].mxu0 %v3291
        %v3482 = vpop.f32.mrb[0].mxu0
        %v3483 = vadd.f32 0.0, %v3482
        %v3484 = vpop.f32.mrb[0].mxu0
        %3485 = vmatprep.mubr.f32.mxu0 0.0
        %3486 = vmatmul.mubr.f32.gmra.mrb[0].mxu0 %v3294
        %v3487 = vpop.f32.mrb[0].mxu0
        %v3488 = vadd.f32 0.0, %v3487
        %v3489 = vpop.f32.mrb[0].mxu0
        %3490 = vmatprep.mubr.f32.mxu0 0.0
        %3491 = vmatmul.mubr.f32.gmra.mrb[0].mxu0 %v3297
        %v3492 = vpop.f32.mrb[0].mxu0
        %v3493 = vadd.f32 0.0, %v3492
        %v3494 = vpop.f32.mrb[0].mxu0
        %3495 = vmatprep.mubr.f32.mxu0 0.0
        %3496 = vmatmul.mubr.f32.gmra.mrb[0].mxu0 %v3300
        %v3497 = vpop.f32.mrb[0].mxu0
        %v3498 = vadd.f32 0.0, %v3497
        %v3499 = vpop.f32.mrb[0].mxu0
        %3500 = vmatprep.mubr.f32.mxu0 0.0
        %3501 = vmatmul.mubr.f32.gmra.mrb[0].mxu0 %v3303
        %v3502 = vpop.f32.mrb[0].mxu0
        %v3503 = vadd.f32 0.0, %v3502
        %v3504 = vpop.f32.mrb[0].mxu0
        %3505 = vmatprep.mubr.f32.mxu0 0.0
        %3506 = vmatmul.mubr.f32.gmra.mrb[0].mxu0 %v3306
        %v3507 = vpop.f32.mrb[0].mxu0
        %v3508 = vadd.f32 0.0, %v3507
        %v3509 = vpop.f32.mrb[0].mxu0
        %3510 = vmatprep.mubr.f32.mxu0 0.0
        %3511 = vmatmul.mubr.f32.gmra.mrb[0].mxu0 %v3309
        %v3512 = vpop.f32.mrb[0].mxu0
        %v3513 = vadd.f32 0.0, %v3512
        %v3514 = vpop.f32.mrb[0].mxu0
        %3515 = vmatprep.mubr.f32.mxu0 0.0
        %3516 = vmatmul.mubr.f32.gmra.mrb[0].mxu0 %v3312
        %v3517 = vpop.f32.mrb[0].mxu0
        %v3518 = vadd.f32 0.0, %v3517
        %v3519 = vpop.f32.mrb[0].mxu0
        %3520 = vmatprep.mubr.f32.mxu0 0.0
        %3521 = vmatmul.mubr.f32.gmra.mrb[0].mxu0 %v3315
        %v3522 = vpop.f32.mrb[0].mxu0
        %v3523 = vadd.f32 0.0, %v3522
        %v3524 = vpop.f32.mrb[0].mxu0
        %3525 = vmatprep.mubr.f32.mxu0 0.0
        %3526 = vmatmul.mubr.f32.gmra.mrb[0].mxu0 %v3318
        %v3527 = vpop.f32.mrb[0].mxu0
        %v3528 = vadd.f32 0.0, %v3527
        %v3529 = vpop.f32.mrb[0].mxu0
        %3530 = vmatprep.mubr.f32.mxu0 0.0
        %3531 = vmatmul.mubr.f32.gmra.mrb[0].mxu0 %v3321
        %v3532 = vpop.f32.mrb[0].mxu0
        %v3533 = vadd.f32 0.0, %v3532
        %v3534 = vpop.f32.mrb[0].mxu0
        %3535 = vmatprep.mubr.f32.mxu0 0.0
        %3536 = vmatmul.mubr.f32.gmra.mrb[0].mxu0 %v3324
        %v3537 = vpop.f32.mrb[0].mxu0
        %v3538 = vadd.f32 0.0, %v3537
        %v3539 = vpop.f32.mrb[0].mxu0
        %3540 = vmatprep.mubr.f32.mxu0 0.0
        %3541 = vmatmul.mubr.f32.gmra.mrb[0].mxu0 %v3327
        %v3542 = vpop.f32.mrb[0].mxu0
        %v3543 = vadd.f32 0.0, %v3542
        %v3544 = vpop.f32.mrb[0].mxu0
        %3545 = vmatprep.mubr.f32.mxu0 0.0
        %3546 = vmatmul.mubr.f32.gmra.mrb[0].mxu0 %v3330
        %v3547 = vpop.f32.mrb[0].mxu0
        %v3548 = vadd.f32 0.0, %v3547
        %v3549 = vpop.f32.mrb[0].mxu0
        %3550 = vmatprep.mubr.f32.mxu0 0.0
        %3551 = vmatmul.mubr.f32.gmra.mrb[0].mxu0 %v3333
        %v3552 = vpop.f32.mrb[0].mxu0
        %v3553 = vadd.f32 0.0, %v3552
        %v3554 = vpop.f32.mrb[0].mxu0
        %3555 = vmatprep.mubr.f32.mxu0 0.0
        %3556 = vmatmul.mubr.f32.gmra.mrb[0].mxu0 %v3336
        %v3557 = vpop.f32.mrb[0].mxu0
        %v3558 = vadd.f32 0.0, %v3557
        %v3559 = vpop.f32.mrb[0].mxu0
        %3560 = vmatprep.mubr.f32.mxu0 0.0
        %3561 = vmatmul.mubr.f32.gmra.mrb[0].mxu0 %v3339
        %v3562 = vpop.f32.mrb[0].mxu0
        %v3563 = vadd.f32 0.0, %v3562
        %v3564 = vpop.f32.mrb[0].mxu0
        %3565 = vdwg.mxu0
        %v3566 = vadd.f32 %v3178, %v3408
        %v3567 = vadd.f32 %v3179, %v3413
        %v3568 = vadd.f32 %v3180, %v3418
        %v3569 = vadd.f32 %v3181, %v3423
        %v3570 = vadd.f32 %v3182, %v3428
        %v3571 = vadd.f32 %v3183, %v3433
        %v3572 = vadd.f32 %v3184, %v3438
        %v3573 = vadd.f32 %v3185, %v3443
        %v3574 = vadd.f32 %v3186, %v3448
        %v3575 = vadd.f32 %v3187, %v3453
        %v3576 = vadd.f32 %v3188, %v3458
        %v3577 = vadd.f32 %v3189, %v3463
        %v3578 = vadd.f32 %v3190, %v3468
        %v3579 = vadd.f32 %v3191, %v3473
        %v3580 = vadd.f32 %v3192, %v3478
        %v3581 = vadd.f32 %v3193, %v3483
        %v3582 = vadd.f32 %v3194, %v3488
        %v3583 = vadd.f32 %v3195, %v3493
        %v3584 = vadd.f32 %v3196, %v3498
        %v3585 = vadd.f32 %v3197, %v3503
        %v3586 = vadd.f32 %v3198, %v3508
        %v3587 = vadd.f32 %v3199, %v3513
        %v3588 = vadd.f32 %v3200, %v3518
        %v3589 = vadd.f32 %v3201, %v3523
        %v3590 = vadd.f32 %v3202, %v3528
        %v3591 = vadd.f32 %v3203, %v3533
        %v3592 = vadd.f32 %v3204, %v3538
        %v3593 = vadd.f32 %v3205, %v3543
        %v3594 = vadd.f32 %v3206, %v3548
        %v3595 = vadd.f32 %v3207, %v3553
        %v3596 = vadd.f32 %v3208, %v3558
        %v3597 = vadd.f32 %v3209, %v3563
        %v3598 = vld [vmem:[%s3210 + $0x1] sm:$0xff]
        %v3599 = vld [vmem:[%s3210 + $0x9] sm:$0xff]
        %v3600 = vld [vmem:[%s3210 + $0x19] sm:$0xff]
        %v3601 = vld [vmem:[%s3210 + $0x21] sm:$0xff]
        %v3602 = vld [vmem:[%s3210 + $0x31] sm:$0xff]
        %v3603 = vld [vmem:[%s3210 + $0x39] sm:$0xff]
        %v3604 = vld [vmem:[%s3210 + $0x49] sm:$0xff]
        %v3605 = vld [vmem:[%s3210 + $0x51] sm:$0xff]
        %v3606 = vld [vmem:[%s3210 + $0x61] sm:$0xff]
        %v3607 = vld [vmem:[%s3210 + $0x69] sm:$0xff]
        %v3608 = vld [vmem:[%s3210 + $0x79] sm:$0xff]
        %v3609 = vld [vmem:[%s3210 + $0x81] sm:$0xff]
        %v3610 = vld [vmem:[%s3210 + $0x91] sm:$0xff]
        %v3611 = vld [vmem:[%s3210 + $0x99] sm:$0xff]
        %v3612 = vld [vmem:[%s3210 + $0xa9] sm:$0xff]
        %v3613 = vld [vmem:[%s3210 + $0xb1] sm:$0xff]
        %v3614 = vld [vmem:[%s3210 + $0xc1] sm:$0xff]
        %v3615 = vld [vmem:[%s3210 + $0xc9] sm:$0xff]
        %v3616 = vld [vmem:[%s3210 + $0xd9] sm:$0xff]
        %v3617 = vld [vmem:[%s3210 + $0xe1] sm:$0xff]
        %v3618 = vld [vmem:[%s3210 + $0xf1] sm:$0xff]
        %v3619 = vld [vmem:[%s3210 + $0xf9] sm:$0xff]
        %v3620 = vld [vmem:[%s3210 + $0x109] sm:$0xff]
        %v3621 = vld [vmem:[%s3210 + $0x111] sm:$0xff]
        %v3622 = vld [vmem:[%s3210 + $0x121] sm:$0xff]
        %v3623 = vld [vmem:[%s3210 + $0x129] sm:$0xff]
        %v3624 = vld [vmem:[%s3210 + $0x139] sm:$0xff]
        %v3625 = vld [vmem:[%s3210 + $0x141] sm:$0xff]
        %v3626 = vld [vmem:[%s3210 + $0x151] sm:$0xff]
        %v3627 = vld [vmem:[%s3210 + $0x159] sm:$0xff]
        %v3628 = vld [vmem:[%s3210 + $0x169] sm:$0xff]
        %v3629 = vld [vmem:[%s3210 + $0x171] sm:$0xff]
        %s3630 = scalar_lea.vmem %s3, 56
        %v3631 = vld [vmem:[%s3630] sm:$0xff]
        %v3633 = vsel %vm864, %v3598, 0
        %v3636 = vsel %vm864, %v3599, 0
        %v3639 = vsel %vm864, %v3600, 0
        %v3642 = vsel %vm864, %v3601, 0
        %v3645 = vsel %vm864, %v3602, 0
        %v3648 = vsel %vm864, %v3603, 0
        %v3651 = vsel %vm864, %v3604, 0
        %v3654 = vsel %vm864, %v3605, 0
        %v3657 = vsel %vm864, %v3606, 0
        %v3660 = vsel %vm864, %v3607, 0
        %v3663 = vsel %vm864, %v3608, 0
        %v3666 = vsel %vm864, %v3609, 0
        %v3669 = vsel %vm864, %v3610, 0
        %v3672 = vsel %vm864, %v3611, 0
        %v3675 = vsel %vm864, %v3612, 0
        %v3678 = vsel %vm864, %v3613, 0
        %v3681 = vsel %vm864, %v3614, 0
        %v3684 = vsel %vm864, %v3615, 0
        %v3687 = vsel %vm864, %v3616, 0
        %v3690 = vsel %vm864, %v3617, 0
        %v3693 = vsel %vm864, %v3618, 0
        %v3696 = vsel %vm864, %v3619, 0
        %v3699 = vsel %vm864, %v3620, 0
        %v3702 = vsel %vm864, %v3621, 0
        %v3705 = vsel %vm864, %v3622, 0
        %v3708 = vsel %vm864, %v3623, 0
        %v3711 = vsel %vm864, %v3624, 0
        %v3714 = vsel %vm864, %v3625, 0
        %v3717 = vsel %vm864, %v3626, 0
        %v3720 = vsel %vm864, %v3627, 0
        %v3723 = vsel %vm864, %v3628, 0
        %v3726 = vsel %vm864, %v3629, 0
        %3728 = vmatprep.subr.mxu0 0.0
        %3729 = vmatpush1.msra.mxu0 %v3631
        %3730 = vmatprep.subr.mxu0 0.0
        %3731 = vmatpush1.msra.mxu0 0.0
        %3732 = vmatprep.subr.mxu0 0.0
        %3733 = vmatpush1.msra.mxu0 0.0
        %3734 = vmatprep.subr.mxu0 0.0
        %3735 = vmatpush1.msra.mxu0 0.0
        %3736 = vmatprep.subr.mxu0 0.0
        %3737 = vmatpush1.msra.mxu0 0.0
        %3738 = vmatprep.subr.mxu0 0.0
        %3739 = vmatpush1.msra.mxu0 0.0
        %3740 = vmatprep.subr.mxu0 0.0
        %3741 = vmatpush1.msra.mxu0 0.0
        %3742 = vmatprep.subr.mxu0 0.0
        %3743 = vmatpush1.msra.mxu0 0.0
        %3744 = vmatprep.subr.mxu0 0.0
        %3745 = vmatpush1.msra.mxu0 0.0
        %3746 = vmatprep.subr.mxu0 0.0
        %3747 = vmatpush1.msra.mxu0 0.0
        %3748 = vmatprep.subr.mxu0 0.0
        %3749 = vmatpush1.msra.mxu0 0.0
        %3750 = vmatprep.subr.mxu0 0.0
        %3751 = vmatpush1.msra.mxu0 0.0
        %3752 = vmatprep.subr.mxu0 0.0
        %3753 = vmatpush1.msra.mxu0 0.0
        %3754 = vmatprep.subr.mxu0 0.0
        %3755 = vmatpush1.msra.mxu0 0.0
        %3756 = vmatprep.subr.mxu0 0.0
        %3757 = vmatpush1.msra.mxu0 0.0
        %3758 = vmatprep.subr.mxu0 0.0
        %3759 = vmatpush1.msra.mxu0 0.0
        %3760 = vmatprep.subr.mxu0 0.0
        %3761 = vmatpush1.msra.mxu0 0.0
        %3762 = vmatprep.subr.mxu0 0.0
        %3763 = vmatpush1.msra.mxu0 0.0
        %3764 = vmatprep.subr.mxu0 0.0
        %3765 = vmatpush1.msra.mxu0 0.0
        %3766 = vmatprep.subr.mxu0 0.0
        %3767 = vmatpush1.msra.mxu0 0.0
        %3768 = vmatprep.subr.mxu0 0.0
        %3769 = vmatpush1.msra.mxu0 0.0
        %3770 = vmatprep.subr.mxu0 0.0
        %3771 = vmatpush1.msra.mxu0 0.0
        %3772 = vmatprep.subr.mxu0 0.0
        %3773 = vmatpush1.msra.mxu0 0.0
        %3774 = vmatprep.subr.mxu0 0.0
        %3775 = vmatpush1.msra.mxu0 0.0
        %3776 = vmatprep.subr.mxu0 0.0
        %3777 = vmatpush1.msra.mxu0 0.0
        %3778 = vmatprep.subr.mxu0 0.0
        %3779 = vmatpush1.msra.mxu0 0.0
        %3780 = vmatprep.subr.mxu0 0.0
        %3781 = vmatpush1.msra.mxu0 0.0
        %3782 = vmatprep.subr.mxu0 0.0
        %3783 = vmatpush1.msra.mxu0 0.0
        %3784 = vmatprep.subr.mxu0 0.0
        %3785 = vmatpush1.msra.mxu0 0.0
        %3786 = vmatprep.subr.mxu0 0.0
        %3787 = vmatpush1.msra.mxu0 0.0
        %3788 = vmatprep.subr.mxu0 0.0
        %3789 = vmatpush1.msra.mxu0 0.0
        %3790 = vmatprep.subr.mxu0 0.0
        %3791 = vmatpush1.msra.mxu0 0.0
        %3792 = vmatprep.mubr.f32.mxu0 0.0
        %3793 = vmatmul.mubr.f32.gmra.mrb[0].mxu0 %v3633
        %v3794 = vpop.f32.mrb[0].mxu0
        %v3795 = vadd.f32 0.0, %v3794
        %v3796 = vpop.f32.mrb[0].mxu0
        %3797 = vmatprep.mubr.f32.mxu0 0.0
        %3798 = vmatmul.mubr.f32.gmra.mrb[0].mxu0 %v3636
        %v3799 = vpop.f32.mrb[0].mxu0
        %v3800 = vadd.f32 0.0, %v3799
        %v3801 = vpop.f32.mrb[0].mxu0
        %3802 = vmatprep.mubr.f32.mxu0 0.0
        %3803 = vmatmul.mubr.f32.gmra.mrb[0].mxu0 %v3639
        %v3804 = vpop.f32.mrb[0].mxu0
        %v3805 = vadd.f32 0.0, %v3804
        %v3806 = vpop.f32.mrb[0].mxu0
        %3807 = vmatprep.mubr.f32.mxu0 0.0
        %3808 = vmatmul.mubr.f32.gmra.mrb[0].mxu0 %v3642
        %v3809 = vpop.f32.mrb[0].mxu0
        %v3810 = vadd.f32 0.0, %v3809
        %v3811 = vpop.f32.mrb[0].mxu0
        %3812 = vmatprep.mubr.f32.mxu0 0.0
        %3813 = vmatmul.mubr.f32.gmra.mrb[0].mxu0 %v3645
        %v3814 = vpop.f32.mrb[0].mxu0
        %v3815 = vadd.f32 0.0, %v3814
        %v3816 = vpop.f32.mrb[0].mxu0
        %3817 = vmatprep.mubr.f32.mxu0 0.0
        %3818 = vmatmul.mubr.f32.gmra.mrb[0].mxu0 %v3648
        %v3819 = vpop.f32.mrb[0].mxu0
        %v3820 = vadd.f32 0.0, %v3819
        %v3821 = vpop.f32.mrb[0].mxu0
        %3822 = vmatprep.mubr.f32.mxu0 0.0
        %3823 = vmatmul.mubr.f32.gmra.mrb[0].mxu0 %v3651
        %v3824 = vpop.f32.mrb[0].mxu0
        %v3825 = vadd.f32 0.0, %v3824
        %v3826 = vpop.f32.mrb[0].mxu0
        %3827 = vmatprep.mubr.f32.mxu0 0.0
        %3828 = vmatmul.mubr.f32.gmra.mrb[0].mxu0 %v3654
        %v3829 = vpop.f32.mrb[0].mxu0
        %v3830 = vadd.f32 0.0, %v3829
        %v3831 = vpop.f32.mrb[0].mxu0
        %3832 = vmatprep.mubr.f32.mxu0 0.0
        %3833 = vmatmul.mubr.f32.gmra.mrb[0].mxu0 %v3657
        %v3834 = vpop.f32.mrb[0].mxu0
        %v3835 = vadd.f32 0.0, %v3834
        %v3836 = vpop.f32.mrb[0].mxu0
        %3837 = vmatprep.mubr.f32.mxu0 0.0
        %3838 = vmatmul.mubr.f32.gmra.mrb[0].mxu0 %v3660
        %v3839 = vpop.f32.mrb[0].mxu0
        %v3840 = vadd.f32 0.0, %v3839
        %v3841 = vpop.f32.mrb[0].mxu0
        %3842 = vmatprep.mubr.f32.mxu0 0.0
        %3843 = vmatmul.mubr.f32.gmra.mrb[0].mxu0 %v3663
        %v3844 = vpop.f32.mrb[0].mxu0
        %v3845 = vadd.f32 0.0, %v3844
        %v3846 = vpop.f32.mrb[0].mxu0
        %3847 = vmatprep.mubr.f32.mxu0 0.0
        %3848 = vmatmul.mubr.f32.gmra.mrb[0].mxu0 %v3666
        %v3849 = vpop.f32.mrb[0].mxu0
        %v3850 = vadd.f32 0.0, %v3849
        %v3851 = vpop.f32.mrb[0].mxu0
        %3852 = vmatprep.mubr.f32.mxu0 0.0
        %3853 = vmatmul.mubr.f32.gmra.mrb[0].mxu0 %v3669
        %v3854 = vpop.f32.mrb[0].mxu0
        %v3855 = vadd.f32 0.0, %v3854
        %v3856 = vpop.f32.mrb[0].mxu0
        %3857 = vmatprep.mubr.f32.mxu0 0.0
        %3858 = vmatmul.mubr.f32.gmra.mrb[0].mxu0 %v3672
        %v3859 = vpop.f32.mrb[0].mxu0
        %v3860 = vadd.f32 0.0, %v3859
        %v3861 = vpop.f32.mrb[0].mxu0
        %3862 = vmatprep.mubr.f32.mxu0 0.0
        %3863 = vmatmul.mubr.f32.gmra.mrb[0].mxu0 %v3675
        %v3864 = vpop.f32.mrb[0].mxu0
        %v3865 = vadd.f32 0.0, %v3864
        %v3866 = vpop.f32.mrb[0].mxu0
        %3867 = vmatprep.mubr.f32.mxu0 0.0
        %3868 = vmatmul.mubr.f32.gmra.mrb[0].mxu0 %v3678
        %v3869 = vpop.f32.mrb[0].mxu0
        %v3870 = vadd.f32 0.0, %v3869
        %v3871 = vpop.f32.mrb[0].mxu0
        %3872 = vmatprep.mubr.f32.mxu0 0.0
        %3873 = vmatmul.mubr.f32.gmra.mrb[0].mxu0 %v3681
        %v3874 = vpop.f32.mrb[0].mxu0
        %v3875 = vadd.f32 0.0, %v3874
        %v3876 = vpop.f32.mrb[0].mxu0
        %3877 = vmatprep.mubr.f32.mxu0 0.0
        %3878 = vmatmul.mubr.f32.gmra.mrb[0].mxu0 %v3684
        %v3879 = vpop.f32.mrb[0].mxu0
        %v3880 = vadd.f32 0.0, %v3879
        %v3881 = vpop.f32.mrb[0].mxu0
        %3882 = vmatprep.mubr.f32.mxu0 0.0
        %3883 = vmatmul.mubr.f32.gmra.mrb[0].mxu0 %v3687
        %v3884 = vpop.f32.mrb[0].mxu0
        %v3885 = vadd.f32 0.0, %v3884
        %v3886 = vpop.f32.mrb[0].mxu0
        %3887 = vmatprep.mubr.f32.mxu0 0.0
        %3888 = vmatmul.mubr.f32.gmra.mrb[0].mxu0 %v3690
        %v3889 = vpop.f32.mrb[0].mxu0
        %v3890 = vadd.f32 0.0, %v3889
        %v3891 = vpop.f32.mrb[0].mxu0
        %3892 = vmatprep.mubr.f32.mxu0 0.0
        %3893 = vmatmul.mubr.f32.gmra.mrb[0].mxu0 %v3693
        %v3894 = vpop.f32.mrb[0].mxu0
        %v3895 = vadd.f32 0.0, %v3894
        %v3896 = vpop.f32.mrb[0].mxu0
        %3897 = vmatprep.mubr.f32.mxu0 0.0
        %3898 = vmatmul.mubr.f32.gmra.mrb[0].mxu0 %v3696
        %v3899 = vpop.f32.mrb[0].mxu0
        %v3900 = vadd.f32 0.0, %v3899
        %v3901 = vpop.f32.mrb[0].mxu0
        %3902 = vmatprep.mubr.f32.mxu0 0.0
        %3903 = vmatmul.mubr.f32.gmra.mrb[0].mxu0 %v3699
        %v3904 = vpop.f32.mrb[0].mxu0
        %v3905 = vadd.f32 0.0, %v3904
        %v3906 = vpop.f32.mrb[0].mxu0
        %3907 = vmatprep.mubr.f32.mxu0 0.0
        %3908 = vmatmul.mubr.f32.gmra.mrb[0].mxu0 %v3702
        %v3909 = vpop.f32.mrb[0].mxu0
        %v3910 = vadd.f32 0.0, %v3909
        %v3911 = vpop.f32.mrb[0].mxu0
        %3912 = vmatprep.mubr.f32.mxu0 0.0
        %3913 = vmatmul.mubr.f32.gmra.mrb[0].mxu0 %v3705
        %v3914 = vpop.f32.mrb[0].mxu0
        %v3915 = vadd.f32 0.0, %v3914
        %v3916 = vpop.f32.mrb[0].mxu0
        %3917 = vmatprep.mubr.f32.mxu0 0.0
        %3918 = vmatmul.mubr.f32.gmra.mrb[0].mxu0 %v3708
        %v3919 = vpop.f32.mrb[0].mxu0
        %v3920 = vadd.f32 0.0, %v3919
        %v3921 = vpop.f32.mrb[0].mxu0
        %3922 = vmatprep.mubr.f32.mxu0 0.0
        %3923 = vmatmul.mubr.f32.gmra.mrb[0].mxu0 %v3711
        %v3924 = vpop.f32.mrb[0].mxu0
        %v3925 = vadd.f32 0.0, %v3924
        %v3926 = vpop.f32.mrb[0].mxu0
        %3927 = vmatprep.mubr.f32.mxu0 0.0
        %3928 = vmatmul.mubr.f32.gmra.mrb[0].mxu0 %v3714
        %v3929 = vpop.f32.mrb[0].mxu0
        %v3930 = vadd.f32 0.0, %v3929
        %v3931 = vpop.f32.mrb[0].mxu0
        %3932 = vmatprep.mubr.f32.mxu0 0.0
        %3933 = vmatmul.mubr.f32.gmra.mrb[0].mxu0 %v3717
        %v3934 = vpop.f32.mrb[0].mxu0
        %v3935 = vadd.f32 0.0, %v3934
        %v3936 = vpop.f32.mrb[0].mxu0
        %3937 = vmatprep.mubr.f32.mxu0 0.0
        %3938 = vmatmul.mubr.f32.gmra.mrb[0].mxu0 %v3720
        %v3939 = vpop.f32.mrb[0].mxu0
        %v3940 = vadd.f32 0.0, %v3939
        %v3941 = vpop.f32.mrb[0].mxu0
        %3942 = vmatprep.mubr.f32.mxu0 0.0
        %3943 = vmatmul.mubr.f32.gmra.mrb[0].mxu0 %v3723
        %v3944 = vpop.f32.mrb[0].mxu0
        %v3945 = vadd.f32 0.0, %v3944
        %v3946 = vpop.f32.mrb[0].mxu0
        %3947 = vmatprep.mubr.f32.mxu0 0.0
        %3948 = vmatmul.mubr.f32.gmra.mrb[0].mxu0 %v3726
        %v3949 = vpop.f32.mrb[0].mxu0
        %v3950 = vadd.f32 0.0, %v3949
        %v3951 = vpop.f32.mrb[0].mxu0
        %3952 = vdwg.mxu0
        %v3953 = vadd.f32 %v3566, %v3795
        %v3954 = vadd.f32 %v3567, %v3800
        %v3955 = vadd.f32 %v3568, %v3805
        %v3956 = vadd.f32 %v3569, %v3810
        %v3957 = vadd.f32 %v3570, %v3815
        %v3958 = vadd.f32 %v3571, %v3820
        %v3959 = vadd.f32 %v3572, %v3825
        %v3960 = vadd.f32 %v3573, %v3830
        %v3961 = vadd.f32 %v3574, %v3835
        %v3962 = vadd.f32 %v3575, %v3840
        %v3963 = vadd.f32 %v3576, %v3845
        %v3964 = vadd.f32 %v3577, %v3850
        %v3965 = vadd.f32 %v3578, %v3855
        %v3966 = vadd.f32 %v3579, %v3860
        %v3967 = vadd.f32 %v3580, %v3865
        %v3968 = vadd.f32 %v3581, %v3870
        %v3969 = vadd.f32 %v3582, %v3875
        %v3970 = vadd.f32 %v3583, %v3880
        %v3971 = vadd.f32 %v3584, %v3885
        %v3972 = vadd.f32 %v3585, %v3890
        %v3973 = vadd.f32 %v3586, %v3895
        %v3974 = vadd.f32 %v3587, %v3900
        %v3975 = vadd.f32 %v3588, %v3905
        %v3976 = vadd.f32 %v3589, %v3910
        %v3977 = vadd.f32 %v3590, %v3915
        %v3978 = vadd.f32 %v3591, %v3920
        %v3979 = vadd.f32 %v3592, %v3925
        %v3980 = vadd.f32 %v3593, %v3930
        %v3981 = vadd.f32 %v3594, %v3935
        %v3982 = vadd.f32 %v3595, %v3940
        %v3983 = vadd.f32 %v3596, %v3945
        %v3984 = vadd.f32 %v3597, %v3950
        %v3985 = vld [vmem:[%s3210 + $0x2] sm:$0xff]
        %v3986 = vld [vmem:[%s3210 + $0xa] sm:$0xff]
        %v3987 = vld [vmem:[%s3210 + $0x1a] sm:$0xff]
        %v3988 = vld [vmem:[%s3210 + $0x22] sm:$0xff]
        %v3989 = vld [vmem:[%s3210 + $0x32] sm:$0xff]
        %v3990 = vld [vmem:[%s3210 + $0x3a] sm:$0xff]
        %v3991 = vld [vmem:[%s3210 + $0x4a] sm:$0xff]
        %v3992 = vld [vmem:[%s3210 + $0x52] sm:$0xff]
        %v3993 = vld [vmem:[%s3210 + $0x62] sm:$0xff]
        %v3994 = vld [vmem:[%s3210 + $0x6a] sm:$0xff]
        %v3995 = vld [vmem:[%s3210 + $0x7a] sm:$0xff]
        %v3996 = vld [vmem:[%s3210 + $0x82] sm:$0xff]
        %v3997 = vld [vmem:[%s3210 + $0x92] sm:$0xff]
        %v3998 = vld [vmem:[%s3210 + $0x9a] sm:$0xff]
        %v3999 = vld [vmem:[%s3210 + $0xaa] sm:$0xff]
        %v4000 = vld [vmem:[%s3210 + $0xb2] sm:$0xff]
        %v4001 = vld [vmem:[%s3210 + $0xc2] sm:$0xff]
        %v4002 = vld [vmem:[%s3210 + $0xca] sm:$0xff]
        %v4003 = vld [vmem:[%s3210 + $0xda] sm:$0xff]
        %v4004 = vld [vmem:[%s3210 + $0xe2] sm:$0xff]
        %v4005 = vld [vmem:[%s3210 + $0xf2] sm:$0xff]
        %v4006 = vld [vmem:[%s3210 + $0xfa] sm:$0xff]
        %v4007 = vld [vmem:[%s3210 + $0x10a] sm:$0xff]
        %v4008 = vld [vmem:[%s3210 + $0x112] sm:$0xff]
        %v4009 = vld [vmem:[%s3210 + $0x122] sm:$0xff]
        %v4010 = vld [vmem:[%s3210 + $0x12a] sm:$0xff]
        %v4011 = vld [vmem:[%s3210 + $0x13a] sm:$0xff]
        %v4012 = vld [vmem:[%s3210 + $0x142] sm:$0xff]
        %v4013 = vld [vmem:[%s3210 + $0x152] sm:$0xff]
        %v4014 = vld [vmem:[%s3210 + $0x15a] sm:$0xff]
        %v4015 = vld [vmem:[%s3210 + $0x16a] sm:$0xff]
        %v4016 = vld [vmem:[%s3210 + $0x172] sm:$0xff]
        %s4017 = scalar_lea.vmem %s3, 64
        %v4018 = vld [vmem:[%s4017] sm:$0xff]
        %v4020 = vsel %vm864, %v3985, 0
        %v4023 = vsel %vm864, %v3986, 0
        %v4026 = vsel %vm864, %v3987, 0
        %v4029 = vsel %vm864, %v3988, 0
        %v4032 = vsel %vm864, %v3989, 0
        %v4035 = vsel %vm864, %v3990, 0
        %v4038 = vsel %vm864, %v3991, 0
        %v4041 = vsel %vm864, %v3992, 0
        %v4044 = vsel %vm864, %v3993, 0
        %v4047 = vsel %vm864, %v3994, 0
        %v4050 = vsel %vm864, %v3995, 0
        %v4053 = vsel %vm864, %v3996, 0
        %v4056 = vsel %vm864, %v3997, 0
        %v4059 = vsel %vm864, %v3998, 0
        %v4062 = vsel %vm864, %v3999, 0
        %v4065 = vsel %vm864, %v4000, 0
        %v4068 = vsel %vm864, %v4001, 0
        %v4071 = vsel %vm864, %v4002, 0
        %v4074 = vsel %vm864, %v4003, 0
        %v4077 = vsel %vm864, %v4004, 0
        %v4080 = vsel %vm864, %v4005, 0
        %v4083 = vsel %vm864, %v4006, 0
        %v4086 = vsel %vm864, %v4007, 0
        %v4089 = vsel %vm864, %v4008, 0
        %v4092 = vsel %vm864, %v4009, 0
        %v4095 = vsel %vm864, %v4010, 0
        %v4098 = vsel %vm864, %v4011, 0
        %v4101 = vsel %vm864, %v4012, 0
        %v4104 = vsel %vm864, %v4013, 0
        %v4107 = vsel %vm864, %v4014, 0
        %v4110 = vsel %vm864, %v4015, 0
        %v4113 = vsel %vm864, %v4016, 0
        %4115 = vmatprep.subr.mxu0 0.0
        %4116 = vmatpush1.msra.mxu0 %v4018
        %4117 = vmatprep.subr.mxu0 0.0
        %4118 = vmatpush1.msra.mxu0 0.0
        %4119 = vmatprep.subr.mxu0 0.0
        %4120 = vmatpush1.msra.mxu0 0.0
        %4121 = vmatprep.subr.mxu0 0.0
        %4122 = vmatpush1.msra.mxu0 0.0
        %4123 = vmatprep.subr.mxu0 0.0
        %4124 = vmatpush1.msra.mxu0 0.0
        %4125 = vmatprep.subr.mxu0 0.0
        %4126 = vmatpush1.msra.mxu0 0.0
        %4127 = vmatprep.subr.mxu0 0.0
        %4128 = vmatpush1.msra.mxu0 0.0
        %4129 = vmatprep.subr.mxu0 0.0
        %4130 = vmatpush1.msra.mxu0 0.0
        %4131 = vmatprep.subr.mxu0 0.0
        %4132 = vmatpush1.msra.mxu0 0.0
        %4133 = vmatprep.subr.mxu0 0.0
        %4134 = vmatpush1.msra.mxu0 0.0
        %4135 = vmatprep.subr.mxu0 0.0
        %4136 = vmatpush1.msra.mxu0 0.0
        %4137 = vmatprep.subr.mxu0 0.0
        %4138 = vmatpush1.msra.mxu0 0.0
        %4139 = vmatprep.subr.mxu0 0.0
        %4140 = vmatpush1.msra.mxu0 0.0
        %4141 = vmatprep.subr.mxu0 0.0
        %4142 = vmatpush1.msra.mxu0 0.0
        %4143 = vmatprep.subr.mxu0 0.0
        %4144 = vmatpush1.msra.mxu0 0.0
        %4145 = vmatprep.subr.mxu0 0.0
        %4146 = vmatpush1.msra.mxu0 0.0
        %4147 = vmatprep.subr.mxu0 0.0
        %4148 = vmatpush1.msra.mxu0 0.0
        %4149 = vmatprep.subr.mxu0 0.0
        %4150 = vmatpush1.msra.mxu0 0.0
        %4151 = vmatprep.subr.mxu0 0.0
        %4152 = vmatpush1.msra.mxu0 0.0
        %4153 = vmatprep.subr.mxu0 0.0
        %4154 = vmatpush1.msra.mxu0 0.0
        %4155 = vmatprep.subr.mxu0 0.0
        %4156 = vmatpush1.msra.mxu0 0.0
        %4157 = vmatprep.subr.mxu0 0.0
        %4158 = vmatpush1.msra.mxu0 0.0
        %4159 = vmatprep.subr.mxu0 0.0
        %4160 = vmatpush1.msra.mxu0 0.0
        %4161 = vmatprep.subr.mxu0 0.0
        %4162 = vmatpush1.msra.mxu0 0.0
        %4163 = vmatprep.subr.mxu0 0.0
        %4164 = vmatpush1.msra.mxu0 0.0
        %4165 = vmatprep.subr.mxu0 0.0
        %4166 = vmatpush1.msra.mxu0 0.0
        %4167 = vmatprep.subr.mxu0 0.0
        %4168 = vmatpush1.msra.mxu0 0.0
        %4169 = vmatprep.subr.mxu0 0.0
        %4170 = vmatpush1.msra.mxu0 0.0
        %4171 = vmatprep.subr.mxu0 0.0
        %4172 = vmatpush1.msra.mxu0 0.0
        %4173 = vmatprep.subr.mxu0 0.0
        %4174 = vmatpush1.msra.mxu0 0.0
        %4175 = vmatprep.subr.mxu0 0.0
        %4176 = vmatpush1.msra.mxu0 0.0
        %4177 = vmatprep.subr.mxu0 0.0
        %4178 = vmatpush1.msra.mxu0 0.0
        %4179 = vmatprep.mubr.f32.mxu0 0.0
        %4180 = vmatmul.mubr.f32.gmra.mrb[0].mxu0 %v4020
        %v4181 = vpop.f32.mrb[0].mxu0
        %v4182 = vadd.f32 0.0, %v4181
        %v4183 = vpop.f32.mrb[0].mxu0
        %4184 = vmatprep.mubr.f32.mxu0 0.0
        %4185 = vmatmul.mubr.f32.gmra.mrb[0].mxu0 %v4023
        %v4186 = vpop.f32.mrb[0].mxu0
        %v4187 = vadd.f32 0.0, %v4186
        %v4188 = vpop.f32.mrb[0].mxu0
        %4189 = vmatprep.mubr.f32.mxu0 0.0
        %4190 = vmatmul.mubr.f32.gmra.mrb[0].mxu0 %v4026
        %v4191 = vpop.f32.mrb[0].mxu0
        %v4192 = vadd.f32 0.0, %v4191
        %v4193 = vpop.f32.mrb[0].mxu0
        %4194 = vmatprep.mubr.f32.mxu0 0.0
        %4195 = vmatmul.mubr.f32.gmra.mrb[0].mxu0 %v4029
        %v4196 = vpop.f32.mrb[0].mxu0
        %v4197 = vadd.f32 0.0, %v4196
        %v4198 = vpop.f32.mrb[0].mxu0
        %4199 = vmatprep.mubr.f32.mxu0 0.0
        %4200 = vmatmul.mubr.f32.gmra.mrb[0].mxu0 %v4032
        %v4201 = vpop.f32.mrb[0].mxu0
        %v4202 = vadd.f32 0.0, %v4201
        %v4203 = vpop.f32.mrb[0].mxu0
        %4204 = vmatprep.mubr.f32.mxu0 0.0
        %4205 = vmatmul.mubr.f32.gmra.mrb[0].mxu0 %v4035
        %v4206 = vpop.f32.mrb[0].mxu0
        %v4207 = vadd.f32 0.0, %v4206
        %v4208 = vpop.f32.mrb[0].mxu0
        %4209 = vmatprep.mubr.f32.mxu0 0.0
        %4210 = vmatmul.mubr.f32.gmra.mrb[0].mxu0 %v4038
        %v4211 = vpop.f32.mrb[0].mxu0
        %v4212 = vadd.f32 0.0, %v4211
        %v4213 = vpop.f32.mrb[0].mxu0
        %4214 = vmatprep.mubr.f32.mxu0 0.0
        %4215 = vmatmul.mubr.f32.gmra.mrb[0].mxu0 %v4041
        %v4216 = vpop.f32.mrb[0].mxu0
        %v4217 = vadd.f32 0.0, %v4216
        %v4218 = vpop.f32.mrb[0].mxu0
        %4219 = vmatprep.mubr.f32.mxu0 0.0
        %4220 = vmatmul.mubr.f32.gmra.mrb[0].mxu0 %v4044
        %v4221 = vpop.f32.mrb[0].mxu0
        %v4222 = vadd.f32 0.0, %v4221
        %v4223 = vpop.f32.mrb[0].mxu0
        %4224 = vmatprep.mubr.f32.mxu0 0.0
        %4225 = vmatmul.mubr.f32.gmra.mrb[0].mxu0 %v4047
        %v4226 = vpop.f32.mrb[0].mxu0
        %v4227 = vadd.f32 0.0, %v4226
        %v4228 = vpop.f32.mrb[0].mxu0
        %4229 = vmatprep.mubr.f32.mxu0 0.0
        %4230 = vmatmul.mubr.f32.gmra.mrb[0].mxu0 %v4050
        %v4231 = vpop.f32.mrb[0].mxu0
        %v4232 = vadd.f32 0.0, %v4231
        %v4233 = vpop.f32.mrb[0].mxu0
        %4234 = vmatprep.mubr.f32.mxu0 0.0
        %4235 = vmatmul.mubr.f32.gmra.mrb[0].mxu0 %v4053
        %v4236 = vpop.f32.mrb[0].mxu0
        %v4237 = vadd.f32 0.0, %v4236
        %v4238 = vpop.f32.mrb[0].mxu0
        %4239 = vmatprep.mubr.f32.mxu0 0.0
        %4240 = vmatmul.mubr.f32.gmra.mrb[0].mxu0 %v4056
        %v4241 = vpop.f32.mrb[0].mxu0
        %v4242 = vadd.f32 0.0, %v4241
        %v4243 = vpop.f32.mrb[0].mxu0
        %4244 = vmatprep.mubr.f32.mxu0 0.0
        %4245 = vmatmul.mubr.f32.gmra.mrb[0].mxu0 %v4059
        %v4246 = vpop.f32.mrb[0].mxu0
        %v4247 = vadd.f32 0.0, %v4246
        %v4248 = vpop.f32.mrb[0].mxu0
        %4249 = vmatprep.mubr.f32.mxu0 0.0
        %4250 = vmatmul.mubr.f32.gmra.mrb[0].mxu0 %v4062
        %v4251 = vpop.f32.mrb[0].mxu0
        %v4252 = vadd.f32 0.0, %v4251
        %v4253 = vpop.f32.mrb[0].mxu0
        %4254 = vmatprep.mubr.f32.mxu0 0.0
        %4255 = vmatmul.mubr.f32.gmra.mrb[0].mxu0 %v4065
        %v4256 = vpop.f32.mrb[0].mxu0
        %v4257 = vadd.f32 0.0, %v4256
        %v4258 = vpop.f32.mrb[0].mxu0
        %4259 = vmatprep.mubr.f32.mxu0 0.0
        %4260 = vmatmul.mubr.f32.gmra.mrb[0].mxu0 %v4068
        %v4261 = vpop.f32.mrb[0].mxu0
        %v4262 = vadd.f32 0.0, %v4261
        %v4263 = vpop.f32.mrb[0].mxu0
        %4264 = vmatprep.mubr.f32.mxu0 0.0
        %4265 = vmatmul.mubr.f32.gmra.mrb[0].mxu0 %v4071
        %v4266 = vpop.f32.mrb[0].mxu0
        %v4267 = vadd.f32 0.0, %v4266
        %v4268 = vpop.f32.mrb[0].mxu0
        %4269 = vmatprep.mubr.f32.mxu0 0.0
        %4270 = vmatmul.mubr.f32.gmra.mrb[0].mxu0 %v4074
        %v4271 = vpop.f32.mrb[0].mxu0
        %v4272 = vadd.f32 0.0, %v4271
        %v4273 = vpop.f32.mrb[0].mxu0
        %4274 = vmatprep.mubr.f32.mxu0 0.0
        %4275 = vmatmul.mubr.f32.gmra.mrb[0].mxu0 %v4077
        %v4276 = vpop.f32.mrb[0].mxu0
        %v4277 = vadd.f32 0.0, %v4276
        %v4278 = vpop.f32.mrb[0].mxu0
        %4279 = vmatprep.mubr.f32.mxu0 0.0
        %4280 = vmatmul.mubr.f32.gmra.mrb[0].mxu0 %v4080
        %v4281 = vpop.f32.mrb[0].mxu0
        %v4282 = vadd.f32 0.0, %v4281
        %v4283 = vpop.f32.mrb[0].mxu0
        %4284 = vmatprep.mubr.f32.mxu0 0.0
        %4285 = vmatmul.mubr.f32.gmra.mrb[0].mxu0 %v4083
        %v4286 = vpop.f32.mrb[0].mxu0
        %v4287 = vadd.f32 0.0, %v4286
        %v4288 = vpop.f32.mrb[0].mxu0
        %4289 = vmatprep.mubr.f32.mxu0 0.0
        %4290 = vmatmul.mubr.f32.gmra.mrb[0].mxu0 %v4086
        %v4291 = vpop.f32.mrb[0].mxu0
        %v4292 = vadd.f32 0.0, %v4291
        %v4293 = vpop.f32.mrb[0].mxu0
        %4294 = vmatprep.mubr.f32.mxu0 0.0
        %4295 = vmatmul.mubr.f32.gmra.mrb[0].mxu0 %v4089
        %v4296 = vpop.f32.mrb[0].mxu0
        %v4297 = vadd.f32 0.0, %v4296
        %v4298 = vpop.f32.mrb[0].mxu0
        %4299 = vmatprep.mubr.f32.mxu0 0.0
        %4300 = vmatmul.mubr.f32.gmra.mrb[0].mxu0 %v4092
        %v4301 = vpop.f32.mrb[0].mxu0
        %v4302 = vadd.f32 0.0, %v4301
        %v4303 = vpop.f32.mrb[0].mxu0
        %4304 = vmatprep.mubr.f32.mxu0 0.0
        %4305 = vmatmul.mubr.f32.gmra.mrb[0].mxu0 %v4095
        %v4306 = vpop.f32.mrb[0].mxu0
        %v4307 = vadd.f32 0.0, %v4306
        %v4308 = vpop.f32.mrb[0].mxu0
        %4309 = vmatprep.mubr.f32.mxu0 0.0
        %4310 = vmatmul.mubr.f32.gmra.mrb[0].mxu0 %v4098
        %v4311 = vpop.f32.mrb[0].mxu0
        %v4312 = vadd.f32 0.0, %v4311
        %v4313 = vpop.f32.mrb[0].mxu0
        %4314 = vmatprep.mubr.f32.mxu0 0.0
        %4315 = vmatmul.mubr.f32.gmra.mrb[0].mxu0 %v4101
        %v4316 = vpop.f32.mrb[0].mxu0
        %v4317 = vadd.f32 0.0, %v4316
        %v4318 = vpop.f32.mrb[0].mxu0
        %4319 = vmatprep.mubr.f32.mxu0 0.0
        %4320 = vmatmul.mubr.f32.gmra.mrb[0].mxu0 %v4104
        %v4321 = vpop.f32.mrb[0].mxu0
        %v4322 = vadd.f32 0.0, %v4321
        %v4323 = vpop.f32.mrb[0].mxu0
        %4324 = vmatprep.mubr.f32.mxu0 0.0
        %4325 = vmatmul.mubr.f32.gmra.mrb[0].mxu0 %v4107
        %v4326 = vpop.f32.mrb[0].mxu0
        %v4327 = vadd.f32 0.0, %v4326
        %v4328 = vpop.f32.mrb[0].mxu0
        %4329 = vmatprep.mubr.f32.mxu0 0.0
        %4330 = vmatmul.mubr.f32.gmra.mrb[0].mxu0 %v4110
        %v4331 = vpop.f32.mrb[0].mxu0
        %v4332 = vadd.f32 0.0, %v4331
        %v4333 = vpop.f32.mrb[0].mxu0
        %4334 = vmatprep.mubr.f32.mxu0 0.0
        %4335 = vmatmul.mubr.f32.gmra.mrb[0].mxu0 %v4113
        %v4336 = vpop.f32.mrb[0].mxu0
        %v4337 = vadd.f32 0.0, %v4336
        %v4338 = vpop.f32.mrb[0].mxu0
        %4339 = vdwg.mxu0
        %v4340 = vadd.f32 %v3953, %v4182
        %v4341 = vadd.f32 %v3954, %v4187
        %v4342 = vadd.f32 %v3955, %v4192
        %v4343 = vadd.f32 %v3956, %v4197
        %v4344 = vadd.f32 %v3957, %v4202
        %v4345 = vadd.f32 %v3958, %v4207
        %v4346 = vadd.f32 %v3959, %v4212
        %v4347 = vadd.f32 %v3960, %v4217
        %v4348 = vadd.f32 %v3961, %v4222
        %v4349 = vadd.f32 %v3962, %v4227
        %v4350 = vadd.f32 %v3963, %v4232
        %v4351 = vadd.f32 %v3964, %v4237
        %v4352 = vadd.f32 %v3965, %v4242
        %v4353 = vadd.f32 %v3966, %v4247
        %v4354 = vadd.f32 %v3967, %v4252
        %v4355 = vadd.f32 %v3968, %v4257
        %v4356 = vadd.f32 %v3969, %v4262
        %v4357 = vadd.f32 %v3970, %v4267
        %v4358 = vadd.f32 %v3971, %v4272
        %v4359 = vadd.f32 %v3972, %v4277
        %v4360 = vadd.f32 %v3973, %v4282
        %v4361 = vadd.f32 %v3974, %v4287
        %v4362 = vadd.f32 %v3975, %v4292
        %v4363 = vadd.f32 %v3976, %v4297
        %v4364 = vadd.f32 %v3977, %v4302
        %v4365 = vadd.f32 %v3978, %v4307
        %v4366 = vadd.f32 %v3979, %v4312
        %v4367 = vadd.f32 %v3980, %v4317
        %v4368 = vadd.f32 %v3981, %v4322
        %v4369 = vadd.f32 %v3982, %v4327
        %v4370 = vadd.f32 %v3983, %v4332
        %v4371 = vadd.f32 %v3984, %v4337
        %v4372 = vld [vmem:[%s4] sm:$0x1]
        %v4374 = vlaneseq
        %v4375 = vshrl.u32 %v4374, 7
        %v4376 = vsub.s32 0, %v4375
        %v4377 = vrot.slane %v4372, %v4376
        %v4379 = vadd.f32 %v4340, %v4377
        %v4380 = vadd.f32 %v4341, %v4377
        %v4381 = vadd.f32 %v4342, %v4377
        %v4382 = vadd.f32 %v4343, %v4377
        %v4383 = vadd.f32 %v4344, %v4377
        %v4384 = vadd.f32 %v4345, %v4377
        %v4385 = vadd.f32 %v4346, %v4377
        %v4386 = vadd.f32 %v4347, %v4377
        %v4387 = vadd.f32 %v4348, %v4377
        %v4388 = vadd.f32 %v4349, %v4377
        %v4389 = vadd.f32 %v4350, %v4377
        %v4390 = vadd.f32 %v4351, %v4377
        %v4391 = vadd.f32 %v4352, %v4377
        %v4392 = vadd.f32 %v4353, %v4377
        %v4393 = vadd.f32 %v4354, %v4377
        %v4394 = vadd.f32 %v4355, %v4377
        %v4395 = vadd.f32 %v4356, %v4377
        %v4396 = vadd.f32 %v4357, %v4377
        %v4397 = vadd.f32 %v4358, %v4377
        %v4398 = vadd.f32 %v4359, %v4377
        %v4399 = vadd.f32 %v4360, %v4377
        %v4400 = vadd.f32 %v4361, %v4377
        %v4401 = vadd.f32 %v4362, %v4377
        %v4402 = vadd.f32 %v4363, %v4377
        %v4403 = vadd.f32 %v4364, %v4377
        %v4404 = vadd.f32 %v4365, %v4377
        %v4405 = vadd.f32 %v4366, %v4377
        %v4406 = vadd.f32 %v4367, %v4377
        %v4407 = vadd.f32 %v4368, %v4377
        %v4408 = vadd.f32 %v4369, %v4377
        %v4409 = vadd.f32 %v4370, %v4377
        %v4410 = vadd.f32 %v4371, %v4377
        %v4411 = vxor.u32 %v4379, 2147483648
        %v4412 = vxor.u32 %v4380, 2147483648
        %v4413 = vxor.u32 %v4381, 2147483648
        %v4414 = vxor.u32 %v4382, 2147483648
        %v4415 = vxor.u32 %v4383, 2147483648
        %v4416 = vxor.u32 %v4384, 2147483648
        %v4417 = vxor.u32 %v4385, 2147483648
        %v4418 = vxor.u32 %v4386, 2147483648
        %v4419 = vxor.u32 %v4387, 2147483648
        %v4420 = vxor.u32 %v4388, 2147483648
        %v4421 = vxor.u32 %v4389, 2147483648
        %v4422 = vxor.u32 %v4390, 2147483648
        %v4423 = vxor.u32 %v4391, 2147483648
        %v4424 = vxor.u32 %v4392, 2147483648
        %v4425 = vxor.u32 %v4393, 2147483648
        %v4426 = vxor.u32 %v4394, 2147483648
        %v4427 = vxor.u32 %v4395, 2147483648
        %v4428 = vxor.u32 %v4396, 2147483648
        %v4429 = vxor.u32 %v4397, 2147483648
        %v4430 = vxor.u32 %v4398, 2147483648
        %v4431 = vxor.u32 %v4399, 2147483648
        %v4432 = vxor.u32 %v4400, 2147483648
        %v4433 = vxor.u32 %v4401, 2147483648
        %v4434 = vxor.u32 %v4402, 2147483648
        %v4435 = vxor.u32 %v4403, 2147483648
        %v4436 = vxor.u32 %v4404, 2147483648
        %v4437 = vxor.u32 %v4405, 2147483648
        %v4438 = vxor.u32 %v4406, 2147483648
        %v4439 = vxor.u32 %v4407, 2147483648
        %v4440 = vxor.u32 %v4408, 2147483648
        %v4441 = vxor.u32 %v4409, 2147483648
        %v4442 = vxor.u32 %v4410, 2147483648
        %v4443 = vmul.f32 %v4411, 1.442695
        %v4444 = vpow.pop %v4443
        %v4445 = vmul.f32 %v4412, 1.442695
        %v4446 = vpow.pop %v4445
        %v4447 = vmul.f32 %v4413, 1.442695
        %v4448 = vpow.pop %v4447
        %v4449 = vmul.f32 %v4414, 1.442695
        %v4450 = vpow.pop %v4449
        %v4451 = vmul.f32 %v4415, 1.442695
        %v4452 = vpow.pop %v4451
        %v4453 = vmul.f32 %v4416, 1.442695
        %v4454 = vpow.pop %v4453
        %v4455 = vmul.f32 %v4417, 1.442695
        %v4456 = vpow.pop %v4455
        %v4457 = vmul.f32 %v4418, 1.442695
        %v4458 = vpow.pop %v4457
        %v4459 = vmul.f32 %v4419, 1.442695
        %v4460 = vpow.pop %v4459
        %v4461 = vmul.f32 %v4420, 1.442695
        %v4462 = vpow.pop %v4461
        %v4463 = vmul.f32 %v4421, 1.442695
        %v4464 = vpow.pop %v4463
        %v4465 = vmul.f32 %v4422, 1.442695
        %v4466 = vpow.pop %v4465
        %v4467 = vmul.f32 %v4423, 1.442695
        %v4468 = vpow.pop %v4467
        %v4469 = vmul.f32 %v4424, 1.442695
        %v4470 = vpow.pop %v4469
        %v4471 = vmul.f32 %v4425, 1.442695
        %v4472 = vpow.pop %v4471
        %v4473 = vmul.f32 %v4426, 1.442695
        %v4474 = vpow.pop %v4473
        %v4475 = vmul.f32 %v4427, 1.442695
        %v4476 = vpow.pop %v4475
        %v4477 = vmul.f32 %v4428, 1.442695
        %v4478 = vpow.pop %v4477
        %v4479 = vmul.f32 %v4429, 1.442695
        %v4480 = vpow.pop %v4479
        %v4481 = vmul.f32 %v4430, 1.442695
        %v4482 = vpow.pop %v4481
        %v4483 = vmul.f32 %v4431, 1.442695
        %v4484 = vpow.pop %v4483
        %v4485 = vmul.f32 %v4432, 1.442695
        %v4486 = vpow.pop %v4485
        %v4487 = vmul.f32 %v4433, 1.442695
        %v4488 = vpow.pop %v4487
        %v4489 = vmul.f32 %v4434, 1.442695
        %v4490 = vpow.pop %v4489
        %v4491 = vmul.f32 %v4435, 1.442695
        %v4492 = vpow.pop %v4491
        %v4493 = vmul.f32 %v4436, 1.442695
        %v4494 = vpow.pop %v4493
        %v4495 = vmul.f32 %v4437, 1.442695
        %v4496 = vpow.pop %v4495
        %v4497 = vmul.f32 %v4438, 1.442695
        %v4498 = vpow.pop %v4497
        %v4499 = vmul.f32 %v4439, 1.442695
        %v4500 = vpow.pop %v4499
        %v4501 = vmul.f32 %v4440, 1.442695
        %v4502 = vpow.pop %v4501
        %v4503 = vmul.f32 %v4441, 1.442695
        %v4504 = vpow.pop %v4503
        %v4505 = vmul.f32 %v4442, 1.442695
        %v4506 = vpow.pop %v4505
        %v4507 = vadd.f32 %v4444, 1.0
        %v4508 = vadd.f32 %v4446, 1.0
        %v4509 = vadd.f32 %v4448, 1.0
        %v4510 = vadd.f32 %v4450, 1.0
        %v4511 = vadd.f32 %v4452, 1.0
        %v4512 = vadd.f32 %v4454, 1.0
        %v4513 = vadd.f32 %v4456, 1.0
        %v4514 = vadd.f32 %v4458, 1.0
        %v4515 = vadd.f32 %v4460, 1.0
        %v4516 = vadd.f32 %v4462, 1.0
        %v4517 = vadd.f32 %v4464, 1.0
        %v4518 = vadd.f32 %v4466, 1.0
        %v4519 = vadd.f32 %v4468, 1.0
        %v4520 = vadd.f32 %v4470, 1.0
        %v4521 = vadd.f32 %v4472, 1.0
        %v4522 = vadd.f32 %v4474, 1.0
        %v4523 = vadd.f32 %v4476, 1.0
        %v4524 = vadd.f32 %v4478, 1.0
        %v4525 = vadd.f32 %v4480, 1.0
        %v4526 = vadd.f32 %v4482, 1.0
        %v4527 = vadd.f32 %v4484, 1.0
        %v4528 = vadd.f32 %v4486, 1.0
        %v4529 = vadd.f32 %v4488, 1.0
        %v4530 = vadd.f32 %v4490, 1.0
        %v4531 = vadd.f32 %v4492, 1.0
        %v4532 = vadd.f32 %v4494, 1.0
        %v4533 = vadd.f32 %v4496, 1.0
        %v4534 = vadd.f32 %v4498, 1.0
        %v4535 = vadd.f32 %v4500, 1.0
        %v4536 = vadd.f32 %v4502, 1.0
        %v4537 = vadd.f32 %v4504, 1.0
        %v4538 = vadd.f32 %v4506, 1.0
        %v4539 = vrcp.pop %v4507
        %v4540 = vmul.f32 1.0, %v4539
        %v4541 = vrcp.pop %v4508
        %v4542 = vmul.f32 1.0, %v4541
        %v4543 = vrcp.pop %v4509
        %v4544 = vmul.f32 1.0, %v4543
        %v4545 = vrcp.pop %v4510
        %v4546 = vmul.f32 1.0, %v4545
        %v4547 = vrcp.pop %v4511
        %v4548 = vmul.f32 1.0, %v4547
        %v4549 = vrcp.pop %v4512
        %v4550 = vmul.f32 1.0, %v4549
        %v4551 = vrcp.pop %v4513
        %v4552 = vmul.f32 1.0, %v4551
        %v4553 = vrcp.pop %v4514
        %v4554 = vmul.f32 1.0, %v4553
        %v4555 = vrcp.pop %v4515
        %v4556 = vmul.f32 1.0, %v4555
        %v4557 = vrcp.pop %v4516
        %v4558 = vmul.f32 1.0, %v4557
        %v4559 = vrcp.pop %v4517
        %v4560 = vmul.f32 1.0, %v4559
        %v4561 = vrcp.pop %v4518
        %v4562 = vmul.f32 1.0, %v4561
        %v4563 = vrcp.pop %v4519
        %v4564 = vmul.f32 1.0, %v4563
        %v4565 = vrcp.pop %v4520
        %v4566 = vmul.f32 1.0, %v4565
        %v4567 = vrcp.pop %v4521
        %v4568 = vmul.f32 1.0, %v4567
        %v4569 = vrcp.pop %v4522
        %v4570 = vmul.f32 1.0, %v4569
        %v4571 = vrcp.pop %v4523
        %v4572 = vmul.f32 1.0, %v4571
        %v4573 = vrcp.pop %v4524
        %v4574 = vmul.f32 1.0, %v4573
        %v4575 = vrcp.pop %v4525
        %v4576 = vmul.f32 1.0, %v4575
        %v4577 = vrcp.pop %v4526
        %v4578 = vmul.f32 1.0, %v4577
        %v4579 = vrcp.pop %v4527
        %v4580 = vmul.f32 1.0, %v4579
        %v4581 = vrcp.pop %v4528
        %v4582 = vmul.f32 1.0, %v4581
        %v4583 = vrcp.pop %v4529
        %v4584 = vmul.f32 1.0, %v4583
        %v4585 = vrcp.pop %v4530
        %v4586 = vmul.f32 1.0, %v4585
        %v4587 = vrcp.pop %v4531
        %v4588 = vmul.f32 1.0, %v4587
        %v4589 = vrcp.pop %v4532
        %v4590 = vmul.f32 1.0, %v4589
        %v4591 = vrcp.pop %v4533
        %v4592 = vmul.f32 1.0, %v4591
        %v4593 = vrcp.pop %v4534
        %v4594 = vmul.f32 1.0, %v4593
        %v4595 = vrcp.pop %v4535
        %v4596 = vmul.f32 1.0, %v4595
        %v4597 = vrcp.pop %v4536
        %v4598 = vmul.f32 1.0, %v4597
        %v4599 = vrcp.pop %v4537
        %v4600 = vmul.f32 1.0, %v4599
        %v4601 = vrcp.pop %v4538
        %v4602 = vmul.f32 1.0, %v4601
        %v4603 = vmul.f32 %v4379, %v4540
        %v4604 = vmul.f32 %v4380, %v4542
        %v4605 = vmul.f32 %v4381, %v4544
        %v4606 = vmul.f32 %v4382, %v4546
        %v4607 = vmul.f32 %v4383, %v4548
        %v4608 = vmul.f32 %v4384, %v4550
        %v4609 = vmul.f32 %v4385, %v4552
        %v4610 = vmul.f32 %v4386, %v4554
        %v4611 = vmul.f32 %v4387, %v4556
        %v4612 = vmul.f32 %v4388, %v4558
        %v4613 = vmul.f32 %v4389, %v4560
        %v4614 = vmul.f32 %v4390, %v4562
        %v4615 = vmul.f32 %v4391, %v4564
        %v4616 = vmul.f32 %v4392, %v4566
        %v4617 = vmul.f32 %v4393, %v4568
        %v4618 = vmul.f32 %v4394, %v4570
        %v4619 = vmul.f32 %v4395, %v4572
        %v4620 = vmul.f32 %v4396, %v4574
        %v4621 = vmul.f32 %v4397, %v4576
        %v4622 = vmul.f32 %v4398, %v4578
        %v4623 = vmul.f32 %v4399, %v4580
        %v4624 = vmul.f32 %v4400, %v4582
        %v4625 = vmul.f32 %v4401, %v4584
        %v4626 = vmul.f32 %v4402, %v4586
        %v4627 = vmul.f32 %v4403, %v4588
        %v4628 = vmul.f32 %v4404, %v4590
        %v4629 = vmul.f32 %v4405, %v4592
        %v4630 = vmul.f32 %v4406, %v4594
        %v4631 = vmul.f32 %v4407, %v4596
        %v4632 = vmul.f32 %v4408, %v4598
        %v4633 = vmul.f32 %v4409, %v4600
        %v4634 = vmul.f32 %v4410, %v4602
        %4635 = vst.msk [vmem:[%s920 + $0x1] sm:$0xff] %vm864, %v4603
        %4636 = vst.msk [vmem:[%s920 + $0x9] sm:$0xff] %vm864, %v4604
        %4637 = vst.msk [vmem:[%s920 + $0x19] sm:$0xff] %vm864, %v4605
        %4638 = vst.msk [vmem:[%s920 + $0x21] sm:$0xff] %vm864, %v4606
        %4639 = vst.msk [vmem:[%s920 + $0x31] sm:$0xff] %vm864, %v4607
        %4640 = vst.msk [vmem:[%s920 + $0x39] sm:$0xff] %vm864, %v4608
        %4641 = vst.msk [vmem:[%s920 + $0x49] sm:$0xff] %vm864, %v4609
        %4642 = vst.msk [vmem:[%s920 + $0x51] sm:$0xff] %vm864, %v4610
        %4643 = vst.msk [vmem:[%s920 + $0x61] sm:$0xff] %vm864, %v4611
        %4644 = vst.msk [vmem:[%s920 + $0x69] sm:$0xff] %vm864, %v4612
        %4645 = vst.msk [vmem:[%s920 + $0x79] sm:$0xff] %vm864, %v4613
        %4646 = vst.msk [vmem:[%s920 + $0x81] sm:$0xff] %vm864, %v4614
        %4647 = vst.msk [vmem:[%s920 + $0x91] sm:$0xff] %vm864, %v4615
        %4648 = vst.msk [vmem:[%s920 + $0x99] sm:$0xff] %vm864, %v4616
        %4649 = vst.msk [vmem:[%s920 + $0xa9] sm:$0xff] %vm864, %v4617
        %4650 = vst.msk [vmem:[%s920 + $0xb1] sm:$0xff] %vm864, %v4618
        %4651 = vst.msk [vmem:[%s920 + $0xc1] sm:$0xff] %vm864, %v4619
        %4652 = vst.msk [vmem:[%s920 + $0xc9] sm:$0xff] %vm864, %v4620
        %4653 = vst.msk [vmem:[%s920 + $0xd9] sm:$0xff] %vm864, %v4621
        %4654 = vst.msk [vmem:[%s920 + $0xe1] sm:$0xff] %vm864, %v4622
        %4655 = vst.msk [vmem:[%s920 + $0xf1] sm:$0xff] %vm864, %v4623
        %4656 = vst.msk [vmem:[%s920 + $0xf9] sm:$0xff] %vm864, %v4624
        %4657 = vst.msk [vmem:[%s920 + $0x109] sm:$0xff] %vm864, %v4625
        %4658 = vst.msk [vmem:[%s920 + $0x111] sm:$0xff] %vm864, %v4626
        %4659 = vst.msk [vmem:[%s920 + $0x121] sm:$0xff] %vm864, %v4627
        %4660 = vst.msk [vmem:[%s920 + $0x129] sm:$0xff] %vm864, %v4628
        %4661 = vst.msk [vmem:[%s920 + $0x139] sm:$0xff] %vm864, %v4629
        %4662 = vst.msk [vmem:[%s920 + $0x141] sm:$0xff] %vm864, %v4630
        %4663 = vst.msk [vmem:[%s920 + $0x151] sm:$0xff] %vm864, %v4631
        %4664 = vst.msk [vmem:[%s920 + $0x159] sm:$0xff] %vm864, %v4632
        %4665 = vst.msk [vmem:[%s920 + $0x169] sm:$0xff] %vm864, %v4633
        %4666 = vst.msk [vmem:[%s920 + $0x171] sm:$0xff] %vm864, %v4634
        %v4667 = vld [vmem:[#allocation2] sm:$0xff]
        %v4668 = vld [vmem:[#allocation2 + $0x8] sm:$0xff]
        %v4669 = vld [vmem:[#allocation2 + $0x18] sm:$0xff]
        %v4670 = vld [vmem:[#allocation2 + $0x20] sm:$0xff]
        %v4671 = vld [vmem:[#allocation2 + $0x30] sm:$0xff]
        %v4672 = vld [vmem:[#allocation2 + $0x38] sm:$0xff]
        %v4673 = vld [vmem:[#allocation2 + $0x48] sm:$0xff]
        %v4674 = vld [vmem:[#allocation2 + $0x50] sm:$0xff]
        %v4675 = vld [vmem:[#allocation2 + $0x60] sm:$0xff]
        %v4676 = vld [vmem:[#allocation2 + $0x68] sm:$0xff]
        %v4677 = vld [vmem:[#allocation2 + $0x78] sm:$0xff]
        %v4678 = vld [vmem:[#allocation2 + $0x80] sm:$0xff]
        %v4679 = vld [vmem:[#allocation2 + $0x90] sm:$0xff]
        %v4680 = vld [vmem:[#allocation2 + $0x98] sm:$0xff]
        %v4681 = vld [vmem:[#allocation2 + $0xa8] sm:$0xff]
        %v4682 = vld [vmem:[#allocation2 + $0xb0] sm:$0xff]
        %v4683 = vld [vmem:[#allocation2 + $0xc0] sm:$0xff]
        %v4684 = vld [vmem:[#allocation2 + $0xc8] sm:$0xff]
        %v4685 = vld [vmem:[#allocation2 + $0xd8] sm:$0xff]
        %v4686 = vld [vmem:[#allocation2 + $0xe0] sm:$0xff]
        %v4687 = vld [vmem:[#allocation2 + $0xf0] sm:$0xff]
        %v4688 = vld [vmem:[#allocation2 + $0xf8] sm:$0xff]
        %v4689 = vld [vmem:[#allocation2 + $0x108] sm:$0xff]
        %v4690 = vld [vmem:[#allocation2 + $0x110] sm:$0xff]
        %v4691 = vld [vmem:[#allocation2 + $0x120] sm:$0xff]
        %v4692 = vld [vmem:[#allocation2 + $0x128] sm:$0xff]
        %v4693 = vld [vmem:[#allocation2 + $0x138] sm:$0xff]
        %v4694 = vld [vmem:[#allocation2 + $0x140] sm:$0xff]
        %v4695 = vld [vmem:[#allocation2 + $0x150] sm:$0xff]
        %v4696 = vld [vmem:[#allocation2 + $0x158] sm:$0xff]
        %v4697 = vld [vmem:[#allocation2 + $0x168] sm:$0xff]
        %v4698 = vld [vmem:[#allocation2 + $0x170] sm:$0xff]
        %s4699 = scalar_lea.vmem %s3, 72
        %v4700 = vld [vmem:[%s4699] sm:$0xff]
        %v4701 = vld [vmem:[#allocation2 + $0x1] sm:$0xff]
        %v4702 = vld [vmem:[#allocation2 + $0x9] sm:$0xff]
        %v4703 = vld [vmem:[#allocation2 + $0x19] sm:$0xff]
        %v4704 = vld [vmem:[#allocation2 + $0x21] sm:$0xff]
        %v4705 = vld [vmem:[#allocation2 + $0x31] sm:$0xff]
        %v4706 = vld [vmem:[#allocation2 + $0x39] sm:$0xff]
        %v4707 = vld [vmem:[#allocation2 + $0x49] sm:$0xff]
        %v4708 = vld [vmem:[#allocation2 + $0x51] sm:$0xff]
        %v4709 = vld [vmem:[#allocation2 + $0x61] sm:$0xff]
        %v4710 = vld [vmem:[#allocation2 + $0x69] sm:$0xff]
        %v4711 = vld [vmem:[#allocation2 + $0x79] sm:$0xff]
        %v4712 = vld [vmem:[#allocation2 + $0x81] sm:$0xff]
        %v4713 = vld [vmem:[#allocation2 + $0x91] sm:$0xff]
        %v4714 = vld [vmem:[#allocation2 + $0x99] sm:$0xff]
        %v4715 = vld [vmem:[#allocation2 + $0xa9] sm:$0xff]
        %v4716 = vld [vmem:[#allocation2 + $0xb1] sm:$0xff]
        %v4717 = vld [vmem:[#allocation2 + $0xc1] sm:$0xff]
        %v4718 = vld [vmem:[#allocation2 + $0xc9] sm:$0xff]
        %v4719 = vld [vmem:[#allocation2 + $0xd9] sm:$0xff]
        %v4720 = vld [vmem:[#allocation2 + $0xe1] sm:$0xff]
        %v4721 = vld [vmem:[#allocation2 + $0xf1] sm:$0xff]
        %v4722 = vld [vmem:[#allocation2 + $0xf9] sm:$0xff]
        %v4723 = vld [vmem:[#allocation2 + $0x109] sm:$0xff]
        %v4724 = vld [vmem:[#allocation2 + $0x111] sm:$0xff]
        %v4725 = vld [vmem:[#allocation2 + $0x121] sm:$0xff]
        %v4726 = vld [vmem:[#allocation2 + $0x129] sm:$0xff]
        %v4727 = vld [vmem:[#allocation2 + $0x139] sm:$0xff]
        %v4728 = vld [vmem:[#allocation2 + $0x141] sm:$0xff]
        %v4729 = vld [vmem:[#allocation2 + $0x151] sm:$0xff]
        %v4730 = vld [vmem:[#allocation2 + $0x159] sm:$0xff]
        %v4731 = vld [vmem:[#allocation2 + $0x169] sm:$0xff]
        %v4732 = vld [vmem:[#allocation2 + $0x171] sm:$0xff]
        %s4733 = scalar_lea.vmem %s3, 80
        %v4734 = vld [vmem:[%s4733] sm:$0xff]
        %v4736 = vsel %vm864, %v4701, 0
        %v4739 = vsel %vm864, %v4702, 0
        %v4742 = vsel %vm864, %v4703, 0
        %v4745 = vsel %vm864, %v4704, 0
        %v4748 = vsel %vm864, %v4705, 0
        %v4751 = vsel %vm864, %v4706, 0
        %v4754 = vsel %vm864, %v4707, 0
        %v4757 = vsel %vm864, %v4708, 0
        %v4760 = vsel %vm864, %v4709, 0
        %v4763 = vsel %vm864, %v4710, 0
        %v4766 = vsel %vm864, %v4711, 0
        %v4769 = vsel %vm864, %v4712, 0
        %v4772 = vsel %vm864, %v4713, 0
        %v4775 = vsel %vm864, %v4714, 0
        %v4778 = vsel %vm864, %v4715, 0
        %v4781 = vsel %vm864, %v4716, 0
        %v4784 = vsel %vm864, %v4717, 0
        %v4787 = vsel %vm864, %v4718, 0
        %v4790 = vsel %vm864, %v4719, 0
        %v4793 = vsel %vm864, %v4720, 0
        %v4796 = vsel %vm864, %v4721, 0
        %v4799 = vsel %vm864, %v4722, 0
        %v4802 = vsel %vm864, %v4723, 0
        %v4805 = vsel %vm864, %v4724, 0
        %v4808 = vsel %vm864, %v4725, 0
        %v4811 = vsel %vm864, %v4726, 0
        %v4814 = vsel %vm864, %v4727, 0
        %v4817 = vsel %vm864, %v4728, 0
        %v4820 = vsel %vm864, %v4729, 0
        %v4823 = vsel %vm864, %v4730, 0
        %v4826 = vsel %vm864, %v4731, 0
        %v4829 = vsel %vm864, %v4732, 0
        %4831 = vmatprep.subr.mxu0 0.0
        %4832 = vmatpush1.msra.mxu0 %v4734
        %4833 = vmatprep.subr.mxu0 0.0
        %4834 = vmatpush1.msra.mxu0 0.0
        %4835 = vmatprep.subr.mxu0 0.0
        %4836 = vmatpush1.msra.mxu0 0.0
        %4837 = vmatprep.subr.mxu0 0.0
        %4838 = vmatpush1.msra.mxu0 0.0
        %4839 = vmatprep.subr.mxu0 0.0
        %4840 = vmatpush1.msra.mxu0 0.0
        %4841 = vmatprep.subr.mxu0 0.0
        %4842 = vmatpush1.msra.mxu0 0.0
        %4843 = vmatprep.subr.mxu0 0.0
        %4844 = vmatpush1.msra.mxu0 0.0
        %4845 = vmatprep.subr.mxu0 0.0
        %4846 = vmatpush1.msra.mxu0 0.0
        %4847 = vmatprep.subr.mxu0 0.0
        %4848 = vmatpush1.msra.mxu0 0.0
        %4849 = vmatprep.subr.mxu0 0.0
        %4850 = vmatpush1.msra.mxu0 0.0
        %4851 = vmatprep.subr.mxu0 0.0
        %4852 = vmatpush1.msra.mxu0 0.0
        %4853 = vmatprep.subr.mxu0 0.0
        %4854 = vmatpush1.msra.mxu0 0.0
        %4855 = vmatprep.subr.mxu0 0.0
        %4856 = vmatpush1.msra.mxu0 0.0
        %4857 = vmatprep.subr.mxu0 0.0
        %4858 = vmatpush1.msra.mxu0 0.0
        %4859 = vmatprep.subr.mxu0 0.0
        %4860 = vmatpush1.msra.mxu0 0.0
        %4861 = vmatprep.subr.mxu0 0.0
        %4862 = vmatpush1.msra.mxu0 0.0
        %4863 = vmatprep.subr.mxu0 0.0
        %4864 = vmatpush1.msra.mxu0 0.0
        %4865 = vmatprep.subr.mxu0 0.0
        %4866 = vmatpush1.msra.mxu0 0.0
        %4867 = vmatprep.subr.mxu0 0.0
        %4868 = vmatpush1.msra.mxu0 0.0
        %4869 = vmatprep.subr.mxu0 0.0
        %4870 = vmatpush1.msra.mxu0 0.0
        %4871 = vmatprep.subr.mxu0 0.0
        %4872 = vmatpush1.msra.mxu0 0.0
        %4873 = vmatprep.subr.mxu0 0.0
        %4874 = vmatpush1.msra.mxu0 0.0
        %4875 = vmatprep.subr.mxu0 0.0
        %4876 = vmatpush1.msra.mxu0 0.0
        %4877 = vmatprep.subr.mxu0 0.0
        %4878 = vmatpush1.msra.mxu0 0.0
        %4879 = vmatprep.subr.mxu0 0.0
        %4880 = vmatpush1.msra.mxu0 0.0
        %4881 = vmatprep.subr.mxu0 0.0
        %4882 = vmatpush1.msra.mxu0 0.0
        %4883 = vmatprep.subr.mxu0 0.0
        %4884 = vmatpush1.msra.mxu0 0.0
        %4885 = vmatprep.subr.mxu0 0.0
        %4886 = vmatpush1.msra.mxu0 0.0
        %4887 = vmatprep.subr.mxu0 0.0
        %4888 = vmatpush1.msra.mxu0 0.0
        %4889 = vmatprep.subr.mxu0 0.0
        %4890 = vmatpush1.msra.mxu0 0.0
        %4891 = vmatprep.subr.mxu0 0.0
        %4892 = vmatpush1.msra.mxu0 0.0
        %4893 = vmatprep.subr.mxu0 0.0
        %4894 = vmatpush1.msra.mxu0 0.0
        %4895 = vmatprep.mubr.f32.mxu0 0.0
        %4896 = vmatmul.mubr.f32.gmra.mrb[0].mxu0 %v4736
        %v4897 = vpop.f32.mrb[0].mxu0
        %v4898 = vadd.f32 0.0, %v4897
        %v4899 = vpop.f32.mrb[0].mxu0
        %4900 = vmatprep.mubr.f32.mxu0 0.0
        %4901 = vmatmul.mubr.f32.gmra.mrb[0].mxu0 %v4739
        %v4902 = vpop.f32.mrb[0].mxu0
        %v4903 = vadd.f32 0.0, %v4902
        %v4904 = vpop.f32.mrb[0].mxu0
        %4905 = vmatprep.mubr.f32.mxu0 0.0
        %4906 = vmatmul.mubr.f32.gmra.mrb[0].mxu0 %v4742
        %v4907 = vpop.f32.mrb[0].mxu0
        %v4908 = vadd.f32 0.0, %v4907
        %v4909 = vpop.f32.mrb[0].mxu0
        %4910 = vmatprep.mubr.f32.mxu0 0.0
        %4911 = vmatmul.mubr.f32.gmra.mrb[0].mxu0 %v4745
        %v4912 = vpop.f32.mrb[0].mxu0
        %v4913 = vadd.f32 0.0, %v4912
        %v4914 = vpop.f32.mrb[0].mxu0
        %4915 = vmatprep.mubr.f32.mxu0 0.0
        %4916 = vmatmul.mubr.f32.gmra.mrb[0].mxu0 %v4748
        %v4917 = vpop.f32.mrb[0].mxu0
        %v4918 = vadd.f32 0.0, %v4917
        %v4919 = vpop.f32.mrb[0].mxu0
        %4920 = vmatprep.mubr.f32.mxu0 0.0
        %4921 = vmatmul.mubr.f32.gmra.mrb[0].mxu0 %v4751
        %v4922 = vpop.f32.mrb[0].mxu0
        %v4923 = vadd.f32 0.0, %v4922
        %v4924 = vpop.f32.mrb[0].mxu0
        %4925 = vmatprep.mubr.f32.mxu0 0.0
        %4926 = vmatmul.mubr.f32.gmra.mrb[0].mxu0 %v4754
        %v4927 = vpop.f32.mrb[0].mxu0
        %v4928 = vadd.f32 0.0, %v4927
        %v4929 = vpop.f32.mrb[0].mxu0
        %4930 = vmatprep.mubr.f32.mxu0 0.0
        %4931 = vmatmul.mubr.f32.gmra.mrb[0].mxu0 %v4757
        %v4932 = vpop.f32.mrb[0].mxu0
        %v4933 = vadd.f32 0.0, %v4932
        %v4934 = vpop.f32.mrb[0].mxu0
        %4935 = vmatprep.mubr.f32.mxu0 0.0
        %4936 = vmatmul.mubr.f32.gmra.mrb[0].mxu0 %v4760
        %v4937 = vpop.f32.mrb[0].mxu0
        %v4938 = vadd.f32 0.0, %v4937
        %v4939 = vpop.f32.mrb[0].mxu0
        %4940 = vmatprep.mubr.f32.mxu0 0.0
        %4941 = vmatmul.mubr.f32.gmra.mrb[0].mxu0 %v4763
        %v4942 = vpop.f32.mrb[0].mxu0
        %v4943 = vadd.f32 0.0, %v4942
        %v4944 = vpop.f32.mrb[0].mxu0
        %4945 = vmatprep.mubr.f32.mxu0 0.0
        %4946 = vmatmul.mubr.f32.gmra.mrb[0].mxu0 %v4766
        %v4947 = vpop.f32.mrb[0].mxu0
        %v4948 = vadd.f32 0.0, %v4947
        %v4949 = vpop.f32.mrb[0].mxu0
        %4950 = vmatprep.mubr.f32.mxu0 0.0
        %4951 = vmatmul.mubr.f32.gmra.mrb[0].mxu0 %v4769
        %v4952 = vpop.f32.mrb[0].mxu0
        %v4953 = vadd.f32 0.0, %v4952
        %v4954 = vpop.f32.mrb[0].mxu0
        %4955 = vmatprep.mubr.f32.mxu0 0.0
        %4956 = vmatmul.mubr.f32.gmra.mrb[0].mxu0 %v4772
        %v4957 = vpop.f32.mrb[0].mxu0
        %v4958 = vadd.f32 0.0, %v4957
        %v4959 = vpop.f32.mrb[0].mxu0
        %4960 = vmatprep.mubr.f32.mxu0 0.0
        %4961 = vmatmul.mubr.f32.gmra.mrb[0].mxu0 %v4775
        %v4962 = vpop.f32.mrb[0].mxu0
        %v4963 = vadd.f32 0.0, %v4962
        %v4964 = vpop.f32.mrb[0].mxu0
        %4965 = vmatprep.mubr.f32.mxu0 0.0
        %4966 = vmatmul.mubr.f32.gmra.mrb[0].mxu0 %v4778
        %v4967 = vpop.f32.mrb[0].mxu0
        %v4968 = vadd.f32 0.0, %v4967
        %v4969 = vpop.f32.mrb[0].mxu0
        %4970 = vmatprep.mubr.f32.mxu0 0.0
        %4971 = vmatmul.mubr.f32.gmra.mrb[0].mxu0 %v4781
        %v4972 = vpop.f32.mrb[0].mxu0
        %v4973 = vadd.f32 0.0, %v4972
        %v4974 = vpop.f32.mrb[0].mxu0
        %4975 = vmatprep.mubr.f32.mxu0 0.0
        %4976 = vmatmul.mubr.f32.gmra.mrb[0].mxu0 %v4784
        %v4977 = vpop.f32.mrb[0].mxu0
        %v4978 = vadd.f32 0.0, %v4977
        %v4979 = vpop.f32.mrb[0].mxu0
        %4980 = vmatprep.mubr.f32.mxu0 0.0
        %4981 = vmatmul.mubr.f32.gmra.mrb[0].mxu0 %v4787
        %v4982 = vpop.f32.mrb[0].mxu0
        %v4983 = vadd.f32 0.0, %v4982
        %v4984 = vpop.f32.mrb[0].mxu0
        %4985 = vmatprep.mubr.f32.mxu0 0.0
        %4986 = vmatmul.mubr.f32.gmra.mrb[0].mxu0 %v4790
        %v4987 = vpop.f32.mrb[0].mxu0
        %v4988 = vadd.f32 0.0, %v4987
        %v4989 = vpop.f32.mrb[0].mxu0
        %4990 = vmatprep.mubr.f32.mxu0 0.0
        %4991 = vmatmul.mubr.f32.gmra.mrb[0].mxu0 %v4793
        %v4992 = vpop.f32.mrb[0].mxu0
        %v4993 = vadd.f32 0.0, %v4992
        %v4994 = vpop.f32.mrb[0].mxu0
        %4995 = vmatprep.mubr.f32.mxu0 0.0
        %4996 = vmatmul.mubr.f32.gmra.mrb[0].mxu0 %v4796
        %v4997 = vpop.f32.mrb[0].mxu0
        %v4998 = vadd.f32 0.0, %v4997
        %v4999 = vpop.f32.mrb[0].mxu0
        %5000 = vmatprep.mubr.f32.mxu0 0.0
        %5001 = vmatmul.mubr.f32.gmra.mrb[0].mxu0 %v4799
        %v5002 = vpop.f32.mrb[0].mxu0
        %v5003 = vadd.f32 0.0, %v5002
        %v5004 = vpop.f32.mrb[0].mxu0
        %5005 = vmatprep.mubr.f32.mxu0 0.0
        %5006 = vmatmul.mubr.f32.gmra.mrb[0].mxu0 %v4802
        %v5007 = vpop.f32.mrb[0].mxu0
        %v5008 = vadd.f32 0.0, %v5007
        %v5009 = vpop.f32.mrb[0].mxu0
        %5010 = vmatprep.mubr.f32.mxu0 0.0
        %5011 = vmatmul.mubr.f32.gmra.mrb[0].mxu0 %v4805
        %v5012 = vpop.f32.mrb[0].mxu0
        %v5013 = vadd.f32 0.0, %v5012
        %v5014 = vpop.f32.mrb[0].mxu0
        %5015 = vmatprep.mubr.f32.mxu0 0.0
        %5016 = vmatmul.mubr.f32.gmra.mrb[0].mxu0 %v4808
        %v5017 = vpop.f32.mrb[0].mxu0
        %v5018 = vadd.f32 0.0, %v5017
        %v5019 = vpop.f32.mrb[0].mxu0
        %5020 = vmatprep.mubr.f32.mxu0 0.0
        %5021 = vmatmul.mubr.f32.gmra.mrb[0].mxu0 %v4811
        %v5022 = vpop.f32.mrb[0].mxu0
        %v5023 = vadd.f32 0.0, %v5022
        %v5024 = vpop.f32.mrb[0].mxu0
        %5025 = vmatprep.mubr.f32.mxu0 0.0
        %5026 = vmatmul.mubr.f32.gmra.mrb[0].mxu0 %v4814
        %v5027 = vpop.f32.mrb[0].mxu0
        %v5028 = vadd.f32 0.0, %v5027
        %v5029 = vpop.f32.mrb[0].mxu0
        %5030 = vmatprep.mubr.f32.mxu0 0.0
        %5031 = vmatmul.mubr.f32.gmra.mrb[0].mxu0 %v4817
        %v5032 = vpop.f32.mrb[0].mxu0
        %v5033 = vadd.f32 0.0, %v5032
        %v5034 = vpop.f32.mrb[0].mxu0
        %5035 = vmatprep.mubr.f32.mxu0 0.0
        %5036 = vmatmul.mubr.f32.gmra.mrb[0].mxu0 %v4820
        %v5037 = vpop.f32.mrb[0].mxu0
        %v5038 = vadd.f32 0.0, %v5037
        %v5039 = vpop.f32.mrb[0].mxu0
        %5040 = vmatprep.mubr.f32.mxu0 0.0
        %5041 = vmatmul.mubr.f32.gmra.mrb[0].mxu0 %v4823
        %v5042 = vpop.f32.mrb[0].mxu0
        %v5043 = vadd.f32 0.0, %v5042
        %v5044 = vpop.f32.mrb[0].mxu0
        %5045 = vmatprep.mubr.f32.mxu0 0.0
        %5046 = vmatmul.mubr.f32.gmra.mrb[0].mxu0 %v4826
        %v5047 = vpop.f32.mrb[0].mxu0
        %v5048 = vadd.f32 0.0, %v5047
        %v5049 = vpop.f32.mrb[0].mxu0
        %5050 = vmatprep.mubr.f32.mxu0 0.0
        %5051 = vmatmul.mubr.f32.gmra.mrb[0].mxu0 %v4829
        %v5052 = vpop.f32.mrb[0].mxu0
        %v5053 = vadd.f32 0.0, %v5052
        %v5054 = vpop.f32.mrb[0].mxu0
        %5055 = vdwg.mxu0
        %v5057 = vsel %vm864, %v4667, 0
        %v5060 = vsel %vm864, %v4668, 0
        %v5063 = vsel %vm864, %v4669, 0
        %v5066 = vsel %vm864, %v4670, 0
        %v5069 = vsel %vm864, %v4671, 0
        %v5072 = vsel %vm864, %v4672, 0
        %v5075 = vsel %vm864, %v4673, 0
        %v5078 = vsel %vm864, %v4674, 0
        %v5081 = vsel %vm864, %v4675, 0
        %v5084 = vsel %vm864, %v4676, 0
        %v5087 = vsel %vm864, %v4677, 0
        %v5090 = vsel %vm864, %v4678, 0
        %v5093 = vsel %vm864, %v4679, 0
        %v5096 = vsel %vm864, %v4680, 0
        %v5099 = vsel %vm864, %v4681, 0
        %v5102 = vsel %vm864, %v4682, 0
        %v5105 = vsel %vm864, %v4683, 0
        %v5108 = vsel %vm864, %v4684, 0
        %v5111 = vsel %vm864, %v4685, 0
        %v5114 = vsel %vm864, %v4686, 0
        %v5117 = vsel %vm864, %v4687, 0
        %v5120 = vsel %vm864, %v4688, 0
        %v5123 = vsel %vm864, %v4689, 0
        %v5126 = vsel %vm864, %v4690, 0
        %v5129 = vsel %vm864, %v4691, 0
        %v5132 = vsel %vm864, %v4692, 0
        %v5135 = vsel %vm864, %v4693, 0
        %v5138 = vsel %vm864, %v4694, 0
        %v5141 = vsel %vm864, %v4695, 0
        %v5144 = vsel %vm864, %v4696, 0
        %v5147 = vsel %vm864, %v4697, 0
        %v5150 = vsel %vm864, %v4698, 0
        %5152 = vmatprep.subr.mxu0 0.0
        %5153 = vmatpush1.msra.mxu0 %v4700
        %5154 = vmatprep.subr.mxu0 0.0
        %5155 = vmatpush1.msra.mxu0 0.0
        %5156 = vmatprep.subr.mxu0 0.0
        %5157 = vmatpush1.msra.mxu0 0.0
        %5158 = vmatprep.subr.mxu0 0.0
        %5159 = vmatpush1.msra.mxu0 0.0
        %5160 = vmatprep.subr.mxu0 0.0
        %5161 = vmatpush1.msra.mxu0 0.0
        %5162 = vmatprep.subr.mxu0 0.0
        %5163 = vmatpush1.msra.mxu0 0.0
        %5164 = vmatprep.subr.mxu0 0.0
        %5165 = vmatpush1.msra.mxu0 0.0
        %5166 = vmatprep.subr.mxu0 0.0
        %5167 = vmatpush1.msra.mxu0 0.0
        %5168 = vmatprep.subr.mxu0 0.0
        %5169 = vmatpush1.msra.mxu0 0.0
        %5170 = vmatprep.subr.mxu0 0.0
        %5171 = vmatpush1.msra.mxu0 0.0
        %5172 = vmatprep.subr.mxu0 0.0
        %5173 = vmatpush1.msra.mxu0 0.0
        %5174 = vmatprep.subr.mxu0 0.0
        %5175 = vmatpush1.msra.mxu0 0.0
        %5176 = vmatprep.subr.mxu0 0.0
        %5177 = vmatpush1.msra.mxu0 0.0
        %5178 = vmatprep.subr.mxu0 0.0
        %5179 = vmatpush1.msra.mxu0 0.0
        %5180 = vmatprep.subr.mxu0 0.0
        %5181 = vmatpush1.msra.mxu0 0.0
        %5182 = vmatprep.subr.mxu0 0.0
        %5183 = vmatpush1.msra.mxu0 0.0
        %5184 = vmatprep.subr.mxu0 0.0
        %5185 = vmatpush1.msra.mxu0 0.0
        %5186 = vmatprep.subr.mxu0 0.0
        %5187 = vmatpush1.msra.mxu0 0.0
        %5188 = vmatprep.subr.mxu0 0.0
        %5189 = vmatpush1.msra.mxu0 0.0
        %5190 = vmatprep.subr.mxu0 0.0
        %5191 = vmatpush1.msra.mxu0 0.0
        %5192 = vmatprep.subr.mxu0 0.0
        %5193 = vmatpush1.msra.mxu0 0.0
        %5194 = vmatprep.subr.mxu0 0.0
        %5195 = vmatpush1.msra.mxu0 0.0
        %5196 = vmatprep.subr.mxu0 0.0
        %5197 = vmatpush1.msra.mxu0 0.0
        %5198 = vmatprep.subr.mxu0 0.0
        %5199 = vmatpush1.msra.mxu0 0.0
        %5200 = vmatprep.subr.mxu0 0.0
        %5201 = vmatpush1.msra.mxu0 0.0
        %5202 = vmatprep.subr.mxu0 0.0
        %5203 = vmatpush1.msra.mxu0 0.0
        %5204 = vmatprep.subr.mxu0 0.0
        %5205 = vmatpush1.msra.mxu0 0.0
        %5206 = vmatprep.subr.mxu0 0.0
        %5207 = vmatpush1.msra.mxu0 0.0
        %5208 = vmatprep.subr.mxu0 0.0
        %5209 = vmatpush1.msra.mxu0 0.0
        %5210 = vmatprep.subr.mxu0 0.0
        %5211 = vmatpush1.msra.mxu0 0.0
        %5212 = vmatprep.subr.mxu0 0.0
        %5213 = vmatpush1.msra.mxu0 0.0
        %5214 = vmatprep.subr.mxu0 0.0
        %5215 = vmatpush1.msra.mxu0 0.0
        %5216 = vmatprep.mubr.f32.mxu0 0.0
        %5217 = vmatmul.mubr.f32.gmra.mrb[0].mxu0 %v5057
        %v5218 = vpop.f32.mrb[0].mxu0
        %v5219 = vadd.f32 %v4898, %v5218
        %v5220 = vpop.f32.mrb[0].mxu0
        %5221 = vmatprep.mubr.f32.mxu0 0.0
        %5222 = vmatmul.mubr.f32.gmra.mrb[0].mxu0 %v5060
        %v5223 = vpop.f32.mrb[0].mxu0
        %v5224 = vadd.f32 %v4903, %v5223
        %v5225 = vpop.f32.mrb[0].mxu0
        %5226 = vmatprep.mubr.f32.mxu0 0.0
        %5227 = vmatmul.mubr.f32.gmra.mrb[0].mxu0 %v5063
        %v5228 = vpop.f32.mrb[0].mxu0
        %v5229 = vadd.f32 %v4908, %v5228
        %v5230 = vpop.f32.mrb[0].mxu0
        %5231 = vmatprep.mubr.f32.mxu0 0.0
        %5232 = vmatmul.mubr.f32.gmra.mrb[0].mxu0 %v5066
        %v5233 = vpop.f32.mrb[0].mxu0
        %v5234 = vadd.f32 %v4913, %v5233
        %v5235 = vpop.f32.mrb[0].mxu0
        %5236 = vmatprep.mubr.f32.mxu0 0.0
        %5237 = vmatmul.mubr.f32.gmra.mrb[0].mxu0 %v5069
        %v5238 = vpop.f32.mrb[0].mxu0
        %v5239 = vadd.f32 %v4918, %v5238
        %v5240 = vpop.f32.mrb[0].mxu0
        %5241 = vmatprep.mubr.f32.mxu0 0.0
        %5242 = vmatmul.mubr.f32.gmra.mrb[0].mxu0 %v5072
        %v5243 = vpop.f32.mrb[0].mxu0
        %v5244 = vadd.f32 %v4923, %v5243
        %v5245 = vpop.f32.mrb[0].mxu0
        %5246 = vmatprep.mubr.f32.mxu0 0.0
        %5247 = vmatmul.mubr.f32.gmra.mrb[0].mxu0 %v5075
        %v5248 = vpop.f32.mrb[0].mxu0
        %v5249 = vadd.f32 %v4928, %v5248
        %v5250 = vpop.f32.mrb[0].mxu0
        %5251 = vmatprep.mubr.f32.mxu0 0.0
        %5252 = vmatmul.mubr.f32.gmra.mrb[0].mxu0 %v5078
        %v5253 = vpop.f32.mrb[0].mxu0
        %v5254 = vadd.f32 %v4933, %v5253
        %v5255 = vpop.f32.mrb[0].mxu0
        %5256 = vmatprep.mubr.f32.mxu0 0.0
        %5257 = vmatmul.mubr.f32.gmra.mrb[0].mxu0 %v5081
        %v5258 = vpop.f32.mrb[0].mxu0
        %v5259 = vadd.f32 %v4938, %v5258
        %v5260 = vpop.f32.mrb[0].mxu0
        %5261 = vmatprep.mubr.f32.mxu0 0.0
        %5262 = vmatmul.mubr.f32.gmra.mrb[0].mxu0 %v5084
        %v5263 = vpop.f32.mrb[0].mxu0
        %v5264 = vadd.f32 %v4943, %v5263
        %v5265 = vpop.f32.mrb[0].mxu0
        %5266 = vmatprep.mubr.f32.mxu0 0.0
        %5267 = vmatmul.mubr.f32.gmra.mrb[0].mxu0 %v5087
        %v5268 = vpop.f32.mrb[0].mxu0
        %v5269 = vadd.f32 %v4948, %v5268
        %v5270 = vpop.f32.mrb[0].mxu0
        %5271 = vmatprep.mubr.f32.mxu0 0.0
        %5272 = vmatmul.mubr.f32.gmra.mrb[0].mxu0 %v5090
        %v5273 = vpop.f32.mrb[0].mxu0
        %v5274 = vadd.f32 %v4953, %v5273
        %v5275 = vpop.f32.mrb[0].mxu0
        %5276 = vmatprep.mubr.f32.mxu0 0.0
        %5277 = vmatmul.mubr.f32.gmra.mrb[0].mxu0 %v5093
        %v5278 = vpop.f32.mrb[0].mxu0
        %v5279 = vadd.f32 %v4958, %v5278
        %v5280 = vpop.f32.mrb[0].mxu0
        %5281 = vmatprep.mubr.f32.mxu0 0.0
        %5282 = vmatmul.mubr.f32.gmra.mrb[0].mxu0 %v5096
        %v5283 = vpop.f32.mrb[0].mxu0
        %v5284 = vadd.f32 %v4963, %v5283
        %v5285 = vpop.f32.mrb[0].mxu0
        %5286 = vmatprep.mubr.f32.mxu0 0.0
        %5287 = vmatmul.mubr.f32.gmra.mrb[0].mxu0 %v5099
        %v5288 = vpop.f32.mrb[0].mxu0
        %v5289 = vadd.f32 %v4968, %v5288
        %v5290 = vpop.f32.mrb[0].mxu0
        %5291 = vmatprep.mubr.f32.mxu0 0.0
        %5292 = vmatmul.mubr.f32.gmra.mrb[0].mxu0 %v5102
        %v5293 = vpop.f32.mrb[0].mxu0
        %v5294 = vadd.f32 %v4973, %v5293
        %v5295 = vpop.f32.mrb[0].mxu0
        %5296 = vmatprep.mubr.f32.mxu0 0.0
        %5297 = vmatmul.mubr.f32.gmra.mrb[0].mxu0 %v5105
        %v5298 = vpop.f32.mrb[0].mxu0
        %v5299 = vadd.f32 %v4978, %v5298
        %v5300 = vpop.f32.mrb[0].mxu0
        %5301 = vmatprep.mubr.f32.mxu0 0.0
        %5302 = vmatmul.mubr.f32.gmra.mrb[0].mxu0 %v5108
        %v5303 = vpop.f32.mrb[0].mxu0
        %v5304 = vadd.f32 %v4983, %v5303
        %v5305 = vpop.f32.mrb[0].mxu0
        %5306 = vmatprep.mubr.f32.mxu0 0.0
        %5307 = vmatmul.mubr.f32.gmra.mrb[0].mxu0 %v5111
        %v5308 = vpop.f32.mrb[0].mxu0
        %v5309 = vadd.f32 %v4988, %v5308
        %v5310 = vpop.f32.mrb[0].mxu0
        %5311 = vmatprep.mubr.f32.mxu0 0.0
        %5312 = vmatmul.mubr.f32.gmra.mrb[0].mxu0 %v5114
        %v5313 = vpop.f32.mrb[0].mxu0
        %v5314 = vadd.f32 %v4993, %v5313
        %v5315 = vpop.f32.mrb[0].mxu0
        %5316 = vmatprep.mubr.f32.mxu0 0.0
        %5317 = vmatmul.mubr.f32.gmra.mrb[0].mxu0 %v5117
        %v5318 = vpop.f32.mrb[0].mxu0
        %v5319 = vadd.f32 %v4998, %v5318
        %v5320 = vpop.f32.mrb[0].mxu0
        %5321 = vmatprep.mubr.f32.mxu0 0.0
        %5322 = vmatmul.mubr.f32.gmra.mrb[0].mxu0 %v5120
        %v5323 = vpop.f32.mrb[0].mxu0
        %v5324 = vadd.f32 %v5003, %v5323
        %v5325 = vpop.f32.mrb[0].mxu0
        %5326 = vmatprep.mubr.f32.mxu0 0.0
        %5327 = vmatmul.mubr.f32.gmra.mrb[0].mxu0 %v5123
        %v5328 = vpop.f32.mrb[0].mxu0
        %v5329 = vadd.f32 %v5008, %v5328
        %v5330 = vpop.f32.mrb[0].mxu0
        %5331 = vmatprep.mubr.f32.mxu0 0.0
        %5332 = vmatmul.mubr.f32.gmra.mrb[0].mxu0 %v5126
        %v5333 = vpop.f32.mrb[0].mxu0
        %v5334 = vadd.f32 %v5013, %v5333
        %v5335 = vpop.f32.mrb[0].mxu0
        %5336 = vmatprep.mubr.f32.mxu0 0.0
        %5337 = vmatmul.mubr.f32.gmra.mrb[0].mxu0 %v5129
        %v5338 = vpop.f32.mrb[0].mxu0
        %v5339 = vadd.f32 %v5018, %v5338
        %v5340 = vpop.f32.mrb[0].mxu0
        %5341 = vmatprep.mubr.f32.mxu0 0.0
        %5342 = vmatmul.mubr.f32.gmra.mrb[0].mxu0 %v5132
        %v5343 = vpop.f32.mrb[0].mxu0
        %v5344 = vadd.f32 %v5023, %v5343
        %v5345 = vpop.f32.mrb[0].mxu0
        %5346 = vmatprep.mubr.f32.mxu0 0.0
        %5347 = vmatmul.mubr.f32.gmra.mrb[0].mxu0 %v5135
        %v5348 = vpop.f32.mrb[0].mxu0
        %v5349 = vadd.f32 %v5028, %v5348
        %v5350 = vpop.f32.mrb[0].mxu0
        %5351 = vmatprep.mubr.f32.mxu0 0.0
        %5352 = vmatmul.mubr.f32.gmra.mrb[0].mxu0 %v5138
        %v5353 = vpop.f32.mrb[0].mxu0
        %v5354 = vadd.f32 %v5033, %v5353
        %v5355 = vpop.f32.mrb[0].mxu0
        %5356 = vmatprep.mubr.f32.mxu0 0.0
        %5357 = vmatmul.mubr.f32.gmra.mrb[0].mxu0 %v5141
        %v5358 = vpop.f32.mrb[0].mxu0
        %v5359 = vadd.f32 %v5038, %v5358
        %v5360 = vpop.f32.mrb[0].mxu0
        %5361 = vmatprep.mubr.f32.mxu0 0.0
        %5362 = vmatmul.mubr.f32.gmra.mrb[0].mxu0 %v5144
        %v5363 = vpop.f32.mrb[0].mxu0
        %v5364 = vadd.f32 %v5043, %v5363
        %v5365 = vpop.f32.mrb[0].mxu0
        %5366 = vmatprep.mubr.f32.mxu0 0.0
        %5367 = vmatmul.mubr.f32.gmra.mrb[0].mxu0 %v5147
        %v5368 = vpop.f32.mrb[0].mxu0
        %v5369 = vadd.f32 %v5048, %v5368
        %v5370 = vpop.f32.mrb[0].mxu0
        %5371 = vmatprep.mubr.f32.mxu0 0.0
        %5372 = vmatmul.mubr.f32.gmra.mrb[0].mxu0 %v5150
        %v5373 = vpop.f32.mrb[0].mxu0
        %v5374 = vadd.f32 %v5053, %v5373
        %v5375 = vpop.f32.mrb[0].mxu0
        %5376 = vdwg.mxu0
        %v5377 = vld [vmem:[#allocation2 + $0x2] sm:$0xff]
        %v5378 = vld [vmem:[#allocation2 + $0xa] sm:$0xff]
        %v5379 = vld [vmem:[#allocation2 + $0x1a] sm:$0xff]
        %v5380 = vld [vmem:[#allocation2 + $0x22] sm:$0xff]
        %v5381 = vld [vmem:[#allocation2 + $0x32] sm:$0xff]
        %v5382 = vld [vmem:[#allocation2 + $0x3a] sm:$0xff]
        %v5383 = vld [vmem:[#allocation2 + $0x4a] sm:$0xff]
        %v5384 = vld [vmem:[#allocation2 + $0x52] sm:$0xff]
        %v5385 = vld [vmem:[#allocation2 + $0x62] sm:$0xff]
        %v5386 = vld [vmem:[#allocation2 + $0x6a] sm:$0xff]
        %v5387 = vld [vmem:[#allocation2 + $0x7a] sm:$0xff]
        %v5388 = vld [vmem:[#allocation2 + $0x82] sm:$0xff]
        %v5389 = vld [vmem:[#allocation2 + $0x92] sm:$0xff]
        %v5390 = vld [vmem:[#allocation2 + $0x9a] sm:$0xff]
        %v5391 = vld [vmem:[#allocation2 + $0xaa] sm:$0xff]
        %v5392 = vld [vmem:[#allocation2 + $0xb2] sm:$0xff]
        %v5393 = vld [vmem:[#allocation2 + $0xc2] sm:$0xff]
        %v5394 = vld [vmem:[#allocation2 + $0xca] sm:$0xff]
        %v5395 = vld [vmem:[#allocation2 + $0xda] sm:$0xff]
        %v5396 = vld [vmem:[#allocation2 + $0xe2] sm:$0xff]
        %v5397 = vld [vmem:[#allocation2 + $0xf2] sm:$0xff]
        %v5398 = vld [vmem:[#allocation2 + $0xfa] sm:$0xff]
        %v5399 = vld [vmem:[#allocation2 + $0x10a] sm:$0xff]
        %v5400 = vld [vmem:[#allocation2 + $0x112] sm:$0xff]
        %v5401 = vld [vmem:[#allocation2 + $0x122] sm:$0xff]
        %v5402 = vld [vmem:[#allocation2 + $0x12a] sm:$0xff]
        %v5403 = vld [vmem:[#allocation2 + $0x13a] sm:$0xff]
        %v5404 = vld [vmem:[#allocation2 + $0x142] sm:$0xff]
        %v5405 = vld [vmem:[#allocation2 + $0x152] sm:$0xff]
        %v5406 = vld [vmem:[#allocation2 + $0x15a] sm:$0xff]
        %v5407 = vld [vmem:[#allocation2 + $0x16a] sm:$0xff]
        %v5408 = vld [vmem:[#allocation2 + $0x172] sm:$0xff]
        %s5409 = scalar_lea.vmem %s3, 88
        %v5410 = vld [vmem:[%s5409] sm:$0xff]
        %v5412 = vsel %vm864, %v5377, 0
        %v5415 = vsel %vm864, %v5378, 0
        %v5418 = vsel %vm864, %v5379, 0
        %v5421 = vsel %vm864, %v5380, 0
        %v5424 = vsel %vm864, %v5381, 0
        %v5427 = vsel %vm864, %v5382, 0
        %v5430 = vsel %vm864, %v5383, 0
        %v5433 = vsel %vm864, %v5384, 0
        %v5436 = vsel %vm864, %v5385, 0
        %v5439 = vsel %vm864, %v5386, 0
        %v5442 = vsel %vm864, %v5387, 0
        %v5445 = vsel %vm864, %v5388, 0
        %v5448 = vsel %vm864, %v5389, 0
        %v5451 = vsel %vm864, %v5390, 0
        %v5454 = vsel %vm864, %v5391, 0
        %v5457 = vsel %vm864, %v5392, 0
        %v5460 = vsel %vm864, %v5393, 0
        %v5463 = vsel %vm864, %v5394, 0
        %v5466 = vsel %vm864, %v5395, 0
        %v5469 = vsel %vm864, %v5396, 0
        %v5472 = vsel %vm864, %v5397, 0
        %v5475 = vsel %vm864, %v5398, 0
        %v5478 = vsel %vm864, %v5399, 0
        %v5481 = vsel %vm864, %v5400, 0
        %v5484 = vsel %vm864, %v5401, 0
        %v5487 = vsel %vm864, %v5402, 0
        %v5490 = vsel %vm864, %v5403, 0
        %v5493 = vsel %vm864, %v5404, 0
        %v5496 = vsel %vm864, %v5405, 0
        %v5499 = vsel %vm864, %v5406, 0
        %v5502 = vsel %vm864, %v5407, 0
        %v5505 = vsel %vm864, %v5408, 0
        %5507 = vmatprep.subr.mxu0 0.0
        %5508 = vmatpush1.msra.mxu0 %v5410
        %5509 = vmatprep.subr.mxu0 0.0
        %5510 = vmatpush1.msra.mxu0 0.0
        %5511 = vmatprep.subr.mxu0 0.0
        %5512 = vmatpush1.msra.mxu0 0.0
        %5513 = vmatprep.subr.mxu0 0.0
        %5514 = vmatpush1.msra.mxu0 0.0
        %5515 = vmatprep.subr.mxu0 0.0
        %5516 = vmatpush1.msra.mxu0 0.0
        %5517 = vmatprep.subr.mxu0 0.0
        %5518 = vmatpush1.msra.mxu0 0.0
        %5519 = vmatprep.subr.mxu0 0.0
        %5520 = vmatpush1.msra.mxu0 0.0
        %5521 = vmatprep.subr.mxu0 0.0
        %5522 = vmatpush1.msra.mxu0 0.0
        %5523 = vmatprep.subr.mxu0 0.0
        %5524 = vmatpush1.msra.mxu0 0.0
        %5525 = vmatprep.subr.mxu0 0.0
        %5526 = vmatpush1.msra.mxu0 0.0
        %5527 = vmatprep.subr.mxu0 0.0
        %5528 = vmatpush1.msra.mxu0 0.0
        %5529 = vmatprep.subr.mxu0 0.0
        %5530 = vmatpush1.msra.mxu0 0.0
        %5531 = vmatprep.subr.mxu0 0.0
        %5532 = vmatpush1.msra.mxu0 0.0
        %5533 = vmatprep.subr.mxu0 0.0
        %5534 = vmatpush1.msra.mxu0 0.0
        %5535 = vmatprep.subr.mxu0 0.0
        %5536 = vmatpush1.msra.mxu0 0.0
        %5537 = vmatprep.subr.mxu0 0.0
        %5538 = vmatpush1.msra.mxu0 0.0
        %5539 = vmatprep.subr.mxu0 0.0
        %5540 = vmatpush1.msra.mxu0 0.0
        %5541 = vmatprep.subr.mxu0 0.0
        %5542 = vmatpush1.msra.mxu0 0.0
        %5543 = vmatprep.subr.mxu0 0.0
        %5544 = vmatpush1.msra.mxu0 0.0
        %5545 = vmatprep.subr.mxu0 0.0
        %5546 = vmatpush1.msra.mxu0 0.0
        %5547 = vmatprep.subr.mxu0 0.0
        %5548 = vmatpush1.msra.mxu0 0.0
        %5549 = vmatprep.subr.mxu0 0.0
        %5550 = vmatpush1.msra.mxu0 0.0
        %5551 = vmatprep.subr.mxu0 0.0
        %5552 = vmatpush1.msra.mxu0 0.0
        %5553 = vmatprep.subr.mxu0 0.0
        %5554 = vmatpush1.msra.mxu0 0.0
        %5555 = vmatprep.subr.mxu0 0.0
        %5556 = vmatpush1.msra.mxu0 0.0
        %5557 = vmatprep.subr.mxu0 0.0
        %5558 = vmatpush1.msra.mxu0 0.0
        %5559 = vmatprep.subr.mxu0 0.0
        %5560 = vmatpush1.msra.mxu0 0.0
        %5561 = vmatprep.subr.mxu0 0.0
        %5562 = vmatpush1.msra.mxu0 0.0
        %5563 = vmatprep.subr.mxu0 0.0
        %5564 = vmatpush1.msra.mxu0 0.0
        %5565 = vmatprep.subr.mxu0 0.0
        %5566 = vmatpush1.msra.mxu0 0.0
        %5567 = vmatprep.subr.mxu0 0.0
        %5568 = vmatpush1.msra.mxu0 0.0
        %5569 = vmatprep.subr.mxu0 0.0
        %5570 = vmatpush1.msra.mxu0 0.0
        %5571 = vmatprep.mubr.f32.mxu0 0.0
        %5572 = vmatmul.mubr.f32.gmra.mrb[0].mxu0 %v5412
        %v5573 = vpop.f32.mrb[0].mxu0
        %v5574 = vadd.f32 0.0, %v5573
        %v5575 = vpop.f32.mrb[0].mxu0
        %5576 = vmatprep.mubr.f32.mxu0 0.0
        %5577 = vmatmul.mubr.f32.gmra.mrb[0].mxu0 %v5415
        %v5578 = vpop.f32.mrb[0].mxu0
        %v5579 = vadd.f32 0.0, %v5578
        %v5580 = vpop.f32.mrb[0].mxu0
        %5581 = vmatprep.mubr.f32.mxu0 0.0
        %5582 = vmatmul.mubr.f32.gmra.mrb[0].mxu0 %v5418
        %v5583 = vpop.f32.mrb[0].mxu0
        %v5584 = vadd.f32 0.0, %v5583
        %v5585 = vpop.f32.mrb[0].mxu0
        %5586 = vmatprep.mubr.f32.mxu0 0.0
        %5587 = vmatmul.mubr.f32.gmra.mrb[0].mxu0 %v5421
        %v5588 = vpop.f32.mrb[0].mxu0
        %v5589 = vadd.f32 0.0, %v5588
        %v5590 = vpop.f32.mrb[0].mxu0
        %5591 = vmatprep.mubr.f32.mxu0 0.0
        %5592 = vmatmul.mubr.f32.gmra.mrb[0].mxu0 %v5424
        %v5593 = vpop.f32.mrb[0].mxu0
        %v5594 = vadd.f32 0.0, %v5593
        %v5595 = vpop.f32.mrb[0].mxu0
        %5596 = vmatprep.mubr.f32.mxu0 0.0
        %5597 = vmatmul.mubr.f32.gmra.mrb[0].mxu0 %v5427
        %v5598 = vpop.f32.mrb[0].mxu0
        %v5599 = vadd.f32 0.0, %v5598
        %v5600 = vpop.f32.mrb[0].mxu0
        %5601 = vmatprep.mubr.f32.mxu0 0.0
        %5602 = vmatmul.mubr.f32.gmra.mrb[0].mxu0 %v5430
        %v5603 = vpop.f32.mrb[0].mxu0
        %v5604 = vadd.f32 0.0, %v5603
        %v5605 = vpop.f32.mrb[0].mxu0
        %5606 = vmatprep.mubr.f32.mxu0 0.0
        %5607 = vmatmul.mubr.f32.gmra.mrb[0].mxu0 %v5433
        %v5608 = vpop.f32.mrb[0].mxu0
        %v5609 = vadd.f32 0.0, %v5608
        %v5610 = vpop.f32.mrb[0].mxu0
        %5611 = vmatprep.mubr.f32.mxu0 0.0
        %5612 = vmatmul.mubr.f32.gmra.mrb[0].mxu0 %v5436
        %v5613 = vpop.f32.mrb[0].mxu0
        %v5614 = vadd.f32 0.0, %v5613
        %v5615 = vpop.f32.mrb[0].mxu0
        %5616 = vmatprep.mubr.f32.mxu0 0.0
        %5617 = vmatmul.mubr.f32.gmra.mrb[0].mxu0 %v5439
        %v5618 = vpop.f32.mrb[0].mxu0
        %v5619 = vadd.f32 0.0, %v5618
        %v5620 = vpop.f32.mrb[0].mxu0
        %5621 = vmatprep.mubr.f32.mxu0 0.0
        %5622 = vmatmul.mubr.f32.gmra.mrb[0].mxu0 %v5442
        %v5623 = vpop.f32.mrb[0].mxu0
        %v5624 = vadd.f32 0.0, %v5623
        %v5625 = vpop.f32.mrb[0].mxu0
        %5626 = vmatprep.mubr.f32.mxu0 0.0
        %5627 = vmatmul.mubr.f32.gmra.mrb[0].mxu0 %v5445
        %v5628 = vpop.f32.mrb[0].mxu0
        %v5629 = vadd.f32 0.0, %v5628
        %v5630 = vpop.f32.mrb[0].mxu0
        %5631 = vmatprep.mubr.f32.mxu0 0.0
        %5632 = vmatmul.mubr.f32.gmra.mrb[0].mxu0 %v5448
        %v5633 = vpop.f32.mrb[0].mxu0
        %v5634 = vadd.f32 0.0, %v5633
        %v5635 = vpop.f32.mrb[0].mxu0
        %5636 = vmatprep.mubr.f32.mxu0 0.0
        %5637 = vmatmul.mubr.f32.gmra.mrb[0].mxu0 %v5451
        %v5638 = vpop.f32.mrb[0].mxu0
        %v5639 = vadd.f32 0.0, %v5638
        %v5640 = vpop.f32.mrb[0].mxu0
        %5641 = vmatprep.mubr.f32.mxu0 0.0
        %5642 = vmatmul.mubr.f32.gmra.mrb[0].mxu0 %v5454
        %v5643 = vpop.f32.mrb[0].mxu0
        %v5644 = vadd.f32 0.0, %v5643
        %v5645 = vpop.f32.mrb[0].mxu0
        %5646 = vmatprep.mubr.f32.mxu0 0.0
        %5647 = vmatmul.mubr.f32.gmra.mrb[0].mxu0 %v5457
        %v5648 = vpop.f32.mrb[0].mxu0
        %v5649 = vadd.f32 0.0, %v5648
        %v5650 = vpop.f32.mrb[0].mxu0
        %5651 = vmatprep.mubr.f32.mxu0 0.0
        %5652 = vmatmul.mubr.f32.gmra.mrb[0].mxu0 %v5460
        %v5653 = vpop.f32.mrb[0].mxu0
        %v5654 = vadd.f32 0.0, %v5653
        %v5655 = vpop.f32.mrb[0].mxu0
        %5656 = vmatprep.mubr.f32.mxu0 0.0
        %5657 = vmatmul.mubr.f32.gmra.mrb[0].mxu0 %v5463
        %v5658 = vpop.f32.mrb[0].mxu0
        %v5659 = vadd.f32 0.0, %v5658
        %v5660 = vpop.f32.mrb[0].mxu0
        %5661 = vmatprep.mubr.f32.mxu0 0.0
        %5662 = vmatmul.mubr.f32.gmra.mrb[0].mxu0 %v5466
        %v5663 = vpop.f32.mrb[0].mxu0
        %v5664 = vadd.f32 0.0, %v5663
        %v5665 = vpop.f32.mrb[0].mxu0
        %5666 = vmatprep.mubr.f32.mxu0 0.0
        %5667 = vmatmul.mubr.f32.gmra.mrb[0].mxu0 %v5469
        %v5668 = vpop.f32.mrb[0].mxu0
        %v5669 = vadd.f32 0.0, %v5668
        %v5670 = vpop.f32.mrb[0].mxu0
        %5671 = vmatprep.mubr.f32.mxu0 0.0
        %5672 = vmatmul.mubr.f32.gmra.mrb[0].mxu0 %v5472
        %v5673 = vpop.f32.mrb[0].mxu0
        %v5674 = vadd.f32 0.0, %v5673
        %v5675 = vpop.f32.mrb[0].mxu0
        %5676 = vmatprep.mubr.f32.mxu0 0.0
        %5677 = vmatmul.mubr.f32.gmra.mrb[0].mxu0 %v5475
        %v5678 = vpop.f32.mrb[0].mxu0
        %v5679 = vadd.f32 0.0, %v5678
        %v5680 = vpop.f32.mrb[0].mxu0
        %5681 = vmatprep.mubr.f32.mxu0 0.0
        %5682 = vmatmul.mubr.f32.gmra.mrb[0].mxu0 %v5478
        %v5683 = vpop.f32.mrb[0].mxu0
        %v5684 = vadd.f32 0.0, %v5683
        %v5685 = vpop.f32.mrb[0].mxu0
        %5686 = vmatprep.mubr.f32.mxu0 0.0
        %5687 = vmatmul.mubr.f32.gmra.mrb[0].mxu0 %v5481
        %v5688 = vpop.f32.mrb[0].mxu0
        %v5689 = vadd.f32 0.0, %v5688
        %v5690 = vpop.f32.mrb[0].mxu0
        %5691 = vmatprep.mubr.f32.mxu0 0.0
        %5692 = vmatmul.mubr.f32.gmra.mrb[0].mxu0 %v5484
        %v5693 = vpop.f32.mrb[0].mxu0
        %v5694 = vadd.f32 0.0, %v5693
        %v5695 = vpop.f32.mrb[0].mxu0
        %5696 = vmatprep.mubr.f32.mxu0 0.0
        %5697 = vmatmul.mubr.f32.gmra.mrb[0].mxu0 %v5487
        %v5698 = vpop.f32.mrb[0].mxu0
        %v5699 = vadd.f32 0.0, %v5698
        %v5700 = vpop.f32.mrb[0].mxu0
        %5701 = vmatprep.mubr.f32.mxu0 0.0
        %5702 = vmatmul.mubr.f32.gmra.mrb[0].mxu0 %v5490
        %v5703 = vpop.f32.mrb[0].mxu0
        %v5704 = vadd.f32 0.0, %v5703
        %v5705 = vpop.f32.mrb[0].mxu0
        %5706 = vmatprep.mubr.f32.mxu0 0.0
        %5707 = vmatmul.mubr.f32.gmra.mrb[0].mxu0 %v5493
        %v5708 = vpop.f32.mrb[0].mxu0
        %v5709 = vadd.f32 0.0, %v5708
        %v5710 = vpop.f32.mrb[0].mxu0
        %5711 = vmatprep.mubr.f32.mxu0 0.0
        %5712 = vmatmul.mubr.f32.gmra.mrb[0].mxu0 %v5496
        %v5713 = vpop.f32.mrb[0].mxu0
        %v5714 = vadd.f32 0.0, %v5713
        %v5715 = vpop.f32.mrb[0].mxu0
        %5716 = vmatprep.mubr.f32.mxu0 0.0
        %5717 = vmatmul.mubr.f32.gmra.mrb[0].mxu0 %v5499
        %v5718 = vpop.f32.mrb[0].mxu0
        %v5719 = vadd.f32 0.0, %v5718
        %v5720 = vpop.f32.mrb[0].mxu0
        %5721 = vmatprep.mubr.f32.mxu0 0.0
        %5722 = vmatmul.mubr.f32.gmra.mrb[0].mxu0 %v5502
        %v5723 = vpop.f32.mrb[0].mxu0
        %v5724 = vadd.f32 0.0, %v5723
        %v5725 = vpop.f32.mrb[0].mxu0
        %5726 = vmatprep.mubr.f32.mxu0 0.0
        %5727 = vmatmul.mubr.f32.gmra.mrb[0].mxu0 %v5505
        %v5728 = vpop.f32.mrb[0].mxu0
        %v5729 = vadd.f32 0.0, %v5728
        %v5730 = vpop.f32.mrb[0].mxu0
        %5731 = vdwg.mxu0
        %v5732 = vadd.f32 %v5219, %v5574
        %v5733 = vadd.f32 %v5224, %v5579
        %v5734 = vadd.f32 %v5229, %v5584
        %v5735 = vadd.f32 %v5234, %v5589
        %v5736 = vadd.f32 %v5239, %v5594
        %v5737 = vadd.f32 %v5244, %v5599
        %v5738 = vadd.f32 %v5249, %v5604
        %v5739 = vadd.f32 %v5254, %v5609
        %v5740 = vadd.f32 %v5259, %v5614
        %v5741 = vadd.f32 %v5264, %v5619
        %v5742 = vadd.f32 %v5269, %v5624
        %v5743 = vadd.f32 %v5274, %v5629
        %v5744 = vadd.f32 %v5279, %v5634
        %v5745 = vadd.f32 %v5284, %v5639
        %v5746 = vadd.f32 %v5289, %v5644
        %v5747 = vadd.f32 %v5294, %v5649
        %v5748 = vadd.f32 %v5299, %v5654
        %v5749 = vadd.f32 %v5304, %v5659
        %v5750 = vadd.f32 %v5309, %v5664
        %v5751 = vadd.f32 %v5314, %v5669
        %v5752 = vadd.f32 %v5319, %v5674
        %v5753 = vadd.f32 %v5324, %v5679
        %v5754 = vadd.f32 %v5329, %v5684
        %v5755 = vadd.f32 %v5334, %v5689
        %v5756 = vadd.f32 %v5339, %v5694
        %v5757 = vadd.f32 %v5344, %v5699
        %v5758 = vadd.f32 %v5349, %v5704
        %v5759 = vadd.f32 %v5354, %v5709
        %v5760 = vadd.f32 %v5359, %v5714
        %v5761 = vadd.f32 %v5364, %v5719
        %v5762 = vadd.f32 %v5369, %v5724
        %v5763 = vadd.f32 %v5374, %v5729
        %v5764 = vld [vmem:[%s920] sm:$0xff]
        %v5765 = vld [vmem:[%s920 + $0x8] sm:$0xff]
        %v5766 = vld [vmem:[%s920 + $0x18] sm:$0xff]
        %v5767 = vld [vmem:[%s920 + $0x20] sm:$0xff]
        %v5768 = vld [vmem:[%s920 + $0x30] sm:$0xff]
        %v5769 = vld [vmem:[%s920 + $0x38] sm:$0xff]
        %v5770 = vld [vmem:[%s920 + $0x48] sm:$0xff]
        %v5771 = vld [vmem:[%s920 + $0x50] sm:$0xff]
        %v5772 = vld [vmem:[%s920 + $0x60] sm:$0xff]
        %v5773 = vld [vmem:[%s920 + $0x68] sm:$0xff]
        %v5774 = vld [vmem:[%s920 + $0x78] sm:$0xff]
        %v5775 = vld [vmem:[%s920 + $0x80] sm:$0xff]
        %v5776 = vld [vmem:[%s920 + $0x90] sm:$0xff]
        %v5777 = vld [vmem:[%s920 + $0x98] sm:$0xff]
        %v5778 = vld [vmem:[%s920 + $0xa8] sm:$0xff]
        %v5779 = vld [vmem:[%s920 + $0xb0] sm:$0xff]
        %v5780 = vld [vmem:[%s920 + $0xc0] sm:$0xff]
        %v5781 = vld [vmem:[%s920 + $0xc8] sm:$0xff]
        %v5782 = vld [vmem:[%s920 + $0xd8] sm:$0xff]
        %v5783 = vld [vmem:[%s920 + $0xe0] sm:$0xff]
        %v5784 = vld [vmem:[%s920 + $0xf0] sm:$0xff]
        %v5785 = vld [vmem:[%s920 + $0xf8] sm:$0xff]
        %v5786 = vld [vmem:[%s920 + $0x108] sm:$0xff]
        %v5787 = vld [vmem:[%s920 + $0x110] sm:$0xff]
        %v5788 = vld [vmem:[%s920 + $0x120] sm:$0xff]
        %v5789 = vld [vmem:[%s920 + $0x128] sm:$0xff]
        %v5790 = vld [vmem:[%s920 + $0x138] sm:$0xff]
        %v5791 = vld [vmem:[%s920 + $0x140] sm:$0xff]
        %v5792 = vld [vmem:[%s920 + $0x150] sm:$0xff]
        %v5793 = vld [vmem:[%s920 + $0x158] sm:$0xff]
        %v5794 = vld [vmem:[%s920 + $0x168] sm:$0xff]
        %v5795 = vld [vmem:[%s920 + $0x170] sm:$0xff]
        %s5796 = scalar_lea.vmem %s3, 96
        %v5797 = vld [vmem:[%s5796] sm:$0xff]
        %v5799 = vsel %vm864, %v5764, 0
        %v5802 = vsel %vm864, %v5765, 0
        %v5805 = vsel %vm864, %v5766, 0
        %v5808 = vsel %vm864, %v5767, 0
        %v5811 = vsel %vm864, %v5768, 0
        %v5814 = vsel %vm864, %v5769, 0
        %v5817 = vsel %vm864, %v5770, 0
        %v5820 = vsel %vm864, %v5771, 0
        %v5823 = vsel %vm864, %v5772, 0
        %v5826 = vsel %vm864, %v5773, 0
        %v5829 = vsel %vm864, %v5774, 0
        %v5832 = vsel %vm864, %v5775, 0
        %v5835 = vsel %vm864, %v5776, 0
        %v5838 = vsel %vm864, %v5777, 0
        %v5841 = vsel %vm864, %v5778, 0
        %v5844 = vsel %vm864, %v5779, 0
        %v5847 = vsel %vm864, %v5780, 0
        %v5850 = vsel %vm864, %v5781, 0
        %v5853 = vsel %vm864, %v5782, 0
        %v5856 = vsel %vm864, %v5783, 0
        %v5859 = vsel %vm864, %v5784, 0
        %v5862 = vsel %vm864, %v5785, 0
        %v5865 = vsel %vm864, %v5786, 0
        %v5868 = vsel %vm864, %v5787, 0
        %v5871 = vsel %vm864, %v5788, 0
        %v5874 = vsel %vm864, %v5789, 0
        %v5877 = vsel %vm864, %v5790, 0
        %v5880 = vsel %vm864, %v5791, 0
        %v5883 = vsel %vm864, %v5792, 0
        %v5886 = vsel %vm864, %v5793, 0
        %v5889 = vsel %vm864, %v5794, 0
        %v5892 = vsel %vm864, %v5795, 0
        %5894 = vmatprep.subr.mxu0 0.0
        %5895 = vmatpush1.msra.mxu0 %v5797
        %5896 = vmatprep.subr.mxu0 0.0
        %5897 = vmatpush1.msra.mxu0 0.0
        %5898 = vmatprep.subr.mxu0 0.0
        %5899 = vmatpush1.msra.mxu0 0.0
        %5900 = vmatprep.subr.mxu0 0.0
        %5901 = vmatpush1.msra.mxu0 0.0
        %5902 = vmatprep.subr.mxu0 0.0
        %5903 = vmatpush1.msra.mxu0 0.0
        %5904 = vmatprep.subr.mxu0 0.0
        %5905 = vmatpush1.msra.mxu0 0.0
        %5906 = vmatprep.subr.mxu0 0.0
        %5907 = vmatpush1.msra.mxu0 0.0
        %5908 = vmatprep.subr.mxu0 0.0
        %5909 = vmatpush1.msra.mxu0 0.0
        %5910 = vmatprep.subr.mxu0 0.0
        %5911 = vmatpush1.msra.mxu0 0.0
        %5912 = vmatprep.subr.mxu0 0.0
        %5913 = vmatpush1.msra.mxu0 0.0
        %5914 = vmatprep.subr.mxu0 0.0
        %5915 = vmatpush1.msra.mxu0 0.0
        %5916 = vmatprep.subr.mxu0 0.0
        %5917 = vmatpush1.msra.mxu0 0.0
        %5918 = vmatprep.subr.mxu0 0.0
        %5919 = vmatpush1.msra.mxu0 0.0
        %5920 = vmatprep.subr.mxu0 0.0
        %5921 = vmatpush1.msra.mxu0 0.0
        %5922 = vmatprep.subr.mxu0 0.0
        %5923 = vmatpush1.msra.mxu0 0.0
        %5924 = vmatprep.subr.mxu0 0.0
        %5925 = vmatpush1.msra.mxu0 0.0
        %5926 = vmatprep.subr.mxu0 0.0
        %5927 = vmatpush1.msra.mxu0 0.0
        %5928 = vmatprep.subr.mxu0 0.0
        %5929 = vmatpush1.msra.mxu0 0.0
        %5930 = vmatprep.subr.mxu0 0.0
        %5931 = vmatpush1.msra.mxu0 0.0
        %5932 = vmatprep.subr.mxu0 0.0
        %5933 = vmatpush1.msra.mxu0 0.0
        %5934 = vmatprep.subr.mxu0 0.0
        %5935 = vmatpush1.msra.mxu0 0.0
        %5936 = vmatprep.subr.mxu0 0.0
        %5937 = vmatpush1.msra.mxu0 0.0
        %5938 = vmatprep.subr.mxu0 0.0
        %5939 = vmatpush1.msra.mxu0 0.0
        %5940 = vmatprep.subr.mxu0 0.0
        %5941 = vmatpush1.msra.mxu0 0.0
        %5942 = vmatprep.subr.mxu0 0.0
        %5943 = vmatpush1.msra.mxu0 0.0
        %5944 = vmatprep.subr.mxu0 0.0
        %5945 = vmatpush1.msra.mxu0 0.0
        %5946 = vmatprep.subr.mxu0 0.0
        %5947 = vmatpush1.msra.mxu0 0.0
        %5948 = vmatprep.subr.mxu0 0.0
        %5949 = vmatpush1.msra.mxu0 0.0
        %5950 = vmatprep.subr.mxu0 0.0
        %5951 = vmatpush1.msra.mxu0 0.0
        %5952 = vmatprep.subr.mxu0 0.0
        %5953 = vmatpush1.msra.mxu0 0.0
        %5954 = vmatprep.subr.mxu0 0.0
        %5955 = vmatpush1.msra.mxu0 0.0
        %5956 = vmatprep.subr.mxu0 0.0
        %5957 = vmatpush1.msra.mxu0 0.0
        %5958 = vmatprep.mubr.f32.mxu0 0.0
        %5959 = vmatmul.mubr.f32.gmra.mrb[0].mxu0 %v5799
        %v5960 = vpop.f32.mrb[0].mxu0
        %v5961 = vadd.f32 0.0, %v5960
        %v5962 = vpop.f32.mrb[0].mxu0
        %5963 = vmatprep.mubr.f32.mxu0 0.0
        %5964 = vmatmul.mubr.f32.gmra.mrb[0].mxu0 %v5802
        %v5965 = vpop.f32.mrb[0].mxu0
        %v5966 = vadd.f32 0.0, %v5965
        %v5967 = vpop.f32.mrb[0].mxu0
        %5968 = vmatprep.mubr.f32.mxu0 0.0
        %5969 = vmatmul.mubr.f32.gmra.mrb[0].mxu0 %v5805
        %v5970 = vpop.f32.mrb[0].mxu0
        %v5971 = vadd.f32 0.0, %v5970
        %v5972 = vpop.f32.mrb[0].mxu0
        %5973 = vmatprep.mubr.f32.mxu0 0.0
        %5974 = vmatmul.mubr.f32.gmra.mrb[0].mxu0 %v5808
        %v5975 = vpop.f32.mrb[0].mxu0
        %v5976 = vadd.f32 0.0, %v5975
        %v5977 = vpop.f32.mrb[0].mxu0
        %5978 = vmatprep.mubr.f32.mxu0 0.0
        %5979 = vmatmul.mubr.f32.gmra.mrb[0].mxu0 %v5811
        %v5980 = vpop.f32.mrb[0].mxu0
        %v5981 = vadd.f32 0.0, %v5980
        %v5982 = vpop.f32.mrb[0].mxu0
        %5983 = vmatprep.mubr.f32.mxu0 0.0
        %5984 = vmatmul.mubr.f32.gmra.mrb[0].mxu0 %v5814
        %v5985 = vpop.f32.mrb[0].mxu0
        %v5986 = vadd.f32 0.0, %v5985
        %v5987 = vpop.f32.mrb[0].mxu0
        %5988 = vmatprep.mubr.f32.mxu0 0.0
        %5989 = vmatmul.mubr.f32.gmra.mrb[0].mxu0 %v5817
        %v5990 = vpop.f32.mrb[0].mxu0
        %v5991 = vadd.f32 0.0, %v5990
        %v5992 = vpop.f32.mrb[0].mxu0
        %5993 = vmatprep.mubr.f32.mxu0 0.0
        %5994 = vmatmul.mubr.f32.gmra.mrb[0].mxu0 %v5820
        %v5995 = vpop.f32.mrb[0].mxu0
        %v5996 = vadd.f32 0.0, %v5995
        %v5997 = vpop.f32.mrb[0].mxu0
        %5998 = vmatprep.mubr.f32.mxu0 0.0
        %5999 = vmatmul.mubr.f32.gmra.mrb[0].mxu0 %v5823
        %v6000 = vpop.f32.mrb[0].mxu0
        %v6001 = vadd.f32 0.0, %v6000
        %v6002 = vpop.f32.mrb[0].mxu0
        %6003 = vmatprep.mubr.f32.mxu0 0.0
        %6004 = vmatmul.mubr.f32.gmra.mrb[0].mxu0 %v5826
        %v6005 = vpop.f32.mrb[0].mxu0
        %v6006 = vadd.f32 0.0, %v6005
        %v6007 = vpop.f32.mrb[0].mxu0
        %6008 = vmatprep.mubr.f32.mxu0 0.0
        %6009 = vmatmul.mubr.f32.gmra.mrb[0].mxu0 %v5829
        %v6010 = vpop.f32.mrb[0].mxu0
        %v6011 = vadd.f32 0.0, %v6010
        %v6012 = vpop.f32.mrb[0].mxu0
        %6013 = vmatprep.mubr.f32.mxu0 0.0
        %6014 = vmatmul.mubr.f32.gmra.mrb[0].mxu0 %v5832
        %v6015 = vpop.f32.mrb[0].mxu0
        %v6016 = vadd.f32 0.0, %v6015
        %v6017 = vpop.f32.mrb[0].mxu0
        %6018 = vmatprep.mubr.f32.mxu0 0.0
        %6019 = vmatmul.mubr.f32.gmra.mrb[0].mxu0 %v5835
        %v6020 = vpop.f32.mrb[0].mxu0
        %v6021 = vadd.f32 0.0, %v6020
        %v6022 = vpop.f32.mrb[0].mxu0
        %6023 = vmatprep.mubr.f32.mxu0 0.0
        %6024 = vmatmul.mubr.f32.gmra.mrb[0].mxu0 %v5838
        %v6025 = vpop.f32.mrb[0].mxu0
        %v6026 = vadd.f32 0.0, %v6025
        %v6027 = vpop.f32.mrb[0].mxu0
        %6028 = vmatprep.mubr.f32.mxu0 0.0
        %6029 = vmatmul.mubr.f32.gmra.mrb[0].mxu0 %v5841
        %v6030 = vpop.f32.mrb[0].mxu0
        %v6031 = vadd.f32 0.0, %v6030
        %v6032 = vpop.f32.mrb[0].mxu0
        %6033 = vmatprep.mubr.f32.mxu0 0.0
        %6034 = vmatmul.mubr.f32.gmra.mrb[0].mxu0 %v5844
        %v6035 = vpop.f32.mrb[0].mxu0
        %v6036 = vadd.f32 0.0, %v6035
        %v6037 = vpop.f32.mrb[0].mxu0
        %6038 = vmatprep.mubr.f32.mxu0 0.0
        %6039 = vmatmul.mubr.f32.gmra.mrb[0].mxu0 %v5847
        %v6040 = vpop.f32.mrb[0].mxu0
        %v6041 = vadd.f32 0.0, %v6040
        %v6042 = vpop.f32.mrb[0].mxu0
        %6043 = vmatprep.mubr.f32.mxu0 0.0
        %6044 = vmatmul.mubr.f32.gmra.mrb[0].mxu0 %v5850
        %v6045 = vpop.f32.mrb[0].mxu0
        %v6046 = vadd.f32 0.0, %v6045
        %v6047 = vpop.f32.mrb[0].mxu0
        %6048 = vmatprep.mubr.f32.mxu0 0.0
        %6049 = vmatmul.mubr.f32.gmra.mrb[0].mxu0 %v5853
        %v6050 = vpop.f32.mrb[0].mxu0
        %v6051 = vadd.f32 0.0, %v6050
        %v6052 = vpop.f32.mrb[0].mxu0
        %6053 = vmatprep.mubr.f32.mxu0 0.0
        %6054 = vmatmul.mubr.f32.gmra.mrb[0].mxu0 %v5856
        %v6055 = vpop.f32.mrb[0].mxu0
        %v6056 = vadd.f32 0.0, %v6055
        %v6057 = vpop.f32.mrb[0].mxu0
        %6058 = vmatprep.mubr.f32.mxu0 0.0
        %6059 = vmatmul.mubr.f32.gmra.mrb[0].mxu0 %v5859
        %v6060 = vpop.f32.mrb[0].mxu0
        %v6061 = vadd.f32 0.0, %v6060
        %v6062 = vpop.f32.mrb[0].mxu0
        %6063 = vmatprep.mubr.f32.mxu0 0.0
        %6064 = vmatmul.mubr.f32.gmra.mrb[0].mxu0 %v5862
        %v6065 = vpop.f32.mrb[0].mxu0
        %v6066 = vadd.f32 0.0, %v6065
        %v6067 = vpop.f32.mrb[0].mxu0
        %6068 = vmatprep.mubr.f32.mxu0 0.0
        %6069 = vmatmul.mubr.f32.gmra.mrb[0].mxu0 %v5865
        %v6070 = vpop.f32.mrb[0].mxu0
        %v6071 = vadd.f32 0.0, %v6070
        %v6072 = vpop.f32.mrb[0].mxu0
        %6073 = vmatprep.mubr.f32.mxu0 0.0
        %6074 = vmatmul.mubr.f32.gmra.mrb[0].mxu0 %v5868
        %v6075 = vpop.f32.mrb[0].mxu0
        %v6076 = vadd.f32 0.0, %v6075
        %v6077 = vpop.f32.mrb[0].mxu0
        %6078 = vmatprep.mubr.f32.mxu0 0.0
        %6079 = vmatmul.mubr.f32.gmra.mrb[0].mxu0 %v5871
        %v6080 = vpop.f32.mrb[0].mxu0
        %v6081 = vadd.f32 0.0, %v6080
        %v6082 = vpop.f32.mrb[0].mxu0
        %6083 = vmatprep.mubr.f32.mxu0 0.0
        %6084 = vmatmul.mubr.f32.gmra.mrb[0].mxu0 %v5874
        %v6085 = vpop.f32.mrb[0].mxu0
        %v6086 = vadd.f32 0.0, %v6085
        %v6087 = vpop.f32.mrb[0].mxu0
        %6088 = vmatprep.mubr.f32.mxu0 0.0
        %6089 = vmatmul.mubr.f32.gmra.mrb[0].mxu0 %v5877
        %v6090 = vpop.f32.mrb[0].mxu0
        %v6091 = vadd.f32 0.0, %v6090
        %v6092 = vpop.f32.mrb[0].mxu0
        %6093 = vmatprep.mubr.f32.mxu0 0.0
        %6094 = vmatmul.mubr.f32.gmra.mrb[0].mxu0 %v5880
        %v6095 = vpop.f32.mrb[0].mxu0
        %v6096 = vadd.f32 0.0, %v6095
        %v6097 = vpop.f32.mrb[0].mxu0
        %6098 = vmatprep.mubr.f32.mxu0 0.0
        %6099 = vmatmul.mubr.f32.gmra.mrb[0].mxu0 %v5883
        %v6100 = vpop.f32.mrb[0].mxu0
        %v6101 = vadd.f32 0.0, %v6100
        %v6102 = vpop.f32.mrb[0].mxu0
        %6103 = vmatprep.mubr.f32.mxu0 0.0
        %6104 = vmatmul.mubr.f32.gmra.mrb[0].mxu0 %v5886
        %v6105 = vpop.f32.mrb[0].mxu0
        %v6106 = vadd.f32 0.0, %v6105
        %v6107 = vpop.f32.mrb[0].mxu0
        %6108 = vmatprep.mubr.f32.mxu0 0.0
        %6109 = vmatmul.mubr.f32.gmra.mrb[0].mxu0 %v5889
        %v6110 = vpop.f32.mrb[0].mxu0
        %v6111 = vadd.f32 0.0, %v6110
        %v6112 = vpop.f32.mrb[0].mxu0
        %6113 = vmatprep.mubr.f32.mxu0 0.0
        %6114 = vmatmul.mubr.f32.gmra.mrb[0].mxu0 %v5892
        %v6115 = vpop.f32.mrb[0].mxu0
        %v6116 = vadd.f32 0.0, %v6115
        %v6117 = vpop.f32.mrb[0].mxu0
        %6118 = vdwg.mxu0
        %v6119 = vadd.f32 %v5732, %v5961
        %v6120 = vadd.f32 %v5733, %v5966
        %v6121 = vadd.f32 %v5734, %v5971
        %v6122 = vadd.f32 %v5735, %v5976
        %v6123 = vadd.f32 %v5736, %v5981
        %v6124 = vadd.f32 %v5737, %v5986
        %v6125 = vadd.f32 %v5738, %v5991
        %v6126 = vadd.f32 %v5739, %v5996
        %v6127 = vadd.f32 %v5740, %v6001
        %v6128 = vadd.f32 %v5741, %v6006
        %v6129 = vadd.f32 %v5742, %v6011
        %v6130 = vadd.f32 %v5743, %v6016
        %v6131 = vadd.f32 %v5744, %v6021
        %v6132 = vadd.f32 %v5745, %v6026
        %v6133 = vadd.f32 %v5746, %v6031
        %v6134 = vadd.f32 %v5747, %v6036
        %v6135 = vadd.f32 %v5748, %v6041
        %v6136 = vadd.f32 %v5749, %v6046
        %v6137 = vadd.f32 %v5750, %v6051
        %v6138 = vadd.f32 %v5751, %v6056
        %v6139 = vadd.f32 %v5752, %v6061
        %v6140 = vadd.f32 %v5753, %v6066
        %v6141 = vadd.f32 %v5754, %v6071
        %v6142 = vadd.f32 %v5755, %v6076
        %v6143 = vadd.f32 %v5756, %v6081
        %v6144 = vadd.f32 %v5757, %v6086
        %v6145 = vadd.f32 %v5758, %v6091
        %v6146 = vadd.f32 %v5759, %v6096
        %v6147 = vadd.f32 %v5760, %v6101
        %v6148 = vadd.f32 %v5761, %v6106
        %v6149 = vadd.f32 %v5762, %v6111
        %v6150 = vadd.f32 %v5763, %v6116
        %v6151 = vld [vmem:[%s920 + $0x1] sm:$0xff]
        %v6152 = vld [vmem:[%s920 + $0x9] sm:$0xff]
        %v6153 = vld [vmem:[%s920 + $0x19] sm:$0xff]
        %v6154 = vld [vmem:[%s920 + $0x21] sm:$0xff]
        %v6155 = vld [vmem:[%s920 + $0x31] sm:$0xff]
        %v6156 = vld [vmem:[%s920 + $0x39] sm:$0xff]
        %v6157 = vld [vmem:[%s920 + $0x49] sm:$0xff]
        %v6158 = vld [vmem:[%s920 + $0x51] sm:$0xff]
        %v6159 = vld [vmem:[%s920 + $0x61] sm:$0xff]
        %v6160 = vld [vmem:[%s920 + $0x69] sm:$0xff]
        %v6161 = vld [vmem:[%s920 + $0x79] sm:$0xff]
        %v6162 = vld [vmem:[%s920 + $0x81] sm:$0xff]
        %v6163 = vld [vmem:[%s920 + $0x91] sm:$0xff]
        %v6164 = vld [vmem:[%s920 + $0x99] sm:$0xff]
        %v6165 = vld [vmem:[%s920 + $0xa9] sm:$0xff]
        %v6166 = vld [vmem:[%s920 + $0xb1] sm:$0xff]
        %v6167 = vld [vmem:[%s920 + $0xc1] sm:$0xff]
        %v6168 = vld [vmem:[%s920 + $0xc9] sm:$0xff]
        %v6169 = vld [vmem:[%s920 + $0xd9] sm:$0xff]
        %v6170 = vld [vmem:[%s920 + $0xe1] sm:$0xff]
        %v6171 = vld [vmem:[%s920 + $0xf1] sm:$0xff]
        %v6172 = vld [vmem:[%s920 + $0xf9] sm:$0xff]
        %v6173 = vld [vmem:[%s920 + $0x109] sm:$0xff]
        %v6174 = vld [vmem:[%s920 + $0x111] sm:$0xff]
        %v6175 = vld [vmem:[%s920 + $0x121] sm:$0xff]
        %v6176 = vld [vmem:[%s920 + $0x129] sm:$0xff]
        %v6177 = vld [vmem:[%s920 + $0x139] sm:$0xff]
        %v6178 = vld [vmem:[%s920 + $0x141] sm:$0xff]
        %v6179 = vld [vmem:[%s920 + $0x151] sm:$0xff]
        %v6180 = vld [vmem:[%s920 + $0x159] sm:$0xff]
        %v6181 = vld [vmem:[%s920 + $0x169] sm:$0xff]
        %v6182 = vld [vmem:[%s920 + $0x171] sm:$0xff]
        %s6183 = scalar_lea.vmem %s3, 104
        %v6184 = vld [vmem:[%s6183] sm:$0xff]
        %v6186 = vsel %vm864, %v6151, 0
        %v6189 = vsel %vm864, %v6152, 0
        %v6192 = vsel %vm864, %v6153, 0
        %v6195 = vsel %vm864, %v6154, 0
        %v6198 = vsel %vm864, %v6155, 0
        %v6201 = vsel %vm864, %v6156, 0
        %v6204 = vsel %vm864, %v6157, 0
        %v6207 = vsel %vm864, %v6158, 0
        %v6210 = vsel %vm864, %v6159, 0
        %v6213 = vsel %vm864, %v6160, 0
        %v6216 = vsel %vm864, %v6161, 0
        %v6219 = vsel %vm864, %v6162, 0
        %v6222 = vsel %vm864, %v6163, 0
        %v6225 = vsel %vm864, %v6164, 0
        %v6228 = vsel %vm864, %v6165, 0
        %v6231 = vsel %vm864, %v6166, 0
        %v6234 = vsel %vm864, %v6167, 0
        %v6237 = vsel %vm864, %v6168, 0
        %v6240 = vsel %vm864, %v6169, 0
        %v6243 = vsel %vm864, %v6170, 0
        %v6246 = vsel %vm864, %v6171, 0
        %v6249 = vsel %vm864, %v6172, 0
        %v6252 = vsel %vm864, %v6173, 0
        %v6255 = vsel %vm864, %v6174, 0
        %v6258 = vsel %vm864, %v6175, 0
        %v6261 = vsel %vm864, %v6176, 0
        %v6264 = vsel %vm864, %v6177, 0
        %v6267 = vsel %vm864, %v6178, 0
        %v6270 = vsel %vm864, %v6179, 0
        %v6273 = vsel %vm864, %v6180, 0
        %v6276 = vsel %vm864, %v6181, 0
        %v6279 = vsel %vm864, %v6182, 0
        %6281 = vmatprep.subr.mxu0 0.0
        %6282 = vmatpush1.msra.mxu0 %v6184
        %6283 = vmatprep.subr.mxu0 0.0
        %6284 = vmatpush1.msra.mxu0 0.0
        %6285 = vmatprep.subr.mxu0 0.0
        %6286 = vmatpush1.msra.mxu0 0.0
        %6287 = vmatprep.subr.mxu0 0.0
        %6288 = vmatpush1.msra.mxu0 0.0
        %6289 = vmatprep.subr.mxu0 0.0
        %6290 = vmatpush1.msra.mxu0 0.0
        %6291 = vmatprep.subr.mxu0 0.0
        %6292 = vmatpush1.msra.mxu0 0.0
        %6293 = vmatprep.subr.mxu0 0.0
        %6294 = vmatpush1.msra.mxu0 0.0
        %6295 = vmatprep.subr.mxu0 0.0
        %6296 = vmatpush1.msra.mxu0 0.0
        %6297 = vmatprep.subr.mxu0 0.0
        %6298 = vmatpush1.msra.mxu0 0.0
        %6299 = vmatprep.subr.mxu0 0.0
        %6300 = vmatpush1.msra.mxu0 0.0
        %6301 = vmatprep.subr.mxu0 0.0
        %6302 = vmatpush1.msra.mxu0 0.0
        %6303 = vmatprep.subr.mxu0 0.0
        %6304 = vmatpush1.msra.mxu0 0.0
        %6305 = vmatprep.subr.mxu0 0.0
        %6306 = vmatpush1.msra.mxu0 0.0
        %6307 = vmatprep.subr.mxu0 0.0
        %6308 = vmatpush1.msra.mxu0 0.0
        %6309 = vmatprep.subr.mxu0 0.0
        %6310 = vmatpush1.msra.mxu0 0.0
        %6311 = vmatprep.subr.mxu0 0.0
        %6312 = vmatpush1.msra.mxu0 0.0
        %6313 = vmatprep.subr.mxu0 0.0
        %6314 = vmatpush1.msra.mxu0 0.0
        %6315 = vmatprep.subr.mxu0 0.0
        %6316 = vmatpush1.msra.mxu0 0.0
        %6317 = vmatprep.subr.mxu0 0.0
        %6318 = vmatpush1.msra.mxu0 0.0
        %6319 = vmatprep.subr.mxu0 0.0
        %6320 = vmatpush1.msra.mxu0 0.0
        %6321 = vmatprep.subr.mxu0 0.0
        %6322 = vmatpush1.msra.mxu0 0.0
        %6323 = vmatprep.subr.mxu0 0.0
        %6324 = vmatpush1.msra.mxu0 0.0
        %6325 = vmatprep.subr.mxu0 0.0
        %6326 = vmatpush1.msra.mxu0 0.0
        %6327 = vmatprep.subr.mxu0 0.0
        %6328 = vmatpush1.msra.mxu0 0.0
        %6329 = vmatprep.subr.mxu0 0.0
        %6330 = vmatpush1.msra.mxu0 0.0
        %6331 = vmatprep.subr.mxu0 0.0
        %6332 = vmatpush1.msra.mxu0 0.0
        %6333 = vmatprep.subr.mxu0 0.0
        %6334 = vmatpush1.msra.mxu0 0.0
        %6335 = vmatprep.subr.mxu0 0.0
        %6336 = vmatpush1.msra.mxu0 0.0
        %6337 = vmatprep.subr.mxu0 0.0
        %6338 = vmatpush1.msra.mxu0 0.0
        %6339 = vmatprep.subr.mxu0 0.0
        %6340 = vmatpush1.msra.mxu0 0.0
        %6341 = vmatprep.subr.mxu0 0.0
        %6342 = vmatpush1.msra.mxu0 0.0
        %6343 = vmatprep.subr.mxu0 0.0
        %6344 = vmatpush1.msra.mxu0 0.0
        %6345 = vmatprep.mubr.f32.mxu0 0.0
        %6346 = vmatmul.mubr.f32.gmra.mrb[0].mxu0 %v6186
        %v6347 = vpop.f32.mrb[0].mxu0
        %v6348 = vadd.f32 0.0, %v6347
        %v6349 = vpop.f32.mrb[0].mxu0
        %6350 = vmatprep.mubr.f32.mxu0 0.0
        %6351 = vmatmul.mubr.f32.gmra.mrb[0].mxu0 %v6189
        %v6352 = vpop.f32.mrb[0].mxu0
        %v6353 = vadd.f32 0.0, %v6352
        %v6354 = vpop.f32.mrb[0].mxu0
        %6355 = vmatprep.mubr.f32.mxu0 0.0
        %6356 = vmatmul.mubr.f32.gmra.mrb[0].mxu0 %v6192
        %v6357 = vpop.f32.mrb[0].mxu0
        %v6358 = vadd.f32 0.0, %v6357
        %v6359 = vpop.f32.mrb[0].mxu0
        %6360 = vmatprep.mubr.f32.mxu0 0.0
        %6361 = vmatmul.mubr.f32.gmra.mrb[0].mxu0 %v6195
        %v6362 = vpop.f32.mrb[0].mxu0
        %v6363 = vadd.f32 0.0, %v6362
        %v6364 = vpop.f32.mrb[0].mxu0
        %6365 = vmatprep.mubr.f32.mxu0 0.0
        %6366 = vmatmul.mubr.f32.gmra.mrb[0].mxu0 %v6198
        %v6367 = vpop.f32.mrb[0].mxu0
        %v6368 = vadd.f32 0.0, %v6367
        %v6369 = vpop.f32.mrb[0].mxu0
        %6370 = vmatprep.mubr.f32.mxu0 0.0
        %6371 = vmatmul.mubr.f32.gmra.mrb[0].mxu0 %v6201
        %v6372 = vpop.f32.mrb[0].mxu0
        %v6373 = vadd.f32 0.0, %v6372
        %v6374 = vpop.f32.mrb[0].mxu0
        %6375 = vmatprep.mubr.f32.mxu0 0.0
        %6376 = vmatmul.mubr.f32.gmra.mrb[0].mxu0 %v6204
        %v6377 = vpop.f32.mrb[0].mxu0
        %v6378 = vadd.f32 0.0, %v6377
        %v6379 = vpop.f32.mrb[0].mxu0
        %6380 = vmatprep.mubr.f32.mxu0 0.0
        %6381 = vmatmul.mubr.f32.gmra.mrb[0].mxu0 %v6207
        %v6382 = vpop.f32.mrb[0].mxu0
        %v6383 = vadd.f32 0.0, %v6382
        %v6384 = vpop.f32.mrb[0].mxu0
        %6385 = vmatprep.mubr.f32.mxu0 0.0
        %6386 = vmatmul.mubr.f32.gmra.mrb[0].mxu0 %v6210
        %v6387 = vpop.f32.mrb[0].mxu0
        %v6388 = vadd.f32 0.0, %v6387
        %v6389 = vpop.f32.mrb[0].mxu0
        %6390 = vmatprep.mubr.f32.mxu0 0.0
        %6391 = vmatmul.mubr.f32.gmra.mrb[0].mxu0 %v6213
        %v6392 = vpop.f32.mrb[0].mxu0
        %v6393 = vadd.f32 0.0, %v6392
        %v6394 = vpop.f32.mrb[0].mxu0
        %6395 = vmatprep.mubr.f32.mxu0 0.0
        %6396 = vmatmul.mubr.f32.gmra.mrb[0].mxu0 %v6216
        %v6397 = vpop.f32.mrb[0].mxu0
        %v6398 = vadd.f32 0.0, %v6397
        %v6399 = vpop.f32.mrb[0].mxu0
        %6400 = vmatprep.mubr.f32.mxu0 0.0
        %6401 = vmatmul.mubr.f32.gmra.mrb[0].mxu0 %v6219
        %v6402 = vpop.f32.mrb[0].mxu0
        %v6403 = vadd.f32 0.0, %v6402
        %v6404 = vpop.f32.mrb[0].mxu0
        %6405 = vmatprep.mubr.f32.mxu0 0.0
        %6406 = vmatmul.mubr.f32.gmra.mrb[0].mxu0 %v6222
        %v6407 = vpop.f32.mrb[0].mxu0
        %v6408 = vadd.f32 0.0, %v6407
        %v6409 = vpop.f32.mrb[0].mxu0
        %6410 = vmatprep.mubr.f32.mxu0 0.0
        %6411 = vmatmul.mubr.f32.gmra.mrb[0].mxu0 %v6225
        %v6412 = vpop.f32.mrb[0].mxu0
        %v6413 = vadd.f32 0.0, %v6412
        %v6414 = vpop.f32.mrb[0].mxu0
        %6415 = vmatprep.mubr.f32.mxu0 0.0
        %6416 = vmatmul.mubr.f32.gmra.mrb[0].mxu0 %v6228
        %v6417 = vpop.f32.mrb[0].mxu0
        %v6418 = vadd.f32 0.0, %v6417
        %v6419 = vpop.f32.mrb[0].mxu0
        %6420 = vmatprep.mubr.f32.mxu0 0.0
        %6421 = vmatmul.mubr.f32.gmra.mrb[0].mxu0 %v6231
        %v6422 = vpop.f32.mrb[0].mxu0
        %v6423 = vadd.f32 0.0, %v6422
        %v6424 = vpop.f32.mrb[0].mxu0
        %6425 = vmatprep.mubr.f32.mxu0 0.0
        %6426 = vmatmul.mubr.f32.gmra.mrb[0].mxu0 %v6234
        %v6427 = vpop.f32.mrb[0].mxu0
        %v6428 = vadd.f32 0.0, %v6427
        %v6429 = vpop.f32.mrb[0].mxu0
        %6430 = vmatprep.mubr.f32.mxu0 0.0
        %6431 = vmatmul.mubr.f32.gmra.mrb[0].mxu0 %v6237
        %v6432 = vpop.f32.mrb[0].mxu0
        %v6433 = vadd.f32 0.0, %v6432
        %v6434 = vpop.f32.mrb[0].mxu0
        %6435 = vmatprep.mubr.f32.mxu0 0.0
        %6436 = vmatmul.mubr.f32.gmra.mrb[0].mxu0 %v6240
        %v6437 = vpop.f32.mrb[0].mxu0
        %v6438 = vadd.f32 0.0, %v6437
        %v6439 = vpop.f32.mrb[0].mxu0
        %6440 = vmatprep.mubr.f32.mxu0 0.0
        %6441 = vmatmul.mubr.f32.gmra.mrb[0].mxu0 %v6243
        %v6442 = vpop.f32.mrb[0].mxu0
        %v6443 = vadd.f32 0.0, %v6442
        %v6444 = vpop.f32.mrb[0].mxu0
        %6445 = vmatprep.mubr.f32.mxu0 0.0
        %6446 = vmatmul.mubr.f32.gmra.mrb[0].mxu0 %v6246
        %v6447 = vpop.f32.mrb[0].mxu0
        %v6448 = vadd.f32 0.0, %v6447
        %v6449 = vpop.f32.mrb[0].mxu0
        %6450 = vmatprep.mubr.f32.mxu0 0.0
        %6451 = vmatmul.mubr.f32.gmra.mrb[0].mxu0 %v6249
        %v6452 = vpop.f32.mrb[0].mxu0
        %v6453 = vadd.f32 0.0, %v6452
        %v6454 = vpop.f32.mrb[0].mxu0
        %6455 = vmatprep.mubr.f32.mxu0 0.0
        %6456 = vmatmul.mubr.f32.gmra.mrb[0].mxu0 %v6252
        %v6457 = vpop.f32.mrb[0].mxu0
        %v6458 = vadd.f32 0.0, %v6457
        %v6459 = vpop.f32.mrb[0].mxu0
        %6460 = vmatprep.mubr.f32.mxu0 0.0
        %6461 = vmatmul.mubr.f32.gmra.mrb[0].mxu0 %v6255
        %v6462 = vpop.f32.mrb[0].mxu0
        %v6463 = vadd.f32 0.0, %v6462
        %v6464 = vpop.f32.mrb[0].mxu0
        %6465 = vmatprep.mubr.f32.mxu0 0.0
        %6466 = vmatmul.mubr.f32.gmra.mrb[0].mxu0 %v6258
        %v6467 = vpop.f32.mrb[0].mxu0
        %v6468 = vadd.f32 0.0, %v6467
        %v6469 = vpop.f32.mrb[0].mxu0
        %6470 = vmatprep.mubr.f32.mxu0 0.0
        %6471 = vmatmul.mubr.f32.gmra.mrb[0].mxu0 %v6261
        %v6472 = vpop.f32.mrb[0].mxu0
        %v6473 = vadd.f32 0.0, %v6472
        %v6474 = vpop.f32.mrb[0].mxu0
        %6475 = vmatprep.mubr.f32.mxu0 0.0
        %6476 = vmatmul.mubr.f32.gmra.mrb[0].mxu0 %v6264
        %v6477 = vpop.f32.mrb[0].mxu0
        %v6478 = vadd.f32 0.0, %v6477
        %v6479 = vpop.f32.mrb[0].mxu0
        %6480 = vmatprep.mubr.f32.mxu0 0.0
        %6481 = vmatmul.mubr.f32.gmra.mrb[0].mxu0 %v6267
        %v6482 = vpop.f32.mrb[0].mxu0
        %v6483 = vadd.f32 0.0, %v6482
        %v6484 = vpop.f32.mrb[0].mxu0
        %6485 = vmatprep.mubr.f32.mxu0 0.0
        %6486 = vmatmul.mubr.f32.gmra.mrb[0].mxu0 %v6270
        %v6487 = vpop.f32.mrb[0].mxu0
        %v6488 = vadd.f32 0.0, %v6487
        %v6489 = vpop.f32.mrb[0].mxu0
        %6490 = vmatprep.mubr.f32.mxu0 0.0
        %6491 = vmatmul.mubr.f32.gmra.mrb[0].mxu0 %v6273
        %v6492 = vpop.f32.mrb[0].mxu0
        %v6493 = vadd.f32 0.0, %v6492
        %v6494 = vpop.f32.mrb[0].mxu0
        %6495 = vmatprep.mubr.f32.mxu0 0.0
        %6496 = vmatmul.mubr.f32.gmra.mrb[0].mxu0 %v6276
        %v6497 = vpop.f32.mrb[0].mxu0
        %v6498 = vadd.f32 0.0, %v6497
        %v6499 = vpop.f32.mrb[0].mxu0
        %6500 = vmatprep.mubr.f32.mxu0 0.0
        %6501 = vmatmul.mubr.f32.gmra.mrb[0].mxu0 %v6279
        %v6502 = vpop.f32.mrb[0].mxu0
        %v6503 = vadd.f32 0.0, %v6502
        %v6504 = vpop.f32.mrb[0].mxu0
        %6505 = vdwg.mxu0
        %v6506 = vadd.f32 %v6119, %v6348
        %v6507 = vadd.f32 %v6120, %v6353
        %v6508 = vadd.f32 %v6121, %v6358
        %v6509 = vadd.f32 %v6122, %v6363
        %v6510 = vadd.f32 %v6123, %v6368
        %v6511 = vadd.f32 %v6124, %v6373
        %v6512 = vadd.f32 %v6125, %v6378
        %v6513 = vadd.f32 %v6126, %v6383
        %v6514 = vadd.f32 %v6127, %v6388
        %v6515 = vadd.f32 %v6128, %v6393
        %v6516 = vadd.f32 %v6129, %v6398
        %v6517 = vadd.f32 %v6130, %v6403
        %v6518 = vadd.f32 %v6131, %v6408
        %v6519 = vadd.f32 %v6132, %v6413
        %v6520 = vadd.f32 %v6133, %v6418
        %v6521 = vadd.f32 %v6134, %v6423
        %v6522 = vadd.f32 %v6135, %v6428
        %v6523 = vadd.f32 %v6136, %v6433
        %v6524 = vadd.f32 %v6137, %v6438
        %v6525 = vadd.f32 %v6138, %v6443
        %v6526 = vadd.f32 %v6139, %v6448
        %v6527 = vadd.f32 %v6140, %v6453
        %v6528 = vadd.f32 %v6141, %v6458
        %v6529 = vadd.f32 %v6142, %v6463
        %v6530 = vadd.f32 %v6143, %v6468
        %v6531 = vadd.f32 %v6144, %v6473
        %v6532 = vadd.f32 %v6145, %v6478
        %v6533 = vadd.f32 %v6146, %v6483
        %v6534 = vadd.f32 %v6147, %v6488
        %v6535 = vadd.f32 %v6148, %v6493
        %v6536 = vadd.f32 %v6149, %v6498
        %v6537 = vadd.f32 %v6150, %v6503
        %v6538 = vld [vmem:[%s920 + $0x2] sm:$0xff]
        %v6539 = vld [vmem:[%s920 + $0xa] sm:$0xff]
        %v6540 = vld [vmem:[%s920 + $0x1a] sm:$0xff]
        %v6541 = vld [vmem:[%s920 + $0x22] sm:$0xff]
        %v6542 = vld [vmem:[%s920 + $0x32] sm:$0xff]
        %v6543 = vld [vmem:[%s920 + $0x3a] sm:$0xff]
        %v6544 = vld [vmem:[%s920 + $0x4a] sm:$0xff]
        %v6545 = vld [vmem:[%s920 + $0x52] sm:$0xff]
        %v6546 = vld [vmem:[%s920 + $0x62] sm:$0xff]
        %v6547 = vld [vmem:[%s920 + $0x6a] sm:$0xff]
        %v6548 = vld [vmem:[%s920 + $0x7a] sm:$0xff]
        %v6549 = vld [vmem:[%s920 + $0x82] sm:$0xff]
        %v6550 = vld [vmem:[%s920 + $0x92] sm:$0xff]
        %v6551 = vld [vmem:[%s920 + $0x9a] sm:$0xff]
        %v6552 = vld [vmem:[%s920 + $0xaa] sm:$0xff]
        %v6553 = vld [vmem:[%s920 + $0xb2] sm:$0xff]
        %v6554 = vld [vmem:[%s920 + $0xc2] sm:$0xff]
        %v6555 = vld [vmem:[%s920 + $0xca] sm:$0xff]
        %v6556 = vld [vmem:[%s920 + $0xda] sm:$0xff]
        %v6557 = vld [vmem:[%s920 + $0xe2] sm:$0xff]
        %v6558 = vld [vmem:[%s920 + $0xf2] sm:$0xff]
        %v6559 = vld [vmem:[%s920 + $0xfa] sm:$0xff]
        %v6560 = vld [vmem:[%s920 + $0x10a] sm:$0xff]
        %v6561 = vld [vmem:[%s920 + $0x112] sm:$0xff]
        %v6562 = vld [vmem:[%s920 + $0x122] sm:$0xff]
        %v6563 = vld [vmem:[%s920 + $0x12a] sm:$0xff]
        %v6564 = vld [vmem:[%s920 + $0x13a] sm:$0xff]
        %v6565 = vld [vmem:[%s920 + $0x142] sm:$0xff]
        %v6566 = vld [vmem:[%s920 + $0x152] sm:$0xff]
        %v6567 = vld [vmem:[%s920 + $0x15a] sm:$0xff]
        %v6568 = vld [vmem:[%s920 + $0x16a] sm:$0xff]
        %v6569 = vld [vmem:[%s920 + $0x172] sm:$0xff]
        %s6570 = scalar_lea.vmem %s3, 112
        %v6571 = vld [vmem:[%s6570] sm:$0xff]
        %v6573 = vsel %vm864, %v6538, 0
        %v6576 = vsel %vm864, %v6539, 0
        %v6579 = vsel %vm864, %v6540, 0
        %v6582 = vsel %vm864, %v6541, 0
        %v6585 = vsel %vm864, %v6542, 0
        %v6588 = vsel %vm864, %v6543, 0
        %v6591 = vsel %vm864, %v6544, 0
        %v6594 = vsel %vm864, %v6545, 0
        %v6597 = vsel %vm864, %v6546, 0
        %v6600 = vsel %vm864, %v6547, 0
        %v6603 = vsel %vm864, %v6548, 0
        %v6606 = vsel %vm864, %v6549, 0
        %v6609 = vsel %vm864, %v6550, 0
        %v6612 = vsel %vm864, %v6551, 0
        %v6615 = vsel %vm864, %v6552, 0
        %v6618 = vsel %vm864, %v6553, 0
        %v6621 = vsel %vm864, %v6554, 0
        %v6624 = vsel %vm864, %v6555, 0
        %v6627 = vsel %vm864, %v6556, 0
        %v6630 = vsel %vm864, %v6557, 0
        %v6633 = vsel %vm864, %v6558, 0
        %v6636 = vsel %vm864, %v6559, 0
        %v6639 = vsel %vm864, %v6560, 0
        %v6642 = vsel %vm864, %v6561, 0
        %v6645 = vsel %vm864, %v6562, 0
        %v6648 = vsel %vm864, %v6563, 0
        %v6651 = vsel %vm864, %v6564, 0
        %v6654 = vsel %vm864, %v6565, 0
        %v6657 = vsel %vm864, %v6566, 0
        %v6660 = vsel %vm864, %v6567, 0
        %v6663 = vsel %vm864, %v6568, 0
        %v6666 = vsel %vm864, %v6569, 0
        %6668 = vmatprep.subr.mxu0 0.0
        %6669 = vmatpush1.msra.mxu0 %v6571
        %6670 = vmatprep.subr.mxu0 0.0
        %6671 = vmatpush1.msra.mxu0 0.0
        %6672 = vmatprep.subr.mxu0 0.0
        %6673 = vmatpush1.msra.mxu0 0.0
        %6674 = vmatprep.subr.mxu0 0.0
        %6675 = vmatpush1.msra.mxu0 0.0
        %6676 = vmatprep.subr.mxu0 0.0
        %6677 = vmatpush1.msra.mxu0 0.0
        %6678 = vmatprep.subr.mxu0 0.0
        %6679 = vmatpush1.msra.mxu0 0.0
        %6680 = vmatprep.subr.mxu0 0.0
        %6681 = vmatpush1.msra.mxu0 0.0
        %6682 = vmatprep.subr.mxu0 0.0
        %6683 = vmatpush1.msra.mxu0 0.0
        %6684 = vmatprep.subr.mxu0 0.0
        %6685 = vmatpush1.msra.mxu0 0.0
        %6686 = vmatprep.subr.mxu0 0.0
        %6687 = vmatpush1.msra.mxu0 0.0
        %6688 = vmatprep.subr.mxu0 0.0
        %6689 = vmatpush1.msra.mxu0 0.0
        %6690 = vmatprep.subr.mxu0 0.0
        %6691 = vmatpush1.msra.mxu0 0.0
        %6692 = vmatprep.subr.mxu0 0.0
        %6693 = vmatpush1.msra.mxu0 0.0
        %6694 = vmatprep.subr.mxu0 0.0
        %6695 = vmatpush1.msra.mxu0 0.0
        %6696 = vmatprep.subr.mxu0 0.0
        %6697 = vmatpush1.msra.mxu0 0.0
        %6698 = vmatprep.subr.mxu0 0.0
        %6699 = vmatpush1.msra.mxu0 0.0
        %6700 = vmatprep.subr.mxu0 0.0
        %6701 = vmatpush1.msra.mxu0 0.0
        %6702 = vmatprep.subr.mxu0 0.0
        %6703 = vmatpush1.msra.mxu0 0.0
        %6704 = vmatprep.subr.mxu0 0.0
        %6705 = vmatpush1.msra.mxu0 0.0
        %6706 = vmatprep.subr.mxu0 0.0
        %6707 = vmatpush1.msra.mxu0 0.0
        %6708 = vmatprep.subr.mxu0 0.0
        %6709 = vmatpush1.msra.mxu0 0.0
        %6710 = vmatprep.subr.mxu0 0.0
        %6711 = vmatpush1.msra.mxu0 0.0
        %6712 = vmatprep.subr.mxu0 0.0
        %6713 = vmatpush1.msra.mxu0 0.0
        %6714 = vmatprep.subr.mxu0 0.0
        %6715 = vmatpush1.msra.mxu0 0.0
        %6716 = vmatprep.subr.mxu0 0.0
        %6717 = vmatpush1.msra.mxu0 0.0
        %6718 = vmatprep.subr.mxu0 0.0
        %6719 = vmatpush1.msra.mxu0 0.0
        %6720 = vmatprep.subr.mxu0 0.0
        %6721 = vmatpush1.msra.mxu0 0.0
        %6722 = vmatprep.subr.mxu0 0.0
        %6723 = vmatpush1.msra.mxu0 0.0
        %6724 = vmatprep.subr.mxu0 0.0
        %6725 = vmatpush1.msra.mxu0 0.0
        %6726 = vmatprep.subr.mxu0 0.0
        %6727 = vmatpush1.msra.mxu0 0.0
        %6728 = vmatprep.subr.mxu0 0.0
        %6729 = vmatpush1.msra.mxu0 0.0
        %6730 = vmatprep.subr.mxu0 0.0
        %6731 = vmatpush1.msra.mxu0 0.0
        %6732 = vmatprep.mubr.f32.mxu0 0.0
        %6733 = vmatmul.mubr.f32.gmra.mrb[0].mxu0 %v6573
        %v6734 = vpop.f32.mrb[0].mxu0
        %v6735 = vadd.f32 0.0, %v6734
        %v6736 = vpop.f32.mrb[0].mxu0
        %6737 = vmatprep.mubr.f32.mxu0 0.0
        %6738 = vmatmul.mubr.f32.gmra.mrb[0].mxu0 %v6576
        %v6739 = vpop.f32.mrb[0].mxu0
        %v6740 = vadd.f32 0.0, %v6739
        %v6741 = vpop.f32.mrb[0].mxu0
        %6742 = vmatprep.mubr.f32.mxu0 0.0
        %6743 = vmatmul.mubr.f32.gmra.mrb[0].mxu0 %v6579
        %v6744 = vpop.f32.mrb[0].mxu0
        %v6745 = vadd.f32 0.0, %v6744
        %v6746 = vpop.f32.mrb[0].mxu0
        %6747 = vmatprep.mubr.f32.mxu0 0.0
        %6748 = vmatmul.mubr.f32.gmra.mrb[0].mxu0 %v6582
        %v6749 = vpop.f32.mrb[0].mxu0
        %v6750 = vadd.f32 0.0, %v6749
        %v6751 = vpop.f32.mrb[0].mxu0
        %6752 = vmatprep.mubr.f32.mxu0 0.0
        %6753 = vmatmul.mubr.f32.gmra.mrb[0].mxu0 %v6585
        %v6754 = vpop.f32.mrb[0].mxu0
        %v6755 = vadd.f32 0.0, %v6754
        %v6756 = vpop.f32.mrb[0].mxu0
        %6757 = vmatprep.mubr.f32.mxu0 0.0
        %6758 = vmatmul.mubr.f32.gmra.mrb[0].mxu0 %v6588
        %v6759 = vpop.f32.mrb[0].mxu0
        %v6760 = vadd.f32 0.0, %v6759
        %v6761 = vpop.f32.mrb[0].mxu0
        %6762 = vmatprep.mubr.f32.mxu0 0.0
        %6763 = vmatmul.mubr.f32.gmra.mrb[0].mxu0 %v6591
        %v6764 = vpop.f32.mrb[0].mxu0
        %v6765 = vadd.f32 0.0, %v6764
        %v6766 = vpop.f32.mrb[0].mxu0
        %6767 = vmatprep.mubr.f32.mxu0 0.0
        %6768 = vmatmul.mubr.f32.gmra.mrb[0].mxu0 %v6594
        %v6769 = vpop.f32.mrb[0].mxu0
        %v6770 = vadd.f32 0.0, %v6769
        %v6771 = vpop.f32.mrb[0].mxu0
        %6772 = vmatprep.mubr.f32.mxu0 0.0
        %6773 = vmatmul.mubr.f32.gmra.mrb[0].mxu0 %v6597
        %v6774 = vpop.f32.mrb[0].mxu0
        %v6775 = vadd.f32 0.0, %v6774
        %v6776 = vpop.f32.mrb[0].mxu0
        %6777 = vmatprep.mubr.f32.mxu0 0.0
        %6778 = vmatmul.mubr.f32.gmra.mrb[0].mxu0 %v6600
        %v6779 = vpop.f32.mrb[0].mxu0
        %v6780 = vadd.f32 0.0, %v6779
        %v6781 = vpop.f32.mrb[0].mxu0
        %6782 = vmatprep.mubr.f32.mxu0 0.0
        %6783 = vmatmul.mubr.f32.gmra.mrb[0].mxu0 %v6603
        %v6784 = vpop.f32.mrb[0].mxu0
        %v6785 = vadd.f32 0.0, %v6784
        %v6786 = vpop.f32.mrb[0].mxu0
        %6787 = vmatprep.mubr.f32.mxu0 0.0
        %6788 = vmatmul.mubr.f32.gmra.mrb[0].mxu0 %v6606
        %v6789 = vpop.f32.mrb[0].mxu0
        %v6790 = vadd.f32 0.0, %v6789
        %v6791 = vpop.f32.mrb[0].mxu0
        %6792 = vmatprep.mubr.f32.mxu0 0.0
        %6793 = vmatmul.mubr.f32.gmra.mrb[0].mxu0 %v6609
        %v6794 = vpop.f32.mrb[0].mxu0
        %v6795 = vadd.f32 0.0, %v6794
        %v6796 = vpop.f32.mrb[0].mxu0
        %6797 = vmatprep.mubr.f32.mxu0 0.0
        %6798 = vmatmul.mubr.f32.gmra.mrb[0].mxu0 %v6612
        %v6799 = vpop.f32.mrb[0].mxu0
        %v6800 = vadd.f32 0.0, %v6799
        %v6801 = vpop.f32.mrb[0].mxu0
        %6802 = vmatprep.mubr.f32.mxu0 0.0
        %6803 = vmatmul.mubr.f32.gmra.mrb[0].mxu0 %v6615
        %v6804 = vpop.f32.mrb[0].mxu0
        %v6805 = vadd.f32 0.0, %v6804
        %v6806 = vpop.f32.mrb[0].mxu0
        %6807 = vmatprep.mubr.f32.mxu0 0.0
        %6808 = vmatmul.mubr.f32.gmra.mrb[0].mxu0 %v6618
        %v6809 = vpop.f32.mrb[0].mxu0
        %v6810 = vadd.f32 0.0, %v6809
        %v6811 = vpop.f32.mrb[0].mxu0
        %6812 = vmatprep.mubr.f32.mxu0 0.0
        %6813 = vmatmul.mubr.f32.gmra.mrb[0].mxu0 %v6621
        %v6814 = vpop.f32.mrb[0].mxu0
        %v6815 = vadd.f32 0.0, %v6814
        %v6816 = vpop.f32.mrb[0].mxu0
        %6817 = vmatprep.mubr.f32.mxu0 0.0
        %6818 = vmatmul.mubr.f32.gmra.mrb[0].mxu0 %v6624
        %v6819 = vpop.f32.mrb[0].mxu0
        %v6820 = vadd.f32 0.0, %v6819
        %v6821 = vpop.f32.mrb[0].mxu0
        %6822 = vmatprep.mubr.f32.mxu0 0.0
        %6823 = vmatmul.mubr.f32.gmra.mrb[0].mxu0 %v6627
        %v6824 = vpop.f32.mrb[0].mxu0
        %v6825 = vadd.f32 0.0, %v6824
        %v6826 = vpop.f32.mrb[0].mxu0
        %6827 = vmatprep.mubr.f32.mxu0 0.0
        %6828 = vmatmul.mubr.f32.gmra.mrb[0].mxu0 %v6630
        %v6829 = vpop.f32.mrb[0].mxu0
        %v6830 = vadd.f32 0.0, %v6829
        %v6831 = vpop.f32.mrb[0].mxu0
        %6832 = vmatprep.mubr.f32.mxu0 0.0
        %6833 = vmatmul.mubr.f32.gmra.mrb[0].mxu0 %v6633
        %v6834 = vpop.f32.mrb[0].mxu0
        %v6835 = vadd.f32 0.0, %v6834
        %v6836 = vpop.f32.mrb[0].mxu0
        %6837 = vmatprep.mubr.f32.mxu0 0.0
        %6838 = vmatmul.mubr.f32.gmra.mrb[0].mxu0 %v6636
        %v6839 = vpop.f32.mrb[0].mxu0
        %v6840 = vadd.f32 0.0, %v6839
        %v6841 = vpop.f32.mrb[0].mxu0
        %6842 = vmatprep.mubr.f32.mxu0 0.0
        %6843 = vmatmul.mubr.f32.gmra.mrb[0].mxu0 %v6639
        %v6844 = vpop.f32.mrb[0].mxu0
        %v6845 = vadd.f32 0.0, %v6844
        %v6846 = vpop.f32.mrb[0].mxu0
        %6847 = vmatprep.mubr.f32.mxu0 0.0
        %6848 = vmatmul.mubr.f32.gmra.mrb[0].mxu0 %v6642
        %v6849 = vpop.f32.mrb[0].mxu0
        %v6850 = vadd.f32 0.0, %v6849
        %v6851 = vpop.f32.mrb[0].mxu0
        %6852 = vmatprep.mubr.f32.mxu0 0.0
        %6853 = vmatmul.mubr.f32.gmra.mrb[0].mxu0 %v6645
        %v6854 = vpop.f32.mrb[0].mxu0
        %v6855 = vadd.f32 0.0, %v6854
        %v6856 = vpop.f32.mrb[0].mxu0
        %6857 = vmatprep.mubr.f32.mxu0 0.0
        %6858 = vmatmul.mubr.f32.gmra.mrb[0].mxu0 %v6648
        %v6859 = vpop.f32.mrb[0].mxu0
        %v6860 = vadd.f32 0.0, %v6859
        %v6861 = vpop.f32.mrb[0].mxu0
        %6862 = vmatprep.mubr.f32.mxu0 0.0
        %6863 = vmatmul.mubr.f32.gmra.mrb[0].mxu0 %v6651
        %v6864 = vpop.f32.mrb[0].mxu0
        %v6865 = vadd.f32 0.0, %v6864
        %v6866 = vpop.f32.mrb[0].mxu0
        %6867 = vmatprep.mubr.f32.mxu0 0.0
        %6868 = vmatmul.mubr.f32.gmra.mrb[0].mxu0 %v6654
        %v6869 = vpop.f32.mrb[0].mxu0
        %v6870 = vadd.f32 0.0, %v6869
        %v6871 = vpop.f32.mrb[0].mxu0
        %6872 = vmatprep.mubr.f32.mxu0 0.0
        %6873 = vmatmul.mubr.f32.gmra.mrb[0].mxu0 %v6657
        %v6874 = vpop.f32.mrb[0].mxu0
        %v6875 = vadd.f32 0.0, %v6874
        %v6876 = vpop.f32.mrb[0].mxu0
        %6877 = vmatprep.mubr.f32.mxu0 0.0
        %6878 = vmatmul.mubr.f32.gmra.mrb[0].mxu0 %v6660
        %v6879 = vpop.f32.mrb[0].mxu0
        %v6880 = vadd.f32 0.0, %v6879
        %v6881 = vpop.f32.mrb[0].mxu0
        %6882 = vmatprep.mubr.f32.mxu0 0.0
        %6883 = vmatmul.mubr.f32.gmra.mrb[0].mxu0 %v6663
        %v6884 = vpop.f32.mrb[0].mxu0
        %v6885 = vadd.f32 0.0, %v6884
        %v6886 = vpop.f32.mrb[0].mxu0
        %6887 = vmatprep.mubr.f32.mxu0 0.0
        %6888 = vmatmul.mubr.f32.gmra.mrb[0].mxu0 %v6666
        %v6889 = vpop.f32.mrb[0].mxu0
        %v6890 = vadd.f32 0.0, %v6889
        %v6891 = vpop.f32.mrb[0].mxu0
        %6892 = vdwg.mxu0
        %v6893 = vadd.f32 %v6506, %v6735
        %v6894 = vadd.f32 %v6507, %v6740
        %v6895 = vadd.f32 %v6508, %v6745
        %v6896 = vadd.f32 %v6509, %v6750
        %v6897 = vadd.f32 %v6510, %v6755
        %v6898 = vadd.f32 %v6511, %v6760
        %v6899 = vadd.f32 %v6512, %v6765
        %v6900 = vadd.f32 %v6513, %v6770
        %v6901 = vadd.f32 %v6514, %v6775
        %v6902 = vadd.f32 %v6515, %v6780
        %v6903 = vadd.f32 %v6516, %v6785
        %v6904 = vadd.f32 %v6517, %v6790
        %v6905 = vadd.f32 %v6518, %v6795
        %v6906 = vadd.f32 %v6519, %v6800
        %v6907 = vadd.f32 %v6520, %v6805
        %v6908 = vadd.f32 %v6521, %v6810
        %v6909 = vadd.f32 %v6522, %v6815
        %v6910 = vadd.f32 %v6523, %v6820
        %v6911 = vadd.f32 %v6524, %v6825
        %v6912 = vadd.f32 %v6525, %v6830
        %v6913 = vadd.f32 %v6526, %v6835
        %v6914 = vadd.f32 %v6527, %v6840
        %v6915 = vadd.f32 %v6528, %v6845
        %v6916 = vadd.f32 %v6529, %v6850
        %v6917 = vadd.f32 %v6530, %v6855
        %v6918 = vadd.f32 %v6531, %v6860
        %v6919 = vadd.f32 %v6532, %v6865
        %v6920 = vadd.f32 %v6533, %v6870
        %v6921 = vadd.f32 %v6534, %v6875
        %v6922 = vadd.f32 %v6535, %v6880
        %v6923 = vadd.f32 %v6536, %v6885
        %v6924 = vadd.f32 %v6537, %v6890
        %v6925 = vld [vmem:[%s3210] sm:$0xff]
        %v6926 = vld [vmem:[%s3210 + $0x8] sm:$0xff]
        %v6927 = vld [vmem:[%s3210 + $0x18] sm:$0xff]
        %v6928 = vld [vmem:[%s3210 + $0x20] sm:$0xff]
        %v6929 = vld [vmem:[%s3210 + $0x30] sm:$0xff]
        %v6930 = vld [vmem:[%s3210 + $0x38] sm:$0xff]
        %v6931 = vld [vmem:[%s3210 + $0x48] sm:$0xff]
        %v6932 = vld [vmem:[%s3210 + $0x50] sm:$0xff]
        %v6933 = vld [vmem:[%s3210 + $0x60] sm:$0xff]
        %v6934 = vld [vmem:[%s3210 + $0x68] sm:$0xff]
        %v6935 = vld [vmem:[%s3210 + $0x78] sm:$0xff]
        %v6936 = vld [vmem:[%s3210 + $0x80] sm:$0xff]
        %v6937 = vld [vmem:[%s3210 + $0x90] sm:$0xff]
        %v6938 = vld [vmem:[%s3210 + $0x98] sm:$0xff]
        %v6939 = vld [vmem:[%s3210 + $0xa8] sm:$0xff]
        %v6940 = vld [vmem:[%s3210 + $0xb0] sm:$0xff]
        %v6941 = vld [vmem:[%s3210 + $0xc0] sm:$0xff]
        %v6942 = vld [vmem:[%s3210 + $0xc8] sm:$0xff]
        %v6943 = vld [vmem:[%s3210 + $0xd8] sm:$0xff]
        %v6944 = vld [vmem:[%s3210 + $0xe0] sm:$0xff]
        %v6945 = vld [vmem:[%s3210 + $0xf0] sm:$0xff]
        %v6946 = vld [vmem:[%s3210 + $0xf8] sm:$0xff]
        %v6947 = vld [vmem:[%s3210 + $0x108] sm:$0xff]
        %v6948 = vld [vmem:[%s3210 + $0x110] sm:$0xff]
        %v6949 = vld [vmem:[%s3210 + $0x120] sm:$0xff]
        %v6950 = vld [vmem:[%s3210 + $0x128] sm:$0xff]
        %v6951 = vld [vmem:[%s3210 + $0x138] sm:$0xff]
        %v6952 = vld [vmem:[%s3210 + $0x140] sm:$0xff]
        %v6953 = vld [vmem:[%s3210 + $0x150] sm:$0xff]
        %v6954 = vld [vmem:[%s3210 + $0x158] sm:$0xff]
        %v6955 = vld [vmem:[%s3210 + $0x168] sm:$0xff]
        %v6956 = vld [vmem:[%s3210 + $0x170] sm:$0xff]
        %s6957 = scalar_lea.vmem %s3, 120
        %v6958 = vld [vmem:[%s6957] sm:$0xff]
        %v6960 = vsel %vm864, %v6925, 0
        %v6963 = vsel %vm864, %v6926, 0
        %v6966 = vsel %vm864, %v6927, 0
        %v6969 = vsel %vm864, %v6928, 0
        %v6972 = vsel %vm864, %v6929, 0
        %v6975 = vsel %vm864, %v6930, 0
        %v6978 = vsel %vm864, %v6931, 0
        %v6981 = vsel %vm864, %v6932, 0
        %v6984 = vsel %vm864, %v6933, 0
        %v6987 = vsel %vm864, %v6934, 0
        %v6990 = vsel %vm864, %v6935, 0
        %v6993 = vsel %vm864, %v6936, 0
        %v6996 = vsel %vm864, %v6937, 0
        %v6999 = vsel %vm864, %v6938, 0
        %v7002 = vsel %vm864, %v6939, 0
        %v7005 = vsel %vm864, %v6940, 0
        %v7008 = vsel %vm864, %v6941, 0
        %v7011 = vsel %vm864, %v6942, 0
        %v7014 = vsel %vm864, %v6943, 0
        %v7017 = vsel %vm864, %v6944, 0
        %v7020 = vsel %vm864, %v6945, 0
        %v7023 = vsel %vm864, %v6946, 0
        %v7026 = vsel %vm864, %v6947, 0
        %v7029 = vsel %vm864, %v6948, 0
        %v7032 = vsel %vm864, %v6949, 0
        %v7035 = vsel %vm864, %v6950, 0
        %v7038 = vsel %vm864, %v6951, 0
        %v7041 = vsel %vm864, %v6952, 0
        %v7044 = vsel %vm864, %v6953, 0
        %v7047 = vsel %vm864, %v6954, 0
        %v7050 = vsel %vm864, %v6955, 0
        %v7053 = vsel %vm864, %v6956, 0
        %7055 = vmatprep.subr.mxu0 0.0
        %7056 = vmatpush1.msra.mxu0 %v6958
        %7057 = vmatprep.subr.mxu0 0.0
        %7058 = vmatpush1.msra.mxu0 0.0
        %7059 = vmatprep.subr.mxu0 0.0
        %7060 = vmatpush1.msra.mxu0 0.0
        %7061 = vmatprep.subr.mxu0 0.0
        %7062 = vmatpush1.msra.mxu0 0.0
        %7063 = vmatprep.subr.mxu0 0.0
        %7064 = vmatpush1.msra.mxu0 0.0
        %7065 = vmatprep.subr.mxu0 0.0
        %7066 = vmatpush1.msra.mxu0 0.0
        %7067 = vmatprep.subr.mxu0 0.0
        %7068 = vmatpush1.msra.mxu0 0.0
        %7069 = vmatprep.subr.mxu0 0.0
        %7070 = vmatpush1.msra.mxu0 0.0
        %7071 = vmatprep.subr.mxu0 0.0
        %7072 = vmatpush1.msra.mxu0 0.0
        %7073 = vmatprep.subr.mxu0 0.0
        %7074 = vmatpush1.msra.mxu0 0.0
        %7075 = vmatprep.subr.mxu0 0.0
        %7076 = vmatpush1.msra.mxu0 0.0
        %7077 = vmatprep.subr.mxu0 0.0
        %7078 = vmatpush1.msra.mxu0 0.0
        %7079 = vmatprep.subr.mxu0 0.0
        %7080 = vmatpush1.msra.mxu0 0.0
        %7081 = vmatprep.subr.mxu0 0.0
        %7082 = vmatpush1.msra.mxu0 0.0
        %7083 = vmatprep.subr.mxu0 0.0
        %7084 = vmatpush1.msra.mxu0 0.0
        %7085 = vmatprep.subr.mxu0 0.0
        %7086 = vmatpush1.msra.mxu0 0.0
        %7087 = vmatprep.subr.mxu0 0.0
        %7088 = vmatpush1.msra.mxu0 0.0
        %7089 = vmatprep.subr.mxu0 0.0
        %7090 = vmatpush1.msra.mxu0 0.0
        %7091 = vmatprep.subr.mxu0 0.0
        %7092 = vmatpush1.msra.mxu0 0.0
        %7093 = vmatprep.subr.mxu0 0.0
        %7094 = vmatpush1.msra.mxu0 0.0
        %7095 = vmatprep.subr.mxu0 0.0
        %7096 = vmatpush1.msra.mxu0 0.0
        %7097 = vmatprep.subr.mxu0 0.0
        %7098 = vmatpush1.msra.mxu0 0.0
        %7099 = vmatprep.subr.mxu0 0.0
        %7100 = vmatpush1.msra.mxu0 0.0
        %7101 = vmatprep.subr.mxu0 0.0
        %7102 = vmatpush1.msra.mxu0 0.0
        %7103 = vmatprep.subr.mxu0 0.0
        %7104 = vmatpush1.msra.mxu0 0.0
        %7105 = vmatprep.subr.mxu0 0.0
        %7106 = vmatpush1.msra.mxu0 0.0
        %7107 = vmatprep.subr.mxu0 0.0
        %7108 = vmatpush1.msra.mxu0 0.0
        %7109 = vmatprep.subr.mxu0 0.0
        %7110 = vmatpush1.msra.mxu0 0.0
        %7111 = vmatprep.subr.mxu0 0.0
        %7112 = vmatpush1.msra.mxu0 0.0
        %7113 = vmatprep.subr.mxu0 0.0
        %7114 = vmatpush1.msra.mxu0 0.0
        %7115 = vmatprep.subr.mxu0 0.0
        %7116 = vmatpush1.msra.mxu0 0.0
        %7117 = vmatprep.subr.mxu0 0.0
        %7118 = vmatpush1.msra.mxu0 0.0
        %7119 = vmatprep.mubr.f32.mxu0 0.0
        %7120 = vmatmul.mubr.f32.gmra.mrb[0].mxu0 %v6960
        %v7121 = vpop.f32.mrb[0].mxu0
        %v7122 = vadd.f32 0.0, %v7121
        %v7123 = vpop.f32.mrb[0].mxu0
        %7124 = vmatprep.mubr.f32.mxu0 0.0
        %7125 = vmatmul.mubr.f32.gmra.mrb[0].mxu0 %v6963
        %v7126 = vpop.f32.mrb[0].mxu0
        %v7127 = vadd.f32 0.0, %v7126
        %v7128 = vpop.f32.mrb[0].mxu0
        %7129 = vmatprep.mubr.f32.mxu0 0.0
        %7130 = vmatmul.mubr.f32.gmra.mrb[0].mxu0 %v6966
        %v7131 = vpop.f32.mrb[0].mxu0
        %v7132 = vadd.f32 0.0, %v7131
        %v7133 = vpop.f32.mrb[0].mxu0
        %7134 = vmatprep.mubr.f32.mxu0 0.0
        %7135 = vmatmul.mubr.f32.gmra.mrb[0].mxu0 %v6969
        %v7136 = vpop.f32.mrb[0].mxu0
        %v7137 = vadd.f32 0.0, %v7136
        %v7138 = vpop.f32.mrb[0].mxu0
        %7139 = vmatprep.mubr.f32.mxu0 0.0
        %7140 = vmatmul.mubr.f32.gmra.mrb[0].mxu0 %v6972
        %v7141 = vpop.f32.mrb[0].mxu0
        %v7142 = vadd.f32 0.0, %v7141
        %v7143 = vpop.f32.mrb[0].mxu0
        %7144 = vmatprep.mubr.f32.mxu0 0.0
        %7145 = vmatmul.mubr.f32.gmra.mrb[0].mxu0 %v6975
        %v7146 = vpop.f32.mrb[0].mxu0
        %v7147 = vadd.f32 0.0, %v7146
        %v7148 = vpop.f32.mrb[0].mxu0
        %7149 = vmatprep.mubr.f32.mxu0 0.0
        %7150 = vmatmul.mubr.f32.gmra.mrb[0].mxu0 %v6978
        %v7151 = vpop.f32.mrb[0].mxu0
        %v7152 = vadd.f32 0.0, %v7151
        %v7153 = vpop.f32.mrb[0].mxu0
        %7154 = vmatprep.mubr.f32.mxu0 0.0
        %7155 = vmatmul.mubr.f32.gmra.mrb[0].mxu0 %v6981
        %v7156 = vpop.f32.mrb[0].mxu0
        %v7157 = vadd.f32 0.0, %v7156
        %v7158 = vpop.f32.mrb[0].mxu0
        %7159 = vmatprep.mubr.f32.mxu0 0.0
        %7160 = vmatmul.mubr.f32.gmra.mrb[0].mxu0 %v6984
        %v7161 = vpop.f32.mrb[0].mxu0
        %v7162 = vadd.f32 0.0, %v7161
        %v7163 = vpop.f32.mrb[0].mxu0
        %7164 = vmatprep.mubr.f32.mxu0 0.0
        %7165 = vmatmul.mubr.f32.gmra.mrb[0].mxu0 %v6987
        %v7166 = vpop.f32.mrb[0].mxu0
        %v7167 = vadd.f32 0.0, %v7166
        %v7168 = vpop.f32.mrb[0].mxu0
        %7169 = vmatprep.mubr.f32.mxu0 0.0
        %7170 = vmatmul.mubr.f32.gmra.mrb[0].mxu0 %v6990
        %v7171 = vpop.f32.mrb[0].mxu0
        %v7172 = vadd.f32 0.0, %v7171
        %v7173 = vpop.f32.mrb[0].mxu0
        %7174 = vmatprep.mubr.f32.mxu0 0.0
        %7175 = vmatmul.mubr.f32.gmra.mrb[0].mxu0 %v6993
        %v7176 = vpop.f32.mrb[0].mxu0
        %v7177 = vadd.f32 0.0, %v7176
        %v7178 = vpop.f32.mrb[0].mxu0
        %7179 = vmatprep.mubr.f32.mxu0 0.0
        %7180 = vmatmul.mubr.f32.gmra.mrb[0].mxu0 %v6996
        %v7181 = vpop.f32.mrb[0].mxu0
        %v7182 = vadd.f32 0.0, %v7181
        %v7183 = vpop.f32.mrb[0].mxu0
        %7184 = vmatprep.mubr.f32.mxu0 0.0
        %7185 = vmatmul.mubr.f32.gmra.mrb[0].mxu0 %v6999
        %v7186 = vpop.f32.mrb[0].mxu0
        %v7187 = vadd.f32 0.0, %v7186
        %v7188 = vpop.f32.mrb[0].mxu0
        %7189 = vmatprep.mubr.f32.mxu0 0.0
        %7190 = vmatmul.mubr.f32.gmra.mrb[0].mxu0 %v7002
        %v7191 = vpop.f32.mrb[0].mxu0
        %v7192 = vadd.f32 0.0, %v7191
        %v7193 = vpop.f32.mrb[0].mxu0
        %7194 = vmatprep.mubr.f32.mxu0 0.0
        %7195 = vmatmul.mubr.f32.gmra.mrb[0].mxu0 %v7005
        %v7196 = vpop.f32.mrb[0].mxu0
        %v7197 = vadd.f32 0.0, %v7196
        %v7198 = vpop.f32.mrb[0].mxu0
        %7199 = vmatprep.mubr.f32.mxu0 0.0
        %7200 = vmatmul.mubr.f32.gmra.mrb[0].mxu0 %v7008
        %v7201 = vpop.f32.mrb[0].mxu0
        %v7202 = vadd.f32 0.0, %v7201
        %v7203 = vpop.f32.mrb[0].mxu0
        %7204 = vmatprep.mubr.f32.mxu0 0.0
        %7205 = vmatmul.mubr.f32.gmra.mrb[0].mxu0 %v7011
        %v7206 = vpop.f32.mrb[0].mxu0
        %v7207 = vadd.f32 0.0, %v7206
        %v7208 = vpop.f32.mrb[0].mxu0
        %7209 = vmatprep.mubr.f32.mxu0 0.0
        %7210 = vmatmul.mubr.f32.gmra.mrb[0].mxu0 %v7014
        %v7211 = vpop.f32.mrb[0].mxu0
        %v7212 = vadd.f32 0.0, %v7211
        %v7213 = vpop.f32.mrb[0].mxu0
        %7214 = vmatprep.mubr.f32.mxu0 0.0
        %7215 = vmatmul.mubr.f32.gmra.mrb[0].mxu0 %v7017
        %v7216 = vpop.f32.mrb[0].mxu0
        %v7217 = vadd.f32 0.0, %v7216
        %v7218 = vpop.f32.mrb[0].mxu0
        %7219 = vmatprep.mubr.f32.mxu0 0.0
        %7220 = vmatmul.mubr.f32.gmra.mrb[0].mxu0 %v7020
        %v7221 = vpop.f32.mrb[0].mxu0
        %v7222 = vadd.f32 0.0, %v7221
        %v7223 = vpop.f32.mrb[0].mxu0
        %7224 = vmatprep.mubr.f32.mxu0 0.0
        %7225 = vmatmul.mubr.f32.gmra.mrb[0].mxu0 %v7023
        %v7226 = vpop.f32.mrb[0].mxu0
        %v7227 = vadd.f32 0.0, %v7226
        %v7228 = vpop.f32.mrb[0].mxu0
        %7229 = vmatprep.mubr.f32.mxu0 0.0
        %7230 = vmatmul.mubr.f32.gmra.mrb[0].mxu0 %v7026
        %v7231 = vpop.f32.mrb[0].mxu0
        %v7232 = vadd.f32 0.0, %v7231
        %v7233 = vpop.f32.mrb[0].mxu0
        %7234 = vmatprep.mubr.f32.mxu0 0.0
        %7235 = vmatmul.mubr.f32.gmra.mrb[0].mxu0 %v7029
        %v7236 = vpop.f32.mrb[0].mxu0
        %v7237 = vadd.f32 0.0, %v7236
        %v7238 = vpop.f32.mrb[0].mxu0
        %7239 = vmatprep.mubr.f32.mxu0 0.0
        %7240 = vmatmul.mubr.f32.gmra.mrb[0].mxu0 %v7032
        %v7241 = vpop.f32.mrb[0].mxu0
        %v7242 = vadd.f32 0.0, %v7241
        %v7243 = vpop.f32.mrb[0].mxu0
        %7244 = vmatprep.mubr.f32.mxu0 0.0
        %7245 = vmatmul.mubr.f32.gmra.mrb[0].mxu0 %v7035
        %v7246 = vpop.f32.mrb[0].mxu0
        %v7247 = vadd.f32 0.0, %v7246
        %v7248 = vpop.f32.mrb[0].mxu0
        %7249 = vmatprep.mubr.f32.mxu0 0.0
        %7250 = vmatmul.mubr.f32.gmra.mrb[0].mxu0 %v7038
        %v7251 = vpop.f32.mrb[0].mxu0
        %v7252 = vadd.f32 0.0, %v7251
        %v7253 = vpop.f32.mrb[0].mxu0
        %7254 = vmatprep.mubr.f32.mxu0 0.0
        %7255 = vmatmul.mubr.f32.gmra.mrb[0].mxu0 %v7041
        %v7256 = vpop.f32.mrb[0].mxu0
        %v7257 = vadd.f32 0.0, %v7256
        %v7258 = vpop.f32.mrb[0].mxu0
        %7259 = vmatprep.mubr.f32.mxu0 0.0
        %7260 = vmatmul.mubr.f32.gmra.mrb[0].mxu0 %v7044
        %v7261 = vpop.f32.mrb[0].mxu0
        %v7262 = vadd.f32 0.0, %v7261
        %v7263 = vpop.f32.mrb[0].mxu0
        %7264 = vmatprep.mubr.f32.mxu0 0.0
        %7265 = vmatmul.mubr.f32.gmra.mrb[0].mxu0 %v7047
        %v7266 = vpop.f32.mrb[0].mxu0
        %v7267 = vadd.f32 0.0, %v7266
        %v7268 = vpop.f32.mrb[0].mxu0
        %7269 = vmatprep.mubr.f32.mxu0 0.0
        %7270 = vmatmul.mubr.f32.gmra.mrb[0].mxu0 %v7050
        %v7271 = vpop.f32.mrb[0].mxu0
        %v7272 = vadd.f32 0.0, %v7271
        %v7273 = vpop.f32.mrb[0].mxu0
        %7274 = vmatprep.mubr.f32.mxu0 0.0
        %7275 = vmatmul.mubr.f32.gmra.mrb[0].mxu0 %v7053
        %v7276 = vpop.f32.mrb[0].mxu0
        %v7277 = vadd.f32 0.0, %v7276
        %v7278 = vpop.f32.mrb[0].mxu0
        %7279 = vdwg.mxu0
        %v7280 = vadd.f32 %v6893, %v7122
        %v7281 = vadd.f32 %v6894, %v7127
        %v7282 = vadd.f32 %v6895, %v7132
        %v7283 = vadd.f32 %v6896, %v7137
        %v7284 = vadd.f32 %v6897, %v7142
        %v7285 = vadd.f32 %v6898, %v7147
        %v7286 = vadd.f32 %v6899, %v7152
        %v7287 = vadd.f32 %v6900, %v7157
        %v7288 = vadd.f32 %v6901, %v7162
        %v7289 = vadd.f32 %v6902, %v7167
        %v7290 = vadd.f32 %v6903, %v7172
        %v7291 = vadd.f32 %v6904, %v7177
        %v7292 = vadd.f32 %v6905, %v7182
        %v7293 = vadd.f32 %v6906, %v7187
        %v7294 = vadd.f32 %v6907, %v7192
        %v7295 = vadd.f32 %v6908, %v7197
        %v7296 = vadd.f32 %v6909, %v7202
        %v7297 = vadd.f32 %v6910, %v7207
        %v7298 = vadd.f32 %v6911, %v7212
        %v7299 = vadd.f32 %v6912, %v7217
        %v7300 = vadd.f32 %v6913, %v7222
        %v7301 = vadd.f32 %v6914, %v7227
        %v7302 = vadd.f32 %v6915, %v7232
        %v7303 = vadd.f32 %v6916, %v7237
        %v7304 = vadd.f32 %v6917, %v7242
        %v7305 = vadd.f32 %v6918, %v7247
        %v7306 = vadd.f32 %v6919, %v7252
        %v7307 = vadd.f32 %v6920, %v7257
        %v7308 = vadd.f32 %v6921, %v7262
        %v7309 = vadd.f32 %v6922, %v7267
        %v7310 = vadd.f32 %v6923, %v7272
        %v7311 = vadd.f32 %v6924, %v7277
        %v7312 = vld [vmem:[%s3210 + $0x1] sm:$0xff]
        %v7313 = vld [vmem:[%s3210 + $0x9] sm:$0xff]
        %v7314 = vld [vmem:[%s3210 + $0x19] sm:$0xff]
        %v7315 = vld [vmem:[%s3210 + $0x21] sm:$0xff]
        %v7316 = vld [vmem:[%s3210 + $0x31] sm:$0xff]
        %v7317 = vld [vmem:[%s3210 + $0x39] sm:$0xff]
        %v7318 = vld [vmem:[%s3210 + $0x49] sm:$0xff]
        %v7319 = vld [vmem:[%s3210 + $0x51] sm:$0xff]
        %v7320 = vld [vmem:[%s3210 + $0x61] sm:$0xff]
        %v7321 = vld [vmem:[%s3210 + $0x69] sm:$0xff]
        %v7322 = vld [vmem:[%s3210 + $0x79] sm:$0xff]
        %v7323 = vld [vmem:[%s3210 + $0x81] sm:$0xff]
        %v7324 = vld [vmem:[%s3210 + $0x91] sm:$0xff]
        %v7325 = vld [vmem:[%s3210 + $0x99] sm:$0xff]
        %v7326 = vld [vmem:[%s3210 + $0xa9] sm:$0xff]
        %v7327 = vld [vmem:[%s3210 + $0xb1] sm:$0xff]
        %v7328 = vld [vmem:[%s3210 + $0xc1] sm:$0xff]
        %v7329 = vld [vmem:[%s3210 + $0xc9] sm:$0xff]
        %v7330 = vld [vmem:[%s3210 + $0xd9] sm:$0xff]
        %v7331 = vld [vmem:[%s3210 + $0xe1] sm:$0xff]
        %v7332 = vld [vmem:[%s3210 + $0xf1] sm:$0xff]
        %v7333 = vld [vmem:[%s3210 + $0xf9] sm:$0xff]
        %v7334 = vld [vmem:[%s3210 + $0x109] sm:$0xff]
        %v7335 = vld [vmem:[%s3210 + $0x111] sm:$0xff]
        %v7336 = vld [vmem:[%s3210 + $0x121] sm:$0xff]
        %v7337 = vld [vmem:[%s3210 + $0x129] sm:$0xff]
        %v7338 = vld [vmem:[%s3210 + $0x139] sm:$0xff]
        %v7339 = vld [vmem:[%s3210 + $0x141] sm:$0xff]
        %v7340 = vld [vmem:[%s3210 + $0x151] sm:$0xff]
        %v7341 = vld [vmem:[%s3210 + $0x159] sm:$0xff]
        %v7342 = vld [vmem:[%s3210 + $0x169] sm:$0xff]
        %v7343 = vld [vmem:[%s3210 + $0x171] sm:$0xff]
        %s7344 = scalar_lea.vmem %s3, 128
        %v7345 = vld [vmem:[%s7344] sm:$0xff]
        %v7347 = vsel %vm864, %v7312, 0
        %v7350 = vsel %vm864, %v7313, 0
        %v7353 = vsel %vm864, %v7314, 0
        %v7356 = vsel %vm864, %v7315, 0
        %v7359 = vsel %vm864, %v7316, 0
        %v7362 = vsel %vm864, %v7317, 0
        %v7365 = vsel %vm864, %v7318, 0
        %v7368 = vsel %vm864, %v7319, 0
        %v7371 = vsel %vm864, %v7320, 0
        %v7374 = vsel %vm864, %v7321, 0
        %v7377 = vsel %vm864, %v7322, 0
        %v7380 = vsel %vm864, %v7323, 0
        %v7383 = vsel %vm864, %v7324, 0
        %v7386 = vsel %vm864, %v7325, 0
        %v7389 = vsel %vm864, %v7326, 0
        %v7392 = vsel %vm864, %v7327, 0
        %v7395 = vsel %vm864, %v7328, 0
        %v7398 = vsel %vm864, %v7329, 0
        %v7401 = vsel %vm864, %v7330, 0
        %v7404 = vsel %vm864, %v7331, 0
        %v7407 = vsel %vm864, %v7332, 0
        %v7410 = vsel %vm864, %v7333, 0
        %v7413 = vsel %vm864, %v7334, 0
        %v7416 = vsel %vm864, %v7335, 0
        %v7419 = vsel %vm864, %v7336, 0
        %v7422 = vsel %vm864, %v7337, 0
        %v7425 = vsel %vm864, %v7338, 0
        %v7428 = vsel %vm864, %v7339, 0
        %v7431 = vsel %vm864, %v7340, 0
        %v7434 = vsel %vm864, %v7341, 0
        %v7437 = vsel %vm864, %v7342, 0
        %v7440 = vsel %vm864, %v7343, 0
        %7442 = vmatprep.subr.mxu0 0.0
        %7443 = vmatpush1.msra.mxu0 %v7345
        %7444 = vmatprep.subr.mxu0 0.0
        %7445 = vmatpush1.msra.mxu0 0.0
        %7446 = vmatprep.subr.mxu0 0.0
        %7447 = vmatpush1.msra.mxu0 0.0
        %7448 = vmatprep.subr.mxu0 0.0
        %7449 = vmatpush1.msra.mxu0 0.0
        %7450 = vmatprep.subr.mxu0 0.0
        %7451 = vmatpush1.msra.mxu0 0.0
        %7452 = vmatprep.subr.mxu0 0.0
        %7453 = vmatpush1.msra.mxu0 0.0
        %7454 = vmatprep.subr.mxu0 0.0
        %7455 = vmatpush1.msra.mxu0 0.0
        %7456 = vmatprep.subr.mxu0 0.0
        %7457 = vmatpush1.msra.mxu0 0.0
        %7458 = vmatprep.subr.mxu0 0.0
        %7459 = vmatpush1.msra.mxu0 0.0
        %7460 = vmatprep.subr.mxu0 0.0
        %7461 = vmatpush1.msra.mxu0 0.0
        %7462 = vmatprep.subr.mxu0 0.0
        %7463 = vmatpush1.msra.mxu0 0.0
        %7464 = vmatprep.subr.mxu0 0.0
        %7465 = vmatpush1.msra.mxu0 0.0
        %7466 = vmatprep.subr.mxu0 0.0
        %7467 = vmatpush1.msra.mxu0 0.0
        %7468 = vmatprep.subr.mxu0 0.0
        %7469 = vmatpush1.msra.mxu0 0.0
        %7470 = vmatprep.subr.mxu0 0.0
        %7471 = vmatpush1.msra.mxu0 0.0
        %7472 = vmatprep.subr.mxu0 0.0
        %7473 = vmatpush1.msra.mxu0 0.0
        %7474 = vmatprep.subr.mxu0 0.0
        %7475 = vmatpush1.msra.mxu0 0.0
        %7476 = vmatprep.subr.mxu0 0.0
        %7477 = vmatpush1.msra.mxu0 0.0
        %7478 = vmatprep.subr.mxu0 0.0
        %7479 = vmatpush1.msra.mxu0 0.0
        %7480 = vmatprep.subr.mxu0 0.0
        %7481 = vmatpush1.msra.mxu0 0.0
        %7482 = vmatprep.subr.mxu0 0.0
        %7483 = vmatpush1.msra.mxu0 0.0
        %7484 = vmatprep.subr.mxu0 0.0
        %7485 = vmatpush1.msra.mxu0 0.0
        %7486 = vmatprep.subr.mxu0 0.0
        %7487 = vmatpush1.msra.mxu0 0.0
        %7488 = vmatprep.subr.mxu0 0.0
        %7489 = vmatpush1.msra.mxu0 0.0
        %7490 = vmatprep.subr.mxu0 0.0
        %7491 = vmatpush1.msra.mxu0 0.0
        %7492 = vmatprep.subr.mxu0 0.0
        %7493 = vmatpush1.msra.mxu0 0.0
        %7494 = vmatprep.subr.mxu0 0.0
        %7495 = vmatpush1.msra.mxu0 0.0
        %7496 = vmatprep.subr.mxu0 0.0
        %7497 = vmatpush1.msra.mxu0 0.0
        %7498 = vmatprep.subr.mxu0 0.0
        %7499 = vmatpush1.msra.mxu0 0.0
        %7500 = vmatprep.subr.mxu0 0.0
        %7501 = vmatpush1.msra.mxu0 0.0
        %7502 = vmatprep.subr.mxu0 0.0
        %7503 = vmatpush1.msra.mxu0 0.0
        %7504 = vmatprep.subr.mxu0 0.0
        %7505 = vmatpush1.msra.mxu0 0.0
        %7506 = vmatprep.mubr.f32.mxu0 0.0
        %7507 = vmatmul.mubr.f32.gmra.mrb[0].mxu0 %v7347
        %v7508 = vpop.f32.mrb[0].mxu0
        %v7509 = vadd.f32 0.0, %v7508
        %v7510 = vpop.f32.mrb[0].mxu0
        %7511 = vmatprep.mubr.f32.mxu0 0.0
        %7512 = vmatmul.mubr.f32.gmra.mrb[0].mxu0 %v7350
        %v7513 = vpop.f32.mrb[0].mxu0
        %v7514 = vadd.f32 0.0, %v7513
        %v7515 = vpop.f32.mrb[0].mxu0
        %7516 = vmatprep.mubr.f32.mxu0 0.0
        %7517 = vmatmul.mubr.f32.gmra.mrb[0].mxu0 %v7353
        %v7518 = vpop.f32.mrb[0].mxu0
        %v7519 = vadd.f32 0.0, %v7518
        %v7520 = vpop.f32.mrb[0].mxu0
        %7521 = vmatprep.mubr.f32.mxu0 0.0
        %7522 = vmatmul.mubr.f32.gmra.mrb[0].mxu0 %v7356
        %v7523 = vpop.f32.mrb[0].mxu0
        %v7524 = vadd.f32 0.0, %v7523
        %v7525 = vpop.f32.mrb[0].mxu0
        %7526 = vmatprep.mubr.f32.mxu0 0.0
        %7527 = vmatmul.mubr.f32.gmra.mrb[0].mxu0 %v7359
        %v7528 = vpop.f32.mrb[0].mxu0
        %v7529 = vadd.f32 0.0, %v7528
        %v7530 = vpop.f32.mrb[0].mxu0
        %7531 = vmatprep.mubr.f32.mxu0 0.0
        %7532 = vmatmul.mubr.f32.gmra.mrb[0].mxu0 %v7362
        %v7533 = vpop.f32.mrb[0].mxu0
        %v7534 = vadd.f32 0.0, %v7533
        %v7535 = vpop.f32.mrb[0].mxu0
        %7536 = vmatprep.mubr.f32.mxu0 0.0
        %7537 = vmatmul.mubr.f32.gmra.mrb[0].mxu0 %v7365
        %v7538 = vpop.f32.mrb[0].mxu0
        %v7539 = vadd.f32 0.0, %v7538
        %v7540 = vpop.f32.mrb[0].mxu0
        %7541 = vmatprep.mubr.f32.mxu0 0.0
        %7542 = vmatmul.mubr.f32.gmra.mrb[0].mxu0 %v7368
        %v7543 = vpop.f32.mrb[0].mxu0
        %v7544 = vadd.f32 0.0, %v7543
        %v7545 = vpop.f32.mrb[0].mxu0
        %7546 = vmatprep.mubr.f32.mxu0 0.0
        %7547 = vmatmul.mubr.f32.gmra.mrb[0].mxu0 %v7371
        %v7548 = vpop.f32.mrb[0].mxu0
        %v7549 = vadd.f32 0.0, %v7548
        %v7550 = vpop.f32.mrb[0].mxu0
        %7551 = vmatprep.mubr.f32.mxu0 0.0
        %7552 = vmatmul.mubr.f32.gmra.mrb[0].mxu0 %v7374
        %v7553 = vpop.f32.mrb[0].mxu0
        %v7554 = vadd.f32 0.0, %v7553
        %v7555 = vpop.f32.mrb[0].mxu0
        %7556 = vmatprep.mubr.f32.mxu0 0.0
        %7557 = vmatmul.mubr.f32.gmra.mrb[0].mxu0 %v7377
        %v7558 = vpop.f32.mrb[0].mxu0
        %v7559 = vadd.f32 0.0, %v7558
        %v7560 = vpop.f32.mrb[0].mxu0
        %7561 = vmatprep.mubr.f32.mxu0 0.0
        %7562 = vmatmul.mubr.f32.gmra.mrb[0].mxu0 %v7380
        %v7563 = vpop.f32.mrb[0].mxu0
        %v7564 = vadd.f32 0.0, %v7563
        %v7565 = vpop.f32.mrb[0].mxu0
        %7566 = vmatprep.mubr.f32.mxu0 0.0
        %7567 = vmatmul.mubr.f32.gmra.mrb[0].mxu0 %v7383
        %v7568 = vpop.f32.mrb[0].mxu0
        %v7569 = vadd.f32 0.0, %v7568
        %v7570 = vpop.f32.mrb[0].mxu0
        %7571 = vmatprep.mubr.f32.mxu0 0.0
        %7572 = vmatmul.mubr.f32.gmra.mrb[0].mxu0 %v7386
        %v7573 = vpop.f32.mrb[0].mxu0
        %v7574 = vadd.f32 0.0, %v7573
        %v7575 = vpop.f32.mrb[0].mxu0
        %7576 = vmatprep.mubr.f32.mxu0 0.0
        %7577 = vmatmul.mubr.f32.gmra.mrb[0].mxu0 %v7389
        %v7578 = vpop.f32.mrb[0].mxu0
        %v7579 = vadd.f32 0.0, %v7578
        %v7580 = vpop.f32.mrb[0].mxu0
        %7581 = vmatprep.mubr.f32.mxu0 0.0
        %7582 = vmatmul.mubr.f32.gmra.mrb[0].mxu0 %v7392
        %v7583 = vpop.f32.mrb[0].mxu0
        %v7584 = vadd.f32 0.0, %v7583
        %v7585 = vpop.f32.mrb[0].mxu0
        %7586 = vmatprep.mubr.f32.mxu0 0.0
        %7587 = vmatmul.mubr.f32.gmra.mrb[0].mxu0 %v7395
        %v7588 = vpop.f32.mrb[0].mxu0
        %v7589 = vadd.f32 0.0, %v7588
        %v7590 = vpop.f32.mrb[0].mxu0
        %7591 = vmatprep.mubr.f32.mxu0 0.0
        %7592 = vmatmul.mubr.f32.gmra.mrb[0].mxu0 %v7398
        %v7593 = vpop.f32.mrb[0].mxu0
        %v7594 = vadd.f32 0.0, %v7593
        %v7595 = vpop.f32.mrb[0].mxu0
        %7596 = vmatprep.mubr.f32.mxu0 0.0
        %7597 = vmatmul.mubr.f32.gmra.mrb[0].mxu0 %v7401
        %v7598 = vpop.f32.mrb[0].mxu0
        %v7599 = vadd.f32 0.0, %v7598
        %v7600 = vpop.f32.mrb[0].mxu0
        %7601 = vmatprep.mubr.f32.mxu0 0.0
        %7602 = vmatmul.mubr.f32.gmra.mrb[0].mxu0 %v7404
        %v7603 = vpop.f32.mrb[0].mxu0
        %v7604 = vadd.f32 0.0, %v7603
        %v7605 = vpop.f32.mrb[0].mxu0
        %7606 = vmatprep.mubr.f32.mxu0 0.0
        %7607 = vmatmul.mubr.f32.gmra.mrb[0].mxu0 %v7407
        %v7608 = vpop.f32.mrb[0].mxu0
        %v7609 = vadd.f32 0.0, %v7608
        %v7610 = vpop.f32.mrb[0].mxu0
        %7611 = vmatprep.mubr.f32.mxu0 0.0
        %7612 = vmatmul.mubr.f32.gmra.mrb[0].mxu0 %v7410
        %v7613 = vpop.f32.mrb[0].mxu0
        %v7614 = vadd.f32 0.0, %v7613
        %v7615 = vpop.f32.mrb[0].mxu0
        %7616 = vmatprep.mubr.f32.mxu0 0.0
        %7617 = vmatmul.mubr.f32.gmra.mrb[0].mxu0 %v7413
        %v7618 = vpop.f32.mrb[0].mxu0
        %v7619 = vadd.f32 0.0, %v7618
        %v7620 = vpop.f32.mrb[0].mxu0
        %7621 = vmatprep.mubr.f32.mxu0 0.0
        %7622 = vmatmul.mubr.f32.gmra.mrb[0].mxu0 %v7416
        %v7623 = vpop.f32.mrb[0].mxu0
        %v7624 = vadd.f32 0.0, %v7623
        %v7625 = vpop.f32.mrb[0].mxu0
        %7626 = vmatprep.mubr.f32.mxu0 0.0
        %7627 = vmatmul.mubr.f32.gmra.mrb[0].mxu0 %v7419
        %v7628 = vpop.f32.mrb[0].mxu0
        %v7629 = vadd.f32 0.0, %v7628
        %v7630 = vpop.f32.mrb[0].mxu0
        %7631 = vmatprep.mubr.f32.mxu0 0.0
        %7632 = vmatmul.mubr.f32.gmra.mrb[0].mxu0 %v7422
        %v7633 = vpop.f32.mrb[0].mxu0
        %v7634 = vadd.f32 0.0, %v7633
        %v7635 = vpop.f32.mrb[0].mxu0
        %7636 = vmatprep.mubr.f32.mxu0 0.0
        %7637 = vmatmul.mubr.f32.gmra.mrb[0].mxu0 %v7425
        %v7638 = vpop.f32.mrb[0].mxu0
        %v7639 = vadd.f32 0.0, %v7638
        %v7640 = vpop.f32.mrb[0].mxu0
        %7641 = vmatprep.mubr.f32.mxu0 0.0
        %7642 = vmatmul.mubr.f32.gmra.mrb[0].mxu0 %v7428
        %v7643 = vpop.f32.mrb[0].mxu0
        %v7644 = vadd.f32 0.0, %v7643
        %v7645 = vpop.f32.mrb[0].mxu0
        %7646 = vmatprep.mubr.f32.mxu0 0.0
        %7647 = vmatmul.mubr.f32.gmra.mrb[0].mxu0 %v7431
        %v7648 = vpop.f32.mrb[0].mxu0
        %v7649 = vadd.f32 0.0, %v7648
        %v7650 = vpop.f32.mrb[0].mxu0
        %7651 = vmatprep.mubr.f32.mxu0 0.0
        %7652 = vmatmul.mubr.f32.gmra.mrb[0].mxu0 %v7434
        %v7653 = vpop.f32.mrb[0].mxu0
        %v7654 = vadd.f32 0.0, %v7653
        %v7655 = vpop.f32.mrb[0].mxu0
        %7656 = vmatprep.mubr.f32.mxu0 0.0
        %7657 = vmatmul.mubr.f32.gmra.mrb[0].mxu0 %v7437
        %v7658 = vpop.f32.mrb[0].mxu0
        %v7659 = vadd.f32 0.0, %v7658
        %v7660 = vpop.f32.mrb[0].mxu0
        %7661 = vmatprep.mubr.f32.mxu0 0.0
        %7662 = vmatmul.mubr.f32.gmra.mrb[0].mxu0 %v7440
        %v7663 = vpop.f32.mrb[0].mxu0
        %v7664 = vadd.f32 0.0, %v7663
        %v7665 = vpop.f32.mrb[0].mxu0
        %7666 = vdwg.mxu0
        %v7667 = vadd.f32 %v7280, %v7509
        %v7668 = vadd.f32 %v7281, %v7514
        %v7669 = vadd.f32 %v7282, %v7519
        %v7670 = vadd.f32 %v7283, %v7524
        %v7671 = vadd.f32 %v7284, %v7529
        %v7672 = vadd.f32 %v7285, %v7534
        %v7673 = vadd.f32 %v7286, %v7539
        %v7674 = vadd.f32 %v7287, %v7544
        %v7675 = vadd.f32 %v7288, %v7549
        %v7676 = vadd.f32 %v7289, %v7554
        %v7677 = vadd.f32 %v7290, %v7559
        %v7678 = vadd.f32 %v7291, %v7564
        %v7679 = vadd.f32 %v7292, %v7569
        %v7680 = vadd.f32 %v7293, %v7574
        %v7681 = vadd.f32 %v7294, %v7579
        %v7682 = vadd.f32 %v7295, %v7584
        %v7683 = vadd.f32 %v7296, %v7589
        %v7684 = vadd.f32 %v7297, %v7594
        %v7685 = vadd.f32 %v7298, %v7599
        %v7686 = vadd.f32 %v7299, %v7604
        %v7687 = vadd.f32 %v7300, %v7609
        %v7688 = vadd.f32 %v7301, %v7614
        %v7689 = vadd.f32 %v7302, %v7619
        %v7690 = vadd.f32 %v7303, %v7624
        %v7691 = vadd.f32 %v7304, %v7629
        %v7692 = vadd.f32 %v7305, %v7634
        %v7693 = vadd.f32 %v7306, %v7639
        %v7694 = vadd.f32 %v7307, %v7644
        %v7695 = vadd.f32 %v7308, %v7649
        %v7696 = vadd.f32 %v7309, %v7654
        %v7697 = vadd.f32 %v7310, %v7659
        %v7698 = vadd.f32 %v7311, %v7664
        %v7699 = vld [vmem:[%s3210 + $0x2] sm:$0xff]
        %v7700 = vld [vmem:[%s3210 + $0xa] sm:$0xff]
        %v7701 = vld [vmem:[%s3210 + $0x1a] sm:$0xff]
        %v7702 = vld [vmem:[%s3210 + $0x22] sm:$0xff]
        %v7703 = vld [vmem:[%s3210 + $0x32] sm:$0xff]
        %v7704 = vld [vmem:[%s3210 + $0x3a] sm:$0xff]
        %v7705 = vld [vmem:[%s3210 + $0x4a] sm:$0xff]
        %v7706 = vld [vmem:[%s3210 + $0x52] sm:$0xff]
        %v7707 = vld [vmem:[%s3210 + $0x62] sm:$0xff]
        %v7708 = vld [vmem:[%s3210 + $0x6a] sm:$0xff]
        %v7709 = vld [vmem:[%s3210 + $0x7a] sm:$0xff]
        %v7710 = vld [vmem:[%s3210 + $0x82] sm:$0xff]
        %v7711 = vld [vmem:[%s3210 + $0x92] sm:$0xff]
        %v7712 = vld [vmem:[%s3210 + $0x9a] sm:$0xff]
        %v7713 = vld [vmem:[%s3210 + $0xaa] sm:$0xff]
        %v7714 = vld [vmem:[%s3210 + $0xb2] sm:$0xff]
        %v7715 = vld [vmem:[%s3210 + $0xc2] sm:$0xff]
        %v7716 = vld [vmem:[%s3210 + $0xca] sm:$0xff]
        %v7717 = vld [vmem:[%s3210 + $0xda] sm:$0xff]
        %v7718 = vld [vmem:[%s3210 + $0xe2] sm:$0xff]
        %v7719 = vld [vmem:[%s3210 + $0xf2] sm:$0xff]
        %v7720 = vld [vmem:[%s3210 + $0xfa] sm:$0xff]
        %v7721 = vld [vmem:[%s3210 + $0x10a] sm:$0xff]
        %v7722 = vld [vmem:[%s3210 + $0x112] sm:$0xff]
        %v7723 = vld [vmem:[%s3210 + $0x122] sm:$0xff]
        %v7724 = vld [vmem:[%s3210 + $0x12a] sm:$0xff]
        %v7725 = vld [vmem:[%s3210 + $0x13a] sm:$0xff]
        %v7726 = vld [vmem:[%s3210 + $0x142] sm:$0xff]
        %v7727 = vld [vmem:[%s3210 + $0x152] sm:$0xff]
        %v7728 = vld [vmem:[%s3210 + $0x15a] sm:$0xff]
        %v7729 = vld [vmem:[%s3210 + $0x16a] sm:$0xff]
        %v7730 = vld [vmem:[%s3210 + $0x172] sm:$0xff]
        %s7731 = scalar_lea.vmem %s3, 136
        %v7732 = vld [vmem:[%s7731] sm:$0xff]
        %v7734 = vsel %vm864, %v7699, 0
        %v7737 = vsel %vm864, %v7700, 0
        %v7740 = vsel %vm864, %v7701, 0
        %v7743 = vsel %vm864, %v7702, 0
        %v7746 = vsel %vm864, %v7703, 0
        %v7749 = vsel %vm864, %v7704, 0
        %v7752 = vsel %vm864, %v7705, 0
        %v7755 = vsel %vm864, %v7706, 0
        %v7758 = vsel %vm864, %v7707, 0
        %v7761 = vsel %vm864, %v7708, 0
        %v7764 = vsel %vm864, %v7709, 0
        %v7767 = vsel %vm864, %v7710, 0
        %v7770 = vsel %vm864, %v7711, 0
        %v7773 = vsel %vm864, %v7712, 0
        %v7776 = vsel %vm864, %v7713, 0
        %v7779 = vsel %vm864, %v7714, 0
        %v7782 = vsel %vm864, %v7715, 0
        %v7785 = vsel %vm864, %v7716, 0
        %v7788 = vsel %vm864, %v7717, 0
        %v7791 = vsel %vm864, %v7718, 0
        %v7794 = vsel %vm864, %v7719, 0
        %v7797 = vsel %vm864, %v7720, 0
        %v7800 = vsel %vm864, %v7721, 0
        %v7803 = vsel %vm864, %v7722, 0
        %v7806 = vsel %vm864, %v7723, 0
        %v7809 = vsel %vm864, %v7724, 0
        %v7812 = vsel %vm864, %v7725, 0
        %v7815 = vsel %vm864, %v7726, 0
        %v7818 = vsel %vm864, %v7727, 0
        %v7821 = vsel %vm864, %v7728, 0
        %v7824 = vsel %vm864, %v7729, 0
        %v7827 = vsel %vm864, %v7730, 0
        %7829 = vmatprep.subr.mxu0 0.0
        %7830 = vmatpush1.msra.mxu0 %v7732
        %7831 = vmatprep.subr.mxu0 0.0
        %7832 = vmatpush1.msra.mxu0 0.0
        %7833 = vmatprep.subr.mxu0 0.0
        %7834 = vmatpush1.msra.mxu0 0.0
        %7835 = vmatprep.subr.mxu0 0.0
        %7836 = vmatpush1.msra.mxu0 0.0
        %7837 = vmatprep.subr.mxu0 0.0
        %7838 = vmatpush1.msra.mxu0 0.0
        %7839 = vmatprep.subr.mxu0 0.0
        %7840 = vmatpush1.msra.mxu0 0.0
        %7841 = vmatprep.subr.mxu0 0.0
        %7842 = vmatpush1.msra.mxu0 0.0
        %7843 = vmatprep.subr.mxu0 0.0
        %7844 = vmatpush1.msra.mxu0 0.0
        %7845 = vmatprep.subr.mxu0 0.0
        %7846 = vmatpush1.msra.mxu0 0.0
        %7847 = vmatprep.subr.mxu0 0.0
        %7848 = vmatpush1.msra.mxu0 0.0
        %7849 = vmatprep.subr.mxu0 0.0
        %7850 = vmatpush1.msra.mxu0 0.0
        %7851 = vmatprep.subr.mxu0 0.0
        %7852 = vmatpush1.msra.mxu0 0.0
        %7853 = vmatprep.subr.mxu0 0.0
        %7854 = vmatpush1.msra.mxu0 0.0
        %7855 = vmatprep.subr.mxu0 0.0
        %7856 = vmatpush1.msra.mxu0 0.0
        %7857 = vmatprep.subr.mxu0 0.0
        %7858 = vmatpush1.msra.mxu0 0.0
        %7859 = vmatprep.subr.mxu0 0.0
        %7860 = vmatpush1.msra.mxu0 0.0
        %7861 = vmatprep.subr.mxu0 0.0
        %7862 = vmatpush1.msra.mxu0 0.0
        %7863 = vmatprep.subr.mxu0 0.0
        %7864 = vmatpush1.msra.mxu0 0.0
        %7865 = vmatprep.subr.mxu0 0.0
        %7866 = vmatpush1.msra.mxu0 0.0
        %7867 = vmatprep.subr.mxu0 0.0
        %7868 = vmatpush1.msra.mxu0 0.0
        %7869 = vmatprep.subr.mxu0 0.0
        %7870 = vmatpush1.msra.mxu0 0.0
        %7871 = vmatprep.subr.mxu0 0.0
        %7872 = vmatpush1.msra.mxu0 0.0
        %7873 = vmatprep.subr.mxu0 0.0
        %7874 = vmatpush1.msra.mxu0 0.0
        %7875 = vmatprep.subr.mxu0 0.0
        %7876 = vmatpush1.msra.mxu0 0.0
        %7877 = vmatprep.subr.mxu0 0.0
        %7878 = vmatpush1.msra.mxu0 0.0
        %7879 = vmatprep.subr.mxu0 0.0
        %7880 = vmatpush1.msra.mxu0 0.0
        %7881 = vmatprep.subr.mxu0 0.0
        %7882 = vmatpush1.msra.mxu0 0.0
        %7883 = vmatprep.subr.mxu0 0.0
        %7884 = vmatpush1.msra.mxu0 0.0
        %7885 = vmatprep.subr.mxu0 0.0
        %7886 = vmatpush1.msra.mxu0 0.0
        %7887 = vmatprep.subr.mxu0 0.0
        %7888 = vmatpush1.msra.mxu0 0.0
        %7889 = vmatprep.subr.mxu0 0.0
        %7890 = vmatpush1.msra.mxu0 0.0
        %7891 = vmatprep.subr.mxu0 0.0
        %7892 = vmatpush1.msra.mxu0 0.0
        %7893 = vmatprep.mubr.f32.mxu0 0.0
        %7894 = vmatmul.mubr.f32.gmra.mrb[0].mxu0 %v7734
        %v7895 = vpop.f32.mrb[0].mxu0
        %v7896 = vadd.f32 0.0, %v7895
        %v7897 = vpop.f32.mrb[0].mxu0
        %7898 = vmatprep.mubr.f32.mxu0 0.0
        %7899 = vmatmul.mubr.f32.gmra.mrb[0].mxu0 %v7737
        %v7900 = vpop.f32.mrb[0].mxu0
        %v7901 = vadd.f32 0.0, %v7900
        %v7902 = vpop.f32.mrb[0].mxu0
        %7903 = vmatprep.mubr.f32.mxu0 0.0
        %7904 = vmatmul.mubr.f32.gmra.mrb[0].mxu0 %v7740
        %v7905 = vpop.f32.mrb[0].mxu0
        %v7906 = vadd.f32 0.0, %v7905
        %v7907 = vpop.f32.mrb[0].mxu0
        %7908 = vmatprep.mubr.f32.mxu0 0.0
        %7909 = vmatmul.mubr.f32.gmra.mrb[0].mxu0 %v7743
        %v7910 = vpop.f32.mrb[0].mxu0
        %v7911 = vadd.f32 0.0, %v7910
        %v7912 = vpop.f32.mrb[0].mxu0
        %7913 = vmatprep.mubr.f32.mxu0 0.0
        %7914 = vmatmul.mubr.f32.gmra.mrb[0].mxu0 %v7746
        %v7915 = vpop.f32.mrb[0].mxu0
        %v7916 = vadd.f32 0.0, %v7915
        %v7917 = vpop.f32.mrb[0].mxu0
        %7918 = vmatprep.mubr.f32.mxu0 0.0
        %7919 = vmatmul.mubr.f32.gmra.mrb[0].mxu0 %v7749
        %v7920 = vpop.f32.mrb[0].mxu0
        %v7921 = vadd.f32 0.0, %v7920
        %v7922 = vpop.f32.mrb[0].mxu0
        %7923 = vmatprep.mubr.f32.mxu0 0.0
        %7924 = vmatmul.mubr.f32.gmra.mrb[0].mxu0 %v7752
        %v7925 = vpop.f32.mrb[0].mxu0
        %v7926 = vadd.f32 0.0, %v7925
        %v7927 = vpop.f32.mrb[0].mxu0
        %7928 = vmatprep.mubr.f32.mxu0 0.0
        %7929 = vmatmul.mubr.f32.gmra.mrb[0].mxu0 %v7755
        %v7930 = vpop.f32.mrb[0].mxu0
        %v7931 = vadd.f32 0.0, %v7930
        %v7932 = vpop.f32.mrb[0].mxu0
        %7933 = vmatprep.mubr.f32.mxu0 0.0
        %7934 = vmatmul.mubr.f32.gmra.mrb[0].mxu0 %v7758
        %v7935 = vpop.f32.mrb[0].mxu0
        %v7936 = vadd.f32 0.0, %v7935
        %v7937 = vpop.f32.mrb[0].mxu0
        %7938 = vmatprep.mubr.f32.mxu0 0.0
        %7939 = vmatmul.mubr.f32.gmra.mrb[0].mxu0 %v7761
        %v7940 = vpop.f32.mrb[0].mxu0
        %v7941 = vadd.f32 0.0, %v7940
        %v7942 = vpop.f32.mrb[0].mxu0
        %7943 = vmatprep.mubr.f32.mxu0 0.0
        %7944 = vmatmul.mubr.f32.gmra.mrb[0].mxu0 %v7764
        %v7945 = vpop.f32.mrb[0].mxu0
        %v7946 = vadd.f32 0.0, %v7945
        %v7947 = vpop.f32.mrb[0].mxu0
        %7948 = vmatprep.mubr.f32.mxu0 0.0
        %7949 = vmatmul.mubr.f32.gmra.mrb[0].mxu0 %v7767
        %v7950 = vpop.f32.mrb[0].mxu0
        %v7951 = vadd.f32 0.0, %v7950
        %v7952 = vpop.f32.mrb[0].mxu0
        %7953 = vmatprep.mubr.f32.mxu0 0.0
        %7954 = vmatmul.mubr.f32.gmra.mrb[0].mxu0 %v7770
        %v7955 = vpop.f32.mrb[0].mxu0
        %v7956 = vadd.f32 0.0, %v7955
        %v7957 = vpop.f32.mrb[0].mxu0
        %7958 = vmatprep.mubr.f32.mxu0 0.0
        %7959 = vmatmul.mubr.f32.gmra.mrb[0].mxu0 %v7773
        %v7960 = vpop.f32.mrb[0].mxu0
        %v7961 = vadd.f32 0.0, %v7960
        %v7962 = vpop.f32.mrb[0].mxu0
        %7963 = vmatprep.mubr.f32.mxu0 0.0
        %7964 = vmatmul.mubr.f32.gmra.mrb[0].mxu0 %v7776
        %v7965 = vpop.f32.mrb[0].mxu0
        %v7966 = vadd.f32 0.0, %v7965
        %v7967 = vpop.f32.mrb[0].mxu0
        %7968 = vmatprep.mubr.f32.mxu0 0.0
        %7969 = vmatmul.mubr.f32.gmra.mrb[0].mxu0 %v7779
        %v7970 = vpop.f32.mrb[0].mxu0
        %v7971 = vadd.f32 0.0, %v7970
        %v7972 = vpop.f32.mrb[0].mxu0
        %7973 = vmatprep.mubr.f32.mxu0 0.0
        %7974 = vmatmul.mubr.f32.gmra.mrb[0].mxu0 %v7782
        %v7975 = vpop.f32.mrb[0].mxu0
        %v7976 = vadd.f32 0.0, %v7975
        %v7977 = vpop.f32.mrb[0].mxu0
        %7978 = vmatprep.mubr.f32.mxu0 0.0
        %7979 = vmatmul.mubr.f32.gmra.mrb[0].mxu0 %v7785
        %v7980 = vpop.f32.mrb[0].mxu0
        %v7981 = vadd.f32 0.0, %v7980
        %v7982 = vpop.f32.mrb[0].mxu0
        %7983 = vmatprep.mubr.f32.mxu0 0.0
        %7984 = vmatmul.mubr.f32.gmra.mrb[0].mxu0 %v7788
        %v7985 = vpop.f32.mrb[0].mxu0
        %v7986 = vadd.f32 0.0, %v7985
        %v7987 = vpop.f32.mrb[0].mxu0
        %7988 = vmatprep.mubr.f32.mxu0 0.0
        %7989 = vmatmul.mubr.f32.gmra.mrb[0].mxu0 %v7791
        %v7990 = vpop.f32.mrb[0].mxu0
        %v7991 = vadd.f32 0.0, %v7990
        %v7992 = vpop.f32.mrb[0].mxu0
        %7993 = vmatprep.mubr.f32.mxu0 0.0
        %7994 = vmatmul.mubr.f32.gmra.mrb[0].mxu0 %v7794
        %v7995 = vpop.f32.mrb[0].mxu0
        %v7996 = vadd.f32 0.0, %v7995
        %v7997 = vpop.f32.mrb[0].mxu0
        %7998 = vmatprep.mubr.f32.mxu0 0.0
        %7999 = vmatmul.mubr.f32.gmra.mrb[0].mxu0 %v7797
        %v8000 = vpop.f32.mrb[0].mxu0
        %v8001 = vadd.f32 0.0, %v8000
        %v8002 = vpop.f32.mrb[0].mxu0
        %8003 = vmatprep.mubr.f32.mxu0 0.0
        %8004 = vmatmul.mubr.f32.gmra.mrb[0].mxu0 %v7800
        %v8005 = vpop.f32.mrb[0].mxu0
        %v8006 = vadd.f32 0.0, %v8005
        %v8007 = vpop.f32.mrb[0].mxu0
        %8008 = vmatprep.mubr.f32.mxu0 0.0
        %8009 = vmatmul.mubr.f32.gmra.mrb[0].mxu0 %v7803
        %v8010 = vpop.f32.mrb[0].mxu0
        %v8011 = vadd.f32 0.0, %v8010
        %v8012 = vpop.f32.mrb[0].mxu0
        %8013 = vmatprep.mubr.f32.mxu0 0.0
        %8014 = vmatmul.mubr.f32.gmra.mrb[0].mxu0 %v7806
        %v8015 = vpop.f32.mrb[0].mxu0
        %v8016 = vadd.f32 0.0, %v8015
        %v8017 = vpop.f32.mrb[0].mxu0
        %8018 = vmatprep.mubr.f32.mxu0 0.0
        %8019 = vmatmul.mubr.f32.gmra.mrb[0].mxu0 %v7809
        %v8020 = vpop.f32.mrb[0].mxu0
        %v8021 = vadd.f32 0.0, %v8020
        %v8022 = vpop.f32.mrb[0].mxu0
        %8023 = vmatprep.mubr.f32.mxu0 0.0
        %8024 = vmatmul.mubr.f32.gmra.mrb[0].mxu0 %v7812
        %v8025 = vpop.f32.mrb[0].mxu0
        %v8026 = vadd.f32 0.0, %v8025
        %v8027 = vpop.f32.mrb[0].mxu0
        %8028 = vmatprep.mubr.f32.mxu0 0.0
        %8029 = vmatmul.mubr.f32.gmra.mrb[0].mxu0 %v7815
        %v8030 = vpop.f32.mrb[0].mxu0
        %v8031 = vadd.f32 0.0, %v8030
        %v8032 = vpop.f32.mrb[0].mxu0
        %8033 = vmatprep.mubr.f32.mxu0 0.0
        %8034 = vmatmul.mubr.f32.gmra.mrb[0].mxu0 %v7818
        %v8035 = vpop.f32.mrb[0].mxu0
        %v8036 = vadd.f32 0.0, %v8035
        %v8037 = vpop.f32.mrb[0].mxu0
        %8038 = vmatprep.mubr.f32.mxu0 0.0
        %8039 = vmatmul.mubr.f32.gmra.mrb[0].mxu0 %v7821
        %v8040 = vpop.f32.mrb[0].mxu0
        %v8041 = vadd.f32 0.0, %v8040
        %v8042 = vpop.f32.mrb[0].mxu0
        %8043 = vmatprep.mubr.f32.mxu0 0.0
        %8044 = vmatmul.mubr.f32.gmra.mrb[0].mxu0 %v7824
        %v8045 = vpop.f32.mrb[0].mxu0
        %v8046 = vadd.f32 0.0, %v8045
        %v8047 = vpop.f32.mrb[0].mxu0
        %8048 = vmatprep.mubr.f32.mxu0 0.0
        %8049 = vmatmul.mubr.f32.gmra.mrb[0].mxu0 %v7827
        %v8050 = vpop.f32.mrb[0].mxu0
        %v8051 = vadd.f32 0.0, %v8050
        %v8052 = vpop.f32.mrb[0].mxu0
        %8053 = vdwg.mxu0
        %v8054 = vadd.f32 %v7667, %v7896
        %v8055 = vadd.f32 %v7668, %v7901
        %v8056 = vadd.f32 %v7669, %v7906
        %v8057 = vadd.f32 %v7670, %v7911
        %v8058 = vadd.f32 %v7671, %v7916
        %v8059 = vadd.f32 %v7672, %v7921
        %v8060 = vadd.f32 %v7673, %v7926
        %v8061 = vadd.f32 %v7674, %v7931
        %v8062 = vadd.f32 %v7675, %v7936
        %v8063 = vadd.f32 %v7676, %v7941
        %v8064 = vadd.f32 %v7677, %v7946
        %v8065 = vadd.f32 %v7678, %v7951
        %v8066 = vadd.f32 %v7679, %v7956
        %v8067 = vadd.f32 %v7680, %v7961
        %v8068 = vadd.f32 %v7681, %v7966
        %v8069 = vadd.f32 %v7682, %v7971
        %v8070 = vadd.f32 %v7683, %v7976
        %v8071 = vadd.f32 %v7684, %v7981
        %v8072 = vadd.f32 %v7685, %v7986
        %v8073 = vadd.f32 %v7686, %v7991
        %v8074 = vadd.f32 %v7687, %v7996
        %v8075 = vadd.f32 %v7688, %v8001
        %v8076 = vadd.f32 %v7689, %v8006
        %v8077 = vadd.f32 %v7690, %v8011
        %v8078 = vadd.f32 %v7691, %v8016
        %v8079 = vadd.f32 %v7692, %v8021
        %v8080 = vadd.f32 %v7693, %v8026
        %v8081 = vadd.f32 %v7694, %v8031
        %v8082 = vadd.f32 %v7695, %v8036
        %v8083 = vadd.f32 %v7696, %v8041
        %v8084 = vadd.f32 %v7697, %v8046
        %v8085 = vadd.f32 %v7698, %v8051
        %s8086 = scalar_lea.vmem %s4, 1
        %v8087 = vld [vmem:[%s8086] sm:$0x1]
        %v8089 = vlaneseq
        %v8090 = vshrl.u32 %v8089, 7
        %v8091 = vsub.s32 0, %v8090
        %v8092 = vrot.slane %v8087, %v8091
        %v8094 = vadd.f32 %v8054, %v8092
        %v8095 = vadd.f32 %v8055, %v8092
        %v8096 = vadd.f32 %v8056, %v8092
        %v8097 = vadd.f32 %v8057, %v8092
        %v8098 = vadd.f32 %v8058, %v8092
        %v8099 = vadd.f32 %v8059, %v8092
        %v8100 = vadd.f32 %v8060, %v8092
        %v8101 = vadd.f32 %v8061, %v8092
        %v8102 = vadd.f32 %v8062, %v8092
        %v8103 = vadd.f32 %v8063, %v8092
        %v8104 = vadd.f32 %v8064, %v8092
        %v8105 = vadd.f32 %v8065, %v8092
        %v8106 = vadd.f32 %v8066, %v8092
        %v8107 = vadd.f32 %v8067, %v8092
        %v8108 = vadd.f32 %v8068, %v8092
        %v8109 = vadd.f32 %v8069, %v8092
        %v8110 = vadd.f32 %v8070, %v8092
        %v8111 = vadd.f32 %v8071, %v8092
        %v8112 = vadd.f32 %v8072, %v8092
        %v8113 = vadd.f32 %v8073, %v8092
        %v8114 = vadd.f32 %v8074, %v8092
        %v8115 = vadd.f32 %v8075, %v8092
        %v8116 = vadd.f32 %v8076, %v8092
        %v8117 = vadd.f32 %v8077, %v8092
        %v8118 = vadd.f32 %v8078, %v8092
        %v8119 = vadd.f32 %v8079, %v8092
        %v8120 = vadd.f32 %v8080, %v8092
        %v8121 = vadd.f32 %v8081, %v8092
        %v8122 = vadd.f32 %v8082, %v8092
        %v8123 = vadd.f32 %v8083, %v8092
        %v8124 = vadd.f32 %v8084, %v8092
        %v8125 = vadd.f32 %v8085, %v8092
        %v8126 = vxor.u32 %v8094, 2147483648
        %v8127 = vxor.u32 %v8095, 2147483648
        %v8128 = vxor.u32 %v8096, 2147483648
        %v8129 = vxor.u32 %v8097, 2147483648
        %v8130 = vxor.u32 %v8098, 2147483648
        %v8131 = vxor.u32 %v8099, 2147483648
        %v8132 = vxor.u32 %v8100, 2147483648
        %v8133 = vxor.u32 %v8101, 2147483648
        %v8134 = vxor.u32 %v8102, 2147483648
        %v8135 = vxor.u32 %v8103, 2147483648
        %v8136 = vxor.u32 %v8104, 2147483648
        %v8137 = vxor.u32 %v8105, 2147483648
        %v8138 = vxor.u32 %v8106, 2147483648
        %v8139 = vxor.u32 %v8107, 2147483648
        %v8140 = vxor.u32 %v8108, 2147483648
        %v8141 = vxor.u32 %v8109, 2147483648
        %v8142 = vxor.u32 %v8110, 2147483648
        %v8143 = vxor.u32 %v8111, 2147483648
        %v8144 = vxor.u32 %v8112, 2147483648
        %v8145 = vxor.u32 %v8113, 2147483648
        %v8146 = vxor.u32 %v8114, 2147483648
        %v8147 = vxor.u32 %v8115, 2147483648
        %v8148 = vxor.u32 %v8116, 2147483648
        %v8149 = vxor.u32 %v8117, 2147483648
        %v8150 = vxor.u32 %v8118, 2147483648
        %v8151 = vxor.u32 %v8119, 2147483648
        %v8152 = vxor.u32 %v8120, 2147483648
        %v8153 = vxor.u32 %v8121, 2147483648
        %v8154 = vxor.u32 %v8122, 2147483648
        %v8155 = vxor.u32 %v8123, 2147483648
        %v8156 = vxor.u32 %v8124, 2147483648
        %v8157 = vxor.u32 %v8125, 2147483648
        %v8158 = vmul.f32 %v8126, 1.442695
        %v8159 = vpow.pop %v8158
        %v8160 = vmul.f32 %v8127, 1.442695
        %v8161 = vpow.pop %v8160
        %v8162 = vmul.f32 %v8128, 1.442695
        %v8163 = vpow.pop %v8162
        %v8164 = vmul.f32 %v8129, 1.442695
        %v8165 = vpow.pop %v8164
        %v8166 = vmul.f32 %v8130, 1.442695
        %v8167 = vpow.pop %v8166
        %v8168 = vmul.f32 %v8131, 1.442695
        %v8169 = vpow.pop %v8168
        %v8170 = vmul.f32 %v8132, 1.442695
        %v8171 = vpow.pop %v8170
        %v8172 = vmul.f32 %v8133, 1.442695
        %v8173 = vpow.pop %v8172
        %v8174 = vmul.f32 %v8134, 1.442695
        %v8175 = vpow.pop %v8174
        %v8176 = vmul.f32 %v8135, 1.442695
        %v8177 = vpow.pop %v8176
        %v8178 = vmul.f32 %v8136, 1.442695
        %v8179 = vpow.pop %v8178
        %v8180 = vmul.f32 %v8137, 1.442695
        %v8181 = vpow.pop %v8180
        %v8182 = vmul.f32 %v8138, 1.442695
        %v8183 = vpow.pop %v8182
        %v8184 = vmul.f32 %v8139, 1.442695
        %v8185 = vpow.pop %v8184
        %v8186 = vmul.f32 %v8140, 1.442695
        %v8187 = vpow.pop %v8186
        %v8188 = vmul.f32 %v8141, 1.442695
        %v8189 = vpow.pop %v8188
        %v8190 = vmul.f32 %v8142, 1.442695
        %v8191 = vpow.pop %v8190
        %v8192 = vmul.f32 %v8143, 1.442695
        %v8193 = vpow.pop %v8192
        %v8194 = vmul.f32 %v8144, 1.442695
        %v8195 = vpow.pop %v8194
        %v8196 = vmul.f32 %v8145, 1.442695
        %v8197 = vpow.pop %v8196
        %v8198 = vmul.f32 %v8146, 1.442695
        %v8199 = vpow.pop %v8198
        %v8200 = vmul.f32 %v8147, 1.442695
        %v8201 = vpow.pop %v8200
        %v8202 = vmul.f32 %v8148, 1.442695
        %v8203 = vpow.pop %v8202
        %v8204 = vmul.f32 %v8149, 1.442695
        %v8205 = vpow.pop %v8204
        %v8206 = vmul.f32 %v8150, 1.442695
        %v8207 = vpow.pop %v8206
        %v8208 = vmul.f32 %v8151, 1.442695
        %v8209 = vpow.pop %v8208
        %v8210 = vmul.f32 %v8152, 1.442695
        %v8211 = vpow.pop %v8210
        %v8212 = vmul.f32 %v8153, 1.442695
        %v8213 = vpow.pop %v8212
        %v8214 = vmul.f32 %v8154, 1.442695
        %v8215 = vpow.pop %v8214
        %v8216 = vmul.f32 %v8155, 1.442695
        %v8217 = vpow.pop %v8216
        %v8218 = vmul.f32 %v8156, 1.442695
        %v8219 = vpow.pop %v8218
        %v8220 = vmul.f32 %v8157, 1.442695
        %v8221 = vpow.pop %v8220
        %v8222 = vadd.f32 %v8159, 1.0
        %v8223 = vadd.f32 %v8161, 1.0
        %v8224 = vadd.f32 %v8163, 1.0
        %v8225 = vadd.f32 %v8165, 1.0
        %v8226 = vadd.f32 %v8167, 1.0
        %v8227 = vadd.f32 %v8169, 1.0
        %v8228 = vadd.f32 %v8171, 1.0
        %v8229 = vadd.f32 %v8173, 1.0
        %v8230 = vadd.f32 %v8175, 1.0
        %v8231 = vadd.f32 %v8177, 1.0
        %v8232 = vadd.f32 %v8179, 1.0
        %v8233 = vadd.f32 %v8181, 1.0
        %v8234 = vadd.f32 %v8183, 1.0
        %v8235 = vadd.f32 %v8185, 1.0
        %v8236 = vadd.f32 %v8187, 1.0
        %v8237 = vadd.f32 %v8189, 1.0
        %v8238 = vadd.f32 %v8191, 1.0
        %v8239 = vadd.f32 %v8193, 1.0
        %v8240 = vadd.f32 %v8195, 1.0
        %v8241 = vadd.f32 %v8197, 1.0
        %v8242 = vadd.f32 %v8199, 1.0
        %v8243 = vadd.f32 %v8201, 1.0
        %v8244 = vadd.f32 %v8203, 1.0
        %v8245 = vadd.f32 %v8205, 1.0
        %v8246 = vadd.f32 %v8207, 1.0
        %v8247 = vadd.f32 %v8209, 1.0
        %v8248 = vadd.f32 %v8211, 1.0
        %v8249 = vadd.f32 %v8213, 1.0
        %v8250 = vadd.f32 %v8215, 1.0
        %v8251 = vadd.f32 %v8217, 1.0
        %v8252 = vadd.f32 %v8219, 1.0
        %v8253 = vadd.f32 %v8221, 1.0
        %v8254 = vrcp.pop %v8222
        %v8255 = vmul.f32 1.0, %v8254
        %v8256 = vrcp.pop %v8223
        %v8257 = vmul.f32 1.0, %v8256
        %v8258 = vrcp.pop %v8224
        %v8259 = vmul.f32 1.0, %v8258
        %v8260 = vrcp.pop %v8225
        %v8261 = vmul.f32 1.0, %v8260
        %v8262 = vrcp.pop %v8226
        %v8263 = vmul.f32 1.0, %v8262
        %v8264 = vrcp.pop %v8227
        %v8265 = vmul.f32 1.0, %v8264
        %v8266 = vrcp.pop %v8228
        %v8267 = vmul.f32 1.0, %v8266
        %v8268 = vrcp.pop %v8229
        %v8269 = vmul.f32 1.0, %v8268
        %v8270 = vrcp.pop %v8230
        %v8271 = vmul.f32 1.0, %v8270
        %v8272 = vrcp.pop %v8231
        %v8273 = vmul.f32 1.0, %v8272
        %v8274 = vrcp.pop %v8232
        %v8275 = vmul.f32 1.0, %v8274
        %v8276 = vrcp.pop %v8233
        %v8277 = vmul.f32 1.0, %v8276
        %v8278 = vrcp.pop %v8234
        %v8279 = vmul.f32 1.0, %v8278
        %v8280 = vrcp.pop %v8235
        %v8281 = vmul.f32 1.0, %v8280
        %v8282 = vrcp.pop %v8236
        %v8283 = vmul.f32 1.0, %v8282
        %v8284 = vrcp.pop %v8237
        %v8285 = vmul.f32 1.0, %v8284
        %v8286 = vrcp.pop %v8238
        %v8287 = vmul.f32 1.0, %v8286
        %v8288 = vrcp.pop %v8239
        %v8289 = vmul.f32 1.0, %v8288
        %v8290 = vrcp.pop %v8240
        %v8291 = vmul.f32 1.0, %v8290
        %v8292 = vrcp.pop %v8241
        %v8293 = vmul.f32 1.0, %v8292
        %v8294 = vrcp.pop %v8242
        %v8295 = vmul.f32 1.0, %v8294
        %v8296 = vrcp.pop %v8243
        %v8297 = vmul.f32 1.0, %v8296
        %v8298 = vrcp.pop %v8244
        %v8299 = vmul.f32 1.0, %v8298
        %v8300 = vrcp.pop %v8245
        %v8301 = vmul.f32 1.0, %v8300
        %v8302 = vrcp.pop %v8246
        %v8303 = vmul.f32 1.0, %v8302
        %v8304 = vrcp.pop %v8247
        %v8305 = vmul.f32 1.0, %v8304
        %v8306 = vrcp.pop %v8248
        %v8307 = vmul.f32 1.0, %v8306
        %v8308 = vrcp.pop %v8249
        %v8309 = vmul.f32 1.0, %v8308
        %v8310 = vrcp.pop %v8250
        %v8311 = vmul.f32 1.0, %v8310
        %v8312 = vrcp.pop %v8251
        %v8313 = vmul.f32 1.0, %v8312
        %v8314 = vrcp.pop %v8252
        %v8315 = vmul.f32 1.0, %v8314
        %v8316 = vrcp.pop %v8253
        %v8317 = vmul.f32 1.0, %v8316
        %v8318 = vmul.f32 %v8094, %v8255
        %v8319 = vmul.f32 %v8095, %v8257
        %v8320 = vmul.f32 %v8096, %v8259
        %v8321 = vmul.f32 %v8097, %v8261
        %v8322 = vmul.f32 %v8098, %v8263
        %v8323 = vmul.f32 %v8099, %v8265
        %v8324 = vmul.f32 %v8100, %v8267
        %v8325 = vmul.f32 %v8101, %v8269
        %v8326 = vmul.f32 %v8102, %v8271
        %v8327 = vmul.f32 %v8103, %v8273
        %v8328 = vmul.f32 %v8104, %v8275
        %v8329 = vmul.f32 %v8105, %v8277
        %v8330 = vmul.f32 %v8106, %v8279
        %v8331 = vmul.f32 %v8107, %v8281
        %v8332 = vmul.f32 %v8108, %v8283
        %v8333 = vmul.f32 %v8109, %v8285
        %v8334 = vmul.f32 %v8110, %v8287
        %v8335 = vmul.f32 %v8111, %v8289
        %v8336 = vmul.f32 %v8112, %v8291
        %v8337 = vmul.f32 %v8113, %v8293
        %v8338 = vmul.f32 %v8114, %v8295
        %v8339 = vmul.f32 %v8115, %v8297
        %v8340 = vmul.f32 %v8116, %v8299
        %v8341 = vmul.f32 %v8117, %v8301
        %v8342 = vmul.f32 %v8118, %v8303
        %v8343 = vmul.f32 %v8119, %v8305
        %v8344 = vmul.f32 %v8120, %v8307
        %v8345 = vmul.f32 %v8121, %v8309
        %v8346 = vmul.f32 %v8122, %v8311
        %v8347 = vmul.f32 %v8123, %v8313
        %v8348 = vmul.f32 %v8124, %v8315
        %v8349 = vmul.f32 %v8125, %v8317
        %v8350 = vadd.f32 %v832, %v8318
        %v8351 = vadd.f32 %v833, %v8319
        %v8352 = vadd.f32 %v834, %v8320
        %v8353 = vadd.f32 %v835, %v8321
        %v8354 = vadd.f32 %v836, %v8322
        %v8355 = vadd.f32 %v837, %v8323
        %v8356 = vadd.f32 %v838, %v8324
        %v8357 = vadd.f32 %v839, %v8325
        %v8358 = vadd.f32 %v840, %v8326
        %v8359 = vadd.f32 %v841, %v8327
        %v8360 = vadd.f32 %v842, %v8328
        %v8361 = vadd.f32 %v843, %v8329
        %v8362 = vadd.f32 %v844, %v8330
        %v8363 = vadd.f32 %v845, %v8331
        %v8364 = vadd.f32 %v846, %v8332
        %v8365 = vadd.f32 %v847, %v8333
        %v8366 = vadd.f32 %v848, %v8334
        %v8367 = vadd.f32 %v849, %v8335
        %v8368 = vadd.f32 %v850, %v8336
        %v8369 = vadd.f32 %v851, %v8337
        %v8370 = vadd.f32 %v852, %v8338
        %v8371 = vadd.f32 %v853, %v8339
        %v8372 = vadd.f32 %v854, %v8340
        %v8373 = vadd.f32 %v855, %v8341
        %v8374 = vadd.f32 %v856, %v8342
        %v8375 = vadd.f32 %v857, %v8343
        %v8376 = vadd.f32 %v858, %v8344
        %v8377 = vadd.f32 %v859, %v8345
        %v8378 = vadd.f32 %v860, %v8346
        %v8379 = vadd.f32 %v861, %v8347
        %v8380 = vadd.f32 %v862, %v8348
        %v8381 = vadd.f32 %v863, %v8349
        %v8382 = vld [vmem:[%s5] sm:$0xff]
        %v8383 = vld [vmem:[%s5 + $0x8] sm:$0xff]
        %8416 = vrot.lane.b32.xlu0 %v832, 120
        %v8417 = vpop.permute.xlu0 %8416
        %8418 = vrot.lane.b32.xlu0 %v833, 120
        %v8419 = vpop.permute.xlu0 %8418
        %8420 = vrot.lane.b32.xlu0 %v834, 120
        %v8421 = vpop.permute.xlu0 %8420
        %8422 = vrot.lane.b32.xlu0 %v835, 120
        %v8423 = vpop.permute.xlu0 %8422
        %8424 = vrot.lane.b32.xlu0 %v836, 120
        %v8425 = vpop.permute.xlu0 %8424
        %8426 = vrot.lane.b32.xlu0 %v837, 120
        %v8427 = vpop.permute.xlu0 %8426
        %8428 = vrot.lane.b32.xlu0 %v838, 120
        %v8429 = vpop.permute.xlu0 %8428
        %8430 = vrot.lane.b32.xlu0 %v839, 120
        %v8431 = vpop.permute.xlu0 %8430
        %8432 = vrot.lane.b32.xlu0 %v840, 120
        %v8433 = vpop.permute.xlu0 %8432
        %8434 = vrot.lane.b32.xlu0 %v841, 120
        %v8435 = vpop.permute.xlu0 %8434
        %8436 = vrot.lane.b32.xlu0 %v842, 120
        %v8437 = vpop.permute.xlu0 %8436
        %8438 = vrot.lane.b32.xlu0 %v843, 120
        %v8439 = vpop.permute.xlu0 %8438
        %8440 = vrot.lane.b32.xlu0 %v844, 120
        %v8441 = vpop.permute.xlu0 %8440
        %8442 = vrot.lane.b32.xlu0 %v845, 120
        %v8443 = vpop.permute.xlu0 %8442
        %8444 = vrot.lane.b32.xlu0 %v846, 120
        %v8445 = vpop.permute.xlu0 %8444
        %8446 = vrot.lane.b32.xlu0 %v847, 120
        %v8447 = vpop.permute.xlu0 %8446
        %8448 = vrot.lane.b32.xlu0 %v848, 120
        %v8449 = vpop.permute.xlu0 %8448
        %8450 = vrot.lane.b32.xlu0 %v849, 120
        %v8451 = vpop.permute.xlu0 %8450
        %8452 = vrot.lane.b32.xlu0 %v850, 120
        %v8453 = vpop.permute.xlu0 %8452
        %8454 = vrot.lane.b32.xlu0 %v851, 120
        %v8455 = vpop.permute.xlu0 %8454
        %8456 = vrot.lane.b32.xlu0 %v852, 120
        %v8457 = vpop.permute.xlu0 %8456
        %8458 = vrot.lane.b32.xlu0 %v853, 120
        %v8459 = vpop.permute.xlu0 %8458
        %8460 = vrot.lane.b32.xlu0 %v854, 120
        %v8461 = vpop.permute.xlu0 %8460
        %8462 = vrot.lane.b32.xlu0 %v855, 120
        %v8463 = vpop.permute.xlu0 %8462
        %8464 = vrot.lane.b32.xlu0 %v856, 120
        %v8465 = vpop.permute.xlu0 %8464
        %8466 = vrot.lane.b32.xlu0 %v857, 120
        %v8467 = vpop.permute.xlu0 %8466
        %8468 = vrot.lane.b32.xlu0 %v858, 120
        %v8469 = vpop.permute.xlu0 %8468
        %8470 = vrot.lane.b32.xlu0 %v859, 120
        %v8471 = vpop.permute.xlu0 %8470
        %8472 = vrot.lane.b32.xlu0 %v860, 120
        %v8473 = vpop.permute.xlu0 %8472
        %8474 = vrot.lane.b32.xlu0 %v861, 120
        %v8475 = vpop.permute.xlu0 %8474
        %8476 = vrot.lane.b32.xlu0 %v862, 120
        %v8477 = vpop.permute.xlu0 %8476
        %8478 = vrot.lane.b32.xlu0 %v863, 120
        %v8479 = vpop.permute.xlu0 %8478
        %v8480 = vsel %vm864, %v8417, 0
        %v8482 = vsel %vm864, %v8419, 0
        %v8484 = vsel %vm864, %v8421, 0
        %v8486 = vsel %vm864, %v8423, 0
        %v8488 = vsel %vm864, %v8425, 0
        %v8490 = vsel %vm864, %v8427, 0
        %v8492 = vsel %vm864, %v8429, 0
        %v8494 = vsel %vm864, %v8431, 0
        %v8496 = vsel %vm864, %v8433, 0
        %v8498 = vsel %vm864, %v8435, 0
        %v8500 = vsel %vm864, %v8437, 0
        %v8502 = vsel %vm864, %v8439, 0
        %v8504 = vsel %vm864, %v8441, 0
        %v8506 = vsel %vm864, %v8443, 0
        %v8508 = vsel %vm864, %v8445, 0
        %v8510 = vsel %vm864, %v8447, 0
        %v8512 = vsel %vm864, %v8449, 0
        %v8514 = vsel %vm864, %v8451, 0
        %v8516 = vsel %vm864, %v8453, 0
        %v8518 = vsel %vm864, %v8455, 0
        %v8520 = vsel %vm864, %v8457, 0
        %v8522 = vsel %vm864, %v8459, 0
        %v8524 = vsel %vm864, %v8461, 0
        %v8526 = vsel %vm864, %v8463, 0
        %v8528 = vsel %vm864, %v8465, 0
        %v8530 = vsel %vm864, %v8467, 0
        %v8532 = vsel %vm864, %v8469, 0
        %v8534 = vsel %vm864, %v8471, 0
        %v8536 = vsel %vm864, %v8473, 0
        %v8538 = vsel %vm864, %v8475, 0
        %v8540 = vsel %vm864, %v8477, 0
        %v8542 = vsel %vm864, %v8479, 0
        %8544 = vmatprep.subr.mxu0 0.0
        %8545 = vmatpush1.msra.mxu0 %v8383
        %8546 = vmatprep.subr.mxu0 0.0
        %8547 = vmatpush1.msra.mxu0 0.0
        %8548 = vmatprep.subr.mxu0 0.0
        %8549 = vmatpush1.msra.mxu0 0.0
        %8550 = vmatprep.subr.mxu0 0.0
        %8551 = vmatpush1.msra.mxu0 0.0
        %8552 = vmatprep.subr.mxu0 0.0
        %8553 = vmatpush1.msra.mxu0 0.0
        %8554 = vmatprep.subr.mxu0 0.0
        %8555 = vmatpush1.msra.mxu0 0.0
        %8556 = vmatprep.subr.mxu0 0.0
        %8557 = vmatpush1.msra.mxu0 0.0
        %8558 = vmatprep.subr.mxu0 0.0
        %8559 = vmatpush1.msra.mxu0 0.0
        %8560 = vmatprep.subr.mxu0 0.0
        %8561 = vmatpush1.msra.mxu0 0.0
        %8562 = vmatprep.subr.mxu0 0.0
        %8563 = vmatpush1.msra.mxu0 0.0
        %8564 = vmatprep.subr.mxu0 0.0
        %8565 = vmatpush1.msra.mxu0 0.0
        %8566 = vmatprep.subr.mxu0 0.0
        %8567 = vmatpush1.msra.mxu0 0.0
        %8568 = vmatprep.subr.mxu0 0.0
        %8569 = vmatpush1.msra.mxu0 0.0
        %8570 = vmatprep.subr.mxu0 0.0
        %8571 = vmatpush1.msra.mxu0 0.0
        %8572 = vmatprep.subr.mxu0 0.0
        %8573 = vmatpush1.msra.mxu0 0.0
        %8574 = vmatprep.subr.mxu0 0.0
        %8575 = vmatpush1.msra.mxu0 0.0
        %8576 = vmatprep.subr.mxu0 0.0
        %8577 = vmatpush1.msra.mxu0 0.0
        %8578 = vmatprep.subr.mxu0 0.0
        %8579 = vmatpush1.msra.mxu0 0.0
        %8580 = vmatprep.subr.mxu0 0.0
        %8581 = vmatpush1.msra.mxu0 0.0
        %8582 = vmatprep.subr.mxu0 0.0
        %8583 = vmatpush1.msra.mxu0 0.0
        %8584 = vmatprep.subr.mxu0 0.0
        %8585 = vmatpush1.msra.mxu0 0.0
        %8586 = vmatprep.subr.mxu0 0.0
        %8587 = vmatpush1.msra.mxu0 0.0
        %8588 = vmatprep.subr.mxu0 0.0
        %8589 = vmatpush1.msra.mxu0 0.0
        %8590 = vmatprep.subr.mxu0 0.0
        %8591 = vmatpush1.msra.mxu0 0.0
        %8592 = vmatprep.subr.mxu0 0.0
        %8593 = vmatpush1.msra.mxu0 0.0
        %8594 = vmatprep.subr.mxu0 0.0
        %8595 = vmatpush1.msra.mxu0 0.0
        %8596 = vmatprep.subr.mxu0 0.0
        %8597 = vmatpush1.msra.mxu0 0.0
        %8598 = vmatprep.subr.mxu0 0.0
        %8599 = vmatpush1.msra.mxu0 0.0
        %8600 = vmatprep.subr.mxu0 0.0
        %8601 = vmatpush1.msra.mxu0 0.0
        %8602 = vmatprep.subr.mxu0 0.0
        %8603 = vmatpush1.msra.mxu0 0.0
        %8604 = vmatprep.subr.mxu0 0.0
        %8605 = vmatpush1.msra.mxu0 0.0
        %8606 = vmatprep.subr.mxu0 0.0
        %8607 = vmatpush1.msra.mxu0 0.0
        %8608 = vmatprep.mubr.f32.mxu0 0.0
        %8609 = vmatmul.mubr.f32.gmra.mrb[0].mxu0 %v8480
        %v8610 = vpop.f32.mrb[0].mxu0
        %v8611 = vadd.f32 0.0, %v8610
        %v8612 = vpop.f32.mrb[0].mxu0
        %8613 = vmatprep.mubr.f32.mxu0 0.0
        %8614 = vmatmul.mubr.f32.gmra.mrb[0].mxu0 %v8482
        %v8615 = vpop.f32.mrb[0].mxu0
        %v8616 = vadd.f32 0.0, %v8615
        %v8617 = vpop.f32.mrb[0].mxu0
        %8618 = vmatprep.mubr.f32.mxu0 0.0
        %8619 = vmatmul.mubr.f32.gmra.mrb[0].mxu0 %v8484
        %v8620 = vpop.f32.mrb[0].mxu0
        %v8621 = vadd.f32 0.0, %v8620
        %v8622 = vpop.f32.mrb[0].mxu0
        %8623 = vmatprep.mubr.f32.mxu0 0.0
        %8624 = vmatmul.mubr.f32.gmra.mrb[0].mxu0 %v8486
        %v8625 = vpop.f32.mrb[0].mxu0
        %v8626 = vadd.f32 0.0, %v8625
        %v8627 = vpop.f32.mrb[0].mxu0
        %8628 = vmatprep.mubr.f32.mxu0 0.0
        %8629 = vmatmul.mubr.f32.gmra.mrb[0].mxu0 %v8488
        %v8630 = vpop.f32.mrb[0].mxu0
        %v8631 = vadd.f32 0.0, %v8630
        %v8632 = vpop.f32.mrb[0].mxu0
        %8633 = vmatprep.mubr.f32.mxu0 0.0
        %8634 = vmatmul.mubr.f32.gmra.mrb[0].mxu0 %v8490
        %v8635 = vpop.f32.mrb[0].mxu0
        %v8636 = vadd.f32 0.0, %v8635
        %v8637 = vpop.f32.mrb[0].mxu0
        %8638 = vmatprep.mubr.f32.mxu0 0.0
        %8639 = vmatmul.mubr.f32.gmra.mrb[0].mxu0 %v8492
        %v8640 = vpop.f32.mrb[0].mxu0
        %v8641 = vadd.f32 0.0, %v8640
        %v8642 = vpop.f32.mrb[0].mxu0
        %8643 = vmatprep.mubr.f32.mxu0 0.0
        %8644 = vmatmul.mubr.f32.gmra.mrb[0].mxu0 %v8494
        %v8645 = vpop.f32.mrb[0].mxu0
        %v8646 = vadd.f32 0.0, %v8645
        %v8647 = vpop.f32.mrb[0].mxu0
        %8648 = vmatprep.mubr.f32.mxu0 0.0
        %8649 = vmatmul.mubr.f32.gmra.mrb[0].mxu0 %v8496
        %v8650 = vpop.f32.mrb[0].mxu0
        %v8651 = vadd.f32 0.0, %v8650
        %v8652 = vpop.f32.mrb[0].mxu0
        %8653 = vmatprep.mubr.f32.mxu0 0.0
        %8654 = vmatmul.mubr.f32.gmra.mrb[0].mxu0 %v8498
        %v8655 = vpop.f32.mrb[0].mxu0
        %v8656 = vadd.f32 0.0, %v8655
        %v8657 = vpop.f32.mrb[0].mxu0
        %8658 = vmatprep.mubr.f32.mxu0 0.0
        %8659 = vmatmul.mubr.f32.gmra.mrb[0].mxu0 %v8500
        %v8660 = vpop.f32.mrb[0].mxu0
        %v8661 = vadd.f32 0.0, %v8660
        %v8662 = vpop.f32.mrb[0].mxu0
        %8663 = vmatprep.mubr.f32.mxu0 0.0
        %8664 = vmatmul.mubr.f32.gmra.mrb[0].mxu0 %v8502
        %v8665 = vpop.f32.mrb[0].mxu0
        %v8666 = vadd.f32 0.0, %v8665
        %v8667 = vpop.f32.mrb[0].mxu0
        %8668 = vmatprep.mubr.f32.mxu0 0.0
        %8669 = vmatmul.mubr.f32.gmra.mrb[0].mxu0 %v8504
        %v8670 = vpop.f32.mrb[0].mxu0
        %v8671 = vadd.f32 0.0, %v8670
        %v8672 = vpop.f32.mrb[0].mxu0
        %8673 = vmatprep.mubr.f32.mxu0 0.0
        %8674 = vmatmul.mubr.f32.gmra.mrb[0].mxu0 %v8506
        %v8675 = vpop.f32.mrb[0].mxu0
        %v8676 = vadd.f32 0.0, %v8675
        %v8677 = vpop.f32.mrb[0].mxu0
        %8678 = vmatprep.mubr.f32.mxu0 0.0
        %8679 = vmatmul.mubr.f32.gmra.mrb[0].mxu0 %v8508
        %v8680 = vpop.f32.mrb[0].mxu0
        %v8681 = vadd.f32 0.0, %v8680
        %v8682 = vpop.f32.mrb[0].mxu0
        %8683 = vmatprep.mubr.f32.mxu0 0.0
        %8684 = vmatmul.mubr.f32.gmra.mrb[0].mxu0 %v8510
        %v8685 = vpop.f32.mrb[0].mxu0
        %v8686 = vadd.f32 0.0, %v8685
        %v8687 = vpop.f32.mrb[0].mxu0
        %8688 = vmatprep.mubr.f32.mxu0 0.0
        %8689 = vmatmul.mubr.f32.gmra.mrb[0].mxu0 %v8512
        %v8690 = vpop.f32.mrb[0].mxu0
        %v8691 = vadd.f32 0.0, %v8690
        %v8692 = vpop.f32.mrb[0].mxu0
        %8693 = vmatprep.mubr.f32.mxu0 0.0
        %8694 = vmatmul.mubr.f32.gmra.mrb[0].mxu0 %v8514
        %v8695 = vpop.f32.mrb[0].mxu0
        %v8696 = vadd.f32 0.0, %v8695
        %v8697 = vpop.f32.mrb[0].mxu0
        %8698 = vmatprep.mubr.f32.mxu0 0.0
        %8699 = vmatmul.mubr.f32.gmra.mrb[0].mxu0 %v8516
        %v8700 = vpop.f32.mrb[0].mxu0
        %v8701 = vadd.f32 0.0, %v8700
        %v8702 = vpop.f32.mrb[0].mxu0
        %8703 = vmatprep.mubr.f32.mxu0 0.0
        %8704 = vmatmul.mubr.f32.gmra.mrb[0].mxu0 %v8518
        %v8705 = vpop.f32.mrb[0].mxu0
        %v8706 = vadd.f32 0.0, %v8705
        %v8707 = vpop.f32.mrb[0].mxu0
        %8708 = vmatprep.mubr.f32.mxu0 0.0
        %8709 = vmatmul.mubr.f32.gmra.mrb[0].mxu0 %v8520
        %v8710 = vpop.f32.mrb[0].mxu0
        %v8711 = vadd.f32 0.0, %v8710
        %v8712 = vpop.f32.mrb[0].mxu0
        %8713 = vmatprep.mubr.f32.mxu0 0.0
        %8714 = vmatmul.mubr.f32.gmra.mrb[0].mxu0 %v8522
        %v8715 = vpop.f32.mrb[0].mxu0
        %v8716 = vadd.f32 0.0, %v8715
        %v8717 = vpop.f32.mrb[0].mxu0
        %8718 = vmatprep.mubr.f32.mxu0 0.0
        %8719 = vmatmul.mubr.f32.gmra.mrb[0].mxu0 %v8524
        %v8720 = vpop.f32.mrb[0].mxu0
        %v8721 = vadd.f32 0.0, %v8720
        %v8722 = vpop.f32.mrb[0].mxu0
        %8723 = vmatprep.mubr.f32.mxu0 0.0
        %8724 = vmatmul.mubr.f32.gmra.mrb[0].mxu0 %v8526
        %v8725 = vpop.f32.mrb[0].mxu0
        %v8726 = vadd.f32 0.0, %v8725
        %v8727 = vpop.f32.mrb[0].mxu0
        %8728 = vmatprep.mubr.f32.mxu0 0.0
        %8729 = vmatmul.mubr.f32.gmra.mrb[0].mxu0 %v8528
        %v8730 = vpop.f32.mrb[0].mxu0
        %v8731 = vadd.f32 0.0, %v8730
        %v8732 = vpop.f32.mrb[0].mxu0
        %8733 = vmatprep.mubr.f32.mxu0 0.0
        %8734 = vmatmul.mubr.f32.gmra.mrb[0].mxu0 %v8530
        %v8735 = vpop.f32.mrb[0].mxu0
        %v8736 = vadd.f32 0.0, %v8735
        %v8737 = vpop.f32.mrb[0].mxu0
        %8738 = vmatprep.mubr.f32.mxu0 0.0
        %8739 = vmatmul.mubr.f32.gmra.mrb[0].mxu0 %v8532
        %v8740 = vpop.f32.mrb[0].mxu0
        %v8741 = vadd.f32 0.0, %v8740
        %v8742 = vpop.f32.mrb[0].mxu0
        %8743 = vmatprep.mubr.f32.mxu0 0.0
        %8744 = vmatmul.mubr.f32.gmra.mrb[0].mxu0 %v8534
        %v8745 = vpop.f32.mrb[0].mxu0
        %v8746 = vadd.f32 0.0, %v8745
        %v8747 = vpop.f32.mrb[0].mxu0
        %8748 = vmatprep.mubr.f32.mxu0 0.0
        %8749 = vmatmul.mubr.f32.gmra.mrb[0].mxu0 %v8536
        %v8750 = vpop.f32.mrb[0].mxu0
        %v8751 = vadd.f32 0.0, %v8750
        %v8752 = vpop.f32.mrb[0].mxu0
        %8753 = vmatprep.mubr.f32.mxu0 0.0
        %8754 = vmatmul.mubr.f32.gmra.mrb[0].mxu0 %v8538
        %v8755 = vpop.f32.mrb[0].mxu0
        %v8756 = vadd.f32 0.0, %v8755
        %v8757 = vpop.f32.mrb[0].mxu0
        %8758 = vmatprep.mubr.f32.mxu0 0.0
        %8759 = vmatmul.mubr.f32.gmra.mrb[0].mxu0 %v8540
        %v8760 = vpop.f32.mrb[0].mxu0
        %v8761 = vadd.f32 0.0, %v8760
        %v8762 = vpop.f32.mrb[0].mxu0
        %8763 = vmatprep.mubr.f32.mxu0 0.0
        %8764 = vmatmul.mubr.f32.gmra.mrb[0].mxu0 %v8542
        %v8765 = vpop.f32.mrb[0].mxu0
        %v8766 = vadd.f32 0.0, %v8765
        %v8767 = vpop.f32.mrb[0].mxu0
        %8768 = vdwg.mxu0
        %v8770 = vsel %vm864, %v8350, 0
        %v8773 = vsel %vm864, %v8351, 0
        %v8776 = vsel %vm864, %v8352, 0
        %v8779 = vsel %vm864, %v8353, 0
        %v8782 = vsel %vm864, %v8354, 0
        %v8785 = vsel %vm864, %v8355, 0
        %v8788 = vsel %vm864, %v8356, 0
        %v8791 = vsel %vm864, %v8357, 0
        %v8794 = vsel %vm864, %v8358, 0
        %v8797 = vsel %vm864, %v8359, 0
        %v8800 = vsel %vm864, %v8360, 0
        %v8803 = vsel %vm864, %v8361, 0
        %v8806 = vsel %vm864, %v8362, 0
        %v8809 = vsel %vm864, %v8363, 0
        %v8812 = vsel %vm864, %v8364, 0
        %v8815 = vsel %vm864, %v8365, 0
        %v8818 = vsel %vm864, %v8366, 0
        %v8821 = vsel %vm864, %v8367, 0
        %v8824 = vsel %vm864, %v8368, 0
        %v8827 = vsel %vm864, %v8369, 0
        %v8830 = vsel %vm864, %v8370, 0
        %v8833 = vsel %vm864, %v8371, 0
        %v8836 = vsel %vm864, %v8372, 0
        %v8839 = vsel %vm864, %v8373, 0
        %v8842 = vsel %vm864, %v8374, 0
        %v8845 = vsel %vm864, %v8375, 0
        %v8848 = vsel %vm864, %v8376, 0
        %v8851 = vsel %vm864, %v8377, 0
        %v8854 = vsel %vm864, %v8378, 0
        %v8857 = vsel %vm864, %v8379, 0
        %v8860 = vsel %vm864, %v8380, 0
        %v8863 = vsel %vm864, %v8381, 0
        %8865 = vmatprep.subr.mxu0 0.0
        %8866 = vmatpush1.msra.mxu0 %v8382
        %8867 = vmatprep.subr.mxu0 0.0
        %8868 = vmatpush1.msra.mxu0 0.0
        %8869 = vmatprep.subr.mxu0 0.0
        %8870 = vmatpush1.msra.mxu0 0.0
        %8871 = vmatprep.subr.mxu0 0.0
        %8872 = vmatpush1.msra.mxu0 0.0
        %8873 = vmatprep.subr.mxu0 0.0
        %8874 = vmatpush1.msra.mxu0 0.0
        %8875 = vmatprep.subr.mxu0 0.0
        %8876 = vmatpush1.msra.mxu0 0.0
        %8877 = vmatprep.subr.mxu0 0.0
        %8878 = vmatpush1.msra.mxu0 0.0
        %8879 = vmatprep.subr.mxu0 0.0
        %8880 = vmatpush1.msra.mxu0 0.0
        %8881 = vmatprep.subr.mxu0 0.0
        %8882 = vmatpush1.msra.mxu0 0.0
        %8883 = vmatprep.subr.mxu0 0.0
        %8884 = vmatpush1.msra.mxu0 0.0
        %8885 = vmatprep.subr.mxu0 0.0
        %8886 = vmatpush1.msra.mxu0 0.0
        %8887 = vmatprep.subr.mxu0 0.0
        %8888 = vmatpush1.msra.mxu0 0.0
        %8889 = vmatprep.subr.mxu0 0.0
        %8890 = vmatpush1.msra.mxu0 0.0
        %8891 = vmatprep.subr.mxu0 0.0
        %8892 = vmatpush1.msra.mxu0 0.0
        %8893 = vmatprep.subr.mxu0 0.0
        %8894 = vmatpush1.msra.mxu0 0.0
        %8895 = vmatprep.subr.mxu0 0.0
        %8896 = vmatpush1.msra.mxu0 0.0
        %8897 = vmatprep.subr.mxu0 0.0
        %8898 = vmatpush1.msra.mxu0 0.0
        %8899 = vmatprep.subr.mxu0 0.0
        %8900 = vmatpush1.msra.mxu0 0.0
        %8901 = vmatprep.subr.mxu0 0.0
        %8902 = vmatpush1.msra.mxu0 0.0
        %8903 = vmatprep.subr.mxu0 0.0
        %8904 = vmatpush1.msra.mxu0 0.0
        %8905 = vmatprep.subr.mxu0 0.0
        %8906 = vmatpush1.msra.mxu0 0.0
        %8907 = vmatprep.subr.mxu0 0.0
        %8908 = vmatpush1.msra.mxu0 0.0
        %8909 = vmatprep.subr.mxu0 0.0
        %8910 = vmatpush1.msra.mxu0 0.0
        %8911 = vmatprep.subr.mxu0 0.0
        %8912 = vmatpush1.msra.mxu0 0.0
        %8913 = vmatprep.subr.mxu0 0.0
        %8914 = vmatpush1.msra.mxu0 0.0
        %8915 = vmatprep.subr.mxu0 0.0
        %8916 = vmatpush1.msra.mxu0 0.0
        %8917 = vmatprep.subr.mxu0 0.0
        %8918 = vmatpush1.msra.mxu0 0.0
        %8919 = vmatprep.subr.mxu0 0.0
        %8920 = vmatpush1.msra.mxu0 0.0
        %8921 = vmatprep.subr.mxu0 0.0
        %8922 = vmatpush1.msra.mxu0 0.0
        %8923 = vmatprep.subr.mxu0 0.0
        %8924 = vmatpush1.msra.mxu0 0.0
        %8925 = vmatprep.subr.mxu0 0.0
        %8926 = vmatpush1.msra.mxu0 0.0
        %8927 = vmatprep.subr.mxu0 0.0
        %8928 = vmatpush1.msra.mxu0 0.0
        %8929 = vmatprep.mubr.f32.mxu0 0.0
        %8930 = vmatmul.mubr.f32.gmra.mrb[0].mxu0 %v8770
        %v8931 = vpop.f32.mrb[0].mxu0
        %v8932 = vadd.f32 %v8611, %v8931
        %v8933 = vpop.f32.mrb[0].mxu0
        %8934 = vmatprep.mubr.f32.mxu0 0.0
        %8935 = vmatmul.mubr.f32.gmra.mrb[0].mxu0 %v8773
        %v8936 = vpop.f32.mrb[0].mxu0
        %v8937 = vadd.f32 %v8616, %v8936
        %v8938 = vpop.f32.mrb[0].mxu0
        %8939 = vmatprep.mubr.f32.mxu0 0.0
        %8940 = vmatmul.mubr.f32.gmra.mrb[0].mxu0 %v8776
        %v8941 = vpop.f32.mrb[0].mxu0
        %v8942 = vadd.f32 %v8621, %v8941
        %v8943 = vpop.f32.mrb[0].mxu0
        %8944 = vmatprep.mubr.f32.mxu0 0.0
        %8945 = vmatmul.mubr.f32.gmra.mrb[0].mxu0 %v8779
        %v8946 = vpop.f32.mrb[0].mxu0
        %v8947 = vadd.f32 %v8626, %v8946
        %v8948 = vpop.f32.mrb[0].mxu0
        %8949 = vmatprep.mubr.f32.mxu0 0.0
        %8950 = vmatmul.mubr.f32.gmra.mrb[0].mxu0 %v8782
        %v8951 = vpop.f32.mrb[0].mxu0
        %v8952 = vadd.f32 %v8631, %v8951
        %v8953 = vpop.f32.mrb[0].mxu0
        %8954 = vmatprep.mubr.f32.mxu0 0.0
        %8955 = vmatmul.mubr.f32.gmra.mrb[0].mxu0 %v8785
        %v8956 = vpop.f32.mrb[0].mxu0
        %v8957 = vadd.f32 %v8636, %v8956
        %v8958 = vpop.f32.mrb[0].mxu0
        %8959 = vmatprep.mubr.f32.mxu0 0.0
        %8960 = vmatmul.mubr.f32.gmra.mrb[0].mxu0 %v8788
        %v8961 = vpop.f32.mrb[0].mxu0
        %v8962 = vadd.f32 %v8641, %v8961
        %v8963 = vpop.f32.mrb[0].mxu0
        %8964 = vmatprep.mubr.f32.mxu0 0.0
        %8965 = vmatmul.mubr.f32.gmra.mrb[0].mxu0 %v8791
        %v8966 = vpop.f32.mrb[0].mxu0
        %v8967 = vadd.f32 %v8646, %v8966
        %v8968 = vpop.f32.mrb[0].mxu0
        %8969 = vmatprep.mubr.f32.mxu0 0.0
        %8970 = vmatmul.mubr.f32.gmra.mrb[0].mxu0 %v8794
        %v8971 = vpop.f32.mrb[0].mxu0
        %v8972 = vadd.f32 %v8651, %v8971
        %v8973 = vpop.f32.mrb[0].mxu0
        %8974 = vmatprep.mubr.f32.mxu0 0.0
        %8975 = vmatmul.mubr.f32.gmra.mrb[0].mxu0 %v8797
        %v8976 = vpop.f32.mrb[0].mxu0
        %v8977 = vadd.f32 %v8656, %v8976
        %v8978 = vpop.f32.mrb[0].mxu0
        %8979 = vmatprep.mubr.f32.mxu0 0.0
        %8980 = vmatmul.mubr.f32.gmra.mrb[0].mxu0 %v8800
        %v8981 = vpop.f32.mrb[0].mxu0
        %v8982 = vadd.f32 %v8661, %v8981
        %v8983 = vpop.f32.mrb[0].mxu0
        %8984 = vmatprep.mubr.f32.mxu0 0.0
        %8985 = vmatmul.mubr.f32.gmra.mrb[0].mxu0 %v8803
        %v8986 = vpop.f32.mrb[0].mxu0
        %v8987 = vadd.f32 %v8666, %v8986
        %v8988 = vpop.f32.mrb[0].mxu0
        %8989 = vmatprep.mubr.f32.mxu0 0.0
        %8990 = vmatmul.mubr.f32.gmra.mrb[0].mxu0 %v8806
        %v8991 = vpop.f32.mrb[0].mxu0
        %v8992 = vadd.f32 %v8671, %v8991
        %v8993 = vpop.f32.mrb[0].mxu0
        %8994 = vmatprep.mubr.f32.mxu0 0.0
        %8995 = vmatmul.mubr.f32.gmra.mrb[0].mxu0 %v8809
        %v8996 = vpop.f32.mrb[0].mxu0
        %v8997 = vadd.f32 %v8676, %v8996
        %v8998 = vpop.f32.mrb[0].mxu0
        %8999 = vmatprep.mubr.f32.mxu0 0.0
        %9000 = vmatmul.mubr.f32.gmra.mrb[0].mxu0 %v8812
        %v9001 = vpop.f32.mrb[0].mxu0
        %v9002 = vadd.f32 %v8681, %v9001
        %v9003 = vpop.f32.mrb[0].mxu0
        %9004 = vmatprep.mubr.f32.mxu0 0.0
        %9005 = vmatmul.mubr.f32.gmra.mrb[0].mxu0 %v8815
        %v9006 = vpop.f32.mrb[0].mxu0
        %v9007 = vadd.f32 %v8686, %v9006
        %v9008 = vpop.f32.mrb[0].mxu0
        %9009 = vmatprep.mubr.f32.mxu0 0.0
        %9010 = vmatmul.mubr.f32.gmra.mrb[0].mxu0 %v8818
        %v9011 = vpop.f32.mrb[0].mxu0
        %v9012 = vadd.f32 %v8691, %v9011
        %v9013 = vpop.f32.mrb[0].mxu0
        %9014 = vmatprep.mubr.f32.mxu0 0.0
        %9015 = vmatmul.mubr.f32.gmra.mrb[0].mxu0 %v8821
        %v9016 = vpop.f32.mrb[0].mxu0
        %v9017 = vadd.f32 %v8696, %v9016
        %v9018 = vpop.f32.mrb[0].mxu0
        %9019 = vmatprep.mubr.f32.mxu0 0.0
        %9020 = vmatmul.mubr.f32.gmra.mrb[0].mxu0 %v8824
        %v9021 = vpop.f32.mrb[0].mxu0
        %v9022 = vadd.f32 %v8701, %v9021
        %v9023 = vpop.f32.mrb[0].mxu0
        %9024 = vmatprep.mubr.f32.mxu0 0.0
        %9025 = vmatmul.mubr.f32.gmra.mrb[0].mxu0 %v8827
        %v9026 = vpop.f32.mrb[0].mxu0
        %v9027 = vadd.f32 %v8706, %v9026
        %v9028 = vpop.f32.mrb[0].mxu0
        %9029 = vmatprep.mubr.f32.mxu0 0.0
        %9030 = vmatmul.mubr.f32.gmra.mrb[0].mxu0 %v8830
        %v9031 = vpop.f32.mrb[0].mxu0
        %v9032 = vadd.f32 %v8711, %v9031
        %v9033 = vpop.f32.mrb[0].mxu0
        %9034 = vmatprep.mubr.f32.mxu0 0.0
        %9035 = vmatmul.mubr.f32.gmra.mrb[0].mxu0 %v8833
        %v9036 = vpop.f32.mrb[0].mxu0
        %v9037 = vadd.f32 %v8716, %v9036
        %v9038 = vpop.f32.mrb[0].mxu0
        %9039 = vmatprep.mubr.f32.mxu0 0.0
        %9040 = vmatmul.mubr.f32.gmra.mrb[0].mxu0 %v8836
        %v9041 = vpop.f32.mrb[0].mxu0
        %v9042 = vadd.f32 %v8721, %v9041
        %v9043 = vpop.f32.mrb[0].mxu0
        %9044 = vmatprep.mubr.f32.mxu0 0.0
        %9045 = vmatmul.mubr.f32.gmra.mrb[0].mxu0 %v8839
        %v9046 = vpop.f32.mrb[0].mxu0
        %v9047 = vadd.f32 %v8726, %v9046
        %v9048 = vpop.f32.mrb[0].mxu0
        %9049 = vmatprep.mubr.f32.mxu0 0.0
        %9050 = vmatmul.mubr.f32.gmra.mrb[0].mxu0 %v8842
        %v9051 = vpop.f32.mrb[0].mxu0
        %v9052 = vadd.f32 %v8731, %v9051
        %v9053 = vpop.f32.mrb[0].mxu0
        %9054 = vmatprep.mubr.f32.mxu0 0.0
        %9055 = vmatmul.mubr.f32.gmra.mrb[0].mxu0 %v8845
        %v9056 = vpop.f32.mrb[0].mxu0
        %v9057 = vadd.f32 %v8736, %v9056
        %v9058 = vpop.f32.mrb[0].mxu0
        %9059 = vmatprep.mubr.f32.mxu0 0.0
        %9060 = vmatmul.mubr.f32.gmra.mrb[0].mxu0 %v8848
        %v9061 = vpop.f32.mrb[0].mxu0
        %v9062 = vadd.f32 %v8741, %v9061
        %v9063 = vpop.f32.mrb[0].mxu0
        %9064 = vmatprep.mubr.f32.mxu0 0.0
        %9065 = vmatmul.mubr.f32.gmra.mrb[0].mxu0 %v8851
        %v9066 = vpop.f32.mrb[0].mxu0
        %v9067 = vadd.f32 %v8746, %v9066
        %v9068 = vpop.f32.mrb[0].mxu0
        %9069 = vmatprep.mubr.f32.mxu0 0.0
        %9070 = vmatmul.mubr.f32.gmra.mrb[0].mxu0 %v8854
        %v9071 = vpop.f32.mrb[0].mxu0
        %v9072 = vadd.f32 %v8751, %v9071
        %v9073 = vpop.f32.mrb[0].mxu0
        %9074 = vmatprep.mubr.f32.mxu0 0.0
        %9075 = vmatmul.mubr.f32.gmra.mrb[0].mxu0 %v8857
        %v9076 = vpop.f32.mrb[0].mxu0
        %v9077 = vadd.f32 %v8756, %v9076
        %v9078 = vpop.f32.mrb[0].mxu0
        %9079 = vmatprep.mubr.f32.mxu0 0.0
        %9080 = vmatmul.mubr.f32.gmra.mrb[0].mxu0 %v8860
        %v9081 = vpop.f32.mrb[0].mxu0
        %v9082 = vadd.f32 %v8761, %v9081
        %v9083 = vpop.f32.mrb[0].mxu0
        %9084 = vmatprep.mubr.f32.mxu0 0.0
        %9085 = vmatmul.mubr.f32.gmra.mrb[0].mxu0 %v8863
        %v9086 = vpop.f32.mrb[0].mxu0
        %v9087 = vadd.f32 %v8766, %v9086
        %v9088 = vpop.f32.mrb[0].mxu0
        %9089 = vdwg.mxu0
        %v9090 = vld [vmem:[%s6] sm:$0x1]
        %v9092 = vlaneseq
        %v9093 = vshrl.u32 %v9092, 7
        %v9094 = vsub.s32 0, %v9093
        %v9095 = vrot.slane %v9090, %v9094
        %v9097 = vadd.f32 %v8932, %v9095
        %v9098 = vadd.f32 %v8937, %v9095
        %v9099 = vadd.f32 %v8942, %v9095
        %v9100 = vadd.f32 %v8947, %v9095
        %v9101 = vadd.f32 %v8952, %v9095
        %v9102 = vadd.f32 %v8957, %v9095
        %v9103 = vadd.f32 %v8962, %v9095
        %v9104 = vadd.f32 %v8967, %v9095
        %v9105 = vadd.f32 %v8972, %v9095
        %v9106 = vadd.f32 %v8977, %v9095
        %v9107 = vadd.f32 %v8982, %v9095
        %v9108 = vadd.f32 %v8987, %v9095
        %v9109 = vadd.f32 %v8992, %v9095
        %v9110 = vadd.f32 %v8997, %v9095
        %v9111 = vadd.f32 %v9002, %v9095
        %v9112 = vadd.f32 %v9007, %v9095
        %v9113 = vadd.f32 %v9012, %v9095
        %v9114 = vadd.f32 %v9017, %v9095
        %v9115 = vadd.f32 %v9022, %v9095
        %v9116 = vadd.f32 %v9027, %v9095
        %v9117 = vadd.f32 %v9032, %v9095
        %v9118 = vadd.f32 %v9037, %v9095
        %v9119 = vadd.f32 %v9042, %v9095
        %v9120 = vadd.f32 %v9047, %v9095
        %v9121 = vadd.f32 %v9052, %v9095
        %v9122 = vadd.f32 %v9057, %v9095
        %v9123 = vadd.f32 %v9062, %v9095
        %v9124 = vadd.f32 %v9067, %v9095
        %v9125 = vadd.f32 %v9072, %v9095
        %v9126 = vadd.f32 %v9077, %v9095
        %v9127 = vadd.f32 %v9082, %v9095
        %v9128 = vadd.f32 %v9087, %v9095
        %v9129 = vxor.u32 %v9097, 2147483648
        %v9130 = vxor.u32 %v9098, 2147483648
        %v9131 = vxor.u32 %v9099, 2147483648
        %v9132 = vxor.u32 %v9100, 2147483648
        %v9133 = vxor.u32 %v9101, 2147483648
        %v9134 = vxor.u32 %v9102, 2147483648
        %v9135 = vxor.u32 %v9103, 2147483648
        %v9136 = vxor.u32 %v9104, 2147483648
        %v9137 = vxor.u32 %v9105, 2147483648
        %v9138 = vxor.u32 %v9106, 2147483648
        %v9139 = vxor.u32 %v9107, 2147483648
        %v9140 = vxor.u32 %v9108, 2147483648
        %v9141 = vxor.u32 %v9109, 2147483648
        %v9142 = vxor.u32 %v9110, 2147483648
        %v9143 = vxor.u32 %v9111, 2147483648
        %v9144 = vxor.u32 %v9112, 2147483648
        %v9145 = vxor.u32 %v9113, 2147483648
        %v9146 = vxor.u32 %v9114, 2147483648
        %v9147 = vxor.u32 %v9115, 2147483648
        %v9148 = vxor.u32 %v9116, 2147483648
        %v9149 = vxor.u32 %v9117, 2147483648
        %v9150 = vxor.u32 %v9118, 2147483648
        %v9151 = vxor.u32 %v9119, 2147483648
        %v9152 = vxor.u32 %v9120, 2147483648
        %v9153 = vxor.u32 %v9121, 2147483648
        %v9154 = vxor.u32 %v9122, 2147483648
        %v9155 = vxor.u32 %v9123, 2147483648
        %v9156 = vxor.u32 %v9124, 2147483648
        %v9157 = vxor.u32 %v9125, 2147483648
        %v9158 = vxor.u32 %v9126, 2147483648
        %v9159 = vxor.u32 %v9127, 2147483648
        %v9160 = vxor.u32 %v9128, 2147483648
        %v9161 = vmul.f32 %v9129, 1.442695
        %v9162 = vpow.pop %v9161
        %v9163 = vmul.f32 %v9130, 1.442695
        %v9164 = vpow.pop %v9163
        %v9165 = vmul.f32 %v9131, 1.442695
        %v9166 = vpow.pop %v9165
        %v9167 = vmul.f32 %v9132, 1.442695
        %v9168 = vpow.pop %v9167
        %v9169 = vmul.f32 %v9133, 1.442695
        %v9170 = vpow.pop %v9169
        %v9171 = vmul.f32 %v9134, 1.442695
        %v9172 = vpow.pop %v9171
        %v9173 = vmul.f32 %v9135, 1.442695
        %v9174 = vpow.pop %v9173
        %v9175 = vmul.f32 %v9136, 1.442695
        %v9176 = vpow.pop %v9175
        %v9177 = vmul.f32 %v9137, 1.442695
        %v9178 = vpow.pop %v9177
        %v9179 = vmul.f32 %v9138, 1.442695
        %v9180 = vpow.pop %v9179
        %v9181 = vmul.f32 %v9139, 1.442695
        %v9182 = vpow.pop %v9181
        %v9183 = vmul.f32 %v9140, 1.442695
        %v9184 = vpow.pop %v9183
        %v9185 = vmul.f32 %v9141, 1.442695
        %v9186 = vpow.pop %v9185
        %v9187 = vmul.f32 %v9142, 1.442695
        %v9188 = vpow.pop %v9187
        %v9189 = vmul.f32 %v9143, 1.442695
        %v9190 = vpow.pop %v9189
        %v9191 = vmul.f32 %v9144, 1.442695
        %v9192 = vpow.pop %v9191
        %v9193 = vmul.f32 %v9145, 1.442695
        %v9194 = vpow.pop %v9193
        %v9195 = vmul.f32 %v9146, 1.442695
        %v9196 = vpow.pop %v9195
        %v9197 = vmul.f32 %v9147, 1.442695
        %v9198 = vpow.pop %v9197
        %v9199 = vmul.f32 %v9148, 1.442695
        %v9200 = vpow.pop %v9199
        %v9201 = vmul.f32 %v9149, 1.442695
        %v9202 = vpow.pop %v9201
        %v9203 = vmul.f32 %v9150, 1.442695
        %v9204 = vpow.pop %v9203
        %v9205 = vmul.f32 %v9151, 1.442695
        %v9206 = vpow.pop %v9205
        %v9207 = vmul.f32 %v9152, 1.442695
        %v9208 = vpow.pop %v9207
        %v9209 = vmul.f32 %v9153, 1.442695
        %v9210 = vpow.pop %v9209
        %v9211 = vmul.f32 %v9154, 1.442695
        %v9212 = vpow.pop %v9211
        %v9213 = vmul.f32 %v9155, 1.442695
        %v9214 = vpow.pop %v9213
        %v9215 = vmul.f32 %v9156, 1.442695
        %v9216 = vpow.pop %v9215
        %v9217 = vmul.f32 %v9157, 1.442695
        %v9218 = vpow.pop %v9217
        %v9219 = vmul.f32 %v9158, 1.442695
        %v9220 = vpow.pop %v9219
        %v9221 = vmul.f32 %v9159, 1.442695
        %v9222 = vpow.pop %v9221
        %v9223 = vmul.f32 %v9160, 1.442695
        %v9224 = vpow.pop %v9223
        %v9225 = vadd.f32 %v9162, 1.0
        %v9226 = vadd.f32 %v9164, 1.0
        %v9227 = vadd.f32 %v9166, 1.0
        %v9228 = vadd.f32 %v9168, 1.0
        %v9229 = vadd.f32 %v9170, 1.0
        %v9230 = vadd.f32 %v9172, 1.0
        %v9231 = vadd.f32 %v9174, 1.0
        %v9232 = vadd.f32 %v9176, 1.0
        %v9233 = vadd.f32 %v9178, 1.0
        %v9234 = vadd.f32 %v9180, 1.0
        %v9235 = vadd.f32 %v9182, 1.0
        %v9236 = vadd.f32 %v9184, 1.0
        %v9237 = vadd.f32 %v9186, 1.0
        %v9238 = vadd.f32 %v9188, 1.0
        %v9239 = vadd.f32 %v9190, 1.0
        %v9240 = vadd.f32 %v9192, 1.0
        %v9241 = vadd.f32 %v9194, 1.0
        %v9242 = vadd.f32 %v9196, 1.0
        %v9243 = vadd.f32 %v9198, 1.0
        %v9244 = vadd.f32 %v9200, 1.0
        %v9245 = vadd.f32 %v9202, 1.0
        %v9246 = vadd.f32 %v9204, 1.0
        %v9247 = vadd.f32 %v9206, 1.0
        %v9248 = vadd.f32 %v9208, 1.0
        %v9249 = vadd.f32 %v9210, 1.0
        %v9250 = vadd.f32 %v9212, 1.0
        %v9251 = vadd.f32 %v9214, 1.0
        %v9252 = vadd.f32 %v9216, 1.0
        %v9253 = vadd.f32 %v9218, 1.0
        %v9254 = vadd.f32 %v9220, 1.0
        %v9255 = vadd.f32 %v9222, 1.0
        %v9256 = vadd.f32 %v9224, 1.0
        %v9257 = vrcp.pop %v9225
        %v9258 = vmul.f32 1.0, %v9257
        %v9259 = vrcp.pop %v9226
        %v9260 = vmul.f32 1.0, %v9259
        %v9261 = vrcp.pop %v9227
        %v9262 = vmul.f32 1.0, %v9261
        %v9263 = vrcp.pop %v9228
        %v9264 = vmul.f32 1.0, %v9263
        %v9265 = vrcp.pop %v9229
        %v9266 = vmul.f32 1.0, %v9265
        %v9267 = vrcp.pop %v9230
        %v9268 = vmul.f32 1.0, %v9267
        %v9269 = vrcp.pop %v9231
        %v9270 = vmul.f32 1.0, %v9269
        %v9271 = vrcp.pop %v9232
        %v9272 = vmul.f32 1.0, %v9271
        %v9273 = vrcp.pop %v9233
        %v9274 = vmul.f32 1.0, %v9273
        %v9275 = vrcp.pop %v9234
        %v9276 = vmul.f32 1.0, %v9275
        %v9277 = vrcp.pop %v9235
        %v9278 = vmul.f32 1.0, %v9277
        %v9279 = vrcp.pop %v9236
        %v9280 = vmul.f32 1.0, %v9279
        %v9281 = vrcp.pop %v9237
        %v9282 = vmul.f32 1.0, %v9281
        %v9283 = vrcp.pop %v9238
        %v9284 = vmul.f32 1.0, %v9283
        %v9285 = vrcp.pop %v9239
        %v9286 = vmul.f32 1.0, %v9285
        %v9287 = vrcp.pop %v9240
        %v9288 = vmul.f32 1.0, %v9287
        %v9289 = vrcp.pop %v9241
        %v9290 = vmul.f32 1.0, %v9289
        %v9291 = vrcp.pop %v9242
        %v9292 = vmul.f32 1.0, %v9291
        %v9293 = vrcp.pop %v9243
        %v9294 = vmul.f32 1.0, %v9293
        %v9295 = vrcp.pop %v9244
        %v9296 = vmul.f32 1.0, %v9295
        %v9297 = vrcp.pop %v9245
        %v9298 = vmul.f32 1.0, %v9297
        %v9299 = vrcp.pop %v9246
        %v9300 = vmul.f32 1.0, %v9299
        %v9301 = vrcp.pop %v9247
        %v9302 = vmul.f32 1.0, %v9301
        %v9303 = vrcp.pop %v9248
        %v9304 = vmul.f32 1.0, %v9303
        %v9305 = vrcp.pop %v9249
        %v9306 = vmul.f32 1.0, %v9305
        %v9307 = vrcp.pop %v9250
        %v9308 = vmul.f32 1.0, %v9307
        %v9309 = vrcp.pop %v9251
        %v9310 = vmul.f32 1.0, %v9309
        %v9311 = vrcp.pop %v9252
        %v9312 = vmul.f32 1.0, %v9311
        %v9313 = vrcp.pop %v9253
        %v9314 = vmul.f32 1.0, %v9313
        %v9315 = vrcp.pop %v9254
        %v9316 = vmul.f32 1.0, %v9315
        %v9317 = vrcp.pop %v9255
        %v9318 = vmul.f32 1.0, %v9317
        %v9319 = vrcp.pop %v9256
        %v9320 = vmul.f32 1.0, %v9319
        %v9321 = vmul.f32 %v9097, %v9258
        %v9322 = vmul.f32 %v9098, %v9260
        %v9323 = vmul.f32 %v9099, %v9262
        %v9324 = vmul.f32 %v9100, %v9264
        %v9325 = vmul.f32 %v9101, %v9266
        %v9326 = vmul.f32 %v9102, %v9268
        %v9327 = vmul.f32 %v9103, %v9270
        %v9328 = vmul.f32 %v9104, %v9272
        %v9329 = vmul.f32 %v9105, %v9274
        %v9330 = vmul.f32 %v9106, %v9276
        %v9331 = vmul.f32 %v9107, %v9278
        %v9332 = vmul.f32 %v9108, %v9280
        %v9333 = vmul.f32 %v9109, %v9282
        %v9334 = vmul.f32 %v9110, %v9284
        %v9335 = vmul.f32 %v9111, %v9286
        %v9336 = vmul.f32 %v9112, %v9288
        %v9337 = vmul.f32 %v9113, %v9290
        %v9338 = vmul.f32 %v9114, %v9292
        %v9339 = vmul.f32 %v9115, %v9294
        %v9340 = vmul.f32 %v9116, %v9296
        %v9341 = vmul.f32 %v9117, %v9298
        %v9342 = vmul.f32 %v9118, %v9300
        %v9343 = vmul.f32 %v9119, %v9302
        %v9344 = vmul.f32 %v9120, %v9304
        %v9345 = vmul.f32 %v9121, %v9306
        %v9346 = vmul.f32 %v9122, %v9308
        %v9347 = vmul.f32 %v9123, %v9310
        %v9348 = vmul.f32 %v9124, %v9312
        %v9349 = vmul.f32 %v9125, %v9314
        %v9350 = vmul.f32 %v9126, %v9316
        %v9351 = vmul.f32 %v9127, %v9318
        %v9352 = vmul.f32 %v9128, %v9320
        %9353 = vst.msk [vmem:[%s271] sm:$0xff] %vm318, %v9321
        %9354 = vst.msk [vmem:[%s271 + $0x8] sm:$0xff] %vm318, %v9322
        %9355 = vst.msk [vmem:[%s271 + $0x10] sm:$0xff] %vm318, %v9323
        %9356 = vst.msk [vmem:[%s271 + $0x18] sm:$0xff] %vm318, %v9324
        %9357 = vst.msk [vmem:[%s271 + $0x20] sm:$0xff] %vm318, %v9325
        %9358 = vst.msk [vmem:[%s271 + $0x28] sm:$0xff] %vm318, %v9326
        %9359 = vst.msk [vmem:[%s271 + $0x30] sm:$0xff] %vm318, %v9327
        %9360 = vst.msk [vmem:[%s271 + $0x38] sm:$0xff] %vm318, %v9328
        %9361 = vst.msk [vmem:[%s271 + $0x40] sm:$0xff] %vm318, %v9329
        %9362 = vst.msk [vmem:[%s271 + $0x48] sm:$0xff] %vm318, %v9330
        %9363 = vst.msk [vmem:[%s271 + $0x50] sm:$0xff] %vm318, %v9331
        %9364 = vst.msk [vmem:[%s271 + $0x58] sm:$0xff] %vm318, %v9332
        %9365 = vst.msk [vmem:[%s271 + $0x60] sm:$0xff] %vm318, %v9333
        %9366 = vst.msk [vmem:[%s271 + $0x68] sm:$0xff] %vm318, %v9334
        %9367 = vst.msk [vmem:[%s271 + $0x70] sm:$0xff] %vm318, %v9335
        %9368 = vst.msk [vmem:[%s271 + $0x78] sm:$0xff] %vm318, %v9336
        %9369 = vst.msk [vmem:[%s271 + $0x80] sm:$0xff] %vm318, %v9337
        %9370 = vst.msk [vmem:[%s271 + $0x88] sm:$0xff] %vm318, %v9338
        %9371 = vst.msk [vmem:[%s271 + $0x90] sm:$0xff] %vm318, %v9339
        %9372 = vst.msk [vmem:[%s271 + $0x98] sm:$0xff] %vm318, %v9340
        %9373 = vst.msk [vmem:[%s271 + $0xa0] sm:$0xff] %vm318, %v9341
        %9374 = vst.msk [vmem:[%s271 + $0xa8] sm:$0xff] %vm318, %v9342
        %9375 = vst.msk [vmem:[%s271 + $0xb0] sm:$0xff] %vm318, %v9343
        %9376 = vst.msk [vmem:[%s271 + $0xb8] sm:$0xff] %vm318, %v9344
        %9377 = vst.msk [vmem:[%s271 + $0xc0] sm:$0xff] %vm318, %v9345
        %9378 = vst.msk [vmem:[%s271 + $0xc8] sm:$0xff] %vm318, %v9346
        %9379 = vst.msk [vmem:[%s271 + $0xd0] sm:$0xff] %vm318, %v9347
        %9380 = vst.msk [vmem:[%s271 + $0xd8] sm:$0xff] %vm318, %v9348
        %9381 = vst.msk [vmem:[%s271 + $0xe0] sm:$0xff] %vm318, %v9349
        %9382 = vst.msk [vmem:[%s271 + $0xe8] sm:$0xff] %vm318, %v9350
        %9383 = vst.msk [vmem:[%s271 + $0xf0] sm:$0xff] %vm318, %v9351
        %9384 = vst.msk [vmem:[%s271 + $0xf8] sm:$0xff] %vm318, %v9352
        %s9385 = sand.u32 %s181, 1
        %s9386 = scalar_lea.sflag [#allocation4], %s9385
        %s9387 = sand.u32 %s181, 1
        %s9388 = smul.addr %s9387, 256
        %s9389 = scalar_lea.vmem [#allocation3], %s9388
        // Predicated region
        $region49: #{tpu_custom_call.1} parent=47 // pred_check
          %p9390 = pneg %p191
        $region50: #{tpu_custom_call.1} parent=47 // pred_check_branch
          %9392 = sbr.rel (%p9390) target = $region52
        $region51: #{tpu_custom_call.1} parent=47 // pred_region
          %s9394 = ssub.s32 4096, 4096
          %9395 = vsyncadd %s9386, %s9394
          %s9396 = smul.addr %s21, 32
          %s9397 = smul.addr %s9396, 128
          %s9398 = scalar_lea.hbm %s7, %s9397
          %s9399 = sshll.u32 %s9389, 4
          %s9400 = int_to_ptr.vmem [resolvable:$true] %s9399
          %9405 = dma.vmem_to_hbm [thread:$0]  %s9400, 4096, %s9398, %s9386, 128, 128, 8
        $region52: #{tpu_custom_call.1} parent=47 // pred_fallthru
          _
      $region48: #{tpu_custom_call.1} parent=5 // pred_fallthru
        _
      %p9406 = scmp.le.s32.totalorder 2, %s16
      // Predicated region
      $region53: #{tpu_custom_call.1} parent=5 // pred_check
        %p9407 = pneg %p9406
      $region54: #{tpu_custom_call.1} parent=5 // pred_check_branch
        %9409 = sbr.rel (%p9407) target = $region56
      $region55: #{tpu_custom_call.1} parent=5 // pred_region
        %s9410 = ssub.s32 %s16, 2
        // Predicated region
        $region57: #{tpu_custom_call.1} parent=55 // pred_check
          %p9411 = pneg %p197
        $region58: #{tpu_custom_call.1} parent=55 // pred_check_branch
          %9413 = sbr.rel (%p9411) target = $region60
        $region59: #{tpu_custom_call.1} parent=55 // pred_region
          %s9414 = sand.u32 %s182, 1
          %s9415 = scalar_lea.sflag [#allocation4], %s9414
          %s9416 = sand.u32 %s182, 1
          %s9417 = smul.addr %s9416, 256
          %s9418 = scalar_lea.vmem [#allocation3], %s9417
          %9419 = dma.done %s9415, 4096
        $region60: #{tpu_custom_call.1} parent=55 // pred_fallthru
          _
      $region56: #{tpu_custom_call.1} parent=5 // pred_fallthru
        _
    $region6: #{tpu_custom_call.1} parent=1 // loop_footer
      %s20 = sadd.s32 1, %s16
    $region7: #{tpu_custom_call.1} parent=1 // loop_footer_branch
      %15 = sbr.rel target = $region3
    $region8: #{tpu_custom_call.1} parent=1 // loop_exit
      _
    %9420 = vsyncpa [#allocation4], 1
    %s9421 = scalar_lea.sflag [#allocation4], 1
    %9422 = vsyncpa %s9421, 1

</llo_original>
